<compile_context>
chip_gen: v5e
topology: v5e:2x2
jax: 0.10.0
libtpu: 0.0.40
codegen_flags: <defaults>
</compile_context>

<pallas_src>
import jax
import jax.numpy as jnp
from jax import lax, random
from jax.experimental import pallas as pl
from jax.experimental.pallas import tpu as pltpu

N = 8                       # batch
H_IN = W_IN = 32            # input spatial (implied by fc = 20*14*14)
C_OUT = 20
KSZ = 5                     # conv kernel size
H_CONV = W_CONV = H_IN - KSZ + 1        # 28
H_POOL = W_POOL = H_CONV // 2           # 14
FEAT = C_OUT * H_POOL * W_POOL          # 3920
HID = 500
OUT = 26

PH_BLK = 7                  # pool-rows (fc K-blocks) per grid step
NK = H_POOL // PH_BLK       # 2 grid steps


# ------------------------------ kernel ------------------------------------- #

def _net_kernel(lhs_ref, be_ref, bo_ref, se_ref, so_ref, cb_ref,
                w1_ref, b1_ref, w2_ref, b2_ref, out_ref,
                feat_ref, acc_ref):
    """Whole network.  Grid axis = K-blocks of the first FC layer."""
    k = pl.program_id(0)
    nb = acc_ref.shape[0]                      # batch (static)

    # ---- step 0: conv + 2x2 max pool -> feature scratch (rows = ph*nb + n) ----
    @pl.when(k == 0)
    def _conv_pool():
        lhs = lhs_ref[...]                                     # (nb*32, 160) f32
        # conv at even / odd output columns via banded weight matmuls (MXU)
        ye = jnp.dot(lhs, be_ref[...], preferred_element_type=jnp.float32)
        yo = jnp.dot(lhs, bo_ref[...], preferred_element_type=jnp.float32)
        yw = jnp.maximum(ye, yo)                               # pooled over w: (nb*32, 280)
        # pool over h + reorder rows to [ph*nb + n] via 0/1 selection matmuls
        rp = jnp.maximum(
            jnp.dot(se_ref[...], yw, preferred_element_type=jnp.float32),
            jnp.dot(so_ref[...], yw, preferred_element_type=jnp.float32))
        # rp[ph*nb + n, c*14 + pw] = maxpool(conv(x))[n, c, ph, pw]  (bias below:
        # per-channel bias commutes with max, so it is added once, post-pool)
        feat_ref[...] = rp + cb_ref[...]
        acc_ref[...] = jnp.zeros_like(acc_ref)

    # ---- every step: accumulate this K-block of fc (bf16 x bf16, f32 acc) ----
    for j in range(PH_BLK):
        row0 = pl.multiple_of((k * PH_BLK + j) * nb, nb)       # sublane-aligned
        fblk = feat_ref[pl.ds(row0, nb), :].astype(jnp.bfloat16)   # (nb, 280)
        acc_ref[...] += jnp.dot(fblk, w1_ref[j],
                                preferred_element_type=jnp.float32)

    # ---- last step: bias + relu + fc1 + relu -> output (masked 26-lane store) ----
    @pl.when(k == NK - 1)
    def _head():
        h = jnp.maximum(acc_ref[...] + b1_ref[...], 0.0)       # (nb, 500)
        o = jnp.dot(h, w2_ref[...], preferred_element_type=jnp.float32)
        out_ref[...] = jnp.maximum(o + b2_ref[...], 0.0)


# ------------------------- wrapper-side operand prep ------------------------ #

def _prep_operands(x, params):
    """Pure layout plumbing (XLA): im2col slab, banded conv matrices,
    pool-selection matrices, bias rows and the permuted bf16 fc weight."""
    conv_w, conv_b, fc_w, fc_b, fc1_w, fc1_b = params
    n = x.shape[0]

    # im2col over kh: lhs[n*32 + h, kh*32 + w] = x[n, 0, h + kh, w]
    x2 = x[:, 0].reshape(n * H_IN, W_IN)
    xp = jnp.pad(x2, ((0, KSZ - 1), (0, 0)))
    lhs = jnp.concatenate(
        [xp[kh:kh + n * H_IN, :] for kh in range(KSZ)], axis=1)   # (n*32, 160)

    # banded conv matrices: B_dw[kh*32 + w_in, c*14 + pw] = W[c,0,kh, w_in-2pw-dw]
    w_t = jnp.transpose(conv_w[:, 0], (1, 2, 0))                  # (kh, kw, c)
    w_in = jnp.arange(W_IN)
    pw = jnp.arange(W_POOL)
    bmats = []
    for dw in (0, 1):
        kw = w_in[:, None] - (2 * pw[None, :] + dw)               # (32, 14)
        valid = (kw >= 0) & (kw < KSZ)
        b4 = w_t[:, jnp.clip(kw, 0, KSZ - 1), :]                  # (5, 32, 14, 20)
        b4 = jnp.where(valid[None, :, :, None], b4, 0.0)
        b4 = jnp.transpose(b4, (0, 1, 3, 2))                      # (5, 32, 20, 14)
        bmats.append(b4.reshape(KSZ * W_IN, C_OUT * W_POOL))      # (160, 280)
    be, bo = bmats

    # 0/1 row-pool selection: out row ph*n + i  <-  conv row i*32 + 2ph (+1)
    ridx = jnp.arange(H_POOL * n)
    ph_i, s_i = ridx // n, ridx % n
    cols = jnp.arange(n * H_IN)
    sel_e = (cols[None, :] == (s_i * H_IN + 2 * ph_i)[:, None]).astype(jnp.float32)
    sel_o = (cols[None, :] == (s_i * H_IN + 2 * ph_i + 1)[:, None]).astype(jnp.float32)

    # conv bias broadcast over the (c, pw) feature columns
    cb = jnp.repeat(conv_b, W_POOL)[None, :]                      # (1, 280)

    # fc weight: permute rows from torch flatten order [c, ph, pw] to the
    # kernel's feature order [ph, c, pw]; reshape to (14, 280, 500); cast bf16.
    w1r = fc_w.reshape(C_OUT, H_POOL, W_POOL, HID)
    w1r = jnp.transpose(w1r, (1, 0, 2, 3)).reshape(H_POOL, C_OUT * W_POOL, HID)
    w1r = w1r.astype(jnp.bfloat16)

    return (lhs, be, bo, sel_e, sel_o, cb, w1r,
            fc_b[None, :], fc1_w, fc1_b[None, :])


@jax.jit
def net_forward(x, params):
    """x: (N, 1, 32, 32) float32 NCHW. Returns (N, 26)."""
    n = x.shape[0]
    ops = _prep_operands(x, params)

    return pl.pallas_call(
        _net_kernel,
        out_shape=jax.ShapeDtypeStruct((n, OUT), jnp.float32),
        grid_spec=pltpu.PrefetchScalarGridSpec(
            num_scalar_prefetch=0,
            grid=(NK,),
            in_specs=[
                pl.BlockSpec((n * H_IN, KSZ * W_IN), lambda k: (0, 0)),         # lhs
                pl.BlockSpec((KSZ * W_IN, C_OUT * W_POOL), lambda k: (0, 0)),   # B_even
                pl.BlockSpec((KSZ * W_IN, C_OUT * W_POOL), lambda k: (0, 0)),   # B_odd
                pl.BlockSpec((H_POOL * n, n * H_IN), lambda k: (0, 0)),         # sel_even
                pl.BlockSpec((H_POOL * n, n * H_IN), lambda k: (0, 0)),         # sel_odd
                pl.BlockSpec((1, C_OUT * W_POOL), lambda k: (0, 0)),            # conv bias row
                pl.BlockSpec((PH_BLK, C_OUT * W_POOL, HID), lambda k: (k, 0, 0)),  # fc_w (bf16, streamed)
                pl.BlockSpec((1, HID), lambda k: (0, 0)),                       # fc_b
                pl.BlockSpec((HID, OUT), lambda k: (0, 0)),                     # fc1_w
                pl.BlockSpec((1, OUT), lambda k: (0, 0)),                       # fc1_b
            ],
            out_specs=pl.BlockSpec((n, OUT), lambda k: (0, 0)),
            scratch_shapes=[
                pltpu.VMEM((H_POOL * n, C_OUT * W_POOL), jnp.float32),  # pooled features
                pltpu.VMEM((n, HID), jnp.float32),                      # fc accumulator
            ]),
        compiler_params=pltpu.CompilerParams(
            dimension_semantics=("arbitrary",)),
    )(*ops)


# ------------------------------ reference ----------------------------------- #

def net_reference(x, params):
    conv_w, conv_b, fc_w, fc_b, fc1_w, fc1_b = params
    y = lax.conv_general_dilated(
        x, conv_w, window_strides=(1, 1), padding="VALID",
        dimension_numbers=("NCHW", "OIHW", "NCHW"))
    y = y + conv_b.reshape(1, C_OUT, 1, 1)
    y = lax.reduce_window(y, -jnp.inf, lax.max,
                          (1, 1, 2, 2), (1, 1, 2, 2), "VALID")
    f = y.reshape(x.shape[0], -1)
    h = jnp.maximum(
        jnp.dot(f, fc_w, precision=lax.Precision.HIGHEST) + fc_b, 0.0)
    o = jnp.maximum(
        jnp.dot(h, fc1_w, precision=lax.Precision.HIGHEST) + fc1_b, 0.0)
    return o


# -------------------------------- main --------------------------------------- #

if __name__ == "__main__":
    key = random.PRNGKey(0)
    ks = random.split(key, 7)
    # deterministic synthetic parameters (shapes from Net.__init__; linear
    # weights stored pre-transposed as (in, out))
    conv_w = random.normal(ks[0], (C_OUT, 1, KSZ, KSZ), jnp.float32) * 0.1
    conv_b = random.normal(ks[1], (C_OUT,), jnp.float32) * 0.1
    fc_w = random.normal(ks[2], (FEAT, HID), jnp.float32) * 0.02
    fc_b = random.normal(ks[3], (HID,), jnp.float32) * 0.02
    fc1_w = random.normal(ks[4], (HID, OUT), jnp.float32) * 0.05
    fc1_b = random.normal(ks[5], (OUT,), jnp.float32) * 0.05
    params = (conv_w, conv_b, fc_w, fc_b, fc1_w, fc1_b)

    x = random.normal(ks[6], (N, 1, H_IN, W_IN), jnp.float32)

    out = jax.block_until_ready(net_forward(x, params))
    ref = jax.block_until_ready(net_reference(x, params))

    assert out.shape == (N, OUT), out.shape
    max_err = float(jnp.max(jnp.abs(out - ref)))
    # tolerance covers the deliberate bf16 cast of the 3920x500 fc weight
    # (f32 accumulation), per the performance review.
    assert jnp.allclose(out, ref, atol=3e-2, rtol=3e-2), f"max_err={max_err}"
    print("KERNEL_OK")
</pallas_src>

<mosaic_0001>
module attributes {stable_mosaic.version = 11 : i64} {
  func.func @_net_kernel(%arg0: i32, %arg1: memref<256x160xf32, #tpu.memory_space<vmem>>, %arg2: memref<160x280xf32, #tpu.memory_space<vmem>>, %arg3: memref<160x280xf32, #tpu.memory_space<vmem>>, %arg4: memref<112x256xf32, #tpu.memory_space<vmem>>, %arg5: memref<112x256xf32, #tpu.memory_space<vmem>>, %arg6: memref<1x280xf32, #tpu.memory_space<vmem>>, %arg7: memref<7x280x500xbf16, #tpu.memory_space<vmem>>, %arg8: memref<1x500xf32, #tpu.memory_space<vmem>>, %arg9: memref<500x26xf32, #tpu.memory_space<vmem>>, %arg10: memref<1x26xf32, #tpu.memory_space<vmem>>, %arg11: memref<8x26xf32, #tpu.memory_space<vmem>>, %arg12: memref<112x280xf32, #tpu.memory_space<vmem>>, %arg13: memref<8x500xf32, #tpu.memory_space<vmem>>) attributes {dimension_semantics = [#tpu.dimension_semantics<arbitrary>], iteration_bounds = array<i64: 2>, scalar_prefetch = 0 : i64, scratch_operands = 2 : i64, tpu.core_type = #tpu.core_type<tc>, window_params = [{pipeline_mode = #tpu.pipeline_mode<synchronous>, transform_indices = @transform_0, window_bounds = array<i64: 256, 160>}, {pipeline_mode = #tpu.pipeline_mode<synchronous>, transform_indices = @transform_1, window_bounds = array<i64: 160, 280>}, {pipeline_mode = #tpu.pipeline_mode<synchronous>, transform_indices = @transform_2, window_bounds = array<i64: 160, 280>}, {pipeline_mode = #tpu.pipeline_mode<synchronous>, transform_indices = @transform_3, window_bounds = array<i64: 112, 256>}, {pipeline_mode = #tpu.pipeline_mode<synchronous>, transform_indices = @transform_4, window_bounds = array<i64: 112, 256>}, {pipeline_mode = #tpu.pipeline_mode<synchronous>, transform_indices = @transform_5, window_bounds = array<i64: 1, 280>}, {transform_indices = @transform_6, window_bounds = array<i64: 7, 280, 500>}, {pipeline_mode = #tpu.pipeline_mode<synchronous>, transform_indices = @transform_7, window_bounds = array<i64: 1, 500>}, {pipeline_mode = #tpu.pipeline_mode<synchronous>, transform_indices = @transform_8, window_bounds = array<i64: 500, 26>}, {pipeline_mode = #tpu.pipeline_mode<synchronous>, transform_indices = @transform_9, window_bounds = array<i64: 1, 26>}, {pipeline_mode = #tpu.pipeline_mode<synchronous>, transform_indices = @transform_10, window_bounds = array<i64: 8, 26>}]} {
    %c0_i32 = arith.constant 0 : i32
    %0 = arith.cmpi eq, %arg0, %c0_i32 : i32
    %1 = arith.extui %0 : i1 to i32
    %c0_i32_0 = arith.constant 0 : i32
    %2 = arith.cmpi ne, %1, %c0_i32_0 : i32
    scf.if %2 {
      %c0_71 = arith.constant 0 : index
      %c0_72 = arith.constant 0 : index
      %97 = vector.load %arg1[%c0_71, %c0_72] : memref<256x160xf32, #tpu.memory_space<vmem>>, vector<256x160xf32>
      %c0_73 = arith.constant 0 : index
      %c0_74 = arith.constant 0 : index
      %98 = vector.load %arg2[%c0_73, %c0_74] : memref<160x280xf32, #tpu.memory_space<vmem>>, vector<160x280xf32>
      %cst_75 = arith.constant dense<0.000000e+00> : vector<256x280xf32>
      %99 = tpu.matmul %97, %98, %cst_75 {dimension_numbers = #tpu.dot_dimension_numbers<[1], [0], [0], [1], [0, 0, 1, 1], [], []>} : vector<256x160xf32>, vector<160x280xf32>, vector<256x280xf32> -> vector<256x280xf32>
      %c0_76 = arith.constant 0 : index
      %c0_77 = arith.constant 0 : index
      %100 = vector.load %arg3[%c0_76, %c0_77] : memref<160x280xf32, #tpu.memory_space<vmem>>, vector<160x280xf32>
      %cst_78 = arith.constant dense<0.000000e+00> : vector<256x280xf32>
      %101 = tpu.matmul %97, %100, %cst_78 {dimension_numbers = #tpu.dot_dimension_numbers<[1], [0], [0], [1], [0, 0, 1, 1], [], []>} : vector<256x160xf32>, vector<160x280xf32>, vector<256x280xf32> -> vector<256x280xf32>
      %102 = arith.maximumf %99, %101 : vector<256x280xf32>
      %c0_79 = arith.constant 0 : index
      %c0_80 = arith.constant 0 : index
      %103 = vector.load %arg4[%c0_79, %c0_80] : memref<112x256xf32, #tpu.memory_space<vmem>>, vector<112x256xf32>
      %cst_81 = arith.constant dense<0.000000e+00> : vector<112x280xf32>
      %104 = tpu.matmul %103, %102, %cst_81 {dimension_numbers = #tpu.dot_dimension_numbers<[1], [0], [0], [1], [0, 0, 1, 1], [], []>} : vector<112x256xf32>, vector<256x280xf32>, vector<112x280xf32> -> vector<112x280xf32>
      %c0_82 = arith.constant 0 : index
      %c0_83 = arith.constant 0 : index
      %105 = vector.load %arg5[%c0_82, %c0_83] : memref<112x256xf32, #tpu.memory_space<vmem>>, vector<112x256xf32>
      %cst_84 = arith.constant dense<0.000000e+00> : vector<112x280xf32>
      %106 = tpu.matmul %105, %102, %cst_84 {dimension_numbers = #tpu.dot_dimension_numbers<[1], [0], [0], [1], [0, 0, 1, 1], [], []>} : vector<112x256xf32>, vector<256x280xf32>, vector<112x280xf32> -> vector<112x280xf32>
      %107 = arith.maximumf %104, %106 : vector<112x280xf32>
      %c0_85 = arith.constant 0 : index
      %c0_86 = arith.constant 0 : index
      %108 = vector.load %arg6[%c0_85, %c0_86] : memref<1x280xf32, #tpu.memory_space<vmem>>, vector<1x280xf32>
      %109 = vector.broadcast %108 : vector<1x280xf32> to vector<112x280xf32>
      %110 = arith.addf %107, %109 : vector<112x280xf32>
      %c0_87 = arith.constant 0 : index
      %c0_88 = arith.constant 0 : index
      %111 = vector.load %arg12[%c0_87, %c0_88] : memref<112x280xf32, #tpu.memory_space<vmem>>, vector<112x280xf32>
      tpu.vector_store %arg12[%c0_87, %c0_88], %110 {strides = array<i32>} : memref<112x280xf32, #tpu.memory_space<vmem>>, vector<112x280xf32>,
      %cst_89 = arith.constant 0.000000e+00 : f32
      %112 = vector.broadcast %cst_89 : f32 to vector<8x500xf32>
      %c0_90 = arith.constant 0 : index
      %c0_91 = arith.constant 0 : index
      %113 = vector.load %arg13[%c0_90, %c0_91] : memref<8x500xf32, #tpu.memory_space<vmem>>, vector<8x500xf32>
      tpu.vector_store %arg13[%c0_90, %c0_91], %112 {strides = array<i32>} : memref<8x500xf32, #tpu.memory_space<vmem>>, vector<8x500xf32>,
    } else {
    }
    %c7_i32 = arith.constant 7 : i32
    %3 = arith.muli %arg0, %c7_i32 : i32
    %c0_i32_1 = arith.constant 0 : i32
    %4 = arith.addi %3, %c0_i32_1 : i32
    %c8_i32 = arith.constant 8 : i32
    %5 = arith.muli %4, %c8_i32 : i32
    %6 = tpu.assume_multiple %5, 8 : i32
    %7 = arith.index_cast %6 : i32 to index
    %c0 = arith.constant 0 : index
    %8 = vector.load %arg12[%7, %c0] : memref<112x280xf32, #tpu.memory_space<vmem>>, vector<8x280xf32>
    %9 = arith.truncf %8 : vector<8x280xf32> to vector<8x280xbf16>
    %c0_2 = arith.constant 0 : index
    %c0_3 = arith.constant 0 : index
    %10 = vector.load %arg13[%c0_2, %c0_3] : memref<8x500xf32, #tpu.memory_space<vmem>>, vector<8x500xf32>
    %c0_4 = arith.constant 0 : index
    %c0_5 = arith.constant 0 : index
    %c0_6 = arith.constant 0 : index
    %11 = vector.load %arg7[%c0_4, %c0_5, %c0_6] : memref<7x280x500xbf16, #tpu.memory_space<vmem>>, vector<1x280x500xbf16>
    %12 = vector.shape_cast %11 : vector<1x280x500xbf16> to vector<280x500xbf16>
    %cst = arith.constant dense<0.000000e+00> : vector<8x500xf32>
    %13 = tpu.matmul %9, %12, %cst {dimension_numbers = #tpu.dot_dimension_numbers<[1], [0], [0], [1], [0, 0, 1, 1], [], []>} : vector<8x280xbf16>, vector<280x500xbf16>, vector<8x500xf32> -> vector<8x500xf32>
    %14 = arith.addf %10, %13 : vector<8x500xf32>
    %c0_7 = arith.constant 0 : index
    %c0_8 = arith.constant 0 : index
    %15 = vector.load %arg13[%c0_7, %c0_8] : memref<8x500xf32, #tpu.memory_space<vmem>>, vector<8x500xf32>
    tpu.vector_store %arg13[%c0_7, %c0_8], %14 {strides = array<i32>} : memref<8x500xf32, #tpu.memory_space<vmem>>, vector<8x500xf32>,
    %c7_i32_9 = arith.constant 7 : i32
    %16 = arith.muli %arg0, %c7_i32_9 : i32
    %c1_i32 = arith.constant 1 : i32
    %17 = arith.addi %16, %c1_i32 : i32
    %c8_i32_10 = arith.constant 8 : i32
    %18 = arith.muli %17, %c8_i32_10 : i32
    %19 = tpu.assume_multiple %18, 8 : i32
    %20 = arith.index_cast %19 : i32 to index
    %c0_11 = arith.constant 0 : index
    %21 = vector.load %arg12[%20, %c0_11] : memref<112x280xf32, #tpu.memory_space<vmem>>, vector<8x280xf32>
    %22 = arith.truncf %21 : vector<8x280xf32> to vector<8x280xbf16>
    %c0_12 = arith.constant 0 : index
    %c0_13 = arith.constant 0 : index
    %23 = vector.load %arg13[%c0_12, %c0_13] : memref<8x500xf32, #tpu.memory_space<vmem>>, vector<8x500xf32>
    %c1 = arith.constant 1 : index
    %c0_14 = arith.constant 0 : index
    %c0_15 = arith.constant 0 : index
    %24 = vector.load %arg7[%c1, %c0_14, %c0_15] : memref<7x280x500xbf16, #tpu.memory_space<vmem>>, vector<1x280x500xbf16>
    %25 = vector.shape_cast %24 : vector<1x280x500xbf16> to vector<280x500xbf16>
    %cst_16 = arith.constant dense<0.000000e+00> : vector<8x500xf32>
    %26 = tpu.matmul %22, %25, %cst_16 {dimension_numbers = #tpu.dot_dimension_numbers<[1], [0], [0], [1], [0, 0, 1, 1], [], []>} : vector<8x280xbf16>, vector<280x500xbf16>, vector<8x500xf32> -> vector<8x500xf32>
    %27 = arith.addf %23, %26 : vector<8x500xf32>
    %c0_17 = arith.constant 0 : index
    %c0_18 = arith.constant 0 : index
    %28 = vector.load %arg13[%c0_17, %c0_18] : memref<8x500xf32, #tpu.memory_space<vmem>>, vector<8x500xf32>
    tpu.vector_store %arg13[%c0_17, %c0_18], %27 {strides = array<i32>} : memref<8x500xf32, #tpu.memory_space<vmem>>, vector<8x500xf32>,
    %c7_i32_19 = arith.constant 7 : i32
    %29 = arith.muli %arg0, %c7_i32_19 : i32
    %c2_i32 = arith.constant 2 : i32
    %30 = arith.addi %29, %c2_i32 : i32
    %c8_i32_20 = arith.constant 8 : i32
    %31 = arith.muli %30, %c8_i32_20 : i32
    %32 = tpu.assume_multiple %31, 8 : i32
    %33 = arith.index_cast %32 : i32 to index
    %c0_21 = arith.constant 0 : index
    %34 = vector.load %arg12[%33, %c0_21] : memref<112x280xf32, #tpu.memory_space<vmem>>, vector<8x280xf32>
    %35 = arith.truncf %34 : vector<8x280xf32> to vector<8x280xbf16>
    %c0_22 = arith.constant 0 : index
    %c0_23 = arith.constant 0 : index
    %36 = vector.load %arg13[%c0_22, %c0_23] : memref<8x500xf32, #tpu.memory_space<vmem>>, vector<8x500xf32>
    %c2 = arith.constant 2 : index
    %c0_24 = arith.constant 0 : index
    %c0_25 = arith.constant 0 : index
    %37 = vector.load %arg7[%c2, %c0_24, %c0_25] : memref<7x280x500xbf16, #tpu.memory_space<vmem>>, vector<1x280x500xbf16>
    %38 = vector.shape_cast %37 : vector<1x280x500xbf16> to vector<280x500xbf16>
    %cst_26 = arith.constant dense<0.000000e+00> : vector<8x500xf32>
    %39 = tpu.matmul %35, %38, %cst_26 {dimension_numbers = #tpu.dot_dimension_numbers<[1], [0], [0], [1], [0, 0, 1, 1], [], []>} : vector<8x280xbf16>, vector<280x500xbf16>, vector<8x500xf32> -> vector<8x500xf32>
    %40 = arith.addf %36, %39 : vector<8x500xf32>
    %c0_27 = arith.constant 0 : index
    %c0_28 = arith.constant 0 : index
    %41 = vector.load %arg13[%c0_27, %c0_28] : memref<8x500xf32, #tpu.memory_space<vmem>>, vector<8x500xf32>
    tpu.vector_store %arg13[%c0_27, %c0_28], %40 {strides = array<i32>} : memref<8x500xf32, #tpu.memory_space<vmem>>, vector<8x500xf32>,
    %c7_i32_29 = arith.constant 7 : i32
    %42 = arith.muli %arg0, %c7_i32_29 : i32
    %c3_i32 = arith.constant 3 : i32
    %43 = arith.addi %42, %c3_i32 : i32
    %c8_i32_30 = arith.constant 8 : i32
    %44 = arith.muli %43, %c8_i32_30 : i32
    %45 = tpu.assume_multiple %44, 8 : i32
    %46 = arith.index_cast %45 : i32 to index
    %c0_31 = arith.constant 0 : index
    %47 = vector.load %arg12[%46, %c0_31] : memref<112x280xf32, #tpu.memory_space<vmem>>, vector<8x280xf32>
    %48 = arith.truncf %47 : vector<8x280xf32> to vector<8x280xbf16>
    %c0_32 = arith.constant 0 : index
    %c0_33 = arith.constant 0 : index
    %49 = vector.load %arg13[%c0_32, %c0_33] : memref<8x500xf32, #tpu.memory_space<vmem>>, vector<8x500xf32>
    %c3 = arith.constant 3 : index
    %c0_34 = arith.constant 0 : index
    %c0_35 = arith.constant 0 : index
    %50 = vector.load %arg7[%c3, %c0_34, %c0_35] : memref<7x280x500xbf16, #tpu.memory_space<vmem>>, vector<1x280x500xbf16>
    %51 = vector.shape_cast %50 : vector<1x280x500xbf16> to vector<280x500xbf16>
    %cst_36 = arith.constant dense<0.000000e+00> : vector<8x500xf32>
    %52 = tpu.matmul %48, %51, %cst_36 {dimension_numbers = #tpu.dot_dimension_numbers<[1], [0], [0], [1], [0, 0, 1, 1], [], []>} : vector<8x280xbf16>, vector<280x500xbf16>, vector<8x500xf32> -> vector<8x500xf32>
    %53 = arith.addf %49, %52 : vector<8x500xf32>
    %c0_37 = arith.constant 0 : index
    %c0_38 = arith.constant 0 : index
    %54 = vector.load %arg13[%c0_37, %c0_38] : memref<8x500xf32, #tpu.memory_space<vmem>>, vector<8x500xf32>
    tpu.vector_store %arg13[%c0_37, %c0_38], %53 {strides = array<i32>} : memref<8x500xf32, #tpu.memory_space<vmem>>, vector<8x500xf32>,
    %c7_i32_39 = arith.constant 7 : i32
    %55 = arith.muli %arg0, %c7_i32_39 : i32
    %c4_i32 = arith.constant 4 : i32
    %56 = arith.addi %55, %c4_i32 : i32
    %c8_i32_40 = arith.constant 8 : i32
    %57 = arith.muli %56, %c8_i32_40 : i32
    %58 = tpu.assume_multiple %57, 8 : i32
    %59 = arith.index_cast %58 : i32 to index
    %c0_41 = arith.constant 0 : index
    %60 = vector.load %arg12[%59, %c0_41] : memref<112x280xf32, #tpu.memory_space<vmem>>, vector<8x280xf32>
    %61 = arith.truncf %60 : vector<8x280xf32> to vector<8x280xbf16>
    %c0_42 = arith.constant 0 : index
    %c0_43 = arith.constant 0 : index
    %62 = vector.load %arg13[%c0_42, %c0_43] : memref<8x500xf32, #tpu.memory_space<vmem>>, vector<8x500xf32>
    %c4 = arith.constant 4 : index
    %c0_44 = arith.constant 0 : index
    %c0_45 = arith.constant 0 : index
    %63 = vector.load %arg7[%c4, %c0_44, %c0_45] : memref<7x280x500xbf16, #tpu.memory_space<vmem>>, vector<1x280x500xbf16>
    %64 = vector.shape_cast %63 : vector<1x280x500xbf16> to vector<280x500xbf16>
    %cst_46 = arith.constant dense<0.000000e+00> : vector<8x500xf32>
    %65 = tpu.matmul %61, %64, %cst_46 {dimension_numbers = #tpu.dot_dimension_numbers<[1], [0], [0], [1], [0, 0, 1, 1], [], []>} : vector<8x280xbf16>, vector<280x500xbf16>, vector<8x500xf32> -> vector<8x500xf32>
    %66 = arith.addf %62, %65 : vector<8x500xf32>
    %c0_47 = arith.constant 0 : index
    %c0_48 = arith.constant 0 : index
    %67 = vector.load %arg13[%c0_47, %c0_48] : memref<8x500xf32, #tpu.memory_space<vmem>>, vector<8x500xf32>
    tpu.vector_store %arg13[%c0_47, %c0_48], %66 {strides = array<i32>} : memref<8x500xf32, #tpu.memory_space<vmem>>, vector<8x500xf32>,
    %c7_i32_49 = arith.constant 7 : i32
    %68 = arith.muli %arg0, %c7_i32_49 : i32
    %c5_i32 = arith.constant 5 : i32
    %69 = arith.addi %68, %c5_i32 : i32
    %c8_i32_50 = arith.constant 8 : i32
    %70 = arith.muli %69, %c8_i32_50 : i32
    %71 = tpu.assume_multiple %70, 8 : i32
    %72 = arith.index_cast %71 : i32 to index
    %c0_51 = arith.constant 0 : index
    %73 = vector.load %arg12[%72, %c0_51] : memref<112x280xf32, #tpu.memory_space<vmem>>, vector<8x280xf32>
    %74 = arith.truncf %73 : vector<8x280xf32> to vector<8x280xbf16>
    %c0_52 = arith.constant 0 : index
    %c0_53 = arith.constant 0 : index
    %75 = vector.load %arg13[%c0_52, %c0_53] : memref<8x500xf32, #tpu.memory_space<vmem>>, vector<8x500xf32>
    %c5 = arith.constant 5 : index
    %c0_54 = arith.constant 0 : index
    %c0_55 = arith.constant 0 : index
    %76 = vector.load %arg7[%c5, %c0_54, %c0_55] : memref<7x280x500xbf16, #tpu.memory_space<vmem>>, vector<1x280x500xbf16>
    %77 = vector.shape_cast %76 : vector<1x280x500xbf16> to vector<280x500xbf16>
    %cst_56 = arith.constant dense<0.000000e+00> : vector<8x500xf32>
    %78 = tpu.matmul %74, %77, %cst_56 {dimension_numbers = #tpu.dot_dimension_numbers<[1], [0], [0], [1], [0, 0, 1, 1], [], []>} : vector<8x280xbf16>, vector<280x500xbf16>, vector<8x500xf32> -> vector<8x500xf32>
    %79 = arith.addf %75, %78 : vector<8x500xf32>
    %c0_57 = arith.constant 0 : index
    %c0_58 = arith.constant 0 : index
    %80 = vector.load %arg13[%c0_57, %c0_58] : memref<8x500xf32, #tpu.memory_space<vmem>>, vector<8x500xf32>
    tpu.vector_store %arg13[%c0_57, %c0_58], %79 {strides = array<i32>} : memref<8x500xf32, #tpu.memory_space<vmem>>, vector<8x500xf32>,
    %c7_i32_59 = arith.constant 7 : i32
    %81 = arith.muli %arg0, %c7_i32_59 : i32
    %c6_i32 = arith.constant 6 : i32
    %82 = arith.addi %81, %c6_i32 : i32
    %c8_i32_60 = arith.constant 8 : i32
    %83 = arith.muli %82, %c8_i32_60 : i32
    %84 = tpu.assume_multiple %83, 8 : i32
    %85 = arith.index_cast %84 : i32 to index
    %c0_61 = arith.constant 0 : index
    %86 = vector.load %arg12[%85, %c0_61] : memref<112x280xf32, #tpu.memory_space<vmem>>, vector<8x280xf32>
    %87 = arith.truncf %86 : vector<8x280xf32> to vector<8x280xbf16>
    %c0_62 = arith.constant 0 : index
    %c0_63 = arith.constant 0 : index
    %88 = vector.load %arg13[%c0_62, %c0_63] : memref<8x500xf32, #tpu.memory_space<vmem>>, vector<8x500xf32>
    %c6 = arith.constant 6 : index
    %c0_64 = arith.constant 0 : index
    %c0_65 = arith.constant 0 : index
    %89 = vector.load %arg7[%c6, %c0_64, %c0_65] : memref<7x280x500xbf16, #tpu.memory_space<vmem>>, vector<1x280x500xbf16>
    %90 = vector.shape_cast %89 : vector<1x280x500xbf16> to vector<280x500xbf16>
    %cst_66 = arith.constant dense<0.000000e+00> : vector<8x500xf32>
    %91 = tpu.matmul %87, %90, %cst_66 {dimension_numbers = #tpu.dot_dimension_numbers<[1], [0], [0], [1], [0, 0, 1, 1], [], []>} : vector<8x280xbf16>, vector<280x500xbf16>, vector<8x500xf32> -> vector<8x500xf32>
    %92 = arith.addf %88, %91 : vector<8x500xf32>
    %c0_67 = arith.constant 0 : index
    %c0_68 = arith.constant 0 : index
    %93 = vector.load %arg13[%c0_67, %c0_68] : memref<8x500xf32, #tpu.memory_space<vmem>>, vector<8x500xf32>
    tpu.vector_store %arg13[%c0_67, %c0_68], %92 {strides = array<i32>} : memref<8x500xf32, #tpu.memory_space<vmem>>, vector<8x500xf32>,
    %c1_i32_69 = arith.constant 1 : i32
    %94 = arith.cmpi eq, %arg0, %c1_i32_69 : i32
    %95 = arith.extui %94 : i1 to i32
    %c0_i32_70 = arith.constant 0 : i32
    %96 = arith.cmpi ne, %95, %c0_i32_70 : i32
    scf.if %96 {
      %c0_71 = arith.constant 0 : index
      %c0_72 = arith.constant 0 : index
      %97 = vector.load %arg13[%c0_71, %c0_72] : memref<8x500xf32, #tpu.memory_space<vmem>>, vector<8x500xf32>
      %c0_73 = arith.constant 0 : index
      %c0_74 = arith.constant 0 : index
      %98 = vector.load %arg8[%c0_73, %c0_74] : memref<1x500xf32, #tpu.memory_space<vmem>>, vector<1x500xf32>
      %99 = vector.broadcast %98 : vector<1x500xf32> to vector<8x500xf32>
      %100 = arith.addf %97, %99 : vector<8x500xf32>
      %cst_75 = arith.constant 0.000000e+00 : f32
      %101 = vector.broadcast %cst_75 : f32 to vector<8x500xf32>
      %102 = arith.maximumf %100, %101 : vector<8x500xf32>
      %c0_76 = arith.constant 0 : index
      %c0_77 = arith.constant 0 : index
      %103 = vector.load %arg9[%c0_76, %c0_77] : memref<500x26xf32, #tpu.memory_space<vmem>>, vector<500x26xf32>
      %cst_78 = arith.constant dense<0.000000e+00> : vector<8x26xf32>
      %104 = tpu.matmul %102, %103, %cst_78 {dimension_numbers = #tpu.dot_dimension_numbers<[1], [0], [0], [1], [0, 0, 1, 1], [], []>} : vector<8x500xf32>, vector<500x26xf32>, vector<8x26xf32> -> vector<8x26xf32>
      %c0_79 = arith.constant 0 : index
      %c0_80 = arith.constant 0 : index
      %105 = vector.load %arg10[%c0_79, %c0_80] : memref<1x26xf32, #tpu.memory_space<vmem>>, vector<1x26xf32>
      %106 = vector.broadcast %105 : vector<1x26xf32> to vector<8x26xf32>
      %107 = arith.addf %104, %106 : vector<8x26xf32>
      %cst_81 = arith.constant 0.000000e+00 : f32
      %108 = vector.broadcast %cst_81 : f32 to vector<8x26xf32>
      %109 = arith.maximumf %107, %108 : vector<8x26xf32>
      %c0_82 = arith.constant 0 : index
      %c0_83 = arith.constant 0 : index
      %110 = vector.load %arg11[%c0_82, %c0_83] : memref<8x26xf32, #tpu.memory_space<vmem>>, vector<8x26xf32>
      tpu.vector_store %arg11[%c0_82, %c0_83], %109 {strides = array<i32>} : memref<8x26xf32, #tpu.memory_space<vmem>>, vector<8x26xf32>,
    } else {
    }
    return
  }
  func.func @transform_0(%arg0: i32) -> (i32, i32) {
    %c0_i32 = arith.constant 0 : i32
    %c0_i32_0 = arith.constant 0 : i32
    %c0_i32_1 = arith.constant 0 : i32
    return %c0_i32, %c0_i32_0 : i32, i32
  }
  func.func @transform_1(%arg0: i32) -> (i32, i32) {
    %c0_i32 = arith.constant 0 : i32
    %c0_i32_0 = arith.constant 0 : i32
    %c0_i32_1 = arith.constant 0 : i32
    return %c0_i32, %c0_i32_0 : i32, i32
  }
  func.func @transform_2(%arg0: i32) -> (i32, i32) {
    %c0_i32 = arith.constant 0 : i32
    %c0_i32_0 = arith.constant 0 : i32
    %c0_i32_1 = arith.constant 0 : i32
    return %c0_i32, %c0_i32_0 : i32, i32
  }
  func.func @transform_3(%arg0: i32) -> (i32, i32) {
    %c0_i32 = arith.constant 0 : i32
    %c0_i32_0 = arith.constant 0 : i32
    %c0_i32_1 = arith.constant 0 : i32
    return %c0_i32, %c0_i32_0 : i32, i32
  }
  func.func @transform_4(%arg0: i32) -> (i32, i32) {
    %c0_i32 = arith.constant 0 : i32
    %c0_i32_0 = arith.constant 0 : i32
    %c0_i32_1 = arith.constant 0 : i32
    return %c0_i32, %c0_i32_0 : i32, i32
  }
  func.func @transform_5(%arg0: i32) -> (i32, i32) {
    %c0_i32 = arith.constant 0 : i32
    %c0_i32_0 = arith.constant 0 : i32
    %c0_i32_1 = arith.constant 0 : i32
    return %c0_i32, %c0_i32_0 : i32, i32
  }
  func.func @transform_6(%arg0: i32) -> (i32, i32, i32) {
    %c0_i32 = arith.constant 0 : i32
    %c0_i32_0 = arith.constant 0 : i32
    %c0_i32_1 = arith.constant 0 : i32
    return %arg0, %c0_i32, %c0_i32_0 : i32, i32, i32
  }
  func.func @transform_7(%arg0: i32) -> (i32, i32) {
    %c0_i32 = arith.constant 0 : i32
    %c0_i32_0 = arith.constant 0 : i32
    %c0_i32_1 = arith.constant 0 : i32
    return %c0_i32, %c0_i32_0 : i32, i32
  }
  func.func @transform_8(%arg0: i32) -> (i32, i32) {
    %c0_i32 = arith.constant 0 : i32
    %c0_i32_0 = arith.constant 0 : i32
    %c0_i32_1 = arith.constant 0 : i32
    return %c0_i32, %c0_i32_0 : i32, i32
  }
  func.func @transform_9(%arg0: i32) -> (i32, i32) {
    %c0_i32 = arith.constant 0 : i32
    %c0_i32_0 = arith.constant 0 : i32
    %c0_i32_1 = arith.constant 0 : i32
    return %c0_i32, %c0_i32_0 : i32, i32
  }
  func.func @transform_10(%arg0: i32) -> (i32, i32) {
    %c0_i32 = arith.constant 0 : i32
    %c0_i32_0 = arith.constant 0 : i32
    %c0_i32_1 = arith.constant 0 : i32
    return %c0_i32, %c0_i32_0 : i32, i32
  }
}

</mosaic_0001>

<llo_original>
// kernel: net_forward.1
$region0: #{net_forward.1}
  #allocation0 [shape = 'u32[]', space=smem, size = 0x4, offset = 0x4, fixed_abs, tag = 'smem constant byte address 0x4 - core index']
  #allocation1 [shape = 'u32[72,128]{1,0:T(1,128)}', space=vmem, size = 0x9000, scoped, tag = 'internal scratch']
  #allocation2 [shape = 'f32[112,280]{1,0:T(8,128)}', space=vmem, size = 0x2a000, scoped, tag = 'scratch operand']
  #allocation3 [shape = 'f32[8,500]{1,0:T(8,128)}', space=vmem, size = 0x4000, scoped, tag = 'scratch operand']
  %s0 = inlined_call_operand.vmem [shape: f32[256,160], index: 0, kind: input, shape index: {}]
  %s1 = inlined_call_operand.vmem [shape: f32[160,280], index: 1, kind: input, shape index: {}]
  %s2 = inlined_call_operand.vmem [shape: f32[160,280], index: 2, kind: input, shape index: {}]
  %s3 = inlined_call_operand.vmem [shape: f32[112,256], index: 3, kind: input, shape index: {}]
  %s4 = inlined_call_operand.vmem [shape: f32[112,256], index: 4, kind: input, shape index: {}]
  %s5 = inlined_call_operand.vmem [shape: f32[1,280], index: 5, kind: input, shape index: {}]
  %s6 = inlined_call_operand.vmem [shape: bf16[14,280,500], index: 6, kind: input, shape index: {}]
  %s7 = inlined_call_operand.vmem [shape: f32[1,500], index: 7, kind: input, shape index: {}]
  %s8 = inlined_call_operand.vmem [shape: f32[500,26], index: 8, kind: input, shape index: {}]
  %s9 = inlined_call_operand.vmem [shape: f32[1,26], index: 9, kind: input, shape index: {}]
  %s10 = inlined_call_operand.hbm [shape: f32[8,26], index: 10, kind: output, shape index: {}]
  %s11 = sld [smem:[#allocation0]]
  $region81: #{net_forward.1} parent=0
    _
  %s13 = ssub.s32 1, %s11
  %s14 = scalar_select 0, %s13, %s11
  $region1: #{net_forward.1} parent=0
    #allocation4 [shape = 'u8[4096]{0}', space=vmem, size = 0x1000, scoped, tag = 'output window, operand 0, single buffered']
    #allocation5 [shape = 's32[2]{0}', space=sflag, size = 0x8, scoped, tag = 'scoped memory for net_forward.1']
    %15 = vsyncpa [#allocation5], 0
    loop: start=0, step=1, limit=4
    $region2: #{net_forward.1} parent=1 // loop_pre_header
      _
    $region3: #{net_forward.1} parent=1 // loop_header
      %s17 = sphi 0, %s21
      %p18 = scmp.ge.s32.totalorder %s17, 4
      %s25 = sphi 0, %s25
      %s27 = sphi 0, %s25
      %s28 = sphi 0, %s27
      %s42 = sphi 0, %s28
      %s46 = sphi 0, %s46
      %s48 = sphi 0, %s46
      %s49 = sphi 0, %s48
      %s63 = sphi 0, %s49
      %s67 = sphi 0, %s67
      %s69 = sphi 0, %s67
      %s70 = sphi 0, %s69
      %s84 = sphi 0, %s70
      %s88 = sphi 0, %s88
      %s90 = sphi 0, %s88
      %s91 = sphi 0, %s90
      %s105 = sphi 0, %s91
      %s109 = sphi 0, %s109
      %s111 = sphi 0, %s109
      %s112 = sphi 0, %s111
      %s126 = sphi 0, %s112
      %s130 = sphi 0, %s130
      %s132 = sphi 0, %s130
      %s133 = sphi 0, %s132
      %s147 = sphi 0, %s133
      %s153 = sphi 0, %s155
      %s156 = sphi 0, %s153
      %s157 = sphi 0, %s156
      %s173 = sphi 0, %s157
      %s177 = sphi 0, %s177
      %s179 = sphi 0, %s177
      %s180 = sphi 0, %s179
      %s194 = sphi 0, %s180
      %s198 = sphi 0, %s198
      %s200 = sphi 0, %s198
      %s201 = sphi 0, %s200
      %s215 = sphi 0, %s201
      %s219 = sphi 0, %s219
      %s221 = sphi 0, %s219
      %s222 = sphi 0, %s221
      %s236 = sphi 0, %s222
      %s240 = sphi 0, %s240
      %s242 = sphi 0, %s240
      %s243 = sphi 0, %s242
      %s257 = sphi 0, %s243
    $region4: #{net_forward.1} parent=1 // loop_header_branch
      %20 = sbr.rel (%p18) target = $region8
    $region5: #{net_forward.1} parent=1 // loop_body
      %s22 = ssub.s32 %s17, 1
      %s23 = ssub.s32 %s17, 2
      %s24 = sadd.s32 %s17, 1
      %s26 = sadd.s32 %s25, 1
      %p29 = scmp.eq.s32.totalorder %s17, 1
      %p30 = scmp.ne.s32.totalorder %s25, %s27
      %p31 = scmp.eq.s32.totalorder %s17, 0
      %p32 = por %p30, %p31
      %p33 = scmp.ne.s32.totalorder %s25, %s27
      %p34 = scmp.eq.s32.totalorder %s22, 1
      %p35 = por %p33, %p34
      %p36 = scmp.ne.s32.totalorder %s27, %s28
      %p37 = scmp.eq.s32.totalorder %s22, 0
      %p38 = por %p36, %p37
      %p39 = scmp.ne.s32.totalorder %s27, %s28
      %p40 = scmp.eq.s32.totalorder %s23, 1
      %p41 = por %p39, %p40
      %p43 = scmp.ne.s32.totalorder %s28, %s42
      %p44 = scmp.eq.s32.totalorder %s23, 0
      %p45 = por %p43, %p44
      %s47 = sadd.s32 %s46, 1
      %p50 = scmp.eq.s32.totalorder %s17, 1
      %p51 = scmp.ne.s32.totalorder %s46, %s48
      %p52 = scmp.eq.s32.totalorder %s17, 0
      %p53 = por %p51, %p52
      %p54 = scmp.ne.s32.totalorder %s46, %s48
      %p55 = scmp.eq.s32.totalorder %s22, 1
      %p56 = por %p54, %p55
      %p57 = scmp.ne.s32.totalorder %s48, %s49
      %p58 = scmp.eq.s32.totalorder %s22, 0
      %p59 = por %p57, %p58
      %p60 = scmp.ne.s32.totalorder %s48, %s49
      %p61 = scmp.eq.s32.totalorder %s23, 1
      %p62 = por %p60, %p61
      %p64 = scmp.ne.s32.totalorder %s49, %s63
      %p65 = scmp.eq.s32.totalorder %s23, 0
      %p66 = por %p64, %p65
      %s68 = sadd.s32 %s67, 1
      %p71 = scmp.eq.s32.totalorder %s17, 1
      %p72 = scmp.ne.s32.totalorder %s67, %s69
      %p73 = scmp.eq.s32.totalorder %s17, 0
      %p74 = por %p72, %p73
      %p75 = scmp.ne.s32.totalorder %s67, %s69
      %p76 = scmp.eq.s32.totalorder %s22, 1
      %p77 = por %p75, %p76
      %p78 = scmp.ne.s32.totalorder %s69, %s70
      %p79 = scmp.eq.s32.totalorder %s22, 0
      %p80 = por %p78, %p79
      %p81 = scmp.ne.s32.totalorder %s69, %s70
      %p82 = scmp.eq.s32.totalorder %s23, 1
      %p83 = por %p81, %p82
      %p85 = scmp.ne.s32.totalorder %s70, %s84
      %p86 = scmp.eq.s32.totalorder %s23, 0
      %p87 = por %p85, %p86
      %s89 = sadd.s32 %s88, 1
      %p92 = scmp.eq.s32.totalorder %s17, 1
      %p93 = scmp.ne.s32.totalorder %s88, %s90
      %p94 = scmp.eq.s32.totalorder %s17, 0
      %p95 = por %p93, %p94
      %p96 = scmp.ne.s32.totalorder %s88, %s90
      %p97 = scmp.eq.s32.totalorder %s22, 1
      %p98 = por %p96, %p97
      %p99 = scmp.ne.s32.totalorder %s90, %s91
      %p100 = scmp.eq.s32.totalorder %s22, 0
      %p101 = por %p99, %p100
      %p102 = scmp.ne.s32.totalorder %s90, %s91
      %p103 = scmp.eq.s32.totalorder %s23, 1
      %p104 = por %p102, %p103
      %p106 = scmp.ne.s32.totalorder %s91, %s105
      %p107 = scmp.eq.s32.totalorder %s23, 0
      %p108 = por %p106, %p107
      %s110 = sadd.s32 %s109, 1
      %p113 = scmp.eq.s32.totalorder %s17, 1
      %p114 = scmp.ne.s32.totalorder %s109, %s111
      %p115 = scmp.eq.s32.totalorder %s17, 0
      %p116 = por %p114, %p115
      %p117 = scmp.ne.s32.totalorder %s109, %s111
      %p118 = scmp.eq.s32.totalorder %s22, 1
      %p119 = por %p117, %p118
      %p120 = scmp.ne.s32.totalorder %s111, %s112
      %p121 = scmp.eq.s32.totalorder %s22, 0
      %p122 = por %p120, %p121
      %p123 = scmp.ne.s32.totalorder %s111, %s112
      %p124 = scmp.eq.s32.totalorder %s23, 1
      %p125 = por %p123, %p124
      %p127 = scmp.ne.s32.totalorder %s112, %s126
      %p128 = scmp.eq.s32.totalorder %s23, 0
      %p129 = por %p127, %p128
      %s131 = sadd.s32 %s130, 1
      %p134 = scmp.eq.s32.totalorder %s17, 1
      %p135 = scmp.ne.s32.totalorder %s130, %s132
      %p136 = scmp.eq.s32.totalorder %s17, 0
      %p137 = por %p135, %p136
      %p138 = scmp.ne.s32.totalorder %s130, %s132
      %p139 = scmp.eq.s32.totalorder %s22, 1
      %p140 = por %p138, %p139
      %p141 = scmp.ne.s32.totalorder %s132, %s133
      %p142 = scmp.eq.s32.totalorder %s22, 0
      %p143 = por %p141, %p142
      %p144 = scmp.ne.s32.totalorder %s132, %s133
      %p145 = scmp.eq.s32.totalorder %s23, 1
      %p146 = por %p144, %p145
      %p148 = scmp.ne.s32.totalorder %s133, %s147
      %p149 = scmp.eq.s32.totalorder %s23, 0
      %p150 = por %p148, %p149
      %s151 = ssub.s32 %s17, %s24
      %p152 = scmp.eq.s32.totalorder %s151, 0
      %s154 = sadd.s32 %s153, 1
      %s155 = scalar_select %p152, %s153, %s154
      %p158 = pneg %p152
      %p159 = scmp.eq.s32.totalorder %s17, 1
      %p160 = por %p158, %p159
      %p161 = scmp.ne.s32.totalorder %s153, %s156
      %p162 = scmp.eq.s32.totalorder %s17, 0
      %p163 = por %p161, %p162
      %p164 = scmp.ne.s32.totalorder %s153, %s156
      %p165 = scmp.eq.s32.totalorder %s22, 1
      %p166 = por %p164, %p165
      %p167 = scmp.ne.s32.totalorder %s156, %s157
      %p168 = scmp.eq.s32.totalorder %s22, 0
      %p169 = por %p167, %p168
      %p170 = scmp.ne.s32.totalorder %s156, %s157
      %p171 = scmp.eq.s32.totalorder %s23, 1
      %p172 = por %p170, %p171
      %p174 = scmp.ne.s32.totalorder %s157, %s173
      %p175 = scmp.eq.s32.totalorder %s23, 0
      %p176 = por %p174, %p175
      %s178 = sadd.s32 %s177, 1
      %p181 = scmp.eq.s32.totalorder %s17, 1
      %p182 = scmp.ne.s32.totalorder %s177, %s179
      %p183 = scmp.eq.s32.totalorder %s17, 0
      %p184 = por %p182, %p183
      %p185 = scmp.ne.s32.totalorder %s177, %s179
      %p186 = scmp.eq.s32.totalorder %s22, 1
      %p187 = por %p185, %p186
      %p188 = scmp.ne.s32.totalorder %s179, %s180
      %p189 = scmp.eq.s32.totalorder %s22, 0
      %p190 = por %p188, %p189
      %p191 = scmp.ne.s32.totalorder %s179, %s180
      %p192 = scmp.eq.s32.totalorder %s23, 1
      %p193 = por %p191, %p192
      %p195 = scmp.ne.s32.totalorder %s180, %s194
      %p196 = scmp.eq.s32.totalorder %s23, 0
      %p197 = por %p195, %p196
      %s199 = sadd.s32 %s198, 1
      %p202 = scmp.eq.s32.totalorder %s17, 1
      %p203 = scmp.ne.s32.totalorder %s198, %s200
      %p204 = scmp.eq.s32.totalorder %s17, 0
      %p205 = por %p203, %p204
      %p206 = scmp.ne.s32.totalorder %s198, %s200
      %p207 = scmp.eq.s32.totalorder %s22, 1
      %p208 = por %p206, %p207
      %p209 = scmp.ne.s32.totalorder %s200, %s201
      %p210 = scmp.eq.s32.totalorder %s22, 0
      %p211 = por %p209, %p210
      %p212 = scmp.ne.s32.totalorder %s200, %s201
      %p213 = scmp.eq.s32.totalorder %s23, 1
      %p214 = por %p212, %p213
      %p216 = scmp.ne.s32.totalorder %s201, %s215
      %p217 = scmp.eq.s32.totalorder %s23, 0
      %p218 = por %p216, %p217
      %s220 = sadd.s32 %s219, 1
      %p223 = scmp.eq.s32.totalorder %s17, 1
      %p224 = scmp.ne.s32.totalorder %s219, %s221
      %p225 = scmp.eq.s32.totalorder %s17, 0
      %p226 = por %p224, %p225
      %p227 = scmp.ne.s32.totalorder %s219, %s221
      %p228 = scmp.eq.s32.totalorder %s22, 1
      %p229 = por %p227, %p228
      %p230 = scmp.ne.s32.totalorder %s221, %s222
      %p231 = scmp.eq.s32.totalorder %s22, 0
      %p232 = por %p230, %p231
      %p233 = scmp.ne.s32.totalorder %s221, %s222
      %p234 = scmp.eq.s32.totalorder %s23, 1
      %p235 = por %p233, %p234
      %p237 = scmp.ne.s32.totalorder %s222, %s236
      %p238 = scmp.eq.s32.totalorder %s23, 0
      %p239 = por %p237, %p238
      %s241 = sadd.s32 %s240, 1
      %p244 = scmp.eq.s32.totalorder %s17, 1
      %p245 = scmp.ne.s32.totalorder %s240, %s242
      %p246 = scmp.eq.s32.totalorder %s17, 0
      %p247 = por %p245, %p246
      %p248 = scmp.ne.s32.totalorder %s240, %s242
      %p249 = scmp.eq.s32.totalorder %s22, 1
      %p250 = por %p248, %p249
      %p251 = scmp.ne.s32.totalorder %s242, %s243
      %p252 = scmp.eq.s32.totalorder %s22, 0
      %p253 = por %p251, %p252
      %p254 = scmp.ne.s32.totalorder %s242, %s243
      %p255 = scmp.eq.s32.totalorder %s23, 1
      %p256 = por %p254, %p255
      %p258 = scmp.ne.s32.totalorder %s243, %s257
      %p259 = scmp.eq.s32.totalorder %s23, 0
      %p260 = por %p258, %p259
      %p261 = scmp.le.s32.totalorder 1, %s17
      %p262 = scmp.lt.s32.totalorder %s17, 3
      %p263 = pnand %p261, %p262
      %p264 = pneg %p263
      // Predicated region
      $region9: #{net_forward.1} parent=5 // pred_check
        _
      $region10: #{net_forward.1} parent=5 // pred_check_branch
        %266 = sbr.rel (%p263) target = $region12
      $region11: #{net_forward.1} parent=5 // pred_region
        %s267 = ssub.s32 %s17, 1
        // Predicated region
        $region13: #{net_forward.1} parent=11 // pred_check
          %p268 = pneg %p38
        $region14: #{net_forward.1} parent=11 // pred_check_branch
          %270 = sbr.rel (%p268) target = $region16
        $region15: #{net_forward.1} parent=11 // pred_region
          _
        $region16: #{net_forward.1} parent=11 // pred_fallthru
          _
        // Predicated region
        $region17: #{net_forward.1} parent=11 // pred_check
          %p271 = pneg %p59
        $region18: #{net_forward.1} parent=11 // pred_check_branch
          %273 = sbr.rel (%p271) target = $region20
        $region19: #{net_forward.1} parent=11 // pred_region
          _
        $region20: #{net_forward.1} parent=11 // pred_fallthru
          _
        // Predicated region
        $region21: #{net_forward.1} parent=11 // pred_check
          %p274 = pneg %p80
        $region22: #{net_forward.1} parent=11 // pred_check_branch
          %276 = sbr.rel (%p274) target = $region24
        $region23: #{net_forward.1} parent=11 // pred_region
          _
        $region24: #{net_forward.1} parent=11 // pred_fallthru
          _
        // Predicated region
        $region25: #{net_forward.1} parent=11 // pred_check
          %p277 = pneg %p101
        $region26: #{net_forward.1} parent=11 // pred_check_branch
          %279 = sbr.rel (%p277) target = $region28
        $region27: #{net_forward.1} parent=11 // pred_region
          _
        $region28: #{net_forward.1} parent=11 // pred_fallthru
          _
        // Predicated region
        $region29: #{net_forward.1} parent=11 // pred_check
          %p280 = pneg %p122
        $region30: #{net_forward.1} parent=11 // pred_check_branch
          %282 = sbr.rel (%p280) target = $region32
        $region31: #{net_forward.1} parent=11 // pred_region
          _
        $region32: #{net_forward.1} parent=11 // pred_fallthru
          _
        // Predicated region
        $region33: #{net_forward.1} parent=11 // pred_check
          %p283 = pneg %p143
        $region34: #{net_forward.1} parent=11 // pred_check_branch
          %285 = sbr.rel (%p283) target = $region36
        $region35: #{net_forward.1} parent=11 // pred_region
          _
        $region36: #{net_forward.1} parent=11 // pred_fallthru
          _
        // Predicated region
        $region37: #{net_forward.1} parent=11 // pred_check
          %p286 = pneg %p190
        $region38: #{net_forward.1} parent=11 // pred_check_branch
          %288 = sbr.rel (%p286) target = $region40
        $region39: #{net_forward.1} parent=11 // pred_region
          _
        $region40: #{net_forward.1} parent=11 // pred_fallthru
          _
        // Predicated region
        $region41: #{net_forward.1} parent=11 // pred_check
          %p289 = pneg %p211
        $region42: #{net_forward.1} parent=11 // pred_check_branch
          %291 = sbr.rel (%p289) target = $region44
        $region43: #{net_forward.1} parent=11 // pred_region
          _
        $region44: #{net_forward.1} parent=11 // pred_fallthru
          _
        // Predicated region
        $region45: #{net_forward.1} parent=11 // pred_check
          %p292 = pneg %p232
        $region46: #{net_forward.1} parent=11 // pred_check_branch
          %294 = sbr.rel (%p292) target = $region48
        $region47: #{net_forward.1} parent=11 // pred_region
          _
        $region48: #{net_forward.1} parent=11 // pred_fallthru
          _
      $region12: #{net_forward.1} parent=5 // pred_fallthru
        _
      %p295 = scmp.lt.s32.totalorder %s17, 2
      // Predicated region
      $region49: #{net_forward.1} parent=5 // pred_check
        %p296 = pneg %p295
      $region50: #{net_forward.1} parent=5 // pred_check_branch
        %298 = sbr.rel (%p296) target = $region52
      $region51: #{net_forward.1} parent=5 // pred_region
        // Predicated region
        $region53: #{net_forward.1} parent=51 // pred_check
          %p299 = pneg %p163
        $region54: #{net_forward.1} parent=51 // pred_check_branch
          %301 = sbr.rel (%p299) target = $region56
        $region55: #{net_forward.1} parent=51 // pred_region
          %s302 = smul.u32 7, %s17
          %p303 = scmp.lt.s32.totalorder %s302, 13
          %s304 = scalar_select %p303, %s302, 13
          %s305 = smul.addr %s304, 140
          %s306 = smul.addr %s305, 4
          %s307 = scalar_lea.vmem %s6, %s306
          %s308 = smul.u32 7, %s17
        $region56: #{net_forward.1} parent=51 // pred_fallthru
          _
      $region52: #{net_forward.1} parent=5 // pred_fallthru
        _
      %p309 = scmp.le.s32.totalorder 1, %s17
      %p310 = scmp.lt.s32.totalorder %s17, 3
      %p311 = pnand %p309, %p310
      %p312 = pneg %p311
      // Predicated region
      $region57: #{net_forward.1} parent=5 // pred_check
        _
      $region58: #{net_forward.1} parent=5 // pred_check_branch
        %314 = sbr.rel (%p311) target = $region60
      $region59: #{net_forward.1} parent=5 // pred_region
        %s315 = ssub.s32 %s17, 1
        %p316 = pneg %p38
        %p317 = pneg %p35
        %p318 = pneg %p59
        %p319 = pneg %p56
        %p320 = pneg %p80
        %p321 = pneg %p77
        %p322 = pneg %p101
        %p323 = pneg %p98
        %p324 = pneg %p122
        %p325 = pneg %p119
        %p326 = pneg %p143
        %p327 = pneg %p140
        %s328 = smul.u32 7, %s22
        %p329 = scmp.lt.s32.totalorder %s328, 13
        %s330 = scalar_select %p329, %s328, 13
        %s331 = smul.addr %s330, 140
        %s332 = smul.addr %s331, 4
        %s333 = scalar_lea.vmem %s6, %s332
        %p334 = pneg %p169
        %p335 = pneg %p166
        %p336 = pneg %p190
        %p337 = pneg %p187
        %p338 = pneg %p211
        %p339 = pneg %p208
        %p340 = pneg %p232
        %p341 = pneg %p229
        %p342 = pneg %p253
        %p343 = pneg %p250
        %s344 = smul.u32 7, %s22
        %p345 = scmp.lt.s32.totalorder %s344, 13
        %s346 = scalar_select %p345, %s344, 13
        %s347 = smul.addr %s346, 140
        %s348 = smul.addr %s347, 4
        %s349 = scalar_lea.vmem %s6, %s348
        %s350 = smul.u32 7, %s22
        %p352 = scmp.eq.s32.totalorder %s22, 0
        // Predicated region
        $region61: #{net_forward.1} parent=59 // pred_check
          %p353 = pneg %p352
        $region62: #{net_forward.1} parent=59 // pred_check_branch
          %355 = sbr.rel (%p353) target = $region64
        $region63: #{net_forward.1} parent=59 // pred_region
          %v356 = vld [vmem:[%s0] sm:$0xff]
          %v357 = vld [vmem:[%s0 + $0x8] sm:$0xff]
          %v358 = vld [vmem:[%s0 + $0x10] sm:$0xff]
          %v359 = vld [vmem:[%s0 + $0x18] sm:$0xff]
          %v360 = vld [vmem:[%s0 + $0x20] sm:$0xff]
          %v361 = vld [vmem:[%s0 + $0x28] sm:$0xff]
          %v362 = vld [vmem:[%s0 + $0x30] sm:$0xff]
          %v363 = vld [vmem:[%s0 + $0x38] sm:$0xff]
          %v364 = vld [vmem:[%s0 + $0x40] sm:$0xff]
          %v365 = vld [vmem:[%s0 + $0x48] sm:$0xff]
          %v366 = vld [vmem:[%s0 + $0x50] sm:$0xff]
          %v367 = vld [vmem:[%s0 + $0x58] sm:$0xff]
          %v368 = vld [vmem:[%s0 + $0x60] sm:$0xff]
          %v369 = vld [vmem:[%s0 + $0x68] sm:$0xff]
          %v370 = vld [vmem:[%s0 + $0x70] sm:$0xff]
          %v371 = vld [vmem:[%s0 + $0x78] sm:$0xff]
          %v372 = vld [vmem:[%s0 + $0x80] sm:$0xff]
          %v373 = vld [vmem:[%s0 + $0x88] sm:$0xff]
          %v374 = vld [vmem:[%s0 + $0x90] sm:$0xff]
          %v375 = vld [vmem:[%s0 + $0x98] sm:$0xff]
          %v376 = vld [vmem:[%s0 + $0xa0] sm:$0xff]
          %v377 = vld [vmem:[%s0 + $0xa8] sm:$0xff]
          %v378 = vld [vmem:[%s0 + $0xb0] sm:$0xff]
          %v379 = vld [vmem:[%s0 + $0xb8] sm:$0xff]
          %v380 = vld [vmem:[%s0 + $0xc0] sm:$0xff]
          %v381 = vld [vmem:[%s0 + $0xc8] sm:$0xff]
          %v382 = vld [vmem:[%s0 + $0xd0] sm:$0xff]
          %v383 = vld [vmem:[%s0 + $0xd8] sm:$0xff]
          %v384 = vld [vmem:[%s0 + $0xe0] sm:$0xff]
          %v385 = vld [vmem:[%s0 + $0xe8] sm:$0xff]
          %v386 = vld [vmem:[%s0 + $0xf0] sm:$0xff]
          %v387 = vld [vmem:[%s0 + $0xf8] sm:$0xff]
          %v388 = vld [vmem:[%s0 + $0x100] sm:$0xff]
          %v389 = vld [vmem:[%s0 + $0x108] sm:$0xff]
          %v390 = vld [vmem:[%s0 + $0x110] sm:$0xff]
          %v391 = vld [vmem:[%s0 + $0x118] sm:$0xff]
          %v392 = vld [vmem:[%s0 + $0x120] sm:$0xff]
          %v393 = vld [vmem:[%s0 + $0x128] sm:$0xff]
          %v394 = vld [vmem:[%s0 + $0x130] sm:$0xff]
          %v395 = vld [vmem:[%s0 + $0x138] sm:$0xff]
          %v396 = vld [vmem:[%s0 + $0x140] sm:$0xff]
          %v397 = vld [vmem:[%s0 + $0x148] sm:$0xff]
          %v398 = vld [vmem:[%s0 + $0x150] sm:$0xff]
          %v399 = vld [vmem:[%s0 + $0x158] sm:$0xff]
          %v400 = vld [vmem:[%s0 + $0x160] sm:$0xff]
          %v401 = vld [vmem:[%s0 + $0x168] sm:$0xff]
          %v402 = vld [vmem:[%s0 + $0x170] sm:$0xff]
          %v403 = vld [vmem:[%s0 + $0x178] sm:$0xff]
          %v404 = vld [vmem:[%s0 + $0x180] sm:$0xff]
          %v405 = vld [vmem:[%s0 + $0x188] sm:$0xff]
          %v406 = vld [vmem:[%s0 + $0x190] sm:$0xff]
          %v407 = vld [vmem:[%s0 + $0x198] sm:$0xff]
          %v408 = vld [vmem:[%s0 + $0x1a0] sm:$0xff]
          %v409 = vld [vmem:[%s0 + $0x1a8] sm:$0xff]
          %v410 = vld [vmem:[%s0 + $0x1b0] sm:$0xff]
          %v411 = vld [vmem:[%s0 + $0x1b8] sm:$0xff]
          %v412 = vld [vmem:[%s0 + $0x1c0] sm:$0xff]
          %v413 = vld [vmem:[%s0 + $0x1c8] sm:$0xff]
          %v414 = vld [vmem:[%s0 + $0x1d0] sm:$0xff]
          %v415 = vld [vmem:[%s0 + $0x1d8] sm:$0xff]
          %v416 = vld [vmem:[%s0 + $0x1e0] sm:$0xff]
          %v417 = vld [vmem:[%s0 + $0x1e8] sm:$0xff]
          %v418 = vld [vmem:[%s0 + $0x1f0] sm:$0xff]
          %v419 = vld [vmem:[%s0 + $0x1f8] sm:$0xff]
          %v420 = vld [vmem:[%s1] sm:$0xff]
          %v421 = vld [vmem:[%s1 + $0x8] sm:$0xff]
          %v422 = vld [vmem:[%s1 + $0x10] sm:$0xff]
          %v423 = vld [vmem:[%s1 + $0x18] sm:$0xff]
          %v424 = vld [vmem:[%s1 + $0x20] sm:$0xff]
          %v425 = vld [vmem:[%s1 + $0x28] sm:$0xff]
          %v426 = vld [vmem:[%s1 + $0x30] sm:$0xff]
          %v427 = vld [vmem:[%s1 + $0x38] sm:$0xff]
          %v428 = vld [vmem:[%s1 + $0x40] sm:$0xff]
          %v429 = vld [vmem:[%s1 + $0x48] sm:$0xff]
          %v430 = vld [vmem:[%s1 + $0x50] sm:$0xff]
          %v431 = vld [vmem:[%s1 + $0x58] sm:$0xff]
          %v432 = vld [vmem:[%s1 + $0x60] sm:$0xff]
          %v433 = vld [vmem:[%s1 + $0x68] sm:$0xff]
          %v434 = vld [vmem:[%s1 + $0x70] sm:$0xff]
          %v435 = vld [vmem:[%s1 + $0x78] sm:$0xff]
          %v436 = vld [vmem:[%s1 + $0x80] sm:$0xff]
          %v437 = vld [vmem:[%s1 + $0x88] sm:$0xff]
          %v438 = vld [vmem:[%s1 + $0x90] sm:$0xff]
          %v439 = vld [vmem:[%s1 + $0x98] sm:$0xff]
          %v440 = vld [vmem:[%s1 + $0xa0] sm:$0xff]
          %v441 = vld [vmem:[%s1 + $0xa8] sm:$0xff]
          %v442 = vld [vmem:[%s1 + $0xb0] sm:$0xff]
          %v443 = vld [vmem:[%s1 + $0xb8] sm:$0xff]
          %v444 = vld [vmem:[%s1 + $0xc0] sm:$0xff]
          %v445 = vld [vmem:[%s1 + $0xc8] sm:$0xff]
          %v446 = vld [vmem:[%s1 + $0xd0] sm:$0xff]
          %v447 = vld [vmem:[%s1 + $0xd8] sm:$0xff]
          %v448 = vld [vmem:[%s1 + $0xe0] sm:$0xff]
          %v449 = vld [vmem:[%s1 + $0xe8] sm:$0xff]
          %v450 = vld [vmem:[%s1 + $0xf0] sm:$0xff]
          %v451 = vld [vmem:[%s1 + $0xf8] sm:$0xff]
          %v452 = vld [vmem:[%s1 + $0x100] sm:$0xff]
          %v453 = vld [vmem:[%s1 + $0x108] sm:$0xff]
          %v454 = vld [vmem:[%s1 + $0x110] sm:$0xff]
          %v455 = vld [vmem:[%s1 + $0x118] sm:$0xff]
          %v456 = vld [vmem:[%s1 + $0x120] sm:$0xff]
          %v457 = vld [vmem:[%s1 + $0x128] sm:$0xff]
          %v458 = vld [vmem:[%s1 + $0x130] sm:$0xff]
          %v459 = vld [vmem:[%s1 + $0x138] sm:$0xff]
          %v460 = vld [vmem:[%s1 + $0x140] sm:$0xff]
          %v461 = vld [vmem:[%s1 + $0x148] sm:$0xff]
          %v462 = vld [vmem:[%s1 + $0x150] sm:$0xff]
          %v463 = vld [vmem:[%s1 + $0x158] sm:$0xff]
          %v464 = vld [vmem:[%s1 + $0x160] sm:$0xff]
          %v465 = vld [vmem:[%s1 + $0x168] sm:$0xff]
          %v466 = vld [vmem:[%s1 + $0x170] sm:$0xff]
          %v467 = vld [vmem:[%s1 + $0x178] sm:$0xff]
          %v468 = vld [vmem:[%s1 + $0x180] sm:$0xff]
          %v469 = vld [vmem:[%s1 + $0x188] sm:$0xff]
          %v470 = vld [vmem:[%s1 + $0x190] sm:$0xff]
          %v471 = vld [vmem:[%s1 + $0x198] sm:$0xff]
          %v472 = vld [vmem:[%s1 + $0x1a0] sm:$0xff]
          %v473 = vld [vmem:[%s1 + $0x1a8] sm:$0xff]
          %v474 = vld [vmem:[%s1 + $0x1b0] sm:$0xff]
          %v475 = vld [vmem:[%s1 + $0x1b8] sm:$0xff]
          %v476 = vld [vmem:[%s1 + $0x1c0] sm:$0xff]
          %v477 = vld [vmem:[%s1 + $0x1c8] sm:$0xff]
          %v478 = vld [vmem:[%s1 + $0x1d0] sm:$0xff]
          %v479 = vld [vmem:[%s1 + $0x1d8] sm:$0xff]
          %vm480 = vcmask 261120
          %v482 = vsel %vm480, %v357, 0
          %v485 = vsel %vm480, %v359, 0
          %v488 = vsel %vm480, %v361, 0
          %v491 = vsel %vm480, %v363, 0
          %v494 = vsel %vm480, %v365, 0
          %v497 = vsel %vm480, %v367, 0
          %v500 = vsel %vm480, %v369, 0
          %v503 = vsel %vm480, %v371, 0
          %v506 = vsel %vm480, %v373, 0
          %v509 = vsel %vm480, %v375, 0
          %v512 = vsel %vm480, %v377, 0
          %v515 = vsel %vm480, %v379, 0
          %v518 = vsel %vm480, %v381, 0
          %v521 = vsel %vm480, %v383, 0
          %v524 = vsel %vm480, %v385, 0
          %v527 = vsel %vm480, %v387, 0
          %v530 = vsel %vm480, %v389, 0
          %v533 = vsel %vm480, %v391, 0
          %v536 = vsel %vm480, %v393, 0
          %v539 = vsel %vm480, %v395, 0
          %v542 = vsel %vm480, %v397, 0
          %v545 = vsel %vm480, %v399, 0
          %v548 = vsel %vm480, %v401, 0
          %v551 = vsel %vm480, %v403, 0
          %v554 = vsel %vm480, %v405, 0
          %v557 = vsel %vm480, %v407, 0
          %v560 = vsel %vm480, %v409, 0
          %v563 = vsel %vm480, %v411, 0
          %v566 = vsel %vm480, %v413, 0
          %v569 = vsel %vm480, %v415, 0
          %v572 = vsel %vm480, %v417, 0
          %v575 = vsel %vm480, %v419, 0
          %577 = vmatpush.msra.mxu0 %v465
          %578 = vmatpush.msra.mxu0 %v462
          %579 = vmatpush.msra.mxu0 %v459
          %580 = vmatpush.msra.mxu0 %v456
          %581 = vmatpush.msra.mxu0 %v453
          %582 = vmatpush.msra.mxu0 %v450
          %583 = vmatpush.msra.mxu0 %v447
          %584 = vmatpush.msra.mxu0 %v444
          %585 = vmatpush.msra.mxu0 %v441
          %586 = vmatpush.msra.mxu0 %v438
          %587 = vmatpush.msra.mxu0 %v435
          %588 = vmatpush.msra.mxu0 %v432
          %589 = vmatpush.msra.mxu0 %v429
          %590 = vmatpush.msra.mxu0 %v426
          %591 = vmatpush.msra.mxu0 %v423
          %592 = vmatpush.msra.mxu0 %v420
          %593 = vmatmul.f32.gmra.mxu0 %v356
          %v594 = vpop.f32.mrf.mxu0
          %v595 = vadd.f32 0.0, %v594
          %596 = vmatmul.f32.gmra.mxu0 %v358
          %v597 = vpop.f32.mrf.mxu0
          %v598 = vadd.f32 0.0, %v597
          %599 = vmatmul.f32.gmra.mxu0 %v360
          %v600 = vpop.f32.mrf.mxu0
          %v601 = vadd.f32 0.0, %v600
          %602 = vmatmul.f32.gmra.mxu0 %v362
          %v603 = vpop.f32.mrf.mxu0
          %v604 = vadd.f32 0.0, %v603
          %605 = vmatmul.f32.gmra.mxu0 %v364
          %v606 = vpop.f32.mrf.mxu0
          %v607 = vadd.f32 0.0, %v606
          %608 = vmatmul.f32.gmra.mxu0 %v366
          %v609 = vpop.f32.mrf.mxu0
          %v610 = vadd.f32 0.0, %v609
          %611 = vmatmul.f32.gmra.mxu0 %v368
          %v612 = vpop.f32.mrf.mxu0
          %v613 = vadd.f32 0.0, %v612
          %614 = vmatmul.f32.gmra.mxu0 %v370
          %v615 = vpop.f32.mrf.mxu0
          %v616 = vadd.f32 0.0, %v615
          %617 = vmatmul.f32.gmra.mxu0 %v372
          %v618 = vpop.f32.mrf.mxu0
          %v619 = vadd.f32 0.0, %v618
          %620 = vmatmul.f32.gmra.mxu0 %v374
          %v621 = vpop.f32.mrf.mxu0
          %v622 = vadd.f32 0.0, %v621
          %623 = vmatmul.f32.gmra.mxu0 %v376
          %v624 = vpop.f32.mrf.mxu0
          %v625 = vadd.f32 0.0, %v624
          %626 = vmatmul.f32.gmra.mxu0 %v378
          %v627 = vpop.f32.mrf.mxu0
          %v628 = vadd.f32 0.0, %v627
          %629 = vmatmul.f32.gmra.mxu0 %v380
          %v630 = vpop.f32.mrf.mxu0
          %v631 = vadd.f32 0.0, %v630
          %632 = vmatmul.f32.gmra.mxu0 %v382
          %v633 = vpop.f32.mrf.mxu0
          %v634 = vadd.f32 0.0, %v633
          %635 = vmatmul.f32.gmra.mxu0 %v384
          %v636 = vpop.f32.mrf.mxu0
          %v637 = vadd.f32 0.0, %v636
          %638 = vmatmul.f32.gmra.mxu0 %v386
          %v639 = vpop.f32.mrf.mxu0
          %v640 = vadd.f32 0.0, %v639
          %641 = vmatmul.f32.gmra.mxu0 %v388
          %v642 = vpop.f32.mrf.mxu0
          %v643 = vadd.f32 0.0, %v642
          %644 = vmatmul.f32.gmra.mxu0 %v390
          %v645 = vpop.f32.mrf.mxu0
          %v646 = vadd.f32 0.0, %v645
          %647 = vmatmul.f32.gmra.mxu0 %v392
          %v648 = vpop.f32.mrf.mxu0
          %v649 = vadd.f32 0.0, %v648
          %650 = vmatmul.f32.gmra.mxu0 %v394
          %v651 = vpop.f32.mrf.mxu0
          %v652 = vadd.f32 0.0, %v651
          %653 = vmatmul.f32.gmra.mxu0 %v396
          %v654 = vpop.f32.mrf.mxu0
          %v655 = vadd.f32 0.0, %v654
          %656 = vmatmul.f32.gmra.mxu0 %v398
          %v657 = vpop.f32.mrf.mxu0
          %v658 = vadd.f32 0.0, %v657
          %659 = vmatmul.f32.gmra.mxu0 %v400
          %v660 = vpop.f32.mrf.mxu0
          %v661 = vadd.f32 0.0, %v660
          %662 = vmatmul.f32.gmra.mxu0 %v402
          %v663 = vpop.f32.mrf.mxu0
          %v664 = vadd.f32 0.0, %v663
          %665 = vmatmul.f32.gmra.mxu0 %v404
          %v666 = vpop.f32.mrf.mxu0
          %v667 = vadd.f32 0.0, %v666
          %668 = vmatmul.f32.gmra.mxu0 %v406
          %v669 = vpop.f32.mrf.mxu0
          %v670 = vadd.f32 0.0, %v669
          %671 = vmatmul.f32.gmra.mxu0 %v408
          %v672 = vpop.f32.mrf.mxu0
          %v673 = vadd.f32 0.0, %v672
          %674 = vmatmul.f32.gmra.mxu0 %v410
          %v675 = vpop.f32.mrf.mxu0
          %v676 = vadd.f32 0.0, %v675
          %677 = vmatmul.f32.gmra.mxu0 %v412
          %v678 = vpop.f32.mrf.mxu0
          %v679 = vadd.f32 0.0, %v678
          %680 = vmatmul.f32.gmra.mxu0 %v414
          %v681 = vpop.f32.mrf.mxu0
          %v682 = vadd.f32 0.0, %v681
          %683 = vmatmul.f32.gmra.mxu0 %v416
          %v684 = vpop.f32.mrf.mxu0
          %v685 = vadd.f32 0.0, %v684
          %686 = vmatmul.f32.gmra.mxu0 %v418
          %v687 = vpop.f32.mrf.mxu0
          %v688 = vadd.f32 0.0, %v687
          %689 = vdwg.mxu0
          %690 = vmatpush.msra.mxu0 0.0
          %691 = vmatpush.msra.mxu0 0.0
          %692 = vmatpush.msra.mxu0 0.0
          %693 = vmatpush.msra.mxu0 0.0
          %694 = vmatpush.msra.mxu0 0.0
          %695 = vmatpush.msra.mxu0 0.0
          %696 = vmatpush.msra.mxu0 0.0
          %697 = vmatpush.msra.mxu0 0.0
          %698 = vmatpush.msra.mxu0 0.0
          %699 = vmatpush.msra.mxu0 0.0
          %700 = vmatpush.msra.mxu0 0.0
          %701 = vmatpush.msra.mxu0 0.0
          %702 = vmatpush.msra.mxu0 %v477
          %703 = vmatpush.msra.mxu0 %v474
          %704 = vmatpush.msra.mxu0 %v471
          %705 = vmatpush.msra.mxu0 %v468
          %706 = vmatmul.f32.gmra.mxu0 %v482
          %v707 = vpop.f32.mrf.mxu0
          %v708 = vadd.f32 %v595, %v707
          %709 = vmatmul.f32.gmra.mxu0 %v485
          %v710 = vpop.f32.mrf.mxu0
          %v711 = vadd.f32 %v598, %v710
          %712 = vmatmul.f32.gmra.mxu0 %v488
          %v713 = vpop.f32.mrf.mxu0
          %v714 = vadd.f32 %v601, %v713
          %715 = vmatmul.f32.gmra.mxu0 %v491
          %v716 = vpop.f32.mrf.mxu0
          %v717 = vadd.f32 %v604, %v716
          %718 = vmatmul.f32.gmra.mxu0 %v494
          %v719 = vpop.f32.mrf.mxu0
          %v720 = vadd.f32 %v607, %v719
          %721 = vmatmul.f32.gmra.mxu0 %v497
          %v722 = vpop.f32.mrf.mxu0
          %v723 = vadd.f32 %v610, %v722
          %724 = vmatmul.f32.gmra.mxu0 %v500
          %v725 = vpop.f32.mrf.mxu0
          %v726 = vadd.f32 %v613, %v725
          %727 = vmatmul.f32.gmra.mxu0 %v503
          %v728 = vpop.f32.mrf.mxu0
          %v729 = vadd.f32 %v616, %v728
          %730 = vmatmul.f32.gmra.mxu0 %v506
          %v731 = vpop.f32.mrf.mxu0
          %v732 = vadd.f32 %v619, %v731
          %733 = vmatmul.f32.gmra.mxu0 %v509
          %v734 = vpop.f32.mrf.mxu0
          %v735 = vadd.f32 %v622, %v734
          %736 = vmatmul.f32.gmra.mxu0 %v512
          %v737 = vpop.f32.mrf.mxu0
          %v738 = vadd.f32 %v625, %v737
          %739 = vmatmul.f32.gmra.mxu0 %v515
          %v740 = vpop.f32.mrf.mxu0
          %v741 = vadd.f32 %v628, %v740
          %742 = vmatmul.f32.gmra.mxu0 %v518
          %v743 = vpop.f32.mrf.mxu0
          %v744 = vadd.f32 %v631, %v743
          %745 = vmatmul.f32.gmra.mxu0 %v521
          %v746 = vpop.f32.mrf.mxu0
          %v747 = vadd.f32 %v634, %v746
          %748 = vmatmul.f32.gmra.mxu0 %v524
          %v749 = vpop.f32.mrf.mxu0
          %v750 = vadd.f32 %v637, %v749
          %751 = vmatmul.f32.gmra.mxu0 %v527
          %v752 = vpop.f32.mrf.mxu0
          %v753 = vadd.f32 %v640, %v752
          %754 = vmatmul.f32.gmra.mxu0 %v530
          %v755 = vpop.f32.mrf.mxu0
          %v756 = vadd.f32 %v643, %v755
          %757 = vmatmul.f32.gmra.mxu0 %v533
          %v758 = vpop.f32.mrf.mxu0
          %v759 = vadd.f32 %v646, %v758
          %760 = vmatmul.f32.gmra.mxu0 %v536
          %v761 = vpop.f32.mrf.mxu0
          %v762 = vadd.f32 %v649, %v761
          %763 = vmatmul.f32.gmra.mxu0 %v539
          %v764 = vpop.f32.mrf.mxu0
          %v765 = vadd.f32 %v652, %v764
          %766 = vmatmul.f32.gmra.mxu0 %v542
          %v767 = vpop.f32.mrf.mxu0
          %v768 = vadd.f32 %v655, %v767
          %769 = vmatmul.f32.gmra.mxu0 %v545
          %v770 = vpop.f32.mrf.mxu0
          %v771 = vadd.f32 %v658, %v770
          %772 = vmatmul.f32.gmra.mxu0 %v548
          %v773 = vpop.f32.mrf.mxu0
          %v774 = vadd.f32 %v661, %v773
          %775 = vmatmul.f32.gmra.mxu0 %v551
          %v776 = vpop.f32.mrf.mxu0
          %v777 = vadd.f32 %v664, %v776
          %778 = vmatmul.f32.gmra.mxu0 %v554
          %v779 = vpop.f32.mrf.mxu0
          %v780 = vadd.f32 %v667, %v779
          %781 = vmatmul.f32.gmra.mxu0 %v557
          %v782 = vpop.f32.mrf.mxu0
          %v783 = vadd.f32 %v670, %v782
          %784 = vmatmul.f32.gmra.mxu0 %v560
          %v785 = vpop.f32.mrf.mxu0
          %v786 = vadd.f32 %v673, %v785
          %787 = vmatmul.f32.gmra.mxu0 %v563
          %v788 = vpop.f32.mrf.mxu0
          %v789 = vadd.f32 %v676, %v788
          %790 = vmatmul.f32.gmra.mxu0 %v566
          %v791 = vpop.f32.mrf.mxu0
          %v792 = vadd.f32 %v679, %v791
          %793 = vmatmul.f32.gmra.mxu0 %v569
          %v794 = vpop.f32.mrf.mxu0
          %v795 = vadd.f32 %v682, %v794
          %796 = vmatmul.f32.gmra.mxu0 %v572
          %v797 = vpop.f32.mrf.mxu0
          %v798 = vadd.f32 %v685, %v797
          %799 = vmatmul.f32.gmra.mxu0 %v575
          %v800 = vpop.f32.mrf.mxu0
          %v801 = vadd.f32 %v688, %v800
          %802 = vdwg.mxu0
          %803 = vmatpush.msra.mxu0 %v466
          %804 = vmatpush.msra.mxu0 %v463
          %805 = vmatpush.msra.mxu0 %v460
          %806 = vmatpush.msra.mxu0 %v457
          %807 = vmatpush.msra.mxu0 %v454
          %808 = vmatpush.msra.mxu0 %v451
          %809 = vmatpush.msra.mxu0 %v448
          %810 = vmatpush.msra.mxu0 %v445
          %811 = vmatpush.msra.mxu0 %v442
          %812 = vmatpush.msra.mxu0 %v439
          %813 = vmatpush.msra.mxu0 %v436
          %814 = vmatpush.msra.mxu0 %v433
          %815 = vmatpush.msra.mxu0 %v430
          %816 = vmatpush.msra.mxu0 %v427
          %817 = vmatpush.msra.mxu0 %v424
          %818 = vmatpush.msra.mxu0 %v421
          %819 = vmatmul.f32.gmra.mxu0 %v356
          %v820 = vpop.f32.mrf.mxu0
          %v821 = vadd.f32 0.0, %v820
          %822 = vmatmul.f32.gmra.mxu0 %v358
          %v823 = vpop.f32.mrf.mxu0
          %v824 = vadd.f32 0.0, %v823
          %825 = vmatmul.f32.gmra.mxu0 %v360
          %v826 = vpop.f32.mrf.mxu0
          %v827 = vadd.f32 0.0, %v826
          %828 = vmatmul.f32.gmra.mxu0 %v362
          %v829 = vpop.f32.mrf.mxu0
          %v830 = vadd.f32 0.0, %v829
          %831 = vmatmul.f32.gmra.mxu0 %v364
          %v832 = vpop.f32.mrf.mxu0
          %v833 = vadd.f32 0.0, %v832
          %834 = vmatmul.f32.gmra.mxu0 %v366
          %v835 = vpop.f32.mrf.mxu0
          %v836 = vadd.f32 0.0, %v835
          %837 = vmatmul.f32.gmra.mxu0 %v368
          %v838 = vpop.f32.mrf.mxu0
          %v839 = vadd.f32 0.0, %v838
          %840 = vmatmul.f32.gmra.mxu0 %v370
          %v841 = vpop.f32.mrf.mxu0
          %v842 = vadd.f32 0.0, %v841
          %843 = vmatmul.f32.gmra.mxu0 %v372
          %v844 = vpop.f32.mrf.mxu0
          %v845 = vadd.f32 0.0, %v844
          %846 = vmatmul.f32.gmra.mxu0 %v374
          %v847 = vpop.f32.mrf.mxu0
          %v848 = vadd.f32 0.0, %v847
          %849 = vmatmul.f32.gmra.mxu0 %v376
          %v850 = vpop.f32.mrf.mxu0
          %v851 = vadd.f32 0.0, %v850
          %852 = vmatmul.f32.gmra.mxu0 %v378
          %v853 = vpop.f32.mrf.mxu0
          %v854 = vadd.f32 0.0, %v853
          %855 = vmatmul.f32.gmra.mxu0 %v380
          %v856 = vpop.f32.mrf.mxu0
          %v857 = vadd.f32 0.0, %v856
          %858 = vmatmul.f32.gmra.mxu0 %v382
          %v859 = vpop.f32.mrf.mxu0
          %v860 = vadd.f32 0.0, %v859
          %861 = vmatmul.f32.gmra.mxu0 %v384
          %v862 = vpop.f32.mrf.mxu0
          %v863 = vadd.f32 0.0, %v862
          %864 = vmatmul.f32.gmra.mxu0 %v386
          %v865 = vpop.f32.mrf.mxu0
          %v866 = vadd.f32 0.0, %v865
          %867 = vmatmul.f32.gmra.mxu0 %v388
          %v868 = vpop.f32.mrf.mxu0
          %v869 = vadd.f32 0.0, %v868
          %870 = vmatmul.f32.gmra.mxu0 %v390
          %v871 = vpop.f32.mrf.mxu0
          %v872 = vadd.f32 0.0, %v871
          %873 = vmatmul.f32.gmra.mxu0 %v392
          %v874 = vpop.f32.mrf.mxu0
          %v875 = vadd.f32 0.0, %v874
          %876 = vmatmul.f32.gmra.mxu0 %v394
          %v877 = vpop.f32.mrf.mxu0
          %v878 = vadd.f32 0.0, %v877
          %879 = vmatmul.f32.gmra.mxu0 %v396
          %v880 = vpop.f32.mrf.mxu0
          %v881 = vadd.f32 0.0, %v880
          %882 = vmatmul.f32.gmra.mxu0 %v398
          %v883 = vpop.f32.mrf.mxu0
          %v884 = vadd.f32 0.0, %v883
          %885 = vmatmul.f32.gmra.mxu0 %v400
          %v886 = vpop.f32.mrf.mxu0
          %v887 = vadd.f32 0.0, %v886
          %888 = vmatmul.f32.gmra.mxu0 %v402
          %v889 = vpop.f32.mrf.mxu0
          %v890 = vadd.f32 0.0, %v889
          %891 = vmatmul.f32.gmra.mxu0 %v404
          %v892 = vpop.f32.mrf.mxu0
          %v893 = vadd.f32 0.0, %v892
          %894 = vmatmul.f32.gmra.mxu0 %v406
          %v895 = vpop.f32.mrf.mxu0
          %v896 = vadd.f32 0.0, %v895
          %897 = vmatmul.f32.gmra.mxu0 %v408
          %v898 = vpop.f32.mrf.mxu0
          %v899 = vadd.f32 0.0, %v898
          %900 = vmatmul.f32.gmra.mxu0 %v410
          %v901 = vpop.f32.mrf.mxu0
          %v902 = vadd.f32 0.0, %v901
          %903 = vmatmul.f32.gmra.mxu0 %v412
          %v904 = vpop.f32.mrf.mxu0
          %v905 = vadd.f32 0.0, %v904
          %906 = vmatmul.f32.gmra.mxu0 %v414
          %v907 = vpop.f32.mrf.mxu0
          %v908 = vadd.f32 0.0, %v907
          %909 = vmatmul.f32.gmra.mxu0 %v416
          %v910 = vpop.f32.mrf.mxu0
          %v911 = vadd.f32 0.0, %v910
          %912 = vmatmul.f32.gmra.mxu0 %v418
          %v913 = vpop.f32.mrf.mxu0
          %v914 = vadd.f32 0.0, %v913
          %915 = vdwg.mxu0
          %916 = vmatpush.msra.mxu0 0.0
          %917 = vmatpush.msra.mxu0 0.0
          %918 = vmatpush.msra.mxu0 0.0
          %919 = vmatpush.msra.mxu0 0.0
          %920 = vmatpush.msra.mxu0 0.0
          %921 = vmatpush.msra.mxu0 0.0
          %922 = vmatpush.msra.mxu0 0.0
          %923 = vmatpush.msra.mxu0 0.0
          %924 = vmatpush.msra.mxu0 0.0
          %925 = vmatpush.msra.mxu0 0.0
          %926 = vmatpush.msra.mxu0 0.0
          %927 = vmatpush.msra.mxu0 0.0
          %928 = vmatpush.msra.mxu0 %v478
          %929 = vmatpush.msra.mxu0 %v475
          %930 = vmatpush.msra.mxu0 %v472
          %931 = vmatpush.msra.mxu0 %v469
          %932 = vmatmul.f32.gmra.mxu0 %v482
          %v933 = vpop.f32.mrf.mxu0
          %v934 = vadd.f32 %v821, %v933
          %935 = vmatmul.f32.gmra.mxu0 %v485
          %v936 = vpop.f32.mrf.mxu0
          %v937 = vadd.f32 %v824, %v936
          %938 = vmatmul.f32.gmra.mxu0 %v488
          %v939 = vpop.f32.mrf.mxu0
          %v940 = vadd.f32 %v827, %v939
          %941 = vmatmul.f32.gmra.mxu0 %v491
          %v942 = vpop.f32.mrf.mxu0
          %v943 = vadd.f32 %v830, %v942
          %944 = vmatmul.f32.gmra.mxu0 %v494
          %v945 = vpop.f32.mrf.mxu0
          %v946 = vadd.f32 %v833, %v945
          %947 = vmatmul.f32.gmra.mxu0 %v497
          %v948 = vpop.f32.mrf.mxu0
          %v949 = vadd.f32 %v836, %v948
          %950 = vmatmul.f32.gmra.mxu0 %v500
          %v951 = vpop.f32.mrf.mxu0
          %v952 = vadd.f32 %v839, %v951
          %953 = vmatmul.f32.gmra.mxu0 %v503
          %v954 = vpop.f32.mrf.mxu0
          %v955 = vadd.f32 %v842, %v954
          %956 = vmatmul.f32.gmra.mxu0 %v506
          %v957 = vpop.f32.mrf.mxu0
          %v958 = vadd.f32 %v845, %v957
          %959 = vmatmul.f32.gmra.mxu0 %v509
          %v960 = vpop.f32.mrf.mxu0
          %v961 = vadd.f32 %v848, %v960
          %962 = vmatmul.f32.gmra.mxu0 %v512
          %v963 = vpop.f32.mrf.mxu0
          %v964 = vadd.f32 %v851, %v963
          %965 = vmatmul.f32.gmra.mxu0 %v515
          %v966 = vpop.f32.mrf.mxu0
          %v967 = vadd.f32 %v854, %v966
          %968 = vmatmul.f32.gmra.mxu0 %v518
          %v969 = vpop.f32.mrf.mxu0
          %v970 = vadd.f32 %v857, %v969
          %971 = vmatmul.f32.gmra.mxu0 %v521
          %v972 = vpop.f32.mrf.mxu0
          %v973 = vadd.f32 %v860, %v972
          %974 = vmatmul.f32.gmra.mxu0 %v524
          %v975 = vpop.f32.mrf.mxu0
          %v976 = vadd.f32 %v863, %v975
          %977 = vmatmul.f32.gmra.mxu0 %v527
          %v978 = vpop.f32.mrf.mxu0
          %v979 = vadd.f32 %v866, %v978
          %980 = vmatmul.f32.gmra.mxu0 %v530
          %v981 = vpop.f32.mrf.mxu0
          %v982 = vadd.f32 %v869, %v981
          %983 = vmatmul.f32.gmra.mxu0 %v533
          %v984 = vpop.f32.mrf.mxu0
          %v985 = vadd.f32 %v872, %v984
          %986 = vmatmul.f32.gmra.mxu0 %v536
          %v987 = vpop.f32.mrf.mxu0
          %v988 = vadd.f32 %v875, %v987
          %989 = vmatmul.f32.gmra.mxu0 %v539
          %v990 = vpop.f32.mrf.mxu0
          %v991 = vadd.f32 %v878, %v990
          %992 = vmatmul.f32.gmra.mxu0 %v542
          %v993 = vpop.f32.mrf.mxu0
          %v994 = vadd.f32 %v881, %v993
          %995 = vmatmul.f32.gmra.mxu0 %v545
          %v996 = vpop.f32.mrf.mxu0
          %v997 = vadd.f32 %v884, %v996
          %998 = vmatmul.f32.gmra.mxu0 %v548
          %v999 = vpop.f32.mrf.mxu0
          %v1000 = vadd.f32 %v887, %v999
          %1001 = vmatmul.f32.gmra.mxu0 %v551
          %v1002 = vpop.f32.mrf.mxu0
          %v1003 = vadd.f32 %v890, %v1002
          %1004 = vmatmul.f32.gmra.mxu0 %v554
          %v1005 = vpop.f32.mrf.mxu0
          %v1006 = vadd.f32 %v893, %v1005
          %1007 = vmatmul.f32.gmra.mxu0 %v557
          %v1008 = vpop.f32.mrf.mxu0
          %v1009 = vadd.f32 %v896, %v1008
          %1010 = vmatmul.f32.gmra.mxu0 %v560
          %v1011 = vpop.f32.mrf.mxu0
          %v1012 = vadd.f32 %v899, %v1011
          %1013 = vmatmul.f32.gmra.mxu0 %v563
          %v1014 = vpop.f32.mrf.mxu0
          %v1015 = vadd.f32 %v902, %v1014
          %1016 = vmatmul.f32.gmra.mxu0 %v566
          %v1017 = vpop.f32.mrf.mxu0
          %v1018 = vadd.f32 %v905, %v1017
          %1019 = vmatmul.f32.gmra.mxu0 %v569
          %v1020 = vpop.f32.mrf.mxu0
          %v1021 = vadd.f32 %v908, %v1020
          %1022 = vmatmul.f32.gmra.mxu0 %v572
          %v1023 = vpop.f32.mrf.mxu0
          %v1024 = vadd.f32 %v911, %v1023
          %1025 = vmatmul.f32.gmra.mxu0 %v575
          %v1026 = vpop.f32.mrf.mxu0
          %v1027 = vadd.f32 %v914, %v1026
          %1028 = vdwg.mxu0
          %1029 = vmatpush.msra.mxu0 %v467
          %1030 = vmatpush.msra.mxu0 %v464
          %1031 = vmatpush.msra.mxu0 %v461
          %1032 = vmatpush.msra.mxu0 %v458
          %1033 = vmatpush.msra.mxu0 %v455
          %1034 = vmatpush.msra.mxu0 %v452
          %1035 = vmatpush.msra.mxu0 %v449
          %1036 = vmatpush.msra.mxu0 %v446
          %1037 = vmatpush.msra.mxu0 %v443
          %1038 = vmatpush.msra.mxu0 %v440
          %1039 = vmatpush.msra.mxu0 %v437
          %1040 = vmatpush.msra.mxu0 %v434
          %1041 = vmatpush.msra.mxu0 %v431
          %1042 = vmatpush.msra.mxu0 %v428
          %1043 = vmatpush.msra.mxu0 %v425
          %1044 = vmatpush.msra.mxu0 %v422
          %1045 = vmatmul.f32.gmra.mxu0 %v356
          %v1046 = vpop.f32.mrf.mxu0
          %v1047 = vadd.f32 0.0, %v1046
          %1048 = vmatmul.f32.gmra.mxu0 %v358
          %v1049 = vpop.f32.mrf.mxu0
          %v1050 = vadd.f32 0.0, %v1049
          %1051 = vmatmul.f32.gmra.mxu0 %v360
          %v1052 = vpop.f32.mrf.mxu0
          %v1053 = vadd.f32 0.0, %v1052
          %1054 = vmatmul.f32.gmra.mxu0 %v362
          %v1055 = vpop.f32.mrf.mxu0
          %v1056 = vadd.f32 0.0, %v1055
          %1057 = vmatmul.f32.gmra.mxu0 %v364
          %v1058 = vpop.f32.mrf.mxu0
          %v1059 = vadd.f32 0.0, %v1058
          %1060 = vmatmul.f32.gmra.mxu0 %v366
          %v1061 = vpop.f32.mrf.mxu0
          %v1062 = vadd.f32 0.0, %v1061
          %1063 = vmatmul.f32.gmra.mxu0 %v368
          %v1064 = vpop.f32.mrf.mxu0
          %v1065 = vadd.f32 0.0, %v1064
          %1066 = vmatmul.f32.gmra.mxu0 %v370
          %v1067 = vpop.f32.mrf.mxu0
          %v1068 = vadd.f32 0.0, %v1067
          %1069 = vmatmul.f32.gmra.mxu0 %v372
          %v1070 = vpop.f32.mrf.mxu0
          %v1071 = vadd.f32 0.0, %v1070
          %1072 = vmatmul.f32.gmra.mxu0 %v374
          %v1073 = vpop.f32.mrf.mxu0
          %v1074 = vadd.f32 0.0, %v1073
          %1075 = vmatmul.f32.gmra.mxu0 %v376
          %v1076 = vpop.f32.mrf.mxu0
          %v1077 = vadd.f32 0.0, %v1076
          %1078 = vmatmul.f32.gmra.mxu0 %v378
          %v1079 = vpop.f32.mrf.mxu0
          %v1080 = vadd.f32 0.0, %v1079
          %1081 = vmatmul.f32.gmra.mxu0 %v380
          %v1082 = vpop.f32.mrf.mxu0
          %v1083 = vadd.f32 0.0, %v1082
          %1084 = vmatmul.f32.gmra.mxu0 %v382
          %v1085 = vpop.f32.mrf.mxu0
          %v1086 = vadd.f32 0.0, %v1085
          %1087 = vmatmul.f32.gmra.mxu0 %v384
          %v1088 = vpop.f32.mrf.mxu0
          %v1089 = vadd.f32 0.0, %v1088
          %1090 = vmatmul.f32.gmra.mxu0 %v386
          %v1091 = vpop.f32.mrf.mxu0
          %v1092 = vadd.f32 0.0, %v1091
          %1093 = vmatmul.f32.gmra.mxu0 %v388
          %v1094 = vpop.f32.mrf.mxu0
          %v1095 = vadd.f32 0.0, %v1094
          %1096 = vmatmul.f32.gmra.mxu0 %v390
          %v1097 = vpop.f32.mrf.mxu0
          %v1098 = vadd.f32 0.0, %v1097
          %1099 = vmatmul.f32.gmra.mxu0 %v392
          %v1100 = vpop.f32.mrf.mxu0
          %v1101 = vadd.f32 0.0, %v1100
          %1102 = vmatmul.f32.gmra.mxu0 %v394
          %v1103 = vpop.f32.mrf.mxu0
          %v1104 = vadd.f32 0.0, %v1103
          %1105 = vmatmul.f32.gmra.mxu0 %v396
          %v1106 = vpop.f32.mrf.mxu0
          %v1107 = vadd.f32 0.0, %v1106
          %1108 = vmatmul.f32.gmra.mxu0 %v398
          %v1109 = vpop.f32.mrf.mxu0
          %v1110 = vadd.f32 0.0, %v1109
          %1111 = vmatmul.f32.gmra.mxu0 %v400
          %v1112 = vpop.f32.mrf.mxu0
          %v1113 = vadd.f32 0.0, %v1112
          %1114 = vmatmul.f32.gmra.mxu0 %v402
          %v1115 = vpop.f32.mrf.mxu0
          %v1116 = vadd.f32 0.0, %v1115
          %1117 = vmatmul.f32.gmra.mxu0 %v404
          %v1118 = vpop.f32.mrf.mxu0
          %v1119 = vadd.f32 0.0, %v1118
          %1120 = vmatmul.f32.gmra.mxu0 %v406
          %v1121 = vpop.f32.mrf.mxu0
          %v1122 = vadd.f32 0.0, %v1121
          %1123 = vmatmul.f32.gmra.mxu0 %v408
          %v1124 = vpop.f32.mrf.mxu0
          %v1125 = vadd.f32 0.0, %v1124
          %1126 = vmatmul.f32.gmra.mxu0 %v410
          %v1127 = vpop.f32.mrf.mxu0
          %v1128 = vadd.f32 0.0, %v1127
          %1129 = vmatmul.f32.gmra.mxu0 %v412
          %v1130 = vpop.f32.mrf.mxu0
          %v1131 = vadd.f32 0.0, %v1130
          %1132 = vmatmul.f32.gmra.mxu0 %v414
          %v1133 = vpop.f32.mrf.mxu0
          %v1134 = vadd.f32 0.0, %v1133
          %1135 = vmatmul.f32.gmra.mxu0 %v416
          %v1136 = vpop.f32.mrf.mxu0
          %v1137 = vadd.f32 0.0, %v1136
          %1138 = vmatmul.f32.gmra.mxu0 %v418
          %v1139 = vpop.f32.mrf.mxu0
          %v1140 = vadd.f32 0.0, %v1139
          %1141 = vdwg.mxu0
          %1142 = vmatpush.msra.mxu0 0.0
          %1143 = vmatpush.msra.mxu0 0.0
          %1144 = vmatpush.msra.mxu0 0.0
          %1145 = vmatpush.msra.mxu0 0.0
          %1146 = vmatpush.msra.mxu0 0.0
          %1147 = vmatpush.msra.mxu0 0.0
          %1148 = vmatpush.msra.mxu0 0.0
          %1149 = vmatpush.msra.mxu0 0.0
          %1150 = vmatpush.msra.mxu0 0.0
          %1151 = vmatpush.msra.mxu0 0.0
          %1152 = vmatpush.msra.mxu0 0.0
          %1153 = vmatpush.msra.mxu0 0.0
          %1154 = vmatpush.msra.mxu0 %v479
          %1155 = vmatpush.msra.mxu0 %v476
          %1156 = vmatpush.msra.mxu0 %v473
          %1157 = vmatpush.msra.mxu0 %v470
          %1158 = vmatmul.f32.gmra.mxu0 %v482
          %v1159 = vpop.f32.mrf.mxu0
          %v1160 = vadd.f32 %v1047, %v1159
          %1161 = vmatmul.f32.gmra.mxu0 %v485
          %v1162 = vpop.f32.mrf.mxu0
          %v1163 = vadd.f32 %v1050, %v1162
          %1164 = vmatmul.f32.gmra.mxu0 %v488
          %v1165 = vpop.f32.mrf.mxu0
          %v1166 = vadd.f32 %v1053, %v1165
          %1167 = vmatmul.f32.gmra.mxu0 %v491
          %v1168 = vpop.f32.mrf.mxu0
          %v1169 = vadd.f32 %v1056, %v1168
          %1170 = vmatmul.f32.gmra.mxu0 %v494
          %v1171 = vpop.f32.mrf.mxu0
          %v1172 = vadd.f32 %v1059, %v1171
          %1173 = vmatmul.f32.gmra.mxu0 %v497
          %v1174 = vpop.f32.mrf.mxu0
          %v1175 = vadd.f32 %v1062, %v1174
          %1176 = vmatmul.f32.gmra.mxu0 %v500
          %v1177 = vpop.f32.mrf.mxu0
          %v1178 = vadd.f32 %v1065, %v1177
          %1179 = vmatmul.f32.gmra.mxu0 %v503
          %v1180 = vpop.f32.mrf.mxu0
          %v1181 = vadd.f32 %v1068, %v1180
          %1182 = vmatmul.f32.gmra.mxu0 %v506
          %v1183 = vpop.f32.mrf.mxu0
          %v1184 = vadd.f32 %v1071, %v1183
          %1185 = vmatmul.f32.gmra.mxu0 %v509
          %v1186 = vpop.f32.mrf.mxu0
          %v1187 = vadd.f32 %v1074, %v1186
          %1188 = vmatmul.f32.gmra.mxu0 %v512
          %v1189 = vpop.f32.mrf.mxu0
          %v1190 = vadd.f32 %v1077, %v1189
          %1191 = vmatmul.f32.gmra.mxu0 %v515
          %v1192 = vpop.f32.mrf.mxu0
          %v1193 = vadd.f32 %v1080, %v1192
          %1194 = vmatmul.f32.gmra.mxu0 %v518
          %v1195 = vpop.f32.mrf.mxu0
          %v1196 = vadd.f32 %v1083, %v1195
          %1197 = vmatmul.f32.gmra.mxu0 %v521
          %v1198 = vpop.f32.mrf.mxu0
          %v1199 = vadd.f32 %v1086, %v1198
          %1200 = vmatmul.f32.gmra.mxu0 %v524
          %v1201 = vpop.f32.mrf.mxu0
          %v1202 = vadd.f32 %v1089, %v1201
          %1203 = vmatmul.f32.gmra.mxu0 %v527
          %v1204 = vpop.f32.mrf.mxu0
          %v1205 = vadd.f32 %v1092, %v1204
          %1206 = vmatmul.f32.gmra.mxu0 %v530
          %v1207 = vpop.f32.mrf.mxu0
          %v1208 = vadd.f32 %v1095, %v1207
          %1209 = vmatmul.f32.gmra.mxu0 %v533
          %v1210 = vpop.f32.mrf.mxu0
          %v1211 = vadd.f32 %v1098, %v1210
          %1212 = vmatmul.f32.gmra.mxu0 %v536
          %v1213 = vpop.f32.mrf.mxu0
          %v1214 = vadd.f32 %v1101, %v1213
          %1215 = vmatmul.f32.gmra.mxu0 %v539
          %v1216 = vpop.f32.mrf.mxu0
          %v1217 = vadd.f32 %v1104, %v1216
          %1218 = vmatmul.f32.gmra.mxu0 %v542
          %v1219 = vpop.f32.mrf.mxu0
          %v1220 = vadd.f32 %v1107, %v1219
          %1221 = vmatmul.f32.gmra.mxu0 %v545
          %v1222 = vpop.f32.mrf.mxu0
          %v1223 = vadd.f32 %v1110, %v1222
          %1224 = vmatmul.f32.gmra.mxu0 %v548
          %v1225 = vpop.f32.mrf.mxu0
          %v1226 = vadd.f32 %v1113, %v1225
          %1227 = vmatmul.f32.gmra.mxu0 %v551
          %v1228 = vpop.f32.mrf.mxu0
          %v1229 = vadd.f32 %v1116, %v1228
          %1230 = vmatmul.f32.gmra.mxu0 %v554
          %v1231 = vpop.f32.mrf.mxu0
          %v1232 = vadd.f32 %v1119, %v1231
          %1233 = vmatmul.f32.gmra.mxu0 %v557
          %v1234 = vpop.f32.mrf.mxu0
          %v1235 = vadd.f32 %v1122, %v1234
          %1236 = vmatmul.f32.gmra.mxu0 %v560
          %v1237 = vpop.f32.mrf.mxu0
          %v1238 = vadd.f32 %v1125, %v1237
          %1239 = vmatmul.f32.gmra.mxu0 %v563
          %v1240 = vpop.f32.mrf.mxu0
          %v1241 = vadd.f32 %v1128, %v1240
          %1242 = vmatmul.f32.gmra.mxu0 %v566
          %v1243 = vpop.f32.mrf.mxu0
          %v1244 = vadd.f32 %v1131, %v1243
          %1245 = vmatmul.f32.gmra.mxu0 %v569
          %v1246 = vpop.f32.mrf.mxu0
          %v1247 = vadd.f32 %v1134, %v1246
          %1248 = vmatmul.f32.gmra.mxu0 %v572
          %v1249 = vpop.f32.mrf.mxu0
          %v1250 = vadd.f32 %v1137, %v1249
          %1251 = vmatmul.f32.gmra.mxu0 %v575
          %v1252 = vpop.f32.mrf.mxu0
          %v1253 = vadd.f32 %v1140, %v1252
          %1254 = vdwg.mxu0
          %v1255 = vld [vmem:[%s2] sm:$0xff]
          %v1256 = vld [vmem:[%s2 + $0x8] sm:$0xff]
          %v1257 = vld [vmem:[%s2 + $0x10] sm:$0xff]
          %v1258 = vld [vmem:[%s2 + $0x18] sm:$0xff]
          %v1259 = vld [vmem:[%s2 + $0x20] sm:$0xff]
          %v1260 = vld [vmem:[%s2 + $0x28] sm:$0xff]
          %v1261 = vld [vmem:[%s2 + $0x30] sm:$0xff]
          %v1262 = vld [vmem:[%s2 + $0x38] sm:$0xff]
          %v1263 = vld [vmem:[%s2 + $0x40] sm:$0xff]
          %v1264 = vld [vmem:[%s2 + $0x48] sm:$0xff]
          %v1265 = vld [vmem:[%s2 + $0x50] sm:$0xff]
          %v1266 = vld [vmem:[%s2 + $0x58] sm:$0xff]
          %v1267 = vld [vmem:[%s2 + $0x60] sm:$0xff]
          %v1268 = vld [vmem:[%s2 + $0x68] sm:$0xff]
          %v1269 = vld [vmem:[%s2 + $0x70] sm:$0xff]
          %v1270 = vld [vmem:[%s2 + $0x78] sm:$0xff]
          %v1271 = vld [vmem:[%s2 + $0x80] sm:$0xff]
          %v1272 = vld [vmem:[%s2 + $0x88] sm:$0xff]
          %v1273 = vld [vmem:[%s2 + $0x90] sm:$0xff]
          %v1274 = vld [vmem:[%s2 + $0x98] sm:$0xff]
          %v1275 = vld [vmem:[%s2 + $0xa0] sm:$0xff]
          %v1276 = vld [vmem:[%s2 + $0xa8] sm:$0xff]
          %v1277 = vld [vmem:[%s2 + $0xb0] sm:$0xff]
          %v1278 = vld [vmem:[%s2 + $0xb8] sm:$0xff]
          %v1279 = vld [vmem:[%s2 + $0xc0] sm:$0xff]
          %v1280 = vld [vmem:[%s2 + $0xc8] sm:$0xff]
          %v1281 = vld [vmem:[%s2 + $0xd0] sm:$0xff]
          %v1282 = vld [vmem:[%s2 + $0xd8] sm:$0xff]
          %v1283 = vld [vmem:[%s2 + $0xe0] sm:$0xff]
          %v1284 = vld [vmem:[%s2 + $0xe8] sm:$0xff]
          %v1285 = vld [vmem:[%s2 + $0xf0] sm:$0xff]
          %v1286 = vld [vmem:[%s2 + $0xf8] sm:$0xff]
          %v1287 = vld [vmem:[%s2 + $0x100] sm:$0xff]
          %v1288 = vld [vmem:[%s2 + $0x108] sm:$0xff]
          %v1289 = vld [vmem:[%s2 + $0x110] sm:$0xff]
          %v1290 = vld [vmem:[%s2 + $0x118] sm:$0xff]
          %v1291 = vld [vmem:[%s2 + $0x120] sm:$0xff]
          %v1292 = vld [vmem:[%s2 + $0x128] sm:$0xff]
          %v1293 = vld [vmem:[%s2 + $0x130] sm:$0xff]
          %v1294 = vld [vmem:[%s2 + $0x138] sm:$0xff]
          %v1295 = vld [vmem:[%s2 + $0x140] sm:$0xff]
          %v1296 = vld [vmem:[%s2 + $0x148] sm:$0xff]
          %v1297 = vld [vmem:[%s2 + $0x150] sm:$0xff]
          %v1298 = vld [vmem:[%s2 + $0x158] sm:$0xff]
          %v1299 = vld [vmem:[%s2 + $0x160] sm:$0xff]
          %v1300 = vld [vmem:[%s2 + $0x168] sm:$0xff]
          %v1301 = vld [vmem:[%s2 + $0x170] sm:$0xff]
          %v1302 = vld [vmem:[%s2 + $0x178] sm:$0xff]
          %v1303 = vld [vmem:[%s2 + $0x180] sm:$0xff]
          %v1304 = vld [vmem:[%s2 + $0x188] sm:$0xff]
          %v1305 = vld [vmem:[%s2 + $0x190] sm:$0xff]
          %v1306 = vld [vmem:[%s2 + $0x198] sm:$0xff]
          %v1307 = vld [vmem:[%s2 + $0x1a0] sm:$0xff]
          %v1308 = vld [vmem:[%s2 + $0x1a8] sm:$0xff]
          %v1309 = vld [vmem:[%s2 + $0x1b0] sm:$0xff]
          %v1310 = vld [vmem:[%s2 + $0x1b8] sm:$0xff]
          %v1311 = vld [vmem:[%s2 + $0x1c0] sm:$0xff]
          %v1312 = vld [vmem:[%s2 + $0x1c8] sm:$0xff]
          %v1313 = vld [vmem:[%s2 + $0x1d0] sm:$0xff]
          %v1314 = vld [vmem:[%s2 + $0x1d8] sm:$0xff]
          %1315 = vmatpush.msra.mxu0 %v1300
          %1316 = vmatpush.msra.mxu0 %v1297
          %1317 = vmatpush.msra.mxu0 %v1294
          %1318 = vmatpush.msra.mxu0 %v1291
          %1319 = vmatpush.msra.mxu0 %v1288
          %1320 = vmatpush.msra.mxu0 %v1285
          %1321 = vmatpush.msra.mxu0 %v1282
          %1322 = vmatpush.msra.mxu0 %v1279
          %1323 = vmatpush.msra.mxu0 %v1276
          %1324 = vmatpush.msra.mxu0 %v1273
          %1325 = vmatpush.msra.mxu0 %v1270
          %1326 = vmatpush.msra.mxu0 %v1267
          %1327 = vmatpush.msra.mxu0 %v1264
          %1328 = vmatpush.msra.mxu0 %v1261
          %1329 = vmatpush.msra.mxu0 %v1258
          %1330 = vmatpush.msra.mxu0 %v1255
          %1331 = vmatmul.f32.gmra.mxu0 %v356
          %v1332 = vpop.f32.mrf.mxu0
          %v1333 = vadd.f32 0.0, %v1332
          %1334 = vmatmul.f32.gmra.mxu0 %v358
          %v1335 = vpop.f32.mrf.mxu0
          %v1336 = vadd.f32 0.0, %v1335
          %1337 = vmatmul.f32.gmra.mxu0 %v360
          %v1338 = vpop.f32.mrf.mxu0
          %v1339 = vadd.f32 0.0, %v1338
          %1340 = vmatmul.f32.gmra.mxu0 %v362
          %v1341 = vpop.f32.mrf.mxu0
          %v1342 = vadd.f32 0.0, %v1341
          %1343 = vmatmul.f32.gmra.mxu0 %v364
          %v1344 = vpop.f32.mrf.mxu0
          %v1345 = vadd.f32 0.0, %v1344
          %1346 = vmatmul.f32.gmra.mxu0 %v366
          %v1347 = vpop.f32.mrf.mxu0
          %v1348 = vadd.f32 0.0, %v1347
          %1349 = vmatmul.f32.gmra.mxu0 %v368
          %v1350 = vpop.f32.mrf.mxu0
          %v1351 = vadd.f32 0.0, %v1350
          %1352 = vmatmul.f32.gmra.mxu0 %v370
          %v1353 = vpop.f32.mrf.mxu0
          %v1354 = vadd.f32 0.0, %v1353
          %1355 = vmatmul.f32.gmra.mxu0 %v372
          %v1356 = vpop.f32.mrf.mxu0
          %v1357 = vadd.f32 0.0, %v1356
          %1358 = vmatmul.f32.gmra.mxu0 %v374
          %v1359 = vpop.f32.mrf.mxu0
          %v1360 = vadd.f32 0.0, %v1359
          %1361 = vmatmul.f32.gmra.mxu0 %v376
          %v1362 = vpop.f32.mrf.mxu0
          %v1363 = vadd.f32 0.0, %v1362
          %1364 = vmatmul.f32.gmra.mxu0 %v378
          %v1365 = vpop.f32.mrf.mxu0
          %v1366 = vadd.f32 0.0, %v1365
          %1367 = vmatmul.f32.gmra.mxu0 %v380
          %v1368 = vpop.f32.mrf.mxu0
          %v1369 = vadd.f32 0.0, %v1368
          %1370 = vmatmul.f32.gmra.mxu0 %v382
          %v1371 = vpop.f32.mrf.mxu0
          %v1372 = vadd.f32 0.0, %v1371
          %1373 = vmatmul.f32.gmra.mxu0 %v384
          %v1374 = vpop.f32.mrf.mxu0
          %v1375 = vadd.f32 0.0, %v1374
          %1376 = vmatmul.f32.gmra.mxu0 %v386
          %v1377 = vpop.f32.mrf.mxu0
          %v1378 = vadd.f32 0.0, %v1377
          %1379 = vmatmul.f32.gmra.mxu0 %v388
          %v1380 = vpop.f32.mrf.mxu0
          %v1381 = vadd.f32 0.0, %v1380
          %1382 = vmatmul.f32.gmra.mxu0 %v390
          %v1383 = vpop.f32.mrf.mxu0
          %v1384 = vadd.f32 0.0, %v1383
          %1385 = vmatmul.f32.gmra.mxu0 %v392
          %v1386 = vpop.f32.mrf.mxu0
          %v1387 = vadd.f32 0.0, %v1386
          %1388 = vmatmul.f32.gmra.mxu0 %v394
          %v1389 = vpop.f32.mrf.mxu0
          %v1390 = vadd.f32 0.0, %v1389
          %1391 = vmatmul.f32.gmra.mxu0 %v396
          %v1392 = vpop.f32.mrf.mxu0
          %v1393 = vadd.f32 0.0, %v1392
          %1394 = vmatmul.f32.gmra.mxu0 %v398
          %v1395 = vpop.f32.mrf.mxu0
          %v1396 = vadd.f32 0.0, %v1395
          %1397 = vmatmul.f32.gmra.mxu0 %v400
          %v1398 = vpop.f32.mrf.mxu0
          %v1399 = vadd.f32 0.0, %v1398
          %1400 = vmatmul.f32.gmra.mxu0 %v402
          %v1401 = vpop.f32.mrf.mxu0
          %v1402 = vadd.f32 0.0, %v1401
          %1403 = vmatmul.f32.gmra.mxu0 %v404
          %v1404 = vpop.f32.mrf.mxu0
          %v1405 = vadd.f32 0.0, %v1404
          %1406 = vmatmul.f32.gmra.mxu0 %v406
          %v1407 = vpop.f32.mrf.mxu0
          %v1408 = vadd.f32 0.0, %v1407
          %1409 = vmatmul.f32.gmra.mxu0 %v408
          %v1410 = vpop.f32.mrf.mxu0
          %v1411 = vadd.f32 0.0, %v1410
          %1412 = vmatmul.f32.gmra.mxu0 %v410
          %v1413 = vpop.f32.mrf.mxu0
          %v1414 = vadd.f32 0.0, %v1413
          %1415 = vmatmul.f32.gmra.mxu0 %v412
          %v1416 = vpop.f32.mrf.mxu0
          %v1417 = vadd.f32 0.0, %v1416
          %1418 = vmatmul.f32.gmra.mxu0 %v414
          %v1419 = vpop.f32.mrf.mxu0
          %v1420 = vadd.f32 0.0, %v1419
          %1421 = vmatmul.f32.gmra.mxu0 %v416
          %v1422 = vpop.f32.mrf.mxu0
          %v1423 = vadd.f32 0.0, %v1422
          %1424 = vmatmul.f32.gmra.mxu0 %v418
          %v1425 = vpop.f32.mrf.mxu0
          %v1426 = vadd.f32 0.0, %v1425
          %1427 = vdwg.mxu0
          %1428 = vmatpush.msra.mxu0 0.0
          %1429 = vmatpush.msra.mxu0 0.0
          %1430 = vmatpush.msra.mxu0 0.0
          %1431 = vmatpush.msra.mxu0 0.0
          %1432 = vmatpush.msra.mxu0 0.0
          %1433 = vmatpush.msra.mxu0 0.0
          %1434 = vmatpush.msra.mxu0 0.0
          %1435 = vmatpush.msra.mxu0 0.0
          %1436 = vmatpush.msra.mxu0 0.0
          %1437 = vmatpush.msra.mxu0 0.0
          %1438 = vmatpush.msra.mxu0 0.0
          %1439 = vmatpush.msra.mxu0 0.0
          %1440 = vmatpush.msra.mxu0 %v1312
          %1441 = vmatpush.msra.mxu0 %v1309
          %1442 = vmatpush.msra.mxu0 %v1306
          %1443 = vmatpush.msra.mxu0 %v1303
          %1444 = vmatmul.f32.gmra.mxu0 %v482
          %v1445 = vpop.f32.mrf.mxu0
          %v1446 = vadd.f32 %v1333, %v1445
          %1447 = vmatmul.f32.gmra.mxu0 %v485
          %v1448 = vpop.f32.mrf.mxu0
          %v1449 = vadd.f32 %v1336, %v1448
          %1450 = vmatmul.f32.gmra.mxu0 %v488
          %v1451 = vpop.f32.mrf.mxu0
          %v1452 = vadd.f32 %v1339, %v1451
          %1453 = vmatmul.f32.gmra.mxu0 %v491
          %v1454 = vpop.f32.mrf.mxu0
          %v1455 = vadd.f32 %v1342, %v1454
          %1456 = vmatmul.f32.gmra.mxu0 %v494
          %v1457 = vpop.f32.mrf.mxu0
          %v1458 = vadd.f32 %v1345, %v1457
          %1459 = vmatmul.f32.gmra.mxu0 %v497
          %v1460 = vpop.f32.mrf.mxu0
          %v1461 = vadd.f32 %v1348, %v1460
          %1462 = vmatmul.f32.gmra.mxu0 %v500
          %v1463 = vpop.f32.mrf.mxu0
          %v1464 = vadd.f32 %v1351, %v1463
          %1465 = vmatmul.f32.gmra.mxu0 %v503
          %v1466 = vpop.f32.mrf.mxu0
          %v1467 = vadd.f32 %v1354, %v1466
          %1468 = vmatmul.f32.gmra.mxu0 %v506
          %v1469 = vpop.f32.mrf.mxu0
          %v1470 = vadd.f32 %v1357, %v1469
          %1471 = vmatmul.f32.gmra.mxu0 %v509
          %v1472 = vpop.f32.mrf.mxu0
          %v1473 = vadd.f32 %v1360, %v1472
          %1474 = vmatmul.f32.gmra.mxu0 %v512
          %v1475 = vpop.f32.mrf.mxu0
          %v1476 = vadd.f32 %v1363, %v1475
          %1477 = vmatmul.f32.gmra.mxu0 %v515
          %v1478 = vpop.f32.mrf.mxu0
          %v1479 = vadd.f32 %v1366, %v1478
          %1480 = vmatmul.f32.gmra.mxu0 %v518
          %v1481 = vpop.f32.mrf.mxu0
          %v1482 = vadd.f32 %v1369, %v1481
          %1483 = vmatmul.f32.gmra.mxu0 %v521
          %v1484 = vpop.f32.mrf.mxu0
          %v1485 = vadd.f32 %v1372, %v1484
          %1486 = vmatmul.f32.gmra.mxu0 %v524
          %v1487 = vpop.f32.mrf.mxu0
          %v1488 = vadd.f32 %v1375, %v1487
          %1489 = vmatmul.f32.gmra.mxu0 %v527
          %v1490 = vpop.f32.mrf.mxu0
          %v1491 = vadd.f32 %v1378, %v1490
          %1492 = vmatmul.f32.gmra.mxu0 %v530
          %v1493 = vpop.f32.mrf.mxu0
          %v1494 = vadd.f32 %v1381, %v1493
          %1495 = vmatmul.f32.gmra.mxu0 %v533
          %v1496 = vpop.f32.mrf.mxu0
          %v1497 = vadd.f32 %v1384, %v1496
          %1498 = vmatmul.f32.gmra.mxu0 %v536
          %v1499 = vpop.f32.mrf.mxu0
          %v1500 = vadd.f32 %v1387, %v1499
          %1501 = vmatmul.f32.gmra.mxu0 %v539
          %v1502 = vpop.f32.mrf.mxu0
          %v1503 = vadd.f32 %v1390, %v1502
          %1504 = vmatmul.f32.gmra.mxu0 %v542
          %v1505 = vpop.f32.mrf.mxu0
          %v1506 = vadd.f32 %v1393, %v1505
          %1507 = vmatmul.f32.gmra.mxu0 %v545
          %v1508 = vpop.f32.mrf.mxu0
          %v1509 = vadd.f32 %v1396, %v1508
          %1510 = vmatmul.f32.gmra.mxu0 %v548
          %v1511 = vpop.f32.mrf.mxu0
          %v1512 = vadd.f32 %v1399, %v1511
          %1513 = vmatmul.f32.gmra.mxu0 %v551
          %v1514 = vpop.f32.mrf.mxu0
          %v1515 = vadd.f32 %v1402, %v1514
          %1516 = vmatmul.f32.gmra.mxu0 %v554
          %v1517 = vpop.f32.mrf.mxu0
          %v1518 = vadd.f32 %v1405, %v1517
          %1519 = vmatmul.f32.gmra.mxu0 %v557
          %v1520 = vpop.f32.mrf.mxu0
          %v1521 = vadd.f32 %v1408, %v1520
          %1522 = vmatmul.f32.gmra.mxu0 %v560
          %v1523 = vpop.f32.mrf.mxu0
          %v1524 = vadd.f32 %v1411, %v1523
          %1525 = vmatmul.f32.gmra.mxu0 %v563
          %v1526 = vpop.f32.mrf.mxu0
          %v1527 = vadd.f32 %v1414, %v1526
          %1528 = vmatmul.f32.gmra.mxu0 %v566
          %v1529 = vpop.f32.mrf.mxu0
          %v1530 = vadd.f32 %v1417, %v1529
          %1531 = vmatmul.f32.gmra.mxu0 %v569
          %v1532 = vpop.f32.mrf.mxu0
          %v1533 = vadd.f32 %v1420, %v1532
          %1534 = vmatmul.f32.gmra.mxu0 %v572
          %v1535 = vpop.f32.mrf.mxu0
          %v1536 = vadd.f32 %v1423, %v1535
          %1537 = vmatmul.f32.gmra.mxu0 %v575
          %v1538 = vpop.f32.mrf.mxu0
          %v1539 = vadd.f32 %v1426, %v1538
          %1540 = vdwg.mxu0
          %1541 = vmatpush.msra.mxu0 %v1301
          %1542 = vmatpush.msra.mxu0 %v1298
          %1543 = vmatpush.msra.mxu0 %v1295
          %1544 = vmatpush.msra.mxu0 %v1292
          %1545 = vmatpush.msra.mxu0 %v1289
          %1546 = vmatpush.msra.mxu0 %v1286
          %1547 = vmatpush.msra.mxu0 %v1283
          %1548 = vmatpush.msra.mxu0 %v1280
          %1549 = vmatpush.msra.mxu0 %v1277
          %1550 = vmatpush.msra.mxu0 %v1274
          %1551 = vmatpush.msra.mxu0 %v1271
          %1552 = vmatpush.msra.mxu0 %v1268
          %1553 = vmatpush.msra.mxu0 %v1265
          %1554 = vmatpush.msra.mxu0 %v1262
          %1555 = vmatpush.msra.mxu0 %v1259
          %1556 = vmatpush.msra.mxu0 %v1256
          %1557 = vmatmul.f32.gmra.mxu0 %v356
          %v1558 = vpop.f32.mrf.mxu0
          %v1559 = vadd.f32 0.0, %v1558
          %1560 = vmatmul.f32.gmra.mxu0 %v358
          %v1561 = vpop.f32.mrf.mxu0
          %v1562 = vadd.f32 0.0, %v1561
          %1563 = vmatmul.f32.gmra.mxu0 %v360
          %v1564 = vpop.f32.mrf.mxu0
          %v1565 = vadd.f32 0.0, %v1564
          %1566 = vmatmul.f32.gmra.mxu0 %v362
          %v1567 = vpop.f32.mrf.mxu0
          %v1568 = vadd.f32 0.0, %v1567
          %1569 = vmatmul.f32.gmra.mxu0 %v364
          %v1570 = vpop.f32.mrf.mxu0
          %v1571 = vadd.f32 0.0, %v1570
          %1572 = vmatmul.f32.gmra.mxu0 %v366
          %v1573 = vpop.f32.mrf.mxu0
          %v1574 = vadd.f32 0.0, %v1573
          %1575 = vmatmul.f32.gmra.mxu0 %v368
          %v1576 = vpop.f32.mrf.mxu0
          %v1577 = vadd.f32 0.0, %v1576
          %1578 = vmatmul.f32.gmra.mxu0 %v370
          %v1579 = vpop.f32.mrf.mxu0
          %v1580 = vadd.f32 0.0, %v1579
          %1581 = vmatmul.f32.gmra.mxu0 %v372
          %v1582 = vpop.f32.mrf.mxu0
          %v1583 = vadd.f32 0.0, %v1582
          %1584 = vmatmul.f32.gmra.mxu0 %v374
          %v1585 = vpop.f32.mrf.mxu0
          %v1586 = vadd.f32 0.0, %v1585
          %1587 = vmatmul.f32.gmra.mxu0 %v376
          %v1588 = vpop.f32.mrf.mxu0
          %v1589 = vadd.f32 0.0, %v1588
          %1590 = vmatmul.f32.gmra.mxu0 %v378
          %v1591 = vpop.f32.mrf.mxu0
          %v1592 = vadd.f32 0.0, %v1591
          %1593 = vmatmul.f32.gmra.mxu0 %v380
          %v1594 = vpop.f32.mrf.mxu0
          %v1595 = vadd.f32 0.0, %v1594
          %1596 = vmatmul.f32.gmra.mxu0 %v382
          %v1597 = vpop.f32.mrf.mxu0
          %v1598 = vadd.f32 0.0, %v1597
          %1599 = vmatmul.f32.gmra.mxu0 %v384
          %v1600 = vpop.f32.mrf.mxu0
          %v1601 = vadd.f32 0.0, %v1600
          %1602 = vmatmul.f32.gmra.mxu0 %v386
          %v1603 = vpop.f32.mrf.mxu0
          %v1604 = vadd.f32 0.0, %v1603
          %1605 = vmatmul.f32.gmra.mxu0 %v388
          %v1606 = vpop.f32.mrf.mxu0
          %v1607 = vadd.f32 0.0, %v1606
          %1608 = vmatmul.f32.gmra.mxu0 %v390
          %v1609 = vpop.f32.mrf.mxu0
          %v1610 = vadd.f32 0.0, %v1609
          %1611 = vmatmul.f32.gmra.mxu0 %v392
          %v1612 = vpop.f32.mrf.mxu0
          %v1613 = vadd.f32 0.0, %v1612
          %1614 = vmatmul.f32.gmra.mxu0 %v394
          %v1615 = vpop.f32.mrf.mxu0
          %v1616 = vadd.f32 0.0, %v1615
          %1617 = vmatmul.f32.gmra.mxu0 %v396
          %v1618 = vpop.f32.mrf.mxu0
          %v1619 = vadd.f32 0.0, %v1618
          %1620 = vmatmul.f32.gmra.mxu0 %v398
          %v1621 = vpop.f32.mrf.mxu0
          %v1622 = vadd.f32 0.0, %v1621
          %1623 = vmatmul.f32.gmra.mxu0 %v400
          %v1624 = vpop.f32.mrf.mxu0
          %v1625 = vadd.f32 0.0, %v1624
          %1626 = vmatmul.f32.gmra.mxu0 %v402
          %v1627 = vpop.f32.mrf.mxu0
          %v1628 = vadd.f32 0.0, %v1627
          %1629 = vmatmul.f32.gmra.mxu0 %v404
          %v1630 = vpop.f32.mrf.mxu0
          %v1631 = vadd.f32 0.0, %v1630
          %1632 = vmatmul.f32.gmra.mxu0 %v406
          %v1633 = vpop.f32.mrf.mxu0
          %v1634 = vadd.f32 0.0, %v1633
          %1635 = vmatmul.f32.gmra.mxu0 %v408
          %v1636 = vpop.f32.mrf.mxu0
          %v1637 = vadd.f32 0.0, %v1636
          %1638 = vmatmul.f32.gmra.mxu0 %v410
          %v1639 = vpop.f32.mrf.mxu0
          %v1640 = vadd.f32 0.0, %v1639
          %1641 = vmatmul.f32.gmra.mxu0 %v412
          %v1642 = vpop.f32.mrf.mxu0
          %v1643 = vadd.f32 0.0, %v1642
          %1644 = vmatmul.f32.gmra.mxu0 %v414
          %v1645 = vpop.f32.mrf.mxu0
          %v1646 = vadd.f32 0.0, %v1645
          %1647 = vmatmul.f32.gmra.mxu0 %v416
          %v1648 = vpop.f32.mrf.mxu0
          %v1649 = vadd.f32 0.0, %v1648
          %1650 = vmatmul.f32.gmra.mxu0 %v418
          %v1651 = vpop.f32.mrf.mxu0
          %v1652 = vadd.f32 0.0, %v1651
          %1653 = vdwg.mxu0
          %1654 = vmatpush.msra.mxu0 0.0
          %1655 = vmatpush.msra.mxu0 0.0
          %1656 = vmatpush.msra.mxu0 0.0
          %1657 = vmatpush.msra.mxu0 0.0
          %1658 = vmatpush.msra.mxu0 0.0
          %1659 = vmatpush.msra.mxu0 0.0
          %1660 = vmatpush.msra.mxu0 0.0
          %1661 = vmatpush.msra.mxu0 0.0
          %1662 = vmatpush.msra.mxu0 0.0
          %1663 = vmatpush.msra.mxu0 0.0
          %1664 = vmatpush.msra.mxu0 0.0
          %1665 = vmatpush.msra.mxu0 0.0
          %1666 = vmatpush.msra.mxu0 %v1313
          %1667 = vmatpush.msra.mxu0 %v1310
          %1668 = vmatpush.msra.mxu0 %v1307
          %1669 = vmatpush.msra.mxu0 %v1304
          %1670 = vmatmul.f32.gmra.mxu0 %v482
          %v1671 = vpop.f32.mrf.mxu0
          %v1672 = vadd.f32 %v1559, %v1671
          %1673 = vmatmul.f32.gmra.mxu0 %v485
          %v1674 = vpop.f32.mrf.mxu0
          %v1675 = vadd.f32 %v1562, %v1674
          %1676 = vmatmul.f32.gmra.mxu0 %v488
          %v1677 = vpop.f32.mrf.mxu0
          %v1678 = vadd.f32 %v1565, %v1677
          %1679 = vmatmul.f32.gmra.mxu0 %v491
          %v1680 = vpop.f32.mrf.mxu0
          %v1681 = vadd.f32 %v1568, %v1680
          %1682 = vmatmul.f32.gmra.mxu0 %v494
          %v1683 = vpop.f32.mrf.mxu0
          %v1684 = vadd.f32 %v1571, %v1683
          %1685 = vmatmul.f32.gmra.mxu0 %v497
          %v1686 = vpop.f32.mrf.mxu0
          %v1687 = vadd.f32 %v1574, %v1686
          %1688 = vmatmul.f32.gmra.mxu0 %v500
          %v1689 = vpop.f32.mrf.mxu0
          %v1690 = vadd.f32 %v1577, %v1689
          %1691 = vmatmul.f32.gmra.mxu0 %v503
          %v1692 = vpop.f32.mrf.mxu0
          %v1693 = vadd.f32 %v1580, %v1692
          %1694 = vmatmul.f32.gmra.mxu0 %v506
          %v1695 = vpop.f32.mrf.mxu0
          %v1696 = vadd.f32 %v1583, %v1695
          %1697 = vmatmul.f32.gmra.mxu0 %v509
          %v1698 = vpop.f32.mrf.mxu0
          %v1699 = vadd.f32 %v1586, %v1698
          %1700 = vmatmul.f32.gmra.mxu0 %v512
          %v1701 = vpop.f32.mrf.mxu0
          %v1702 = vadd.f32 %v1589, %v1701
          %1703 = vmatmul.f32.gmra.mxu0 %v515
          %v1704 = vpop.f32.mrf.mxu0
          %v1705 = vadd.f32 %v1592, %v1704
          %1706 = vmatmul.f32.gmra.mxu0 %v518
          %v1707 = vpop.f32.mrf.mxu0
          %v1708 = vadd.f32 %v1595, %v1707
          %1709 = vmatmul.f32.gmra.mxu0 %v521
          %v1710 = vpop.f32.mrf.mxu0
          %v1711 = vadd.f32 %v1598, %v1710
          %1712 = vmatmul.f32.gmra.mxu0 %v524
          %v1713 = vpop.f32.mrf.mxu0
          %v1714 = vadd.f32 %v1601, %v1713
          %1715 = vmatmul.f32.gmra.mxu0 %v527
          %v1716 = vpop.f32.mrf.mxu0
          %v1717 = vadd.f32 %v1604, %v1716
          %1718 = vmatmul.f32.gmra.mxu0 %v530
          %v1719 = vpop.f32.mrf.mxu0
          %v1720 = vadd.f32 %v1607, %v1719
          %1721 = vmatmul.f32.gmra.mxu0 %v533
          %v1722 = vpop.f32.mrf.mxu0
          %v1723 = vadd.f32 %v1610, %v1722
          %1724 = vmatmul.f32.gmra.mxu0 %v536
          %v1725 = vpop.f32.mrf.mxu0
          %v1726 = vadd.f32 %v1613, %v1725
          %1727 = vmatmul.f32.gmra.mxu0 %v539
          %v1728 = vpop.f32.mrf.mxu0
          %v1729 = vadd.f32 %v1616, %v1728
          %1730 = vmatmul.f32.gmra.mxu0 %v542
          %v1731 = vpop.f32.mrf.mxu0
          %v1732 = vadd.f32 %v1619, %v1731
          %1733 = vmatmul.f32.gmra.mxu0 %v545
          %v1734 = vpop.f32.mrf.mxu0
          %v1735 = vadd.f32 %v1622, %v1734
          %1736 = vmatmul.f32.gmra.mxu0 %v548
          %v1737 = vpop.f32.mrf.mxu0
          %v1738 = vadd.f32 %v1625, %v1737
          %1739 = vmatmul.f32.gmra.mxu0 %v551
          %v1740 = vpop.f32.mrf.mxu0
          %v1741 = vadd.f32 %v1628, %v1740
          %1742 = vmatmul.f32.gmra.mxu0 %v554
          %v1743 = vpop.f32.mrf.mxu0
          %v1744 = vadd.f32 %v1631, %v1743
          %1745 = vmatmul.f32.gmra.mxu0 %v557
          %v1746 = vpop.f32.mrf.mxu0
          %v1747 = vadd.f32 %v1634, %v1746
          %1748 = vmatmul.f32.gmra.mxu0 %v560
          %v1749 = vpop.f32.mrf.mxu0
          %v1750 = vadd.f32 %v1637, %v1749
          %1751 = vmatmul.f32.gmra.mxu0 %v563
          %v1752 = vpop.f32.mrf.mxu0
          %v1753 = vadd.f32 %v1640, %v1752
          %1754 = vmatmul.f32.gmra.mxu0 %v566
          %v1755 = vpop.f32.mrf.mxu0
          %v1756 = vadd.f32 %v1643, %v1755
          %1757 = vmatmul.f32.gmra.mxu0 %v569
          %v1758 = vpop.f32.mrf.mxu0
          %v1759 = vadd.f32 %v1646, %v1758
          %1760 = vmatmul.f32.gmra.mxu0 %v572
          %v1761 = vpop.f32.mrf.mxu0
          %v1762 = vadd.f32 %v1649, %v1761
          %1763 = vmatmul.f32.gmra.mxu0 %v575
          %v1764 = vpop.f32.mrf.mxu0
          %v1765 = vadd.f32 %v1652, %v1764
          %1766 = vdwg.mxu0
          %1767 = vmatpush.msra.mxu0 %v1302
          %1768 = vmatpush.msra.mxu0 %v1299
          %1769 = vmatpush.msra.mxu0 %v1296
          %1770 = vmatpush.msra.mxu0 %v1293
          %1771 = vmatpush.msra.mxu0 %v1290
          %1772 = vmatpush.msra.mxu0 %v1287
          %1773 = vmatpush.msra.mxu0 %v1284
          %1774 = vmatpush.msra.mxu0 %v1281
          %1775 = vmatpush.msra.mxu0 %v1278
          %1776 = vmatpush.msra.mxu0 %v1275
          %1777 = vmatpush.msra.mxu0 %v1272
          %1778 = vmatpush.msra.mxu0 %v1269
          %1779 = vmatpush.msra.mxu0 %v1266
          %1780 = vmatpush.msra.mxu0 %v1263
          %1781 = vmatpush.msra.mxu0 %v1260
          %1782 = vmatpush.msra.mxu0 %v1257
          %1783 = vmatmul.f32.gmra.mxu0 %v356
          %v1784 = vpop.f32.mrf.mxu0
          %v1785 = vadd.f32 0.0, %v1784
          %1786 = vmatmul.f32.gmra.mxu0 %v358
          %v1787 = vpop.f32.mrf.mxu0
          %v1788 = vadd.f32 0.0, %v1787
          %1789 = vmatmul.f32.gmra.mxu0 %v360
          %v1790 = vpop.f32.mrf.mxu0
          %v1791 = vadd.f32 0.0, %v1790
          %1792 = vmatmul.f32.gmra.mxu0 %v362
          %v1793 = vpop.f32.mrf.mxu0
          %v1794 = vadd.f32 0.0, %v1793
          %1795 = vmatmul.f32.gmra.mxu0 %v364
          %v1796 = vpop.f32.mrf.mxu0
          %v1797 = vadd.f32 0.0, %v1796
          %1798 = vmatmul.f32.gmra.mxu0 %v366
          %v1799 = vpop.f32.mrf.mxu0
          %v1800 = vadd.f32 0.0, %v1799
          %1801 = vmatmul.f32.gmra.mxu0 %v368
          %v1802 = vpop.f32.mrf.mxu0
          %v1803 = vadd.f32 0.0, %v1802
          %1804 = vmatmul.f32.gmra.mxu0 %v370
          %v1805 = vpop.f32.mrf.mxu0
          %v1806 = vadd.f32 0.0, %v1805
          %1807 = vmatmul.f32.gmra.mxu0 %v372
          %v1808 = vpop.f32.mrf.mxu0
          %v1809 = vadd.f32 0.0, %v1808
          %1810 = vmatmul.f32.gmra.mxu0 %v374
          %v1811 = vpop.f32.mrf.mxu0
          %v1812 = vadd.f32 0.0, %v1811
          %1813 = vmatmul.f32.gmra.mxu0 %v376
          %v1814 = vpop.f32.mrf.mxu0
          %v1815 = vadd.f32 0.0, %v1814
          %1816 = vmatmul.f32.gmra.mxu0 %v378
          %v1817 = vpop.f32.mrf.mxu0
          %v1818 = vadd.f32 0.0, %v1817
          %1819 = vmatmul.f32.gmra.mxu0 %v380
          %v1820 = vpop.f32.mrf.mxu0
          %v1821 = vadd.f32 0.0, %v1820
          %1822 = vmatmul.f32.gmra.mxu0 %v382
          %v1823 = vpop.f32.mrf.mxu0
          %v1824 = vadd.f32 0.0, %v1823
          %1825 = vmatmul.f32.gmra.mxu0 %v384
          %v1826 = vpop.f32.mrf.mxu0
          %v1827 = vadd.f32 0.0, %v1826
          %1828 = vmatmul.f32.gmra.mxu0 %v386
          %v1829 = vpop.f32.mrf.mxu0
          %v1830 = vadd.f32 0.0, %v1829
          %1831 = vmatmul.f32.gmra.mxu0 %v388
          %v1832 = vpop.f32.mrf.mxu0
          %v1833 = vadd.f32 0.0, %v1832
          %1834 = vmatmul.f32.gmra.mxu0 %v390
          %v1835 = vpop.f32.mrf.mxu0
          %v1836 = vadd.f32 0.0, %v1835
          %1837 = vmatmul.f32.gmra.mxu0 %v392
          %v1838 = vpop.f32.mrf.mxu0
          %v1839 = vadd.f32 0.0, %v1838
          %1840 = vmatmul.f32.gmra.mxu0 %v394
          %v1841 = vpop.f32.mrf.mxu0
          %v1842 = vadd.f32 0.0, %v1841
          %1843 = vmatmul.f32.gmra.mxu0 %v396
          %v1844 = vpop.f32.mrf.mxu0
          %v1845 = vadd.f32 0.0, %v1844
          %1846 = vmatmul.f32.gmra.mxu0 %v398
          %v1847 = vpop.f32.mrf.mxu0
          %v1848 = vadd.f32 0.0, %v1847
          %1849 = vmatmul.f32.gmra.mxu0 %v400
          %v1850 = vpop.f32.mrf.mxu0
          %v1851 = vadd.f32 0.0, %v1850
          %1852 = vmatmul.f32.gmra.mxu0 %v402
          %v1853 = vpop.f32.mrf.mxu0
          %v1854 = vadd.f32 0.0, %v1853
          %1855 = vmatmul.f32.gmra.mxu0 %v404
          %v1856 = vpop.f32.mrf.mxu0
          %v1857 = vadd.f32 0.0, %v1856
          %1858 = vmatmul.f32.gmra.mxu0 %v406
          %v1859 = vpop.f32.mrf.mxu0
          %v1860 = vadd.f32 0.0, %v1859
          %1861 = vmatmul.f32.gmra.mxu0 %v408
          %v1862 = vpop.f32.mrf.mxu0
          %v1863 = vadd.f32 0.0, %v1862
          %1864 = vmatmul.f32.gmra.mxu0 %v410
          %v1865 = vpop.f32.mrf.mxu0
          %v1866 = vadd.f32 0.0, %v1865
          %1867 = vmatmul.f32.gmra.mxu0 %v412
          %v1868 = vpop.f32.mrf.mxu0
          %v1869 = vadd.f32 0.0, %v1868
          %1870 = vmatmul.f32.gmra.mxu0 %v414
          %v1871 = vpop.f32.mrf.mxu0
          %v1872 = vadd.f32 0.0, %v1871
          %1873 = vmatmul.f32.gmra.mxu0 %v416
          %v1874 = vpop.f32.mrf.mxu0
          %v1875 = vadd.f32 0.0, %v1874
          %1876 = vmatmul.f32.gmra.mxu0 %v418
          %v1877 = vpop.f32.mrf.mxu0
          %v1878 = vadd.f32 0.0, %v1877
          %1879 = vdwg.mxu0
          %1880 = vmatpush.msra.mxu0 0.0
          %1881 = vmatpush.msra.mxu0 0.0
          %1882 = vmatpush.msra.mxu0 0.0
          %1883 = vmatpush.msra.mxu0 0.0
          %1884 = vmatpush.msra.mxu0 0.0
          %1885 = vmatpush.msra.mxu0 0.0
          %1886 = vmatpush.msra.mxu0 0.0
          %1887 = vmatpush.msra.mxu0 0.0
          %1888 = vmatpush.msra.mxu0 0.0
          %1889 = vmatpush.msra.mxu0 0.0
          %1890 = vmatpush.msra.mxu0 0.0
          %1891 = vmatpush.msra.mxu0 0.0
          %1892 = vmatpush.msra.mxu0 %v1314
          %1893 = vmatpush.msra.mxu0 %v1311
          %1894 = vmatpush.msra.mxu0 %v1308
          %1895 = vmatpush.msra.mxu0 %v1305
          %1896 = vmatmul.f32.gmra.mxu0 %v482
          %v1897 = vpop.f32.mrf.mxu0
          %v1898 = vadd.f32 %v1785, %v1897
          %1899 = vmatmul.f32.gmra.mxu0 %v485
          %v1900 = vpop.f32.mrf.mxu0
          %v1901 = vadd.f32 %v1788, %v1900
          %1902 = vmatmul.f32.gmra.mxu0 %v488
          %v1903 = vpop.f32.mrf.mxu0
          %v1904 = vadd.f32 %v1791, %v1903
          %1905 = vmatmul.f32.gmra.mxu0 %v491
          %v1906 = vpop.f32.mrf.mxu0
          %v1907 = vadd.f32 %v1794, %v1906
          %1908 = vmatmul.f32.gmra.mxu0 %v494
          %v1909 = vpop.f32.mrf.mxu0
          %v1910 = vadd.f32 %v1797, %v1909
          %1911 = vmatmul.f32.gmra.mxu0 %v497
          %v1912 = vpop.f32.mrf.mxu0
          %v1913 = vadd.f32 %v1800, %v1912
          %1914 = vmatmul.f32.gmra.mxu0 %v500
          %v1915 = vpop.f32.mrf.mxu0
          %v1916 = vadd.f32 %v1803, %v1915
          %1917 = vmatmul.f32.gmra.mxu0 %v503
          %v1918 = vpop.f32.mrf.mxu0
          %v1919 = vadd.f32 %v1806, %v1918
          %1920 = vmatmul.f32.gmra.mxu0 %v506
          %v1921 = vpop.f32.mrf.mxu0
          %v1922 = vadd.f32 %v1809, %v1921
          %1923 = vmatmul.f32.gmra.mxu0 %v509
          %v1924 = vpop.f32.mrf.mxu0
          %v1925 = vadd.f32 %v1812, %v1924
          %1926 = vmatmul.f32.gmra.mxu0 %v512
          %v1927 = vpop.f32.mrf.mxu0
          %v1928 = vadd.f32 %v1815, %v1927
          %1929 = vmatmul.f32.gmra.mxu0 %v515
          %v1930 = vpop.f32.mrf.mxu0
          %v1931 = vadd.f32 %v1818, %v1930
          %1932 = vmatmul.f32.gmra.mxu0 %v518
          %v1933 = vpop.f32.mrf.mxu0
          %v1934 = vadd.f32 %v1821, %v1933
          %1935 = vmatmul.f32.gmra.mxu0 %v521
          %v1936 = vpop.f32.mrf.mxu0
          %v1937 = vadd.f32 %v1824, %v1936
          %1938 = vmatmul.f32.gmra.mxu0 %v524
          %v1939 = vpop.f32.mrf.mxu0
          %v1940 = vadd.f32 %v1827, %v1939
          %1941 = vmatmul.f32.gmra.mxu0 %v527
          %v1942 = vpop.f32.mrf.mxu0
          %v1943 = vadd.f32 %v1830, %v1942
          %1944 = vmatmul.f32.gmra.mxu0 %v530
          %v1945 = vpop.f32.mrf.mxu0
          %v1946 = vadd.f32 %v1833, %v1945
          %1947 = vmatmul.f32.gmra.mxu0 %v533
          %v1948 = vpop.f32.mrf.mxu0
          %v1949 = vadd.f32 %v1836, %v1948
          %1950 = vmatmul.f32.gmra.mxu0 %v536
          %v1951 = vpop.f32.mrf.mxu0
          %v1952 = vadd.f32 %v1839, %v1951
          %1953 = vmatmul.f32.gmra.mxu0 %v539
          %v1954 = vpop.f32.mrf.mxu0
          %v1955 = vadd.f32 %v1842, %v1954
          %1956 = vmatmul.f32.gmra.mxu0 %v542
          %v1957 = vpop.f32.mrf.mxu0
          %v1958 = vadd.f32 %v1845, %v1957
          %1959 = vmatmul.f32.gmra.mxu0 %v545
          %v1960 = vpop.f32.mrf.mxu0
          %v1961 = vadd.f32 %v1848, %v1960
          %1962 = vmatmul.f32.gmra.mxu0 %v548
          %v1963 = vpop.f32.mrf.mxu0
          %v1964 = vadd.f32 %v1851, %v1963
          %1965 = vmatmul.f32.gmra.mxu0 %v551
          %v1966 = vpop.f32.mrf.mxu0
          %v1967 = vadd.f32 %v1854, %v1966
          %1968 = vmatmul.f32.gmra.mxu0 %v554
          %v1969 = vpop.f32.mrf.mxu0
          %v1970 = vadd.f32 %v1857, %v1969
          %1971 = vmatmul.f32.gmra.mxu0 %v557
          %v1972 = vpop.f32.mrf.mxu0
          %v1973 = vadd.f32 %v1860, %v1972
          %1974 = vmatmul.f32.gmra.mxu0 %v560
          %v1975 = vpop.f32.mrf.mxu0
          %v1976 = vadd.f32 %v1863, %v1975
          %1977 = vmatmul.f32.gmra.mxu0 %v563
          %v1978 = vpop.f32.mrf.mxu0
          %v1979 = vadd.f32 %v1866, %v1978
          %1980 = vmatmul.f32.gmra.mxu0 %v566
          %v1981 = vpop.f32.mrf.mxu0
          %v1982 = vadd.f32 %v1869, %v1981
          %1983 = vmatmul.f32.gmra.mxu0 %v569
          %v1984 = vpop.f32.mrf.mxu0
          %v1985 = vadd.f32 %v1872, %v1984
          %1986 = vmatmul.f32.gmra.mxu0 %v572
          %v1987 = vpop.f32.mrf.mxu0
          %v1988 = vadd.f32 %v1875, %v1987
          %1989 = vmatmul.f32.gmra.mxu0 %v575
          %v1990 = vpop.f32.mrf.mxu0
          %v1991 = vadd.f32 %v1878, %v1990
          %1992 = vdwg.mxu0
          %v1993 = vmax.f32 %v708, %v1446
          %v1994 = vmax.f32 %v934, %v1672
          %v1995 = vmax.f32 %v1160, %v1898
          %v1996 = vmax.f32 %v711, %v1449
          %v1997 = vmax.f32 %v937, %v1675
          %v1998 = vmax.f32 %v1163, %v1901
          %v1999 = vmax.f32 %v714, %v1452
          %v2000 = vmax.f32 %v940, %v1678
          %v2001 = vmax.f32 %v1166, %v1904
          %v2002 = vmax.f32 %v717, %v1455
          %v2003 = vmax.f32 %v943, %v1681
          %v2004 = vmax.f32 %v1169, %v1907
          %v2005 = vmax.f32 %v720, %v1458
          %v2006 = vmax.f32 %v946, %v1684
          %v2007 = vmax.f32 %v1172, %v1910
          %v2008 = vmax.f32 %v723, %v1461
          %v2009 = vmax.f32 %v949, %v1687
          %v2010 = vmax.f32 %v1175, %v1913
          %v2011 = vmax.f32 %v726, %v1464
          %v2012 = vmax.f32 %v952, %v1690
          %v2013 = vmax.f32 %v1178, %v1916
          %v2014 = vmax.f32 %v729, %v1467
          %v2015 = vmax.f32 %v955, %v1693
          %v2016 = vmax.f32 %v1181, %v1919
          %v2017 = vmax.f32 %v732, %v1470
          %v2018 = vmax.f32 %v958, %v1696
          %v2019 = vmax.f32 %v1184, %v1922
          %v2020 = vmax.f32 %v735, %v1473
          %v2021 = vmax.f32 %v961, %v1699
          %v2022 = vmax.f32 %v1187, %v1925
          %v2023 = vmax.f32 %v738, %v1476
          %v2024 = vmax.f32 %v964, %v1702
          %v2025 = vmax.f32 %v1190, %v1928
          %v2026 = vmax.f32 %v741, %v1479
          %v2027 = vmax.f32 %v967, %v1705
          %v2028 = vmax.f32 %v1193, %v1931
          %v2029 = vmax.f32 %v744, %v1482
          %v2030 = vmax.f32 %v970, %v1708
          %v2031 = vmax.f32 %v1196, %v1934
          %v2032 = vmax.f32 %v747, %v1485
          %v2033 = vmax.f32 %v973, %v1711
          %v2034 = vmax.f32 %v1199, %v1937
          %v2035 = vmax.f32 %v750, %v1488
          %v2036 = vmax.f32 %v976, %v1714
          %v2037 = vmax.f32 %v1202, %v1940
          %v2038 = vmax.f32 %v753, %v1491
          %v2039 = vmax.f32 %v979, %v1717
          %v2040 = vmax.f32 %v1205, %v1943
          %v2041 = vmax.f32 %v756, %v1494
          %v2042 = vmax.f32 %v982, %v1720
          %v2043 = vmax.f32 %v1208, %v1946
          %v2044 = vmax.f32 %v759, %v1497
          %v2045 = vmax.f32 %v985, %v1723
          %v2046 = vmax.f32 %v1211, %v1949
          %v2047 = vmax.f32 %v762, %v1500
          %v2048 = vmax.f32 %v988, %v1726
          %v2049 = vmax.f32 %v1214, %v1952
          %v2050 = vmax.f32 %v765, %v1503
          %v2051 = vmax.f32 %v991, %v1729
          %v2052 = vmax.f32 %v1217, %v1955
          %v2053 = vmax.f32 %v768, %v1506
          %v2054 = vmax.f32 %v994, %v1732
          %v2055 = vmax.f32 %v1220, %v1958
          %v2056 = vmax.f32 %v771, %v1509
          %v2057 = vmax.f32 %v997, %v1735
          %v2058 = vmax.f32 %v1223, %v1961
          %v2059 = vmax.f32 %v774, %v1512
          %v2060 = vmax.f32 %v1000, %v1738
          %v2061 = vmax.f32 %v1226, %v1964
          %v2062 = vmax.f32 %v777, %v1515
          %v2063 = vmax.f32 %v1003, %v1741
          %v2064 = vmax.f32 %v1229, %v1967
          %v2065 = vmax.f32 %v780, %v1518
          %v2066 = vmax.f32 %v1006, %v1744
          %v2067 = vmax.f32 %v1232, %v1970
          %v2068 = vmax.f32 %v783, %v1521
          %v2069 = vmax.f32 %v1009, %v1747
          %v2070 = vmax.f32 %v1235, %v1973
          %v2071 = vmax.f32 %v786, %v1524
          %v2072 = vmax.f32 %v1012, %v1750
          %v2073 = vmax.f32 %v1238, %v1976
          %v2074 = vmax.f32 %v789, %v1527
          %v2075 = vmax.f32 %v1015, %v1753
          %v2076 = vmax.f32 %v1241, %v1979
          %v2077 = vmax.f32 %v792, %v1530
          %v2078 = vmax.f32 %v1018, %v1756
          %v2079 = vmax.f32 %v1244, %v1982
          %v2080 = vmax.f32 %v795, %v1533
          %v2081 = vmax.f32 %v1021, %v1759
          %v2082 = vmax.f32 %v1247, %v1985
          %v2083 = vmax.f32 %v798, %v1536
          %v2084 = vmax.f32 %v1024, %v1762
          %v2085 = vmax.f32 %v1250, %v1988
          %v2086 = vmax.f32 %v801, %v1539
          %v2087 = vmax.f32 %v1027, %v1765
          %v2088 = vmax.f32 %v1253, %v1991
          %v2089 = vld [vmem:[%s3] sm:$0xff]
          %v2090 = vld [vmem:[%s3 + $0x8] sm:$0xff]
          %v2091 = vld [vmem:[%s3 + $0x10] sm:$0xff]
          %v2092 = vld [vmem:[%s3 + $0x18] sm:$0xff]
          %v2093 = vld [vmem:[%s3 + $0x20] sm:$0xff]
          %v2094 = vld [vmem:[%s3 + $0x28] sm:$0xff]
          %v2095 = vld [vmem:[%s3 + $0x30] sm:$0xff]
          %v2096 = vld [vmem:[%s3 + $0x38] sm:$0xff]
          %v2097 = vld [vmem:[%s3 + $0x40] sm:$0xff]
          %v2098 = vld [vmem:[%s3 + $0x48] sm:$0xff]
          %v2099 = vld [vmem:[%s3 + $0x50] sm:$0xff]
          %v2100 = vld [vmem:[%s3 + $0x58] sm:$0xff]
          %v2101 = vld [vmem:[%s3 + $0x60] sm:$0xff]
          %v2102 = vld [vmem:[%s3 + $0x68] sm:$0xff]
          %v2103 = vld [vmem:[%s3 + $0x70] sm:$0xff]
          %v2104 = vld [vmem:[%s3 + $0x78] sm:$0xff]
          %v2105 = vld [vmem:[%s3 + $0x80] sm:$0xff]
          %v2106 = vld [vmem:[%s3 + $0x88] sm:$0xff]
          %v2107 = vld [vmem:[%s3 + $0x90] sm:$0xff]
          %v2108 = vld [vmem:[%s3 + $0x98] sm:$0xff]
          %v2109 = vld [vmem:[%s3 + $0xa0] sm:$0xff]
          %v2110 = vld [vmem:[%s3 + $0xa8] sm:$0xff]
          %v2111 = vld [vmem:[%s3 + $0xb0] sm:$0xff]
          %v2112 = vld [vmem:[%s3 + $0xb8] sm:$0xff]
          %v2113 = vld [vmem:[%s3 + $0xc0] sm:$0xff]
          %v2114 = vld [vmem:[%s3 + $0xc8] sm:$0xff]
          %v2115 = vld [vmem:[%s3 + $0xd0] sm:$0xff]
          %v2116 = vld [vmem:[%s3 + $0xd8] sm:$0xff]
          %2117 = vmatpush.msra.mxu0 %v2038
          %2118 = vmatpush.msra.mxu0 %v2035
          %2119 = vmatpush.msra.mxu0 %v2032
          %2120 = vmatpush.msra.mxu0 %v2029
          %2121 = vmatpush.msra.mxu0 %v2026
          %2122 = vmatpush.msra.mxu0 %v2023
          %2123 = vmatpush.msra.mxu0 %v2020
          %2124 = vmatpush.msra.mxu0 %v2017
          %2125 = vmatpush.msra.mxu0 %v2014
          %2126 = vmatpush.msra.mxu0 %v2011
          %2127 = vmatpush.msra.mxu0 %v2008
          %2128 = vmatpush.msra.mxu0 %v2005
          %2129 = vmatpush.msra.mxu0 %v2002
          %2130 = vmatpush.msra.mxu0 %v1999
          %2131 = vmatpush.msra.mxu0 %v1996
          %2132 = vmatpush.msra.mxu0 %v1993
          %2133 = vmatmul.f32.gmra.mxu0 %v2089
          %v2134 = vpop.f32.mrf.mxu0
          %v2135 = vadd.f32 0.0, %v2134
          %2136 = vmatmul.f32.gmra.mxu0 %v2091
          %v2137 = vpop.f32.mrf.mxu0
          %v2138 = vadd.f32 0.0, %v2137
          %2139 = vmatmul.f32.gmra.mxu0 %v2093
          %v2140 = vpop.f32.mrf.mxu0
          %v2141 = vadd.f32 0.0, %v2140
          %2142 = vmatmul.f32.gmra.mxu0 %v2095
          %v2143 = vpop.f32.mrf.mxu0
          %v2144 = vadd.f32 0.0, %v2143
          %2145 = vmatmul.f32.gmra.mxu0 %v2097
          %v2146 = vpop.f32.mrf.mxu0
          %v2147 = vadd.f32 0.0, %v2146
          %2148 = vmatmul.f32.gmra.mxu0 %v2099
          %v2149 = vpop.f32.mrf.mxu0
          %v2150 = vadd.f32 0.0, %v2149
          %2151 = vmatmul.f32.gmra.mxu0 %v2101
          %v2152 = vpop.f32.mrf.mxu0
          %v2153 = vadd.f32 0.0, %v2152
          %2154 = vmatmul.f32.gmra.mxu0 %v2103
          %v2155 = vpop.f32.mrf.mxu0
          %v2156 = vadd.f32 0.0, %v2155
          %2157 = vmatmul.f32.gmra.mxu0 %v2105
          %v2158 = vpop.f32.mrf.mxu0
          %v2159 = vadd.f32 0.0, %v2158
          %2160 = vmatmul.f32.gmra.mxu0 %v2107
          %v2161 = vpop.f32.mrf.mxu0
          %v2162 = vadd.f32 0.0, %v2161
          %2163 = vmatmul.f32.gmra.mxu0 %v2109
          %v2164 = vpop.f32.mrf.mxu0
          %v2165 = vadd.f32 0.0, %v2164
          %2166 = vmatmul.f32.gmra.mxu0 %v2111
          %v2167 = vpop.f32.mrf.mxu0
          %v2168 = vadd.f32 0.0, %v2167
          %2169 = vmatmul.f32.gmra.mxu0 %v2113
          %v2170 = vpop.f32.mrf.mxu0
          %v2171 = vadd.f32 0.0, %v2170
          %2172 = vmatmul.f32.gmra.mxu0 %v2115
          %v2173 = vpop.f32.mrf.mxu0
          %v2174 = vadd.f32 0.0, %v2173
          %2175 = vdwg.mxu0
          %2176 = vmatpush.msra.mxu0 %v2086
          %2177 = vmatpush.msra.mxu0 %v2083
          %2178 = vmatpush.msra.mxu0 %v2080
          %2179 = vmatpush.msra.mxu0 %v2077
          %2180 = vmatpush.msra.mxu0 %v2074
          %2181 = vmatpush.msra.mxu0 %v2071
          %2182 = vmatpush.msra.mxu0 %v2068
          %2183 = vmatpush.msra.mxu0 %v2065
          %2184 = vmatpush.msra.mxu0 %v2062
          %2185 = vmatpush.msra.mxu0 %v2059
          %2186 = vmatpush.msra.mxu0 %v2056
          %2187 = vmatpush.msra.mxu0 %v2053
          %2188 = vmatpush.msra.mxu0 %v2050
          %2189 = vmatpush.msra.mxu0 %v2047
          %2190 = vmatpush.msra.mxu0 %v2044
          %2191 = vmatpush.msra.mxu0 %v2041
          %2192 = vmatmul.f32.gmra.mxu0 %v2090
          %v2193 = vpop.f32.mrf.mxu0
          %v2194 = vadd.f32 %v2135, %v2193
          %2195 = vmatmul.f32.gmra.mxu0 %v2092
          %v2196 = vpop.f32.mrf.mxu0
          %v2197 = vadd.f32 %v2138, %v2196
          %2198 = vmatmul.f32.gmra.mxu0 %v2094
          %v2199 = vpop.f32.mrf.mxu0
          %v2200 = vadd.f32 %v2141, %v2199
          %2201 = vmatmul.f32.gmra.mxu0 %v2096
          %v2202 = vpop.f32.mrf.mxu0
          %v2203 = vadd.f32 %v2144, %v2202
          %2204 = vmatmul.f32.gmra.mxu0 %v2098
          %v2205 = vpop.f32.mrf.mxu0
          %v2206 = vadd.f32 %v2147, %v2205
          %2207 = vmatmul.f32.gmra.mxu0 %v2100
          %v2208 = vpop.f32.mrf.mxu0
          %v2209 = vadd.f32 %v2150, %v2208
          %2210 = vmatmul.f32.gmra.mxu0 %v2102
          %v2211 = vpop.f32.mrf.mxu0
          %v2212 = vadd.f32 %v2153, %v2211
          %2213 = vmatmul.f32.gmra.mxu0 %v2104
          %v2214 = vpop.f32.mrf.mxu0
          %v2215 = vadd.f32 %v2156, %v2214
          %2216 = vmatmul.f32.gmra.mxu0 %v2106
          %v2217 = vpop.f32.mrf.mxu0
          %v2218 = vadd.f32 %v2159, %v2217
          %2219 = vmatmul.f32.gmra.mxu0 %v2108
          %v2220 = vpop.f32.mrf.mxu0
          %v2221 = vadd.f32 %v2162, %v2220
          %2222 = vmatmul.f32.gmra.mxu0 %v2110
          %v2223 = vpop.f32.mrf.mxu0
          %v2224 = vadd.f32 %v2165, %v2223
          %2225 = vmatmul.f32.gmra.mxu0 %v2112
          %v2226 = vpop.f32.mrf.mxu0
          %v2227 = vadd.f32 %v2168, %v2226
          %2228 = vmatmul.f32.gmra.mxu0 %v2114
          %v2229 = vpop.f32.mrf.mxu0
          %v2230 = vadd.f32 %v2171, %v2229
          %2231 = vmatmul.f32.gmra.mxu0 %v2116
          %v2232 = vpop.f32.mrf.mxu0
          %v2233 = vadd.f32 %v2174, %v2232
          %2234 = vdwg.mxu0
          %2235 = vmatpush.msra.mxu0 %v2039
          %2236 = vmatpush.msra.mxu0 %v2036
          %2237 = vmatpush.msra.mxu0 %v2033
          %2238 = vmatpush.msra.mxu0 %v2030
          %2239 = vmatpush.msra.mxu0 %v2027
          %2240 = vmatpush.msra.mxu0 %v2024
          %2241 = vmatpush.msra.mxu0 %v2021
          %2242 = vmatpush.msra.mxu0 %v2018
          %2243 = vmatpush.msra.mxu0 %v2015
          %2244 = vmatpush.msra.mxu0 %v2012
          %2245 = vmatpush.msra.mxu0 %v2009
          %2246 = vmatpush.msra.mxu0 %v2006
          %2247 = vmatpush.msra.mxu0 %v2003
          %2248 = vmatpush.msra.mxu0 %v2000
          %2249 = vmatpush.msra.mxu0 %v1997
          %2250 = vmatpush.msra.mxu0 %v1994
          %2251 = vmatmul.f32.gmra.mxu0 %v2089
          %v2252 = vpop.f32.mrf.mxu0
          %v2253 = vadd.f32 0.0, %v2252
          %2254 = vmatmul.f32.gmra.mxu0 %v2091
          %v2255 = vpop.f32.mrf.mxu0
          %v2256 = vadd.f32 0.0, %v2255
          %2257 = vmatmul.f32.gmra.mxu0 %v2093
          %v2258 = vpop.f32.mrf.mxu0
          %v2259 = vadd.f32 0.0, %v2258
          %2260 = vmatmul.f32.gmra.mxu0 %v2095
          %v2261 = vpop.f32.mrf.mxu0
          %v2262 = vadd.f32 0.0, %v2261
          %2263 = vmatmul.f32.gmra.mxu0 %v2097
          %v2264 = vpop.f32.mrf.mxu0
          %v2265 = vadd.f32 0.0, %v2264
          %2266 = vmatmul.f32.gmra.mxu0 %v2099
          %v2267 = vpop.f32.mrf.mxu0
          %v2268 = vadd.f32 0.0, %v2267
          %2269 = vmatmul.f32.gmra.mxu0 %v2101
          %v2270 = vpop.f32.mrf.mxu0
          %v2271 = vadd.f32 0.0, %v2270
          %2272 = vmatmul.f32.gmra.mxu0 %v2103
          %v2273 = vpop.f32.mrf.mxu0
          %v2274 = vadd.f32 0.0, %v2273
          %2275 = vmatmul.f32.gmra.mxu0 %v2105
          %v2276 = vpop.f32.mrf.mxu0
          %v2277 = vadd.f32 0.0, %v2276
          %2278 = vmatmul.f32.gmra.mxu0 %v2107
          %v2279 = vpop.f32.mrf.mxu0
          %v2280 = vadd.f32 0.0, %v2279
          %2281 = vmatmul.f32.gmra.mxu0 %v2109
          %v2282 = vpop.f32.mrf.mxu0
          %v2283 = vadd.f32 0.0, %v2282
          %2284 = vmatmul.f32.gmra.mxu0 %v2111
          %v2285 = vpop.f32.mrf.mxu0
          %v2286 = vadd.f32 0.0, %v2285
          %2287 = vmatmul.f32.gmra.mxu0 %v2113
          %v2288 = vpop.f32.mrf.mxu0
          %v2289 = vadd.f32 0.0, %v2288
          %2290 = vmatmul.f32.gmra.mxu0 %v2115
          %v2291 = vpop.f32.mrf.mxu0
          %v2292 = vadd.f32 0.0, %v2291
          %2293 = vdwg.mxu0
          %2294 = vmatpush.msra.mxu0 %v2087
          %2295 = vmatpush.msra.mxu0 %v2084
          %2296 = vmatpush.msra.mxu0 %v2081
          %2297 = vmatpush.msra.mxu0 %v2078
          %2298 = vmatpush.msra.mxu0 %v2075
          %2299 = vmatpush.msra.mxu0 %v2072
          %2300 = vmatpush.msra.mxu0 %v2069
          %2301 = vmatpush.msra.mxu0 %v2066
          %2302 = vmatpush.msra.mxu0 %v2063
          %2303 = vmatpush.msra.mxu0 %v2060
          %2304 = vmatpush.msra.mxu0 %v2057
          %2305 = vmatpush.msra.mxu0 %v2054
          %2306 = vmatpush.msra.mxu0 %v2051
          %2307 = vmatpush.msra.mxu0 %v2048
          %2308 = vmatpush.msra.mxu0 %v2045
          %2309 = vmatpush.msra.mxu0 %v2042
          %2310 = vmatmul.f32.gmra.mxu0 %v2090
          %v2311 = vpop.f32.mrf.mxu0
          %v2312 = vadd.f32 %v2253, %v2311
          %2313 = vmatmul.f32.gmra.mxu0 %v2092
          %v2314 = vpop.f32.mrf.mxu0
          %v2315 = vadd.f32 %v2256, %v2314
          %2316 = vmatmul.f32.gmra.mxu0 %v2094
          %v2317 = vpop.f32.mrf.mxu0
          %v2318 = vadd.f32 %v2259, %v2317
          %2319 = vmatmul.f32.gmra.mxu0 %v2096
          %v2320 = vpop.f32.mrf.mxu0
          %v2321 = vadd.f32 %v2262, %v2320
          %2322 = vmatmul.f32.gmra.mxu0 %v2098
          %v2323 = vpop.f32.mrf.mxu0
          %v2324 = vadd.f32 %v2265, %v2323
          %2325 = vmatmul.f32.gmra.mxu0 %v2100
          %v2326 = vpop.f32.mrf.mxu0
          %v2327 = vadd.f32 %v2268, %v2326
          %2328 = vmatmul.f32.gmra.mxu0 %v2102
          %v2329 = vpop.f32.mrf.mxu0
          %v2330 = vadd.f32 %v2271, %v2329
          %2331 = vmatmul.f32.gmra.mxu0 %v2104
          %v2332 = vpop.f32.mrf.mxu0
          %v2333 = vadd.f32 %v2274, %v2332
          %2334 = vmatmul.f32.gmra.mxu0 %v2106
          %v2335 = vpop.f32.mrf.mxu0
          %v2336 = vadd.f32 %v2277, %v2335
          %2337 = vmatmul.f32.gmra.mxu0 %v2108
          %v2338 = vpop.f32.mrf.mxu0
          %v2339 = vadd.f32 %v2280, %v2338
          %2340 = vmatmul.f32.gmra.mxu0 %v2110
          %v2341 = vpop.f32.mrf.mxu0
          %v2342 = vadd.f32 %v2283, %v2341
          %2343 = vmatmul.f32.gmra.mxu0 %v2112
          %v2344 = vpop.f32.mrf.mxu0
          %v2345 = vadd.f32 %v2286, %v2344
          %2346 = vmatmul.f32.gmra.mxu0 %v2114
          %v2347 = vpop.f32.mrf.mxu0
          %v2348 = vadd.f32 %v2289, %v2347
          %2349 = vmatmul.f32.gmra.mxu0 %v2116
          %v2350 = vpop.f32.mrf.mxu0
          %v2351 = vadd.f32 %v2292, %v2350
          %2352 = vdwg.mxu0
          %2353 = vmatpush.msra.mxu0 %v2040
          %2354 = vmatpush.msra.mxu0 %v2037
          %2355 = vmatpush.msra.mxu0 %v2034
          %2356 = vmatpush.msra.mxu0 %v2031
          %2357 = vmatpush.msra.mxu0 %v2028
          %2358 = vmatpush.msra.mxu0 %v2025
          %2359 = vmatpush.msra.mxu0 %v2022
          %2360 = vmatpush.msra.mxu0 %v2019
          %2361 = vmatpush.msra.mxu0 %v2016
          %2362 = vmatpush.msra.mxu0 %v2013
          %2363 = vmatpush.msra.mxu0 %v2010
          %2364 = vmatpush.msra.mxu0 %v2007
          %2365 = vmatpush.msra.mxu0 %v2004
          %2366 = vmatpush.msra.mxu0 %v2001
          %2367 = vmatpush.msra.mxu0 %v1998
          %2368 = vmatpush.msra.mxu0 %v1995
          %2369 = vmatmul.f32.gmra.mxu0 %v2089
          %v2370 = vpop.f32.mrf.mxu0
          %v2371 = vadd.f32 0.0, %v2370
          %2372 = vmatmul.f32.gmra.mxu0 %v2091
          %v2373 = vpop.f32.mrf.mxu0
          %v2374 = vadd.f32 0.0, %v2373
          %2375 = vmatmul.f32.gmra.mxu0 %v2093
          %v2376 = vpop.f32.mrf.mxu0
          %v2377 = vadd.f32 0.0, %v2376
          %2378 = vmatmul.f32.gmra.mxu0 %v2095
          %v2379 = vpop.f32.mrf.mxu0
          %v2380 = vadd.f32 0.0, %v2379
          %2381 = vmatmul.f32.gmra.mxu0 %v2097
          %v2382 = vpop.f32.mrf.mxu0
          %v2383 = vadd.f32 0.0, %v2382
          %2384 = vmatmul.f32.gmra.mxu0 %v2099
          %v2385 = vpop.f32.mrf.mxu0
          %v2386 = vadd.f32 0.0, %v2385
          %2387 = vmatmul.f32.gmra.mxu0 %v2101
          %v2388 = vpop.f32.mrf.mxu0
          %v2389 = vadd.f32 0.0, %v2388
          %2390 = vmatmul.f32.gmra.mxu0 %v2103
          %v2391 = vpop.f32.mrf.mxu0
          %v2392 = vadd.f32 0.0, %v2391
          %2393 = vmatmul.f32.gmra.mxu0 %v2105
          %v2394 = vpop.f32.mrf.mxu0
          %v2395 = vadd.f32 0.0, %v2394
          %2396 = vmatmul.f32.gmra.mxu0 %v2107
          %v2397 = vpop.f32.mrf.mxu0
          %v2398 = vadd.f32 0.0, %v2397
          %2399 = vmatmul.f32.gmra.mxu0 %v2109
          %v2400 = vpop.f32.mrf.mxu0
          %v2401 = vadd.f32 0.0, %v2400
          %2402 = vmatmul.f32.gmra.mxu0 %v2111
          %v2403 = vpop.f32.mrf.mxu0
          %v2404 = vadd.f32 0.0, %v2403
          %2405 = vmatmul.f32.gmra.mxu0 %v2113
          %v2406 = vpop.f32.mrf.mxu0
          %v2407 = vadd.f32 0.0, %v2406
          %2408 = vmatmul.f32.gmra.mxu0 %v2115
          %v2409 = vpop.f32.mrf.mxu0
          %v2410 = vadd.f32 0.0, %v2409
          %2411 = vdwg.mxu0
          %2412 = vmatpush.msra.mxu0 %v2088
          %2413 = vmatpush.msra.mxu0 %v2085
          %2414 = vmatpush.msra.mxu0 %v2082
          %2415 = vmatpush.msra.mxu0 %v2079
          %2416 = vmatpush.msra.mxu0 %v2076
          %2417 = vmatpush.msra.mxu0 %v2073
          %2418 = vmatpush.msra.mxu0 %v2070
          %2419 = vmatpush.msra.mxu0 %v2067
          %2420 = vmatpush.msra.mxu0 %v2064
          %2421 = vmatpush.msra.mxu0 %v2061
          %2422 = vmatpush.msra.mxu0 %v2058
          %2423 = vmatpush.msra.mxu0 %v2055
          %2424 = vmatpush.msra.mxu0 %v2052
          %2425 = vmatpush.msra.mxu0 %v2049
          %2426 = vmatpush.msra.mxu0 %v2046
          %2427 = vmatpush.msra.mxu0 %v2043
          %2428 = vmatmul.f32.gmra.mxu0 %v2090
          %v2429 = vpop.f32.mrf.mxu0
          %v2430 = vadd.f32 %v2371, %v2429
          %2431 = vmatmul.f32.gmra.mxu0 %v2092
          %v2432 = vpop.f32.mrf.mxu0
          %v2433 = vadd.f32 %v2374, %v2432
          %2434 = vmatmul.f32.gmra.mxu0 %v2094
          %v2435 = vpop.f32.mrf.mxu0
          %v2436 = vadd.f32 %v2377, %v2435
          %2437 = vmatmul.f32.gmra.mxu0 %v2096
          %v2438 = vpop.f32.mrf.mxu0
          %v2439 = vadd.f32 %v2380, %v2438
          %2440 = vmatmul.f32.gmra.mxu0 %v2098
          %v2441 = vpop.f32.mrf.mxu0
          %v2442 = vadd.f32 %v2383, %v2441
          %2443 = vmatmul.f32.gmra.mxu0 %v2100
          %v2444 = vpop.f32.mrf.mxu0
          %v2445 = vadd.f32 %v2386, %v2444
          %2446 = vmatmul.f32.gmra.mxu0 %v2102
          %v2447 = vpop.f32.mrf.mxu0
          %v2448 = vadd.f32 %v2389, %v2447
          %2449 = vmatmul.f32.gmra.mxu0 %v2104
          %v2450 = vpop.f32.mrf.mxu0
          %v2451 = vadd.f32 %v2392, %v2450
          %2452 = vmatmul.f32.gmra.mxu0 %v2106
          %v2453 = vpop.f32.mrf.mxu0
          %v2454 = vadd.f32 %v2395, %v2453
          %2455 = vmatmul.f32.gmra.mxu0 %v2108
          %v2456 = vpop.f32.mrf.mxu0
          %v2457 = vadd.f32 %v2398, %v2456
          %2458 = vmatmul.f32.gmra.mxu0 %v2110
          %v2459 = vpop.f32.mrf.mxu0
          %v2460 = vadd.f32 %v2401, %v2459
          %2461 = vmatmul.f32.gmra.mxu0 %v2112
          %v2462 = vpop.f32.mrf.mxu0
          %v2463 = vadd.f32 %v2404, %v2462
          %2464 = vmatmul.f32.gmra.mxu0 %v2114
          %v2465 = vpop.f32.mrf.mxu0
          %v2466 = vadd.f32 %v2407, %v2465
          %2467 = vmatmul.f32.gmra.mxu0 %v2116
          %v2468 = vpop.f32.mrf.mxu0
          %v2469 = vadd.f32 %v2410, %v2468
          %2470 = vdwg.mxu0
          %v2471 = vld [vmem:[%s4] sm:$0xff]
          %v2472 = vld [vmem:[%s4 + $0x8] sm:$0xff]
          %v2473 = vld [vmem:[%s4 + $0x10] sm:$0xff]
          %v2474 = vld [vmem:[%s4 + $0x18] sm:$0xff]
          %v2475 = vld [vmem:[%s4 + $0x20] sm:$0xff]
          %v2476 = vld [vmem:[%s4 + $0x28] sm:$0xff]
          %v2477 = vld [vmem:[%s4 + $0x30] sm:$0xff]
          %v2478 = vld [vmem:[%s4 + $0x38] sm:$0xff]
          %v2479 = vld [vmem:[%s4 + $0x40] sm:$0xff]
          %v2480 = vld [vmem:[%s4 + $0x48] sm:$0xff]
          %v2481 = vld [vmem:[%s4 + $0x50] sm:$0xff]
          %v2482 = vld [vmem:[%s4 + $0x58] sm:$0xff]
          %v2483 = vld [vmem:[%s4 + $0x60] sm:$0xff]
          %v2484 = vld [vmem:[%s4 + $0x68] sm:$0xff]
          %v2485 = vld [vmem:[%s4 + $0x70] sm:$0xff]
          %v2486 = vld [vmem:[%s4 + $0x78] sm:$0xff]
          %v2487 = vld [vmem:[%s4 + $0x80] sm:$0xff]
          %v2488 = vld [vmem:[%s4 + $0x88] sm:$0xff]
          %v2489 = vld [vmem:[%s4 + $0x90] sm:$0xff]
          %v2490 = vld [vmem:[%s4 + $0x98] sm:$0xff]
          %v2491 = vld [vmem:[%s4 + $0xa0] sm:$0xff]
          %v2492 = vld [vmem:[%s4 + $0xa8] sm:$0xff]
          %v2493 = vld [vmem:[%s4 + $0xb0] sm:$0xff]
          %v2494 = vld [vmem:[%s4 + $0xb8] sm:$0xff]
          %v2495 = vld [vmem:[%s4 + $0xc0] sm:$0xff]
          %v2496 = vld [vmem:[%s4 + $0xc8] sm:$0xff]
          %v2497 = vld [vmem:[%s4 + $0xd0] sm:$0xff]
          %v2498 = vld [vmem:[%s4 + $0xd8] sm:$0xff]
          %2499 = vmatpush.msra.mxu0 %v2038
          %2500 = vmatpush.msra.mxu0 %v2035
          %2501 = vmatpush.msra.mxu0 %v2032
          %2502 = vmatpush.msra.mxu0 %v2029
          %2503 = vmatpush.msra.mxu0 %v2026
          %2504 = vmatpush.msra.mxu0 %v2023
          %2505 = vmatpush.msra.mxu0 %v2020
          %2506 = vmatpush.msra.mxu0 %v2017
          %2507 = vmatpush.msra.mxu0 %v2014
          %2508 = vmatpush.msra.mxu0 %v2011
          %2509 = vmatpush.msra.mxu0 %v2008
          %2510 = vmatpush.msra.mxu0 %v2005
          %2511 = vmatpush.msra.mxu0 %v2002
          %2512 = vmatpush.msra.mxu0 %v1999
          %2513 = vmatpush.msra.mxu0 %v1996
          %2514 = vmatpush.msra.mxu0 %v1993
          %2515 = vmatmul.f32.gmra.mxu0 %v2471
          %v2516 = vpop.f32.mrf.mxu0
          %v2517 = vadd.f32 0.0, %v2516
          %2518 = vmatmul.f32.gmra.mxu0 %v2473
          %v2519 = vpop.f32.mrf.mxu0
          %v2520 = vadd.f32 0.0, %v2519
          %2521 = vmatmul.f32.gmra.mxu0 %v2475
          %v2522 = vpop.f32.mrf.mxu0
          %v2523 = vadd.f32 0.0, %v2522
          %2524 = vmatmul.f32.gmra.mxu0 %v2477
          %v2525 = vpop.f32.mrf.mxu0
          %v2526 = vadd.f32 0.0, %v2525
          %2527 = vmatmul.f32.gmra.mxu0 %v2479
          %v2528 = vpop.f32.mrf.mxu0
          %v2529 = vadd.f32 0.0, %v2528
          %2530 = vmatmul.f32.gmra.mxu0 %v2481
          %v2531 = vpop.f32.mrf.mxu0
          %v2532 = vadd.f32 0.0, %v2531
          %2533 = vmatmul.f32.gmra.mxu0 %v2483
          %v2534 = vpop.f32.mrf.mxu0
          %v2535 = vadd.f32 0.0, %v2534
          %2536 = vmatmul.f32.gmra.mxu0 %v2485
          %v2537 = vpop.f32.mrf.mxu0
          %v2538 = vadd.f32 0.0, %v2537
          %2539 = vmatmul.f32.gmra.mxu0 %v2487
          %v2540 = vpop.f32.mrf.mxu0
          %v2541 = vadd.f32 0.0, %v2540
          %2542 = vmatmul.f32.gmra.mxu0 %v2489
          %v2543 = vpop.f32.mrf.mxu0
          %v2544 = vadd.f32 0.0, %v2543
          %2545 = vmatmul.f32.gmra.mxu0 %v2491
          %v2546 = vpop.f32.mrf.mxu0
          %v2547 = vadd.f32 0.0, %v2546
          %2548 = vmatmul.f32.gmra.mxu0 %v2493
          %v2549 = vpop.f32.mrf.mxu0
          %v2550 = vadd.f32 0.0, %v2549
          %2551 = vmatmul.f32.gmra.mxu0 %v2495
          %v2552 = vpop.f32.mrf.mxu0
          %v2553 = vadd.f32 0.0, %v2552
          %2554 = vmatmul.f32.gmra.mxu0 %v2497
          %v2555 = vpop.f32.mrf.mxu0
          %v2556 = vadd.f32 0.0, %v2555
          %2557 = vdwg.mxu0
          %2558 = vmatpush.msra.mxu0 %v2086
          %2559 = vmatpush.msra.mxu0 %v2083
          %2560 = vmatpush.msra.mxu0 %v2080
          %2561 = vmatpush.msra.mxu0 %v2077
          %2562 = vmatpush.msra.mxu0 %v2074
          %2563 = vmatpush.msra.mxu0 %v2071
          %2564 = vmatpush.msra.mxu0 %v2068
          %2565 = vmatpush.msra.mxu0 %v2065
          %2566 = vmatpush.msra.mxu0 %v2062
          %2567 = vmatpush.msra.mxu0 %v2059
          %2568 = vmatpush.msra.mxu0 %v2056
          %2569 = vmatpush.msra.mxu0 %v2053
          %2570 = vmatpush.msra.mxu0 %v2050
          %2571 = vmatpush.msra.mxu0 %v2047
          %2572 = vmatpush.msra.mxu0 %v2044
          %2573 = vmatpush.msra.mxu0 %v2041
          %2574 = vmatmul.f32.gmra.mxu0 %v2472
          %v2575 = vpop.f32.mrf.mxu0
          %v2576 = vadd.f32 %v2517, %v2575
          %2577 = vmatmul.f32.gmra.mxu0 %v2474
          %v2578 = vpop.f32.mrf.mxu0
          %v2579 = vadd.f32 %v2520, %v2578
          %2580 = vmatmul.f32.gmra.mxu0 %v2476
          %v2581 = vpop.f32.mrf.mxu0
          %v2582 = vadd.f32 %v2523, %v2581
          %2583 = vmatmul.f32.gmra.mxu0 %v2478
          %v2584 = vpop.f32.mrf.mxu0
          %v2585 = vadd.f32 %v2526, %v2584
          %2586 = vmatmul.f32.gmra.mxu0 %v2480
          %v2587 = vpop.f32.mrf.mxu0
          %v2588 = vadd.f32 %v2529, %v2587
          %2589 = vmatmul.f32.gmra.mxu0 %v2482
          %v2590 = vpop.f32.mrf.mxu0
          %v2591 = vadd.f32 %v2532, %v2590
          %2592 = vmatmul.f32.gmra.mxu0 %v2484
          %v2593 = vpop.f32.mrf.mxu0
          %v2594 = vadd.f32 %v2535, %v2593
          %2595 = vmatmul.f32.gmra.mxu0 %v2486
          %v2596 = vpop.f32.mrf.mxu0
          %v2597 = vadd.f32 %v2538, %v2596
          %2598 = vmatmul.f32.gmra.mxu0 %v2488
          %v2599 = vpop.f32.mrf.mxu0
          %v2600 = vadd.f32 %v2541, %v2599
          %2601 = vmatmul.f32.gmra.mxu0 %v2490
          %v2602 = vpop.f32.mrf.mxu0
          %v2603 = vadd.f32 %v2544, %v2602
          %2604 = vmatmul.f32.gmra.mxu0 %v2492
          %v2605 = vpop.f32.mrf.mxu0
          %v2606 = vadd.f32 %v2547, %v2605
          %2607 = vmatmul.f32.gmra.mxu0 %v2494
          %v2608 = vpop.f32.mrf.mxu0
          %v2609 = vadd.f32 %v2550, %v2608
          %2610 = vmatmul.f32.gmra.mxu0 %v2496
          %v2611 = vpop.f32.mrf.mxu0
          %v2612 = vadd.f32 %v2553, %v2611
          %2613 = vmatmul.f32.gmra.mxu0 %v2498
          %v2614 = vpop.f32.mrf.mxu0
          %v2615 = vadd.f32 %v2556, %v2614
          %2616 = vdwg.mxu0
          %2617 = vmatpush.msra.mxu0 %v2039
          %2618 = vmatpush.msra.mxu0 %v2036
          %2619 = vmatpush.msra.mxu0 %v2033
          %2620 = vmatpush.msra.mxu0 %v2030
          %2621 = vmatpush.msra.mxu0 %v2027
          %2622 = vmatpush.msra.mxu0 %v2024
          %2623 = vmatpush.msra.mxu0 %v2021
          %2624 = vmatpush.msra.mxu0 %v2018
          %2625 = vmatpush.msra.mxu0 %v2015
          %2626 = vmatpush.msra.mxu0 %v2012
          %2627 = vmatpush.msra.mxu0 %v2009
          %2628 = vmatpush.msra.mxu0 %v2006
          %2629 = vmatpush.msra.mxu0 %v2003
          %2630 = vmatpush.msra.mxu0 %v2000
          %2631 = vmatpush.msra.mxu0 %v1997
          %2632 = vmatpush.msra.mxu0 %v1994
          %2633 = vmatmul.f32.gmra.mxu0 %v2471
          %v2634 = vpop.f32.mrf.mxu0
          %v2635 = vadd.f32 0.0, %v2634
          %2636 = vmatmul.f32.gmra.mxu0 %v2473
          %v2637 = vpop.f32.mrf.mxu0
          %v2638 = vadd.f32 0.0, %v2637
          %2639 = vmatmul.f32.gmra.mxu0 %v2475
          %v2640 = vpop.f32.mrf.mxu0
          %v2641 = vadd.f32 0.0, %v2640
          %2642 = vmatmul.f32.gmra.mxu0 %v2477
          %v2643 = vpop.f32.mrf.mxu0
          %v2644 = vadd.f32 0.0, %v2643
          %2645 = vmatmul.f32.gmra.mxu0 %v2479
          %v2646 = vpop.f32.mrf.mxu0
          %v2647 = vadd.f32 0.0, %v2646
          %2648 = vmatmul.f32.gmra.mxu0 %v2481
          %v2649 = vpop.f32.mrf.mxu0
          %v2650 = vadd.f32 0.0, %v2649
          %2651 = vmatmul.f32.gmra.mxu0 %v2483
          %v2652 = vpop.f32.mrf.mxu0
          %v2653 = vadd.f32 0.0, %v2652
          %2654 = vmatmul.f32.gmra.mxu0 %v2485
          %v2655 = vpop.f32.mrf.mxu0
          %v2656 = vadd.f32 0.0, %v2655
          %2657 = vmatmul.f32.gmra.mxu0 %v2487
          %v2658 = vpop.f32.mrf.mxu0
          %v2659 = vadd.f32 0.0, %v2658
          %2660 = vmatmul.f32.gmra.mxu0 %v2489
          %v2661 = vpop.f32.mrf.mxu0
          %v2662 = vadd.f32 0.0, %v2661
          %2663 = vmatmul.f32.gmra.mxu0 %v2491
          %v2664 = vpop.f32.mrf.mxu0
          %v2665 = vadd.f32 0.0, %v2664
          %2666 = vmatmul.f32.gmra.mxu0 %v2493
          %v2667 = vpop.f32.mrf.mxu0
          %v2668 = vadd.f32 0.0, %v2667
          %2669 = vmatmul.f32.gmra.mxu0 %v2495
          %v2670 = vpop.f32.mrf.mxu0
          %v2671 = vadd.f32 0.0, %v2670
          %2672 = vmatmul.f32.gmra.mxu0 %v2497
          %v2673 = vpop.f32.mrf.mxu0
          %v2674 = vadd.f32 0.0, %v2673
          %2675 = vdwg.mxu0
          %2676 = vmatpush.msra.mxu0 %v2087
          %2677 = vmatpush.msra.mxu0 %v2084
          %2678 = vmatpush.msra.mxu0 %v2081
          %2679 = vmatpush.msra.mxu0 %v2078
          %2680 = vmatpush.msra.mxu0 %v2075
          %2681 = vmatpush.msra.mxu0 %v2072
          %2682 = vmatpush.msra.mxu0 %v2069
          %2683 = vmatpush.msra.mxu0 %v2066
          %2684 = vmatpush.msra.mxu0 %v2063
          %2685 = vmatpush.msra.mxu0 %v2060
          %2686 = vmatpush.msra.mxu0 %v2057
          %2687 = vmatpush.msra.mxu0 %v2054
          %2688 = vmatpush.msra.mxu0 %v2051
          %2689 = vmatpush.msra.mxu0 %v2048
          %2690 = vmatpush.msra.mxu0 %v2045
          %2691 = vmatpush.msra.mxu0 %v2042
          %2692 = vmatmul.f32.gmra.mxu0 %v2472
          %v2693 = vpop.f32.mrf.mxu0
          %v2694 = vadd.f32 %v2635, %v2693
          %2695 = vmatmul.f32.gmra.mxu0 %v2474
          %v2696 = vpop.f32.mrf.mxu0
          %v2697 = vadd.f32 %v2638, %v2696
          %2698 = vmatmul.f32.gmra.mxu0 %v2476
          %v2699 = vpop.f32.mrf.mxu0
          %v2700 = vadd.f32 %v2641, %v2699
          %2701 = vmatmul.f32.gmra.mxu0 %v2478
          %v2702 = vpop.f32.mrf.mxu0
          %v2703 = vadd.f32 %v2644, %v2702
          %2704 = vmatmul.f32.gmra.mxu0 %v2480
          %v2705 = vpop.f32.mrf.mxu0
          %v2706 = vadd.f32 %v2647, %v2705
          %2707 = vmatmul.f32.gmra.mxu0 %v2482
          %v2708 = vpop.f32.mrf.mxu0
          %v2709 = vadd.f32 %v2650, %v2708
          %2710 = vmatmul.f32.gmra.mxu0 %v2484
          %v2711 = vpop.f32.mrf.mxu0
          %v2712 = vadd.f32 %v2653, %v2711
          %2713 = vmatmul.f32.gmra.mxu0 %v2486
          %v2714 = vpop.f32.mrf.mxu0
          %v2715 = vadd.f32 %v2656, %v2714
          %2716 = vmatmul.f32.gmra.mxu0 %v2488
          %v2717 = vpop.f32.mrf.mxu0
          %v2718 = vadd.f32 %v2659, %v2717
          %2719 = vmatmul.f32.gmra.mxu0 %v2490
          %v2720 = vpop.f32.mrf.mxu0
          %v2721 = vadd.f32 %v2662, %v2720
          %2722 = vmatmul.f32.gmra.mxu0 %v2492
          %v2723 = vpop.f32.mrf.mxu0
          %v2724 = vadd.f32 %v2665, %v2723
          %2725 = vmatmul.f32.gmra.mxu0 %v2494
          %v2726 = vpop.f32.mrf.mxu0
          %v2727 = vadd.f32 %v2668, %v2726
          %2728 = vmatmul.f32.gmra.mxu0 %v2496
          %v2729 = vpop.f32.mrf.mxu0
          %v2730 = vadd.f32 %v2671, %v2729
          %2731 = vmatmul.f32.gmra.mxu0 %v2498
          %v2732 = vpop.f32.mrf.mxu0
          %v2733 = vadd.f32 %v2674, %v2732
          %2734 = vdwg.mxu0
          %2735 = vmatpush.msra.mxu0 %v2040
          %2736 = vmatpush.msra.mxu0 %v2037
          %2737 = vmatpush.msra.mxu0 %v2034
          %2738 = vmatpush.msra.mxu0 %v2031
          %2739 = vmatpush.msra.mxu0 %v2028
          %2740 = vmatpush.msra.mxu0 %v2025
          %2741 = vmatpush.msra.mxu0 %v2022
          %2742 = vmatpush.msra.mxu0 %v2019
          %2743 = vmatpush.msra.mxu0 %v2016
          %2744 = vmatpush.msra.mxu0 %v2013
          %2745 = vmatpush.msra.mxu0 %v2010
          %2746 = vmatpush.msra.mxu0 %v2007
          %2747 = vmatpush.msra.mxu0 %v2004
          %2748 = vmatpush.msra.mxu0 %v2001
          %2749 = vmatpush.msra.mxu0 %v1998
          %2750 = vmatpush.msra.mxu0 %v1995
          %2751 = vmatmul.f32.gmra.mxu0 %v2471
          %v2752 = vpop.f32.mrf.mxu0
          %v2753 = vadd.f32 0.0, %v2752
          %2754 = vmatmul.f32.gmra.mxu0 %v2473
          %v2755 = vpop.f32.mrf.mxu0
          %v2756 = vadd.f32 0.0, %v2755
          %2757 = vmatmul.f32.gmra.mxu0 %v2475
          %v2758 = vpop.f32.mrf.mxu0
          %v2759 = vadd.f32 0.0, %v2758
          %2760 = vmatmul.f32.gmra.mxu0 %v2477
          %v2761 = vpop.f32.mrf.mxu0
          %v2762 = vadd.f32 0.0, %v2761
          %2763 = vmatmul.f32.gmra.mxu0 %v2479
          %v2764 = vpop.f32.mrf.mxu0
          %v2765 = vadd.f32 0.0, %v2764
          %2766 = vmatmul.f32.gmra.mxu0 %v2481
          %v2767 = vpop.f32.mrf.mxu0
          %v2768 = vadd.f32 0.0, %v2767
          %2769 = vmatmul.f32.gmra.mxu0 %v2483
          %v2770 = vpop.f32.mrf.mxu0
          %v2771 = vadd.f32 0.0, %v2770
          %2772 = vmatmul.f32.gmra.mxu0 %v2485
          %v2773 = vpop.f32.mrf.mxu0
          %v2774 = vadd.f32 0.0, %v2773
          %2775 = vmatmul.f32.gmra.mxu0 %v2487
          %v2776 = vpop.f32.mrf.mxu0
          %v2777 = vadd.f32 0.0, %v2776
          %2778 = vmatmul.f32.gmra.mxu0 %v2489
          %v2779 = vpop.f32.mrf.mxu0
          %v2780 = vadd.f32 0.0, %v2779
          %2781 = vmatmul.f32.gmra.mxu0 %v2491
          %v2782 = vpop.f32.mrf.mxu0
          %v2783 = vadd.f32 0.0, %v2782
          %2784 = vmatmul.f32.gmra.mxu0 %v2493
          %v2785 = vpop.f32.mrf.mxu0
          %v2786 = vadd.f32 0.0, %v2785
          %2787 = vmatmul.f32.gmra.mxu0 %v2495
          %v2788 = vpop.f32.mrf.mxu0
          %v2789 = vadd.f32 0.0, %v2788
          %2790 = vmatmul.f32.gmra.mxu0 %v2497
          %v2791 = vpop.f32.mrf.mxu0
          %v2792 = vadd.f32 0.0, %v2791
          %2793 = vdwg.mxu0
          %2794 = vmatpush.msra.mxu0 %v2088
          %2795 = vmatpush.msra.mxu0 %v2085
          %2796 = vmatpush.msra.mxu0 %v2082
          %2797 = vmatpush.msra.mxu0 %v2079
          %2798 = vmatpush.msra.mxu0 %v2076
          %2799 = vmatpush.msra.mxu0 %v2073
          %2800 = vmatpush.msra.mxu0 %v2070
          %2801 = vmatpush.msra.mxu0 %v2067
          %2802 = vmatpush.msra.mxu0 %v2064
          %2803 = vmatpush.msra.mxu0 %v2061
          %2804 = vmatpush.msra.mxu0 %v2058
          %2805 = vmatpush.msra.mxu0 %v2055
          %2806 = vmatpush.msra.mxu0 %v2052
          %2807 = vmatpush.msra.mxu0 %v2049
          %2808 = vmatpush.msra.mxu0 %v2046
          %2809 = vmatpush.msra.mxu0 %v2043
          %2810 = vmatmul.f32.gmra.mxu0 %v2472
          %v2811 = vpop.f32.mrf.mxu0
          %v2812 = vadd.f32 %v2753, %v2811
          %2813 = vmatmul.f32.gmra.mxu0 %v2474
          %v2814 = vpop.f32.mrf.mxu0
          %v2815 = vadd.f32 %v2756, %v2814
          %2816 = vmatmul.f32.gmra.mxu0 %v2476
          %v2817 = vpop.f32.mrf.mxu0
          %v2818 = vadd.f32 %v2759, %v2817
          %2819 = vmatmul.f32.gmra.mxu0 %v2478
          %v2820 = vpop.f32.mrf.mxu0
          %v2821 = vadd.f32 %v2762, %v2820
          %2822 = vmatmul.f32.gmra.mxu0 %v2480
          %v2823 = vpop.f32.mrf.mxu0
          %v2824 = vadd.f32 %v2765, %v2823
          %2825 = vmatmul.f32.gmra.mxu0 %v2482
          %v2826 = vpop.f32.mrf.mxu0
          %v2827 = vadd.f32 %v2768, %v2826
          %2828 = vmatmul.f32.gmra.mxu0 %v2484
          %v2829 = vpop.f32.mrf.mxu0
          %v2830 = vadd.f32 %v2771, %v2829
          %2831 = vmatmul.f32.gmra.mxu0 %v2486
          %v2832 = vpop.f32.mrf.mxu0
          %v2833 = vadd.f32 %v2774, %v2832
          %2834 = vmatmul.f32.gmra.mxu0 %v2488
          %v2835 = vpop.f32.mrf.mxu0
          %v2836 = vadd.f32 %v2777, %v2835
          %2837 = vmatmul.f32.gmra.mxu0 %v2490
          %v2838 = vpop.f32.mrf.mxu0
          %v2839 = vadd.f32 %v2780, %v2838
          %2840 = vmatmul.f32.gmra.mxu0 %v2492
          %v2841 = vpop.f32.mrf.mxu0
          %v2842 = vadd.f32 %v2783, %v2841
          %2843 = vmatmul.f32.gmra.mxu0 %v2494
          %v2844 = vpop.f32.mrf.mxu0
          %v2845 = vadd.f32 %v2786, %v2844
          %2846 = vmatmul.f32.gmra.mxu0 %v2496
          %v2847 = vpop.f32.mrf.mxu0
          %v2848 = vadd.f32 %v2789, %v2847
          %2849 = vmatmul.f32.gmra.mxu0 %v2498
          %v2850 = vpop.f32.mrf.mxu0
          %v2851 = vadd.f32 %v2792, %v2850
          %2852 = vdwg.mxu0
          %v2853 = vmax.f32 %v2194, %v2576
          %v2854 = vmax.f32 %v2312, %v2694
          %v2855 = vmax.f32 %v2430, %v2812
          %v2856 = vmax.f32 %v2197, %v2579
          %v2857 = vmax.f32 %v2315, %v2697
          %v2858 = vmax.f32 %v2433, %v2815
          %v2859 = vmax.f32 %v2200, %v2582
          %v2860 = vmax.f32 %v2318, %v2700
          %v2861 = vmax.f32 %v2436, %v2818
          %v2862 = vmax.f32 %v2203, %v2585
          %v2863 = vmax.f32 %v2321, %v2703
          %v2864 = vmax.f32 %v2439, %v2821
          %v2865 = vmax.f32 %v2206, %v2588
          %v2866 = vmax.f32 %v2324, %v2706
          %v2867 = vmax.f32 %v2442, %v2824
          %v2868 = vmax.f32 %v2209, %v2591
          %v2869 = vmax.f32 %v2327, %v2709
          %v2870 = vmax.f32 %v2445, %v2827
          %v2871 = vmax.f32 %v2212, %v2594
          %v2872 = vmax.f32 %v2330, %v2712
          %v2873 = vmax.f32 %v2448, %v2830
          %v2874 = vmax.f32 %v2215, %v2597
          %v2875 = vmax.f32 %v2333, %v2715
          %v2876 = vmax.f32 %v2451, %v2833
          %v2877 = vmax.f32 %v2218, %v2600
          %v2878 = vmax.f32 %v2336, %v2718
          %v2879 = vmax.f32 %v2454, %v2836
          %v2880 = vmax.f32 %v2221, %v2603
          %v2881 = vmax.f32 %v2339, %v2721
          %v2882 = vmax.f32 %v2457, %v2839
          %v2883 = vmax.f32 %v2224, %v2606
          %v2884 = vmax.f32 %v2342, %v2724
          %v2885 = vmax.f32 %v2460, %v2842
          %v2886 = vmax.f32 %v2227, %v2609
          %v2887 = vmax.f32 %v2345, %v2727
          %v2888 = vmax.f32 %v2463, %v2845
          %v2889 = vmax.f32 %v2230, %v2612
          %v2890 = vmax.f32 %v2348, %v2730
          %v2891 = vmax.f32 %v2466, %v2848
          %v2892 = vmax.f32 %v2233, %v2615
          %v2893 = vmax.f32 %v2351, %v2733
          %v2894 = vmax.f32 %v2469, %v2851
          %v2895 = vld [vmem:[%s5] sm:$0x7]
          %v2897 = vperm.slane %v2895, 0
          %v2898 = vperm.slane %v2895, 1
          %v2899 = vperm.slane %v2895, 2
          %v2903 = vadd.f32 %v2853, %v2897
          %v2904 = vadd.f32 %v2854, %v2898
          %v2905 = vadd.f32 %v2855, %v2899
          %v2906 = vadd.f32 %v2856, %v2897
          %v2907 = vadd.f32 %v2857, %v2898
          %v2908 = vadd.f32 %v2858, %v2899
          %v2909 = vadd.f32 %v2859, %v2897
          %v2910 = vadd.f32 %v2860, %v2898
          %v2911 = vadd.f32 %v2861, %v2899
          %v2912 = vadd.f32 %v2862, %v2897
          %v2913 = vadd.f32 %v2863, %v2898
          %v2914 = vadd.f32 %v2864, %v2899
          %v2915 = vadd.f32 %v2865, %v2897
          %v2916 = vadd.f32 %v2866, %v2898
          %v2917 = vadd.f32 %v2867, %v2899
          %v2918 = vadd.f32 %v2868, %v2897
          %v2919 = vadd.f32 %v2869, %v2898
          %v2920 = vadd.f32 %v2870, %v2899
          %v2921 = vadd.f32 %v2871, %v2897
          %v2922 = vadd.f32 %v2872, %v2898
          %v2923 = vadd.f32 %v2873, %v2899
          %v2924 = vadd.f32 %v2874, %v2897
          %v2925 = vadd.f32 %v2875, %v2898
          %v2926 = vadd.f32 %v2876, %v2899
          %v2927 = vadd.f32 %v2877, %v2897
          %v2928 = vadd.f32 %v2878, %v2898
          %v2929 = vadd.f32 %v2879, %v2899
          %v2930 = vadd.f32 %v2880, %v2897
          %v2931 = vadd.f32 %v2881, %v2898
          %v2932 = vadd.f32 %v2882, %v2899
          %v2933 = vadd.f32 %v2883, %v2897
          %v2934 = vadd.f32 %v2884, %v2898
          %v2935 = vadd.f32 %v2885, %v2899
          %v2936 = vadd.f32 %v2886, %v2897
          %v2937 = vadd.f32 %v2887, %v2898
          %v2938 = vadd.f32 %v2888, %v2899
          %v2939 = vadd.f32 %v2889, %v2897
          %v2940 = vadd.f32 %v2890, %v2898
          %v2941 = vadd.f32 %v2891, %v2899
          %v2942 = vadd.f32 %v2892, %v2897
          %v2943 = vadd.f32 %v2893, %v2898
          %v2944 = vadd.f32 %v2894, %v2899
          %2945 = vst [vmem:[#allocation2] sm:$0xff] %v2903
          %2946 = vst [vmem:[#allocation2 + $0x8] sm:$0xff] %v2904
          %vm2947 = vcmask 195584
          %2948 = vst.msk [vmem:[#allocation2 + $0x10] sm:$0xff] %vm2947, %v2905
          %2949 = vst [vmem:[#allocation2 + $0x18] sm:$0xff] %v2906
          %2950 = vst [vmem:[#allocation2 + $0x20] sm:$0xff] %v2907
          %2951 = vst.msk [vmem:[#allocation2 + $0x28] sm:$0xff] %vm2947, %v2908
          %2952 = vst [vmem:[#allocation2 + $0x30] sm:$0xff] %v2909
          %2953 = vst [vmem:[#allocation2 + $0x38] sm:$0xff] %v2910
          %2954 = vst.msk [vmem:[#allocation2 + $0x40] sm:$0xff] %vm2947, %v2911
          %2955 = vst [vmem:[#allocation2 + $0x48] sm:$0xff] %v2912
          %2956 = vst [vmem:[#allocation2 + $0x50] sm:$0xff] %v2913
          %2957 = vst.msk [vmem:[#allocation2 + $0x58] sm:$0xff] %vm2947, %v2914
          %2958 = vst [vmem:[#allocation2 + $0x60] sm:$0xff] %v2915
          %2959 = vst [vmem:[#allocation2 + $0x68] sm:$0xff] %v2916
          %2960 = vst.msk [vmem:[#allocation2 + $0x70] sm:$0xff] %vm2947, %v2917
          %2961 = vst [vmem:[#allocation2 + $0x78] sm:$0xff] %v2918
          %2962 = vst [vmem:[#allocation2 + $0x80] sm:$0xff] %v2919
          %2963 = vst.msk [vmem:[#allocation2 + $0x88] sm:$0xff] %vm2947, %v2920
          %2964 = vst [vmem:[#allocation2 + $0x90] sm:$0xff] %v2921
          %2965 = vst [vmem:[#allocation2 + $0x98] sm:$0xff] %v2922
          %2966 = vst.msk [vmem:[#allocation2 + $0xa0] sm:$0xff] %vm2947, %v2923
          %2967 = vst [vmem:[#allocation2 + $0xa8] sm:$0xff] %v2924
          %2968 = vst [vmem:[#allocation2 + $0xb0] sm:$0xff] %v2925
          %2969 = vst.msk [vmem:[#allocation2 + $0xb8] sm:$0xff] %vm2947, %v2926
          %2970 = vst [vmem:[#allocation2 + $0xc0] sm:$0xff] %v2927
          %2971 = vst [vmem:[#allocation2 + $0xc8] sm:$0xff] %v2928
          %2972 = vst.msk [vmem:[#allocation2 + $0xd0] sm:$0xff] %vm2947, %v2929
          %2973 = vst [vmem:[#allocation2 + $0xd8] sm:$0xff] %v2930
          %2974 = vst [vmem:[#allocation2 + $0xe0] sm:$0xff] %v2931
          %2975 = vst.msk [vmem:[#allocation2 + $0xe8] sm:$0xff] %vm2947, %v2932
          %2976 = vst [vmem:[#allocation2 + $0xf0] sm:$0xff] %v2933
          %2977 = vst [vmem:[#allocation2 + $0xf8] sm:$0xff] %v2934
          %2978 = vst.msk [vmem:[#allocation2 + $0x100] sm:$0xff] %vm2947, %v2935
          %2979 = vst [vmem:[#allocation2 + $0x108] sm:$0xff] %v2936
          %2980 = vst [vmem:[#allocation2 + $0x110] sm:$0xff] %v2937
          %2981 = vst.msk [vmem:[#allocation2 + $0x118] sm:$0xff] %vm2947, %v2938
          %2982 = vst [vmem:[#allocation2 + $0x120] sm:$0xff] %v2939
          %2983 = vst [vmem:[#allocation2 + $0x128] sm:$0xff] %v2940
          %2984 = vst.msk [vmem:[#allocation2 + $0x130] sm:$0xff] %vm2947, %v2941
          %2985 = vst [vmem:[#allocation2 + $0x138] sm:$0xff] %v2942
          %2986 = vst [vmem:[#allocation2 + $0x140] sm:$0xff] %v2943
          %2987 = vst.msk [vmem:[#allocation2 + $0x148] sm:$0xff] %vm2947, %v2944
          %2988 = vst [vmem:[#allocation3] sm:$0xff] 0.0
          %2989 = vst [vmem:[#allocation3 + $0x8] sm:$0xff] 0.0
          %2990 = vst [vmem:[#allocation3 + $0x10] sm:$0xff] 0.0
          %vm2991 = vcmask 949248
          %2992 = vst.msk [vmem:[#allocation3 + $0x18] sm:$0xff] %vm2991, 0.0
        $region64: #{net_forward.1} parent=59 // pred_fallthru
          _
        %s2993 = smul.u32 %s22, 56
        %s2994 = sshra.s32 %s2993, 3
        %s2995 = sand.u32 %s2993, 7
        %s2996 = smul.u32 %s2994, 3
        %s2997 = smul.addr %s2996, 8
        %s2998 = scalar_lea.vmem [#allocation2], %s2997
        %v2999 = vld [vmem:[%s2998] sm:$0xff]
        %v3000 = vld [vmem:[%s2998 + $0x8] sm:$0xff]
        %v3001 = vld [vmem:[%s2998 + $0x10] sm:$0xff]
        %v3002 = vpack.c.bf16 %v2999, %v2999
        %v3003 = vpack.c.bf16 %v3000, %v3000
        %v3004 = vpack.c.bf16 %v3001, %v3001
        %v3005 = vld [vmem:[#allocation3] sm:$0xff]
        %v3006 = vld [vmem:[#allocation3 + $0x8] sm:$0xff]
        %v3007 = vld [vmem:[#allocation3 + $0x10] sm:$0xff]
        %v3008 = vld [vmem:[#allocation3 + $0x18] sm:$0xff]
        %v3009 = vld [vmem:[%s349] sm:$0xff]
        %v3010 = vld [vmem:[%s349 + $0x8] sm:$0xff]
        %v3011 = vld [vmem:[%s349 + $0x10] sm:$0xff]
        %v3012 = vld [vmem:[%s349 + $0x18] sm:$0xff]
        %v3013 = vld [vmem:[%s349 + $0x20] sm:$0xff]
        %v3014 = vld [vmem:[%s349 + $0x28] sm:$0xff]
        %v3015 = vld [vmem:[%s349 + $0x30] sm:$0xff]
        %v3016 = vld [vmem:[%s349 + $0x38] sm:$0xff]
        %v3017 = vld [vmem:[%s349 + $0x40] sm:$0xff]
        %v3018 = vld [vmem:[%s349 + $0x48] sm:$0xff]
        %v3019 = vld [vmem:[%s349 + $0x50] sm:$0xff]
        %v3020 = vld [vmem:[%s349 + $0x58] sm:$0xff]
        %v3021 = vld [vmem:[%s349 + $0x60] sm:$0xff]
        %v3022 = vld [vmem:[%s349 + $0x68] sm:$0xff]
        %v3023 = vld [vmem:[%s349 + $0x70] sm:$0xff]
        %v3024 = vld [vmem:[%s349 + $0x78] sm:$0xff]
        %v3025 = vld [vmem:[%s349 + $0x80] sm:$0xff]
        %v3026 = vld [vmem:[%s349 + $0x88] sm:$0xff]
        %v3027 = vld [vmem:[%s349 + $0x90] sm:$0xff]
        %v3028 = vld [vmem:[%s349 + $0x98] sm:$0xff]
        %v3029 = vld [vmem:[%s349 + $0xa0] sm:$0xff]
        %v3030 = vld [vmem:[%s349 + $0xa8] sm:$0xff]
        %v3031 = vld [vmem:[%s349 + $0xb0] sm:$0xff]
        %v3032 = vld [vmem:[%s349 + $0xb8] sm:$0xff]
        %v3033 = vld [vmem:[%s349 + $0xc0] sm:$0xff]
        %v3034 = vld [vmem:[%s349 + $0xc8] sm:$0xff]
        %v3035 = vld [vmem:[%s349 + $0xd0] sm:$0xff]
        %v3036 = vld [vmem:[%s349 + $0xd8] sm:$0xff]
        %v3037 = vld [vmem:[%s349 + $0xe0] sm:$0xff]
        %v3038 = vld [vmem:[%s349 + $0xe8] sm:$0xff]
        %v3039 = vld [vmem:[%s349 + $0xf0] sm:$0xff]
        %v3040 = vld [vmem:[%s349 + $0xf8] sm:$0xff]
        %v3041 = vld [vmem:[%s349 + $0x100] sm:$0xff]
        %v3042 = vld [vmem:[%s349 + $0x108] sm:$0xff]
        %v3043 = vld [vmem:[%s349 + $0x110] sm:$0xff]
        %v3044 = vld [vmem:[%s349 + $0x118] sm:$0xff]
        %v3045 = vld [vmem:[%s349 + $0x120] sm:$0xff]
        %v3046 = vld [vmem:[%s349 + $0x128] sm:$0xff]
        %v3047 = vld [vmem:[%s349 + $0x130] sm:$0xff]
        %v3048 = vld [vmem:[%s349 + $0x138] sm:$0xff]
        %v3049 = vld [vmem:[%s349 + $0x140] sm:$0xff]
        %v3050 = vld [vmem:[%s349 + $0x148] sm:$0xff]
        %v3051 = vld [vmem:[%s349 + $0x150] sm:$0xff]
        %v3052 = vld [vmem:[%s349 + $0x158] sm:$0xff]
        %v3053 = vld [vmem:[%s349 + $0x160] sm:$0xff]
        %v3054 = vld [vmem:[%s349 + $0x168] sm:$0xff]
        %v3055 = vld [vmem:[%s349 + $0x170] sm:$0xff]
        %v3056 = vld [vmem:[%s349 + $0x178] sm:$0xff]
        %v3057 = vld [vmem:[%s349 + $0x180] sm:$0xff]
        %v3058 = vld [vmem:[%s349 + $0x188] sm:$0xff]
        %v3059 = vld [vmem:[%s349 + $0x190] sm:$0xff]
        %v3060 = vld [vmem:[%s349 + $0x198] sm:$0xff]
        %v3061 = vld [vmem:[%s349 + $0x1a0] sm:$0xff]
        %v3062 = vld [vmem:[%s349 + $0x1a8] sm:$0xff]
        %v3063 = vld [vmem:[%s349 + $0x1b0] sm:$0xff]
        %v3064 = vld [vmem:[%s349 + $0x1b8] sm:$0xff]
        %v3065 = vld [vmem:[%s349 + $0x1c0] sm:$0xff]
        %v3066 = vld [vmem:[%s349 + $0x1c8] sm:$0xff]
        %v3067 = vld [vmem:[%s349 + $0x1d0] sm:$0xff]
        %v3068 = vld [vmem:[%s349 + $0x1d8] sm:$0xff]
        %v3069 = vld [vmem:[%s349 + $0x1e0] sm:$0xff]
        %v3070 = vld [vmem:[%s349 + $0x1e8] sm:$0xff]
        %v3071 = vld [vmem:[%s349 + $0x1f0] sm:$0xff]
        %v3072 = vld [vmem:[%s349 + $0x1f8] sm:$0xff]
        %v3073 = vld [vmem:[%s349 + $0x200] sm:$0xff]
        %v3074 = vld [vmem:[%s349 + $0x208] sm:$0xff]
        %v3075 = vld [vmem:[%s349 + $0x210] sm:$0xff]
        %v3076 = vld [vmem:[%s349 + $0x218] sm:$0xff]
        %v3077 = vld [vmem:[%s349 + $0x220] sm:$0xff]
        %v3078 = vld [vmem:[%s349 + $0x228] sm:$0xff]
        %v3149 = vunpack.c.l.b16 %v3009
        %v3150 = vunpack.c.h.b16 %v3009
        %v3151 = vunpack.c.l.b16 %v3010
        %v3152 = vunpack.c.h.b16 %v3010
        %v3153 = vunpack.c.l.b16 %v3011
        %v3154 = vunpack.c.h.b16 %v3011
        %v3155 = vunpack.c.l.b16 %v3012
        %v3156 = vunpack.c.h.b16 %v3012
        %v3157 = vunpack.c.l.b16 %v3013
        %v3158 = vunpack.c.h.b16 %v3013
        %v3159 = vunpack.c.l.b16 %v3014
        %v3160 = vunpack.c.h.b16 %v3014
        %v3161 = vunpack.c.l.b16 %v3015
        %v3162 = vunpack.c.h.b16 %v3015
        %v3163 = vunpack.c.l.b16 %v3016
        %v3164 = vunpack.c.h.b16 %v3016
        %v3165 = vunpack.c.l.b16 %v3017
        %v3166 = vunpack.c.h.b16 %v3017
        %v3167 = vunpack.c.l.b16 %v3018
        %v3168 = vunpack.c.h.b16 %v3018
        %v3169 = vunpack.c.l.b16 %v3019
        %v3170 = vunpack.c.h.b16 %v3019
        %v3171 = vunpack.c.l.b16 %v3020
        %v3172 = vunpack.c.h.b16 %v3020
        %v3173 = vunpack.c.l.b16 %v3021
        %v3174 = vunpack.c.h.b16 %v3021
        %v3175 = vunpack.c.l.b16 %v3022
        %v3176 = vunpack.c.h.b16 %v3022
        %v3177 = vunpack.c.l.b16 %v3023
        %v3178 = vunpack.c.h.b16 %v3023
        %v3179 = vunpack.c.l.b16 %v3024
        %v3180 = vunpack.c.h.b16 %v3024
        %v3181 = vunpack.c.l.b16 %v3025
        %v3182 = vunpack.c.h.b16 %v3025
        %v3183 = vunpack.c.l.b16 %v3026
        %v3184 = vunpack.c.h.b16 %v3026
        %v3185 = vunpack.c.l.b16 %v3027
        %v3186 = vunpack.c.h.b16 %v3027
        %v3187 = vunpack.c.l.b16 %v3028
        %v3188 = vunpack.c.h.b16 %v3028
        %v3189 = vunpack.c.l.b16 %v3029
        %v3190 = vunpack.c.h.b16 %v3029
        %v3191 = vunpack.c.l.b16 %v3030
        %v3192 = vunpack.c.h.b16 %v3030
        %v3193 = vunpack.c.l.b16 %v3031
        %v3194 = vunpack.c.h.b16 %v3031
        %v3195 = vunpack.c.l.b16 %v3032
        %v3196 = vunpack.c.h.b16 %v3032
        %v3197 = vunpack.c.l.b16 %v3033
        %v3198 = vunpack.c.h.b16 %v3033
        %v3199 = vunpack.c.l.b16 %v3034
        %v3200 = vunpack.c.h.b16 %v3034
        %v3201 = vunpack.c.l.b16 %v3035
        %v3202 = vunpack.c.h.b16 %v3035
        %v3203 = vunpack.c.l.b16 %v3036
        %v3204 = vunpack.c.h.b16 %v3036
        %v3205 = vunpack.c.l.b16 %v3037
        %v3206 = vunpack.c.h.b16 %v3037
        %v3207 = vunpack.c.l.b16 %v3038
        %v3208 = vunpack.c.h.b16 %v3038
        %v3209 = vunpack.c.l.b16 %v3039
        %v3210 = vunpack.c.h.b16 %v3039
        %v3211 = vunpack.c.l.b16 %v3040
        %v3212 = vunpack.c.h.b16 %v3040
        %v3213 = vunpack.c.l.b16 %v3041
        %v3214 = vunpack.c.h.b16 %v3041
        %v3215 = vunpack.c.l.b16 %v3042
        %v3216 = vunpack.c.h.b16 %v3042
        %v3217 = vunpack.c.l.b16 %v3043
        %v3218 = vunpack.c.h.b16 %v3043
        %v3219 = vunpack.c.l.b16 %v3044
        %v3220 = vunpack.c.h.b16 %v3044
        %v3221 = vunpack.c.l.b16 %v3045
        %v3222 = vunpack.c.h.b16 %v3045
        %v3223 = vunpack.c.l.b16 %v3046
        %v3224 = vunpack.c.h.b16 %v3046
        %v3225 = vunpack.c.l.b16 %v3047
        %v3226 = vunpack.c.h.b16 %v3047
        %v3227 = vunpack.c.l.b16 %v3048
        %v3228 = vunpack.c.h.b16 %v3048
        %v3229 = vunpack.c.l.b16 %v3049
        %v3230 = vunpack.c.h.b16 %v3049
        %v3231 = vunpack.c.l.b16 %v3050
        %v3232 = vunpack.c.h.b16 %v3050
        %v3233 = vunpack.c.l.b16 %v3051
        %v3234 = vunpack.c.h.b16 %v3051
        %v3235 = vunpack.c.l.b16 %v3052
        %v3236 = vunpack.c.h.b16 %v3052
        %v3237 = vunpack.c.l.b16 %v3053
        %v3238 = vunpack.c.h.b16 %v3053
        %v3239 = vunpack.c.l.b16 %v3054
        %v3240 = vunpack.c.h.b16 %v3054
        %v3241 = vunpack.c.l.b16 %v3055
        %v3242 = vunpack.c.h.b16 %v3055
        %v3243 = vunpack.c.l.b16 %v3056
        %v3244 = vunpack.c.h.b16 %v3056
        %v3245 = vunpack.c.l.b16 %v3057
        %v3246 = vunpack.c.h.b16 %v3057
        %v3247 = vunpack.c.l.b16 %v3058
        %v3248 = vunpack.c.h.b16 %v3058
        %v3249 = vunpack.c.l.b16 %v3059
        %v3250 = vunpack.c.h.b16 %v3059
        %v3251 = vunpack.c.l.b16 %v3060
        %v3252 = vunpack.c.h.b16 %v3060
        %v3253 = vunpack.c.l.b16 %v3061
        %v3254 = vunpack.c.h.b16 %v3061
        %v3255 = vunpack.c.l.b16 %v3062
        %v3256 = vunpack.c.h.b16 %v3062
        %v3257 = vunpack.c.l.b16 %v3063
        %v3258 = vunpack.c.h.b16 %v3063
        %v3259 = vunpack.c.l.b16 %v3064
        %v3260 = vunpack.c.h.b16 %v3064
        %v3261 = vunpack.c.l.b16 %v3065
        %v3262 = vunpack.c.h.b16 %v3065
        %v3263 = vunpack.c.l.b16 %v3066
        %v3264 = vunpack.c.h.b16 %v3066
        %v3265 = vunpack.c.l.b16 %v3067
        %v3266 = vunpack.c.h.b16 %v3067
        %v3267 = vunpack.c.l.b16 %v3068
        %v3268 = vunpack.c.h.b16 %v3068
        %v3269 = vunpack.c.l.b16 %v3069
        %v3270 = vunpack.c.h.b16 %v3069
        %v3271 = vunpack.c.l.b16 %v3070
        %v3272 = vunpack.c.h.b16 %v3070
        %v3273 = vunpack.c.l.b16 %v3071
        %v3274 = vunpack.c.h.b16 %v3071
        %v3275 = vunpack.c.l.b16 %v3072
        %v3276 = vunpack.c.h.b16 %v3072
        %v3277 = vunpack.c.l.b16 %v3073
        %v3278 = vunpack.c.h.b16 %v3073
        %v3279 = vunpack.c.l.b16 %v3074
        %v3280 = vunpack.c.h.b16 %v3074
        %v3281 = vunpack.c.l.b16 %v3075
        %v3282 = vunpack.c.h.b16 %v3075
        %v3283 = vunpack.c.l.b16 %v3076
        %v3284 = vunpack.c.h.b16 %v3076
        %v3285 = vunpack.c.l.b16 %v3077
        %v3286 = vunpack.c.h.b16 %v3077
        %v3287 = vunpack.c.l.b16 %v3078
        %v3288 = vunpack.c.h.b16 %v3078
        %v3289 = vpack.c.b16 %v3153, %v3149
        %v3290 = vpack.c.b16 %v3154, %v3150
        %v3291 = vpack.c.b16 %v3155, %v3151
        %v3292 = vpack.c.b16 %v3156, %v3152
        %v3293 = vpack.c.b16 %v3161, %v3157
        %v3294 = vpack.c.b16 %v3162, %v3158
        %v3295 = vpack.c.b16 %v3163, %v3159
        %v3296 = vpack.c.b16 %v3164, %v3160
        %v3297 = vpack.c.b16 %v3169, %v3165
        %v3298 = vpack.c.b16 %v3170, %v3166
        %v3299 = vpack.c.b16 %v3171, %v3167
        %v3300 = vpack.c.b16 %v3172, %v3168
        %v3301 = vpack.c.b16 %v3177, %v3173
        %v3302 = vpack.c.b16 %v3178, %v3174
        %v3303 = vpack.c.b16 %v3179, %v3175
        %v3304 = vpack.c.b16 %v3180, %v3176
        %v3305 = vpack.c.b16 %v3185, %v3181
        %v3306 = vpack.c.b16 %v3186, %v3182
        %v3307 = vpack.c.b16 %v3187, %v3183
        %v3308 = vpack.c.b16 %v3188, %v3184
        %v3309 = vpack.c.b16 %v3193, %v3189
        %v3310 = vpack.c.b16 %v3194, %v3190
        %v3311 = vpack.c.b16 %v3195, %v3191
        %v3312 = vpack.c.b16 %v3196, %v3192
        %v3313 = vpack.c.b16 %v3201, %v3197
        %v3314 = vpack.c.b16 %v3202, %v3198
        %v3315 = vpack.c.b16 %v3203, %v3199
        %v3316 = vpack.c.b16 %v3204, %v3200
        %v3317 = vpack.c.b16 %v3209, %v3205
        %v3318 = vpack.c.b16 %v3210, %v3206
        %v3319 = vpack.c.b16 %v3211, %v3207
        %v3320 = vpack.c.b16 %v3212, %v3208
        %v3321 = vpack.c.b16 %v3217, %v3213
        %v3322 = vpack.c.b16 %v3218, %v3214
        %v3323 = vpack.c.b16 %v3219, %v3215
        %v3324 = vpack.c.b16 %v3220, %v3216
        %v3325 = vpack.c.b16 %v3225, %v3221
        %v3326 = vpack.c.b16 %v3226, %v3222
        %v3327 = vpack.c.b16 %v3227, %v3223
        %v3328 = vpack.c.b16 %v3228, %v3224
        %v3329 = vpack.c.b16 %v3233, %v3229
        %v3330 = vpack.c.b16 %v3234, %v3230
        %v3331 = vpack.c.b16 %v3235, %v3231
        %v3332 = vpack.c.b16 %v3236, %v3232
        %v3333 = vpack.c.b16 %v3241, %v3237
        %v3334 = vpack.c.b16 %v3242, %v3238
        %v3335 = vpack.c.b16 %v3243, %v3239
        %v3336 = vpack.c.b16 %v3244, %v3240
        %v3337 = vpack.c.b16 %v3249, %v3245
        %v3338 = vpack.c.b16 %v3250, %v3246
        %v3339 = vpack.c.b16 %v3251, %v3247
        %v3340 = vpack.c.b16 %v3252, %v3248
        %v3341 = vpack.c.b16 %v3257, %v3253
        %v3342 = vpack.c.b16 %v3258, %v3254
        %v3343 = vpack.c.b16 %v3259, %v3255
        %v3344 = vpack.c.b16 %v3260, %v3256
        %v3345 = vpack.c.b16 %v3265, %v3261
        %v3346 = vpack.c.b16 %v3266, %v3262
        %v3347 = vpack.c.b16 %v3267, %v3263
        %v3348 = vpack.c.b16 %v3268, %v3264
        %v3349 = vpack.c.b16 %v3273, %v3269
        %v3350 = vpack.c.b16 %v3274, %v3270
        %v3351 = vpack.c.b16 %v3275, %v3271
        %v3352 = vpack.c.b16 %v3276, %v3272
        %v3353 = vpack.c.b16 %v3281, %v3277
        %v3354 = vpack.c.b16 %v3282, %v3278
        %v3355 = vpack.c.b16 %v3283, %v3279
        %v3356 = vpack.c.b16 %v3284, %v3280
        %v3357 = vpack.c.b16 %v3285, %v3285
        %v3358 = vpack.c.b16 %v3286, %v3286
        %v3359 = vpack.c.b16 %v3287, %v3287
        %v3360 = vpack.c.b16 %v3288, %v3288
        %vm3429 = vcmask 195584
        %v3431 = vsel %vm3429, %v3004, 0
        %vm3433 = vcmask 1043456
        %v3435 = vsel %vm3433, %v3357, 0
        %v3438 = vsel %vm3433, %v3358, 0
        %v3441 = vsel %vm3433, %v3359, 0
        %v3444 = vsel %vm3433, %v3360, 0
        %3446 = vmatpush.bf16.msra.mxu0 %v3317
        %3447 = vmatpush.bf16.msra.mxu0 %v3313
        %3448 = vmatpush.bf16.msra.mxu0 %v3309
        %3449 = vmatpush.bf16.msra.mxu0 %v3305
        %3450 = vmatpush.bf16.msra.mxu0 %v3301
        %3451 = vmatpush.bf16.msra.mxu0 %v3297
        %3452 = vmatpush.bf16.msra.mxu0 %v3293
        %3453 = vmatpush.bf16.msra.mxu0 %v3289
        %3454 = vmatmul.bf16.gmra.mxu0 %v3002
        %v3455 = vpop.f32.mrf.mxu0
        %v3456 = vadd.f32 0.0, %v3455
        %v3457 = vpop.f32.mrf.mxu0
        %3458 = vdwg.mxu0
        %3459 = vmatpush.bf16.msra.mxu0 %v3349
        %3460 = vmatpush.bf16.msra.mxu0 %v3345
        %3461 = vmatpush.bf16.msra.mxu0 %v3341
        %3462 = vmatpush.bf16.msra.mxu0 %v3337
        %3463 = vmatpush.bf16.msra.mxu0 %v3333
        %3464 = vmatpush.bf16.msra.mxu0 %v3329
        %3465 = vmatpush.bf16.msra.mxu0 %v3325
        %3466 = vmatpush.bf16.msra.mxu0 %v3321
        %3467 = vmatmul.bf16.gmra.mxu0 %v3003
        %v3468 = vpop.f32.mrf.mxu0
        %v3469 = vadd.f32 %v3456, %v3468
        %v3470 = vpop.f32.mrf.mxu0
        %3471 = vdwg.mxu0
        %3472 = vmatpush.bf16.msra.mxu0 0
        %3473 = vmatpush.bf16.msra.mxu0 0
        %3474 = vmatpush.bf16.msra.mxu0 0
        %3475 = vmatpush.bf16.msra.mxu0 0
        %3476 = vmatpush.bf16.msra.mxu0 0
        %3477 = vmatpush.bf16.msra.mxu0 0
        %3478 = vmatpush.bf16.msra.mxu0 %v3435
        %3479 = vmatpush.bf16.msra.mxu0 %v3353
        %3480 = vmatmul.bf16.gmra.mxu0 %v3431
        %v3481 = vpop.f32.mrf.mxu0
        %v3482 = vadd.f32 %v3469, %v3481
        %v3483 = vpop.f32.mrf.mxu0
        %3484 = vdwg.mxu0
        %3485 = vmatpush.bf16.msra.mxu0 %v3318
        %3486 = vmatpush.bf16.msra.mxu0 %v3314
        %3487 = vmatpush.bf16.msra.mxu0 %v3310
        %3488 = vmatpush.bf16.msra.mxu0 %v3306
        %3489 = vmatpush.bf16.msra.mxu0 %v3302
        %3490 = vmatpush.bf16.msra.mxu0 %v3298
        %3491 = vmatpush.bf16.msra.mxu0 %v3294
        %3492 = vmatpush.bf16.msra.mxu0 %v3290
        %3493 = vmatmul.bf16.gmra.mxu0 %v3002
        %v3494 = vpop.f32.mrf.mxu0
        %v3495 = vadd.f32 0.0, %v3494
        %v3496 = vpop.f32.mrf.mxu0
        %3497 = vdwg.mxu0
        %3498 = vmatpush.bf16.msra.mxu0 %v3350
        %3499 = vmatpush.bf16.msra.mxu0 %v3346
        %3500 = vmatpush.bf16.msra.mxu0 %v3342
        %3501 = vmatpush.bf16.msra.mxu0 %v3338
        %3502 = vmatpush.bf16.msra.mxu0 %v3334
        %3503 = vmatpush.bf16.msra.mxu0 %v3330
        %3504 = vmatpush.bf16.msra.mxu0 %v3326
        %3505 = vmatpush.bf16.msra.mxu0 %v3322
        %3506 = vmatmul.bf16.gmra.mxu0 %v3003
        %v3507 = vpop.f32.mrf.mxu0
        %v3508 = vadd.f32 %v3495, %v3507
        %v3509 = vpop.f32.mrf.mxu0
        %3510 = vdwg.mxu0
        %3511 = vmatpush.bf16.msra.mxu0 0
        %3512 = vmatpush.bf16.msra.mxu0 0
        %3513 = vmatpush.bf16.msra.mxu0 0
        %3514 = vmatpush.bf16.msra.mxu0 0
        %3515 = vmatpush.bf16.msra.mxu0 0
        %3516 = vmatpush.bf16.msra.mxu0 0
        %3517 = vmatpush.bf16.msra.mxu0 %v3438
        %3518 = vmatpush.bf16.msra.mxu0 %v3354
        %3519 = vmatmul.bf16.gmra.mxu0 %v3431
        %v3520 = vpop.f32.mrf.mxu0
        %v3521 = vadd.f32 %v3508, %v3520
        %v3522 = vpop.f32.mrf.mxu0
        %3523 = vdwg.mxu0
        %3524 = vmatpush.bf16.msra.mxu0 %v3319
        %3525 = vmatpush.bf16.msra.mxu0 %v3315
        %3526 = vmatpush.bf16.msra.mxu0 %v3311
        %3527 = vmatpush.bf16.msra.mxu0 %v3307
        %3528 = vmatpush.bf16.msra.mxu0 %v3303
        %3529 = vmatpush.bf16.msra.mxu0 %v3299
        %3530 = vmatpush.bf16.msra.mxu0 %v3295
        %3531 = vmatpush.bf16.msra.mxu0 %v3291
        %3532 = vmatmul.bf16.gmra.mxu0 %v3002
        %v3533 = vpop.f32.mrf.mxu0
        %v3534 = vadd.f32 0.0, %v3533
        %v3535 = vpop.f32.mrf.mxu0
        %3536 = vdwg.mxu0
        %3537 = vmatpush.bf16.msra.mxu0 %v3351
        %3538 = vmatpush.bf16.msra.mxu0 %v3347
        %3539 = vmatpush.bf16.msra.mxu0 %v3343
        %3540 = vmatpush.bf16.msra.mxu0 %v3339
        %3541 = vmatpush.bf16.msra.mxu0 %v3335
        %3542 = vmatpush.bf16.msra.mxu0 %v3331
        %3543 = vmatpush.bf16.msra.mxu0 %v3327
        %3544 = vmatpush.bf16.msra.mxu0 %v3323
        %3545 = vmatmul.bf16.gmra.mxu0 %v3003
        %v3546 = vpop.f32.mrf.mxu0
        %v3547 = vadd.f32 %v3534, %v3546
        %v3548 = vpop.f32.mrf.mxu0
        %3549 = vdwg.mxu0
        %3550 = vmatpush.bf16.msra.mxu0 0
        %3551 = vmatpush.bf16.msra.mxu0 0
        %3552 = vmatpush.bf16.msra.mxu0 0
        %3553 = vmatpush.bf16.msra.mxu0 0
        %3554 = vmatpush.bf16.msra.mxu0 0
        %3555 = vmatpush.bf16.msra.mxu0 0
        %3556 = vmatpush.bf16.msra.mxu0 %v3441
        %3557 = vmatpush.bf16.msra.mxu0 %v3355
        %3558 = vmatmul.bf16.gmra.mxu0 %v3431
        %v3559 = vpop.f32.mrf.mxu0
        %v3560 = vadd.f32 %v3547, %v3559
        %v3561 = vpop.f32.mrf.mxu0
        %3562 = vdwg.mxu0
        %3563 = vmatpush.bf16.msra.mxu0 %v3320
        %3564 = vmatpush.bf16.msra.mxu0 %v3316
        %3565 = vmatpush.bf16.msra.mxu0 %v3312
        %3566 = vmatpush.bf16.msra.mxu0 %v3308
        %3567 = vmatpush.bf16.msra.mxu0 %v3304
        %3568 = vmatpush.bf16.msra.mxu0 %v3300
        %3569 = vmatpush.bf16.msra.mxu0 %v3296
        %3570 = vmatpush.bf16.msra.mxu0 %v3292
        %3571 = vmatmul.bf16.gmra.mxu0 %v3002
        %v3572 = vpop.f32.mrf.mxu0
        %v3573 = vadd.f32 0.0, %v3572
        %v3574 = vpop.f32.mrf.mxu0
        %3575 = vdwg.mxu0
        %3576 = vmatpush.bf16.msra.mxu0 %v3352
        %3577 = vmatpush.bf16.msra.mxu0 %v3348
        %3578 = vmatpush.bf16.msra.mxu0 %v3344
        %3579 = vmatpush.bf16.msra.mxu0 %v3340
        %3580 = vmatpush.bf16.msra.mxu0 %v3336
        %3581 = vmatpush.bf16.msra.mxu0 %v3332
        %3582 = vmatpush.bf16.msra.mxu0 %v3328
        %3583 = vmatpush.bf16.msra.mxu0 %v3324
        %3584 = vmatmul.bf16.gmra.mxu0 %v3003
        %v3585 = vpop.f32.mrf.mxu0
        %v3586 = vadd.f32 %v3573, %v3585
        %v3587 = vpop.f32.mrf.mxu0
        %3588 = vdwg.mxu0
        %3589 = vmatpush.bf16.msra.mxu0 0
        %3590 = vmatpush.bf16.msra.mxu0 0
        %3591 = vmatpush.bf16.msra.mxu0 0
        %3592 = vmatpush.bf16.msra.mxu0 0
        %3593 = vmatpush.bf16.msra.mxu0 0
        %3594 = vmatpush.bf16.msra.mxu0 0
        %3595 = vmatpush.bf16.msra.mxu0 %v3444
        %3596 = vmatpush.bf16.msra.mxu0 %v3356
        %3597 = vmatmul.bf16.gmra.mxu0 %v3431
        %v3598 = vpop.f32.mrf.mxu0
        %v3599 = vadd.f32 %v3586, %v3598
        %v3600 = vpop.f32.mrf.mxu0
        %3601 = vdwg.mxu0
        %v3602 = vadd.f32 %v3005, %v3482
        %v3603 = vadd.f32 %v3006, %v3521
        %v3604 = vadd.f32 %v3007, %v3560
        %v3605 = vadd.f32 %v3008, %v3599
        %3606 = vst [vmem:[#allocation3] sm:$0xff] %v3602
        %3607 = vst [vmem:[#allocation3 + $0x8] sm:$0xff] %v3603
        %3608 = vst [vmem:[#allocation3 + $0x10] sm:$0xff] %v3604
        %vm3609 = vcmask 949248
        %3610 = vst.msk [vmem:[#allocation3 + $0x18] sm:$0xff] %vm3609, %v3605
        %s3611 = smul.u32 %s22, 7
        %s3612 = sadd.s32 %s3611, 1
        %s3613 = smul.u32 %s3612, 8
        %s3614 = sshra.s32 %s3613, 3
        %s3615 = sand.u32 %s3613, 7
        %s3616 = smul.u32 %s3614, 3
        %s3617 = smul.addr %s3616, 8
        %s3618 = scalar_lea.vmem [#allocation2], %s3617
        %v3619 = vld [vmem:[%s3618] sm:$0xff]
        %v3620 = vld [vmem:[%s3618 + $0x8] sm:$0xff]
        %v3621 = vld [vmem:[%s3618 + $0x10] sm:$0xff]
        %v3622 = vpack.c.bf16 %v3619, %v3619
        %v3623 = vpack.c.bf16 %v3620, %v3620
        %v3624 = vpack.c.bf16 %v3621, %v3621
        %v3625 = vld [vmem:[#allocation3] sm:$0xff]
        %v3626 = vld [vmem:[#allocation3 + $0x8] sm:$0xff]
        %v3627 = vld [vmem:[#allocation3 + $0x10] sm:$0xff]
        %v3628 = vld [vmem:[#allocation3 + $0x18] sm:$0xff]
        %s3629 = scalar_lea.vmem %s349, 560
        %v3630 = vld [vmem:[%s3629] sm:$0xff]
        %v3631 = vld [vmem:[%s3629 + $0x8] sm:$0xff]
        %v3632 = vld [vmem:[%s3629 + $0x10] sm:$0xff]
        %v3633 = vld [vmem:[%s3629 + $0x18] sm:$0xff]
        %v3634 = vld [vmem:[%s3629 + $0x20] sm:$0xff]
        %v3635 = vld [vmem:[%s3629 + $0x28] sm:$0xff]
        %v3636 = vld [vmem:[%s3629 + $0x30] sm:$0xff]
        %v3637 = vld [vmem:[%s3629 + $0x38] sm:$0xff]
        %v3638 = vld [vmem:[%s3629 + $0x40] sm:$0xff]
        %v3639 = vld [vmem:[%s3629 + $0x48] sm:$0xff]
        %v3640 = vld [vmem:[%s3629 + $0x50] sm:$0xff]
        %v3641 = vld [vmem:[%s3629 + $0x58] sm:$0xff]
        %v3642 = vld [vmem:[%s3629 + $0x60] sm:$0xff]
        %v3643 = vld [vmem:[%s3629 + $0x68] sm:$0xff]
        %v3644 = vld [vmem:[%s3629 + $0x70] sm:$0xff]
        %v3645 = vld [vmem:[%s3629 + $0x78] sm:$0xff]
        %v3646 = vld [vmem:[%s3629 + $0x80] sm:$0xff]
        %v3647 = vld [vmem:[%s3629 + $0x88] sm:$0xff]
        %v3648 = vld [vmem:[%s3629 + $0x90] sm:$0xff]
        %v3649 = vld [vmem:[%s3629 + $0x98] sm:$0xff]
        %v3650 = vld [vmem:[%s3629 + $0xa0] sm:$0xff]
        %v3651 = vld [vmem:[%s3629 + $0xa8] sm:$0xff]
        %v3652 = vld [vmem:[%s3629 + $0xb0] sm:$0xff]
        %v3653 = vld [vmem:[%s3629 + $0xb8] sm:$0xff]
        %v3654 = vld [vmem:[%s3629 + $0xc0] sm:$0xff]
        %v3655 = vld [vmem:[%s3629 + $0xc8] sm:$0xff]
        %v3656 = vld [vmem:[%s3629 + $0xd0] sm:$0xff]
        %v3657 = vld [vmem:[%s3629 + $0xd8] sm:$0xff]
        %v3658 = vld [vmem:[%s3629 + $0xe0] sm:$0xff]
        %v3659 = vld [vmem:[%s3629 + $0xe8] sm:$0xff]
        %v3660 = vld [vmem:[%s3629 + $0xf0] sm:$0xff]
        %v3661 = vld [vmem:[%s3629 + $0xf8] sm:$0xff]
        %v3662 = vld [vmem:[%s3629 + $0x100] sm:$0xff]
        %v3663 = vld [vmem:[%s3629 + $0x108] sm:$0xff]
        %v3664 = vld [vmem:[%s3629 + $0x110] sm:$0xff]
        %v3665 = vld [vmem:[%s3629 + $0x118] sm:$0xff]
        %v3666 = vld [vmem:[%s3629 + $0x120] sm:$0xff]
        %v3667 = vld [vmem:[%s3629 + $0x128] sm:$0xff]
        %v3668 = vld [vmem:[%s3629 + $0x130] sm:$0xff]
        %v3669 = vld [vmem:[%s3629 + $0x138] sm:$0xff]
        %v3670 = vld [vmem:[%s3629 + $0x140] sm:$0xff]
        %v3671 = vld [vmem:[%s3629 + $0x148] sm:$0xff]
        %v3672 = vld [vmem:[%s3629 + $0x150] sm:$0xff]
        %v3673 = vld [vmem:[%s3629 + $0x158] sm:$0xff]
        %v3674 = vld [vmem:[%s3629 + $0x160] sm:$0xff]
        %v3675 = vld [vmem:[%s3629 + $0x168] sm:$0xff]
        %v3676 = vld [vmem:[%s3629 + $0x170] sm:$0xff]
        %v3677 = vld [vmem:[%s3629 + $0x178] sm:$0xff]
        %v3678 = vld [vmem:[%s3629 + $0x180] sm:$0xff]
        %v3679 = vld [vmem:[%s3629 + $0x188] sm:$0xff]
        %v3680 = vld [vmem:[%s3629 + $0x190] sm:$0xff]
        %v3681 = vld [vmem:[%s3629 + $0x198] sm:$0xff]
        %v3682 = vld [vmem:[%s3629 + $0x1a0] sm:$0xff]
        %v3683 = vld [vmem:[%s3629 + $0x1a8] sm:$0xff]
        %v3684 = vld [vmem:[%s3629 + $0x1b0] sm:$0xff]
        %v3685 = vld [vmem:[%s3629 + $0x1b8] sm:$0xff]
        %v3686 = vld [vmem:[%s3629 + $0x1c0] sm:$0xff]
        %v3687 = vld [vmem:[%s3629 + $0x1c8] sm:$0xff]
        %v3688 = vld [vmem:[%s3629 + $0x1d0] sm:$0xff]
        %v3689 = vld [vmem:[%s3629 + $0x1d8] sm:$0xff]
        %v3690 = vld [vmem:[%s3629 + $0x1e0] sm:$0xff]
        %v3691 = vld [vmem:[%s3629 + $0x1e8] sm:$0xff]
        %v3692 = vld [vmem:[%s3629 + $0x1f0] sm:$0xff]
        %v3693 = vld [vmem:[%s3629 + $0x1f8] sm:$0xff]
        %v3694 = vld [vmem:[%s3629 + $0x200] sm:$0xff]
        %v3695 = vld [vmem:[%s3629 + $0x208] sm:$0xff]
        %v3696 = vld [vmem:[%s3629 + $0x210] sm:$0xff]
        %v3697 = vld [vmem:[%s3629 + $0x218] sm:$0xff]
        %v3698 = vld [vmem:[%s3629 + $0x220] sm:$0xff]
        %v3699 = vld [vmem:[%s3629 + $0x228] sm:$0xff]
        %v3770 = vunpack.c.l.b16 %v3630
        %v3771 = vunpack.c.h.b16 %v3630
        %v3772 = vunpack.c.l.b16 %v3631
        %v3773 = vunpack.c.h.b16 %v3631
        %v3774 = vunpack.c.l.b16 %v3632
        %v3775 = vunpack.c.h.b16 %v3632
        %v3776 = vunpack.c.l.b16 %v3633
        %v3777 = vunpack.c.h.b16 %v3633
        %v3778 = vunpack.c.l.b16 %v3634
        %v3779 = vunpack.c.h.b16 %v3634
        %v3780 = vunpack.c.l.b16 %v3635
        %v3781 = vunpack.c.h.b16 %v3635
        %v3782 = vunpack.c.l.b16 %v3636
        %v3783 = vunpack.c.h.b16 %v3636
        %v3784 = vunpack.c.l.b16 %v3637
        %v3785 = vunpack.c.h.b16 %v3637
        %v3786 = vunpack.c.l.b16 %v3638
        %v3787 = vunpack.c.h.b16 %v3638
        %v3788 = vunpack.c.l.b16 %v3639
        %v3789 = vunpack.c.h.b16 %v3639
        %v3790 = vunpack.c.l.b16 %v3640
        %v3791 = vunpack.c.h.b16 %v3640
        %v3792 = vunpack.c.l.b16 %v3641
        %v3793 = vunpack.c.h.b16 %v3641
        %v3794 = vunpack.c.l.b16 %v3642
        %v3795 = vunpack.c.h.b16 %v3642
        %v3796 = vunpack.c.l.b16 %v3643
        %v3797 = vunpack.c.h.b16 %v3643
        %v3798 = vunpack.c.l.b16 %v3644
        %v3799 = vunpack.c.h.b16 %v3644
        %v3800 = vunpack.c.l.b16 %v3645
        %v3801 = vunpack.c.h.b16 %v3645
        %v3802 = vunpack.c.l.b16 %v3646
        %v3803 = vunpack.c.h.b16 %v3646
        %v3804 = vunpack.c.l.b16 %v3647
        %v3805 = vunpack.c.h.b16 %v3647
        %v3806 = vunpack.c.l.b16 %v3648
        %v3807 = vunpack.c.h.b16 %v3648
        %v3808 = vunpack.c.l.b16 %v3649
        %v3809 = vunpack.c.h.b16 %v3649
        %v3810 = vunpack.c.l.b16 %v3650
        %v3811 = vunpack.c.h.b16 %v3650
        %v3812 = vunpack.c.l.b16 %v3651
        %v3813 = vunpack.c.h.b16 %v3651
        %v3814 = vunpack.c.l.b16 %v3652
        %v3815 = vunpack.c.h.b16 %v3652
        %v3816 = vunpack.c.l.b16 %v3653
        %v3817 = vunpack.c.h.b16 %v3653
        %v3818 = vunpack.c.l.b16 %v3654
        %v3819 = vunpack.c.h.b16 %v3654
        %v3820 = vunpack.c.l.b16 %v3655
        %v3821 = vunpack.c.h.b16 %v3655
        %v3822 = vunpack.c.l.b16 %v3656
        %v3823 = vunpack.c.h.b16 %v3656
        %v3824 = vunpack.c.l.b16 %v3657
        %v3825 = vunpack.c.h.b16 %v3657
        %v3826 = vunpack.c.l.b16 %v3658
        %v3827 = vunpack.c.h.b16 %v3658
        %v3828 = vunpack.c.l.b16 %v3659
        %v3829 = vunpack.c.h.b16 %v3659
        %v3830 = vunpack.c.l.b16 %v3660
        %v3831 = vunpack.c.h.b16 %v3660
        %v3832 = vunpack.c.l.b16 %v3661
        %v3833 = vunpack.c.h.b16 %v3661
        %v3834 = vunpack.c.l.b16 %v3662
        %v3835 = vunpack.c.h.b16 %v3662
        %v3836 = vunpack.c.l.b16 %v3663
        %v3837 = vunpack.c.h.b16 %v3663
        %v3838 = vunpack.c.l.b16 %v3664
        %v3839 = vunpack.c.h.b16 %v3664
        %v3840 = vunpack.c.l.b16 %v3665
        %v3841 = vunpack.c.h.b16 %v3665
        %v3842 = vunpack.c.l.b16 %v3666
        %v3843 = vunpack.c.h.b16 %v3666
        %v3844 = vunpack.c.l.b16 %v3667
        %v3845 = vunpack.c.h.b16 %v3667
        %v3846 = vunpack.c.l.b16 %v3668
        %v3847 = vunpack.c.h.b16 %v3668
        %v3848 = vunpack.c.l.b16 %v3669
        %v3849 = vunpack.c.h.b16 %v3669
        %v3850 = vunpack.c.l.b16 %v3670
        %v3851 = vunpack.c.h.b16 %v3670
        %v3852 = vunpack.c.l.b16 %v3671
        %v3853 = vunpack.c.h.b16 %v3671
        %v3854 = vunpack.c.l.b16 %v3672
        %v3855 = vunpack.c.h.b16 %v3672
        %v3856 = vunpack.c.l.b16 %v3673
        %v3857 = vunpack.c.h.b16 %v3673
        %v3858 = vunpack.c.l.b16 %v3674
        %v3859 = vunpack.c.h.b16 %v3674
        %v3860 = vunpack.c.l.b16 %v3675
        %v3861 = vunpack.c.h.b16 %v3675
        %v3862 = vunpack.c.l.b16 %v3676
        %v3863 = vunpack.c.h.b16 %v3676
        %v3864 = vunpack.c.l.b16 %v3677
        %v3865 = vunpack.c.h.b16 %v3677
        %v3866 = vunpack.c.l.b16 %v3678
        %v3867 = vunpack.c.h.b16 %v3678
        %v3868 = vunpack.c.l.b16 %v3679
        %v3869 = vunpack.c.h.b16 %v3679
        %v3870 = vunpack.c.l.b16 %v3680
        %v3871 = vunpack.c.h.b16 %v3680
        %v3872 = vunpack.c.l.b16 %v3681
        %v3873 = vunpack.c.h.b16 %v3681
        %v3874 = vunpack.c.l.b16 %v3682
        %v3875 = vunpack.c.h.b16 %v3682
        %v3876 = vunpack.c.l.b16 %v3683
        %v3877 = vunpack.c.h.b16 %v3683
        %v3878 = vunpack.c.l.b16 %v3684
        %v3879 = vunpack.c.h.b16 %v3684
        %v3880 = vunpack.c.l.b16 %v3685
        %v3881 = vunpack.c.h.b16 %v3685
        %v3882 = vunpack.c.l.b16 %v3686
        %v3883 = vunpack.c.h.b16 %v3686
        %v3884 = vunpack.c.l.b16 %v3687
        %v3885 = vunpack.c.h.b16 %v3687
        %v3886 = vunpack.c.l.b16 %v3688
        %v3887 = vunpack.c.h.b16 %v3688
        %v3888 = vunpack.c.l.b16 %v3689
        %v3889 = vunpack.c.h.b16 %v3689
        %v3890 = vunpack.c.l.b16 %v3690
        %v3891 = vunpack.c.h.b16 %v3690
        %v3892 = vunpack.c.l.b16 %v3691
        %v3893 = vunpack.c.h.b16 %v3691
        %v3894 = vunpack.c.l.b16 %v3692
        %v3895 = vunpack.c.h.b16 %v3692
        %v3896 = vunpack.c.l.b16 %v3693
        %v3897 = vunpack.c.h.b16 %v3693
        %v3898 = vunpack.c.l.b16 %v3694
        %v3899 = vunpack.c.h.b16 %v3694
        %v3900 = vunpack.c.l.b16 %v3695
        %v3901 = vunpack.c.h.b16 %v3695
        %v3902 = vunpack.c.l.b16 %v3696
        %v3903 = vunpack.c.h.b16 %v3696
        %v3904 = vunpack.c.l.b16 %v3697
        %v3905 = vunpack.c.h.b16 %v3697
        %v3906 = vunpack.c.l.b16 %v3698
        %v3907 = vunpack.c.h.b16 %v3698
        %v3908 = vunpack.c.l.b16 %v3699
        %v3909 = vunpack.c.h.b16 %v3699
        %v3910 = vpack.c.b16 %v3774, %v3770
        %v3911 = vpack.c.b16 %v3775, %v3771
        %v3912 = vpack.c.b16 %v3776, %v3772
        %v3913 = vpack.c.b16 %v3777, %v3773
        %v3914 = vpack.c.b16 %v3782, %v3778
        %v3915 = vpack.c.b16 %v3783, %v3779
        %v3916 = vpack.c.b16 %v3784, %v3780
        %v3917 = vpack.c.b16 %v3785, %v3781
        %v3918 = vpack.c.b16 %v3790, %v3786
        %v3919 = vpack.c.b16 %v3791, %v3787
        %v3920 = vpack.c.b16 %v3792, %v3788
        %v3921 = vpack.c.b16 %v3793, %v3789
        %v3922 = vpack.c.b16 %v3798, %v3794
        %v3923 = vpack.c.b16 %v3799, %v3795
        %v3924 = vpack.c.b16 %v3800, %v3796
        %v3925 = vpack.c.b16 %v3801, %v3797
        %v3926 = vpack.c.b16 %v3806, %v3802
        %v3927 = vpack.c.b16 %v3807, %v3803
        %v3928 = vpack.c.b16 %v3808, %v3804
        %v3929 = vpack.c.b16 %v3809, %v3805
        %v3930 = vpack.c.b16 %v3814, %v3810
        %v3931 = vpack.c.b16 %v3815, %v3811
        %v3932 = vpack.c.b16 %v3816, %v3812
        %v3933 = vpack.c.b16 %v3817, %v3813
        %v3934 = vpack.c.b16 %v3822, %v3818
        %v3935 = vpack.c.b16 %v3823, %v3819
        %v3936 = vpack.c.b16 %v3824, %v3820
        %v3937 = vpack.c.b16 %v3825, %v3821
        %v3938 = vpack.c.b16 %v3830, %v3826
        %v3939 = vpack.c.b16 %v3831, %v3827
        %v3940 = vpack.c.b16 %v3832, %v3828
        %v3941 = vpack.c.b16 %v3833, %v3829
        %v3942 = vpack.c.b16 %v3838, %v3834
        %v3943 = vpack.c.b16 %v3839, %v3835
        %v3944 = vpack.c.b16 %v3840, %v3836
        %v3945 = vpack.c.b16 %v3841, %v3837
        %v3946 = vpack.c.b16 %v3846, %v3842
        %v3947 = vpack.c.b16 %v3847, %v3843
        %v3948 = vpack.c.b16 %v3848, %v3844
        %v3949 = vpack.c.b16 %v3849, %v3845
        %v3950 = vpack.c.b16 %v3854, %v3850
        %v3951 = vpack.c.b16 %v3855, %v3851
        %v3952 = vpack.c.b16 %v3856, %v3852
        %v3953 = vpack.c.b16 %v3857, %v3853
        %v3954 = vpack.c.b16 %v3862, %v3858
        %v3955 = vpack.c.b16 %v3863, %v3859
        %v3956 = vpack.c.b16 %v3864, %v3860
        %v3957 = vpack.c.b16 %v3865, %v3861
        %v3958 = vpack.c.b16 %v3870, %v3866
        %v3959 = vpack.c.b16 %v3871, %v3867
        %v3960 = vpack.c.b16 %v3872, %v3868
        %v3961 = vpack.c.b16 %v3873, %v3869
        %v3962 = vpack.c.b16 %v3878, %v3874
        %v3963 = vpack.c.b16 %v3879, %v3875
        %v3964 = vpack.c.b16 %v3880, %v3876
        %v3965 = vpack.c.b16 %v3881, %v3877
        %v3966 = vpack.c.b16 %v3886, %v3882
        %v3967 = vpack.c.b16 %v3887, %v3883
        %v3968 = vpack.c.b16 %v3888, %v3884
        %v3969 = vpack.c.b16 %v3889, %v3885
        %v3970 = vpack.c.b16 %v3894, %v3890
        %v3971 = vpack.c.b16 %v3895, %v3891
        %v3972 = vpack.c.b16 %v3896, %v3892
        %v3973 = vpack.c.b16 %v3897, %v3893
        %v3974 = vpack.c.b16 %v3902, %v3898
        %v3975 = vpack.c.b16 %v3903, %v3899
        %v3976 = vpack.c.b16 %v3904, %v3900
        %v3977 = vpack.c.b16 %v3905, %v3901
        %v3978 = vpack.c.b16 %v3906, %v3906
        %v3979 = vpack.c.b16 %v3907, %v3907
        %v3980 = vpack.c.b16 %v3908, %v3908
        %v3981 = vpack.c.b16 %v3909, %v3909
        %v4051 = vsel %vm3429, %v3624, 0
        %v4054 = vsel %vm3433, %v3978, 0
        %v4057 = vsel %vm3433, %v3979, 0
        %v4060 = vsel %vm3433, %v3980, 0
        %v4063 = vsel %vm3433, %v3981, 0
        %4065 = vmatpush.bf16.msra.mxu0 %v3938
        %4066 = vmatpush.bf16.msra.mxu0 %v3934
        %4067 = vmatpush.bf16.msra.mxu0 %v3930
        %4068 = vmatpush.bf16.msra.mxu0 %v3926
        %4069 = vmatpush.bf16.msra.mxu0 %v3922
        %4070 = vmatpush.bf16.msra.mxu0 %v3918
        %4071 = vmatpush.bf16.msra.mxu0 %v3914
        %4072 = vmatpush.bf16.msra.mxu0 %v3910
        %4073 = vmatmul.bf16.gmra.mxu0 %v3622
        %v4074 = vpop.f32.mrf.mxu0
        %v4075 = vadd.f32 0.0, %v4074
        %v4076 = vpop.f32.mrf.mxu0
        %4077 = vdwg.mxu0
        %4078 = vmatpush.bf16.msra.mxu0 %v3970
        %4079 = vmatpush.bf16.msra.mxu0 %v3966
        %4080 = vmatpush.bf16.msra.mxu0 %v3962
        %4081 = vmatpush.bf16.msra.mxu0 %v3958
        %4082 = vmatpush.bf16.msra.mxu0 %v3954
        %4083 = vmatpush.bf16.msra.mxu0 %v3950
        %4084 = vmatpush.bf16.msra.mxu0 %v3946
        %4085 = vmatpush.bf16.msra.mxu0 %v3942
        %4086 = vmatmul.bf16.gmra.mxu0 %v3623
        %v4087 = vpop.f32.mrf.mxu0
        %v4088 = vadd.f32 %v4075, %v4087
        %v4089 = vpop.f32.mrf.mxu0
        %4090 = vdwg.mxu0
        %4091 = vmatpush.bf16.msra.mxu0 0
        %4092 = vmatpush.bf16.msra.mxu0 0
        %4093 = vmatpush.bf16.msra.mxu0 0
        %4094 = vmatpush.bf16.msra.mxu0 0
        %4095 = vmatpush.bf16.msra.mxu0 0
        %4096 = vmatpush.bf16.msra.mxu0 0
        %4097 = vmatpush.bf16.msra.mxu0 %v4054
        %4098 = vmatpush.bf16.msra.mxu0 %v3974
        %4099 = vmatmul.bf16.gmra.mxu0 %v4051
        %v4100 = vpop.f32.mrf.mxu0
        %v4101 = vadd.f32 %v4088, %v4100
        %v4102 = vpop.f32.mrf.mxu0
        %4103 = vdwg.mxu0
        %4104 = vmatpush.bf16.msra.mxu0 %v3939
        %4105 = vmatpush.bf16.msra.mxu0 %v3935
        %4106 = vmatpush.bf16.msra.mxu0 %v3931
        %4107 = vmatpush.bf16.msra.mxu0 %v3927
        %4108 = vmatpush.bf16.msra.mxu0 %v3923
        %4109 = vmatpush.bf16.msra.mxu0 %v3919
        %4110 = vmatpush.bf16.msra.mxu0 %v3915
        %4111 = vmatpush.bf16.msra.mxu0 %v3911
        %4112 = vmatmul.bf16.gmra.mxu0 %v3622
        %v4113 = vpop.f32.mrf.mxu0
        %v4114 = vadd.f32 0.0, %v4113
        %v4115 = vpop.f32.mrf.mxu0
        %4116 = vdwg.mxu0
        %4117 = vmatpush.bf16.msra.mxu0 %v3971
        %4118 = vmatpush.bf16.msra.mxu0 %v3967
        %4119 = vmatpush.bf16.msra.mxu0 %v3963
        %4120 = vmatpush.bf16.msra.mxu0 %v3959
        %4121 = vmatpush.bf16.msra.mxu0 %v3955
        %4122 = vmatpush.bf16.msra.mxu0 %v3951
        %4123 = vmatpush.bf16.msra.mxu0 %v3947
        %4124 = vmatpush.bf16.msra.mxu0 %v3943
        %4125 = vmatmul.bf16.gmra.mxu0 %v3623
        %v4126 = vpop.f32.mrf.mxu0
        %v4127 = vadd.f32 %v4114, %v4126
        %v4128 = vpop.f32.mrf.mxu0
        %4129 = vdwg.mxu0
        %4130 = vmatpush.bf16.msra.mxu0 0
        %4131 = vmatpush.bf16.msra.mxu0 0
        %4132 = vmatpush.bf16.msra.mxu0 0
        %4133 = vmatpush.bf16.msra.mxu0 0
        %4134 = vmatpush.bf16.msra.mxu0 0
        %4135 = vmatpush.bf16.msra.mxu0 0
        %4136 = vmatpush.bf16.msra.mxu0 %v4057
        %4137 = vmatpush.bf16.msra.mxu0 %v3975
        %4138 = vmatmul.bf16.gmra.mxu0 %v4051
        %v4139 = vpop.f32.mrf.mxu0
        %v4140 = vadd.f32 %v4127, %v4139
        %v4141 = vpop.f32.mrf.mxu0
        %4142 = vdwg.mxu0
        %4143 = vmatpush.bf16.msra.mxu0 %v3940
        %4144 = vmatpush.bf16.msra.mxu0 %v3936
        %4145 = vmatpush.bf16.msra.mxu0 %v3932
        %4146 = vmatpush.bf16.msra.mxu0 %v3928
        %4147 = vmatpush.bf16.msra.mxu0 %v3924
        %4148 = vmatpush.bf16.msra.mxu0 %v3920
        %4149 = vmatpush.bf16.msra.mxu0 %v3916
        %4150 = vmatpush.bf16.msra.mxu0 %v3912
        %4151 = vmatmul.bf16.gmra.mxu0 %v3622
        %v4152 = vpop.f32.mrf.mxu0
        %v4153 = vadd.f32 0.0, %v4152
        %v4154 = vpop.f32.mrf.mxu0
        %4155 = vdwg.mxu0
        %4156 = vmatpush.bf16.msra.mxu0 %v3972
        %4157 = vmatpush.bf16.msra.mxu0 %v3968
        %4158 = vmatpush.bf16.msra.mxu0 %v3964
        %4159 = vmatpush.bf16.msra.mxu0 %v3960
        %4160 = vmatpush.bf16.msra.mxu0 %v3956
        %4161 = vmatpush.bf16.msra.mxu0 %v3952
        %4162 = vmatpush.bf16.msra.mxu0 %v3948
        %4163 = vmatpush.bf16.msra.mxu0 %v3944
        %4164 = vmatmul.bf16.gmra.mxu0 %v3623
        %v4165 = vpop.f32.mrf.mxu0
        %v4166 = vadd.f32 %v4153, %v4165
        %v4167 = vpop.f32.mrf.mxu0
        %4168 = vdwg.mxu0
        %4169 = vmatpush.bf16.msra.mxu0 0
        %4170 = vmatpush.bf16.msra.mxu0 0
        %4171 = vmatpush.bf16.msra.mxu0 0
        %4172 = vmatpush.bf16.msra.mxu0 0
        %4173 = vmatpush.bf16.msra.mxu0 0
        %4174 = vmatpush.bf16.msra.mxu0 0
        %4175 = vmatpush.bf16.msra.mxu0 %v4060
        %4176 = vmatpush.bf16.msra.mxu0 %v3976
        %4177 = vmatmul.bf16.gmra.mxu0 %v4051
        %v4178 = vpop.f32.mrf.mxu0
        %v4179 = vadd.f32 %v4166, %v4178
        %v4180 = vpop.f32.mrf.mxu0
        %4181 = vdwg.mxu0
        %4182 = vmatpush.bf16.msra.mxu0 %v3941
        %4183 = vmatpush.bf16.msra.mxu0 %v3937
        %4184 = vmatpush.bf16.msra.mxu0 %v3933
        %4185 = vmatpush.bf16.msra.mxu0 %v3929
        %4186 = vmatpush.bf16.msra.mxu0 %v3925
        %4187 = vmatpush.bf16.msra.mxu0 %v3921
        %4188 = vmatpush.bf16.msra.mxu0 %v3917
        %4189 = vmatpush.bf16.msra.mxu0 %v3913
        %4190 = vmatmul.bf16.gmra.mxu0 %v3622
        %v4191 = vpop.f32.mrf.mxu0
        %v4192 = vadd.f32 0.0, %v4191
        %v4193 = vpop.f32.mrf.mxu0
        %4194 = vdwg.mxu0
        %4195 = vmatpush.bf16.msra.mxu0 %v3973
        %4196 = vmatpush.bf16.msra.mxu0 %v3969
        %4197 = vmatpush.bf16.msra.mxu0 %v3965
        %4198 = vmatpush.bf16.msra.mxu0 %v3961
        %4199 = vmatpush.bf16.msra.mxu0 %v3957
        %4200 = vmatpush.bf16.msra.mxu0 %v3953
        %4201 = vmatpush.bf16.msra.mxu0 %v3949
        %4202 = vmatpush.bf16.msra.mxu0 %v3945
        %4203 = vmatmul.bf16.gmra.mxu0 %v3623
        %v4204 = vpop.f32.mrf.mxu0
        %v4205 = vadd.f32 %v4192, %v4204
        %v4206 = vpop.f32.mrf.mxu0
        %4207 = vdwg.mxu0
        %4208 = vmatpush.bf16.msra.mxu0 0
        %4209 = vmatpush.bf16.msra.mxu0 0
        %4210 = vmatpush.bf16.msra.mxu0 0
        %4211 = vmatpush.bf16.msra.mxu0 0
        %4212 = vmatpush.bf16.msra.mxu0 0
        %4213 = vmatpush.bf16.msra.mxu0 0
        %4214 = vmatpush.bf16.msra.mxu0 %v4063
        %4215 = vmatpush.bf16.msra.mxu0 %v3977
        %4216 = vmatmul.bf16.gmra.mxu0 %v4051
        %v4217 = vpop.f32.mrf.mxu0
        %v4218 = vadd.f32 %v4205, %v4217
        %v4219 = vpop.f32.mrf.mxu0
        %4220 = vdwg.mxu0
        %v4221 = vadd.f32 %v3625, %v4101
        %v4222 = vadd.f32 %v3626, %v4140
        %v4223 = vadd.f32 %v3627, %v4179
        %v4224 = vadd.f32 %v3628, %v4218
        %4225 = vst [vmem:[#allocation3] sm:$0xff] %v4221
        %4226 = vst [vmem:[#allocation3 + $0x8] sm:$0xff] %v4222
        %4227 = vst [vmem:[#allocation3 + $0x10] sm:$0xff] %v4223
        %4228 = vst.msk [vmem:[#allocation3 + $0x18] sm:$0xff] %vm3609, %v4224
        %s4229 = sadd.s32 %s3611, 2
        %s4230 = smul.u32 %s4229, 8
        %s4231 = sshra.s32 %s4230, 3
        %s4232 = sand.u32 %s4230, 7
        %s4233 = smul.u32 %s4231, 3
        %s4234 = smul.addr %s4233, 8
        %s4235 = scalar_lea.vmem [#allocation2], %s4234
        %v4236 = vld [vmem:[%s4235] sm:$0xff]
        %v4237 = vld [vmem:[%s4235 + $0x8] sm:$0xff]
        %v4238 = vld [vmem:[%s4235 + $0x10] sm:$0xff]
        %v4239 = vpack.c.bf16 %v4236, %v4236
        %v4240 = vpack.c.bf16 %v4237, %v4237
        %v4241 = vpack.c.bf16 %v4238, %v4238
        %v4242 = vld [vmem:[#allocation3] sm:$0xff]
        %v4243 = vld [vmem:[#allocation3 + $0x8] sm:$0xff]
        %v4244 = vld [vmem:[#allocation3 + $0x10] sm:$0xff]
        %v4245 = vld [vmem:[#allocation3 + $0x18] sm:$0xff]
        %s4246 = scalar_lea.vmem %s349, 1120
        %v4247 = vld [vmem:[%s4246] sm:$0xff]
        %v4248 = vld [vmem:[%s4246 + $0x8] sm:$0xff]
        %v4249 = vld [vmem:[%s4246 + $0x10] sm:$0xff]
        %v4250 = vld [vmem:[%s4246 + $0x18] sm:$0xff]
        %v4251 = vld [vmem:[%s4246 + $0x20] sm:$0xff]
        %v4252 = vld [vmem:[%s4246 + $0x28] sm:$0xff]
        %v4253 = vld [vmem:[%s4246 + $0x30] sm:$0xff]
        %v4254 = vld [vmem:[%s4246 + $0x38] sm:$0xff]
        %v4255 = vld [vmem:[%s4246 + $0x40] sm:$0xff]
        %v4256 = vld [vmem:[%s4246 + $0x48] sm:$0xff]
        %v4257 = vld [vmem:[%s4246 + $0x50] sm:$0xff]
        %v4258 = vld [vmem:[%s4246 + $0x58] sm:$0xff]
        %v4259 = vld [vmem:[%s4246 + $0x60] sm:$0xff]
        %v4260 = vld [vmem:[%s4246 + $0x68] sm:$0xff]
        %v4261 = vld [vmem:[%s4246 + $0x70] sm:$0xff]
        %v4262 = vld [vmem:[%s4246 + $0x78] sm:$0xff]
        %v4263 = vld [vmem:[%s4246 + $0x80] sm:$0xff]
        %v4264 = vld [vmem:[%s4246 + $0x88] sm:$0xff]
        %v4265 = vld [vmem:[%s4246 + $0x90] sm:$0xff]
        %v4266 = vld [vmem:[%s4246 + $0x98] sm:$0xff]
        %v4267 = vld [vmem:[%s4246 + $0xa0] sm:$0xff]
        %v4268 = vld [vmem:[%s4246 + $0xa8] sm:$0xff]
        %v4269 = vld [vmem:[%s4246 + $0xb0] sm:$0xff]
        %v4270 = vld [vmem:[%s4246 + $0xb8] sm:$0xff]
        %v4271 = vld [vmem:[%s4246 + $0xc0] sm:$0xff]
        %v4272 = vld [vmem:[%s4246 + $0xc8] sm:$0xff]
        %v4273 = vld [vmem:[%s4246 + $0xd0] sm:$0xff]
        %v4274 = vld [vmem:[%s4246 + $0xd8] sm:$0xff]
        %v4275 = vld [vmem:[%s4246 + $0xe0] sm:$0xff]
        %v4276 = vld [vmem:[%s4246 + $0xe8] sm:$0xff]
        %v4277 = vld [vmem:[%s4246 + $0xf0] sm:$0xff]
        %v4278 = vld [vmem:[%s4246 + $0xf8] sm:$0xff]
        %v4279 = vld [vmem:[%s4246 + $0x100] sm:$0xff]
        %v4280 = vld [vmem:[%s4246 + $0x108] sm:$0xff]
        %v4281 = vld [vmem:[%s4246 + $0x110] sm:$0xff]
        %v4282 = vld [vmem:[%s4246 + $0x118] sm:$0xff]
        %v4283 = vld [vmem:[%s4246 + $0x120] sm:$0xff]
        %v4284 = vld [vmem:[%s4246 + $0x128] sm:$0xff]
        %v4285 = vld [vmem:[%s4246 + $0x130] sm:$0xff]
        %v4286 = vld [vmem:[%s4246 + $0x138] sm:$0xff]
        %v4287 = vld [vmem:[%s4246 + $0x140] sm:$0xff]
        %v4288 = vld [vmem:[%s4246 + $0x148] sm:$0xff]
        %v4289 = vld [vmem:[%s4246 + $0x150] sm:$0xff]
        %v4290 = vld [vmem:[%s4246 + $0x158] sm:$0xff]
        %v4291 = vld [vmem:[%s4246 + $0x160] sm:$0xff]
        %v4292 = vld [vmem:[%s4246 + $0x168] sm:$0xff]
        %v4293 = vld [vmem:[%s4246 + $0x170] sm:$0xff]
        %v4294 = vld [vmem:[%s4246 + $0x178] sm:$0xff]
        %v4295 = vld [vmem:[%s4246 + $0x180] sm:$0xff]
        %v4296 = vld [vmem:[%s4246 + $0x188] sm:$0xff]
        %v4297 = vld [vmem:[%s4246 + $0x190] sm:$0xff]
        %v4298 = vld [vmem:[%s4246 + $0x198] sm:$0xff]
        %v4299 = vld [vmem:[%s4246 + $0x1a0] sm:$0xff]
        %v4300 = vld [vmem:[%s4246 + $0x1a8] sm:$0xff]
        %v4301 = vld [vmem:[%s4246 + $0x1b0] sm:$0xff]
        %v4302 = vld [vmem:[%s4246 + $0x1b8] sm:$0xff]
        %v4303 = vld [vmem:[%s4246 + $0x1c0] sm:$0xff]
        %v4304 = vld [vmem:[%s4246 + $0x1c8] sm:$0xff]
        %v4305 = vld [vmem:[%s4246 + $0x1d0] sm:$0xff]
        %v4306 = vld [vmem:[%s4246 + $0x1d8] sm:$0xff]
        %v4307 = vld [vmem:[%s4246 + $0x1e0] sm:$0xff]
        %v4308 = vld [vmem:[%s4246 + $0x1e8] sm:$0xff]
        %v4309 = vld [vmem:[%s4246 + $0x1f0] sm:$0xff]
        %v4310 = vld [vmem:[%s4246 + $0x1f8] sm:$0xff]
        %v4311 = vld [vmem:[%s4246 + $0x200] sm:$0xff]
        %v4312 = vld [vmem:[%s4246 + $0x208] sm:$0xff]
        %v4313 = vld [vmem:[%s4246 + $0x210] sm:$0xff]
        %v4314 = vld [vmem:[%s4246 + $0x218] sm:$0xff]
        %v4315 = vld [vmem:[%s4246 + $0x220] sm:$0xff]
        %v4316 = vld [vmem:[%s4246 + $0x228] sm:$0xff]
        %v4387 = vunpack.c.l.b16 %v4247
        %v4388 = vunpack.c.h.b16 %v4247
        %v4389 = vunpack.c.l.b16 %v4248
        %v4390 = vunpack.c.h.b16 %v4248
        %v4391 = vunpack.c.l.b16 %v4249
        %v4392 = vunpack.c.h.b16 %v4249
        %v4393 = vunpack.c.l.b16 %v4250
        %v4394 = vunpack.c.h.b16 %v4250
        %v4395 = vunpack.c.l.b16 %v4251
        %v4396 = vunpack.c.h.b16 %v4251
        %v4397 = vunpack.c.l.b16 %v4252
        %v4398 = vunpack.c.h.b16 %v4252
        %v4399 = vunpack.c.l.b16 %v4253
        %v4400 = vunpack.c.h.b16 %v4253
        %v4401 = vunpack.c.l.b16 %v4254
        %v4402 = vunpack.c.h.b16 %v4254
        %v4403 = vunpack.c.l.b16 %v4255
        %v4404 = vunpack.c.h.b16 %v4255
        %v4405 = vunpack.c.l.b16 %v4256
        %v4406 = vunpack.c.h.b16 %v4256
        %v4407 = vunpack.c.l.b16 %v4257
        %v4408 = vunpack.c.h.b16 %v4257
        %v4409 = vunpack.c.l.b16 %v4258
        %v4410 = vunpack.c.h.b16 %v4258
        %v4411 = vunpack.c.l.b16 %v4259
        %v4412 = vunpack.c.h.b16 %v4259
        %v4413 = vunpack.c.l.b16 %v4260
        %v4414 = vunpack.c.h.b16 %v4260
        %v4415 = vunpack.c.l.b16 %v4261
        %v4416 = vunpack.c.h.b16 %v4261
        %v4417 = vunpack.c.l.b16 %v4262
        %v4418 = vunpack.c.h.b16 %v4262
        %v4419 = vunpack.c.l.b16 %v4263
        %v4420 = vunpack.c.h.b16 %v4263
        %v4421 = vunpack.c.l.b16 %v4264
        %v4422 = vunpack.c.h.b16 %v4264
        %v4423 = vunpack.c.l.b16 %v4265
        %v4424 = vunpack.c.h.b16 %v4265
        %v4425 = vunpack.c.l.b16 %v4266
        %v4426 = vunpack.c.h.b16 %v4266
        %v4427 = vunpack.c.l.b16 %v4267
        %v4428 = vunpack.c.h.b16 %v4267
        %v4429 = vunpack.c.l.b16 %v4268
        %v4430 = vunpack.c.h.b16 %v4268
        %v4431 = vunpack.c.l.b16 %v4269
        %v4432 = vunpack.c.h.b16 %v4269
        %v4433 = vunpack.c.l.b16 %v4270
        %v4434 = vunpack.c.h.b16 %v4270
        %v4435 = vunpack.c.l.b16 %v4271
        %v4436 = vunpack.c.h.b16 %v4271
        %v4437 = vunpack.c.l.b16 %v4272
        %v4438 = vunpack.c.h.b16 %v4272
        %v4439 = vunpack.c.l.b16 %v4273
        %v4440 = vunpack.c.h.b16 %v4273
        %v4441 = vunpack.c.l.b16 %v4274
        %v4442 = vunpack.c.h.b16 %v4274
        %v4443 = vunpack.c.l.b16 %v4275
        %v4444 = vunpack.c.h.b16 %v4275
        %v4445 = vunpack.c.l.b16 %v4276
        %v4446 = vunpack.c.h.b16 %v4276
        %v4447 = vunpack.c.l.b16 %v4277
        %v4448 = vunpack.c.h.b16 %v4277
        %v4449 = vunpack.c.l.b16 %v4278
        %v4450 = vunpack.c.h.b16 %v4278
        %v4451 = vunpack.c.l.b16 %v4279
        %v4452 = vunpack.c.h.b16 %v4279
        %v4453 = vunpack.c.l.b16 %v4280
        %v4454 = vunpack.c.h.b16 %v4280
        %v4455 = vunpack.c.l.b16 %v4281
        %v4456 = vunpack.c.h.b16 %v4281
        %v4457 = vunpack.c.l.b16 %v4282
        %v4458 = vunpack.c.h.b16 %v4282
        %v4459 = vunpack.c.l.b16 %v4283
        %v4460 = vunpack.c.h.b16 %v4283
        %v4461 = vunpack.c.l.b16 %v4284
        %v4462 = vunpack.c.h.b16 %v4284
        %v4463 = vunpack.c.l.b16 %v4285
        %v4464 = vunpack.c.h.b16 %v4285
        %v4465 = vunpack.c.l.b16 %v4286
        %v4466 = vunpack.c.h.b16 %v4286
        %v4467 = vunpack.c.l.b16 %v4287
        %v4468 = vunpack.c.h.b16 %v4287
        %v4469 = vunpack.c.l.b16 %v4288
        %v4470 = vunpack.c.h.b16 %v4288
        %v4471 = vunpack.c.l.b16 %v4289
        %v4472 = vunpack.c.h.b16 %v4289
        %v4473 = vunpack.c.l.b16 %v4290
        %v4474 = vunpack.c.h.b16 %v4290
        %v4475 = vunpack.c.l.b16 %v4291
        %v4476 = vunpack.c.h.b16 %v4291
        %v4477 = vunpack.c.l.b16 %v4292
        %v4478 = vunpack.c.h.b16 %v4292
        %v4479 = vunpack.c.l.b16 %v4293
        %v4480 = vunpack.c.h.b16 %v4293
        %v4481 = vunpack.c.l.b16 %v4294
        %v4482 = vunpack.c.h.b16 %v4294
        %v4483 = vunpack.c.l.b16 %v4295
        %v4484 = vunpack.c.h.b16 %v4295
        %v4485 = vunpack.c.l.b16 %v4296
        %v4486 = vunpack.c.h.b16 %v4296
        %v4487 = vunpack.c.l.b16 %v4297
        %v4488 = vunpack.c.h.b16 %v4297
        %v4489 = vunpack.c.l.b16 %v4298
        %v4490 = vunpack.c.h.b16 %v4298
        %v4491 = vunpack.c.l.b16 %v4299
        %v4492 = vunpack.c.h.b16 %v4299
        %v4493 = vunpack.c.l.b16 %v4300
        %v4494 = vunpack.c.h.b16 %v4300
        %v4495 = vunpack.c.l.b16 %v4301
        %v4496 = vunpack.c.h.b16 %v4301
        %v4497 = vunpack.c.l.b16 %v4302
        %v4498 = vunpack.c.h.b16 %v4302
        %v4499 = vunpack.c.l.b16 %v4303
        %v4500 = vunpack.c.h.b16 %v4303
        %v4501 = vunpack.c.l.b16 %v4304
        %v4502 = vunpack.c.h.b16 %v4304
        %v4503 = vunpack.c.l.b16 %v4305
        %v4504 = vunpack.c.h.b16 %v4305
        %v4505 = vunpack.c.l.b16 %v4306
        %v4506 = vunpack.c.h.b16 %v4306
        %v4507 = vunpack.c.l.b16 %v4307
        %v4508 = vunpack.c.h.b16 %v4307
        %v4509 = vunpack.c.l.b16 %v4308
        %v4510 = vunpack.c.h.b16 %v4308
        %v4511 = vunpack.c.l.b16 %v4309
        %v4512 = vunpack.c.h.b16 %v4309
        %v4513 = vunpack.c.l.b16 %v4310
        %v4514 = vunpack.c.h.b16 %v4310
        %v4515 = vunpack.c.l.b16 %v4311
        %v4516 = vunpack.c.h.b16 %v4311
        %v4517 = vunpack.c.l.b16 %v4312
        %v4518 = vunpack.c.h.b16 %v4312
        %v4519 = vunpack.c.l.b16 %v4313
        %v4520 = vunpack.c.h.b16 %v4313
        %v4521 = vunpack.c.l.b16 %v4314
        %v4522 = vunpack.c.h.b16 %v4314
        %v4523 = vunpack.c.l.b16 %v4315
        %v4524 = vunpack.c.h.b16 %v4315
        %v4525 = vunpack.c.l.b16 %v4316
        %v4526 = vunpack.c.h.b16 %v4316
        %v4527 = vpack.c.b16 %v4391, %v4387
        %v4528 = vpack.c.b16 %v4392, %v4388
        %v4529 = vpack.c.b16 %v4393, %v4389
        %v4530 = vpack.c.b16 %v4394, %v4390
        %v4531 = vpack.c.b16 %v4399, %v4395
        %v4532 = vpack.c.b16 %v4400, %v4396
        %v4533 = vpack.c.b16 %v4401, %v4397
        %v4534 = vpack.c.b16 %v4402, %v4398
        %v4535 = vpack.c.b16 %v4407, %v4403
        %v4536 = vpack.c.b16 %v4408, %v4404
        %v4537 = vpack.c.b16 %v4409, %v4405
        %v4538 = vpack.c.b16 %v4410, %v4406
        %v4539 = vpack.c.b16 %v4415, %v4411
        %v4540 = vpack.c.b16 %v4416, %v4412
        %v4541 = vpack.c.b16 %v4417, %v4413
        %v4542 = vpack.c.b16 %v4418, %v4414
        %v4543 = vpack.c.b16 %v4423, %v4419
        %v4544 = vpack.c.b16 %v4424, %v4420
        %v4545 = vpack.c.b16 %v4425, %v4421
        %v4546 = vpack.c.b16 %v4426, %v4422
        %v4547 = vpack.c.b16 %v4431, %v4427
        %v4548 = vpack.c.b16 %v4432, %v4428
        %v4549 = vpack.c.b16 %v4433, %v4429
        %v4550 = vpack.c.b16 %v4434, %v4430
        %v4551 = vpack.c.b16 %v4439, %v4435
        %v4552 = vpack.c.b16 %v4440, %v4436
        %v4553 = vpack.c.b16 %v4441, %v4437
        %v4554 = vpack.c.b16 %v4442, %v4438
        %v4555 = vpack.c.b16 %v4447, %v4443
        %v4556 = vpack.c.b16 %v4448, %v4444
        %v4557 = vpack.c.b16 %v4449, %v4445
        %v4558 = vpack.c.b16 %v4450, %v4446
        %v4559 = vpack.c.b16 %v4455, %v4451
        %v4560 = vpack.c.b16 %v4456, %v4452
        %v4561 = vpack.c.b16 %v4457, %v4453
        %v4562 = vpack.c.b16 %v4458, %v4454
        %v4563 = vpack.c.b16 %v4463, %v4459
        %v4564 = vpack.c.b16 %v4464, %v4460
        %v4565 = vpack.c.b16 %v4465, %v4461
        %v4566 = vpack.c.b16 %v4466, %v4462
        %v4567 = vpack.c.b16 %v4471, %v4467
        %v4568 = vpack.c.b16 %v4472, %v4468
        %v4569 = vpack.c.b16 %v4473, %v4469
        %v4570 = vpack.c.b16 %v4474, %v4470
        %v4571 = vpack.c.b16 %v4479, %v4475
        %v4572 = vpack.c.b16 %v4480, %v4476
        %v4573 = vpack.c.b16 %v4481, %v4477
        %v4574 = vpack.c.b16 %v4482, %v4478
        %v4575 = vpack.c.b16 %v4487, %v4483
        %v4576 = vpack.c.b16 %v4488, %v4484
        %v4577 = vpack.c.b16 %v4489, %v4485
        %v4578 = vpack.c.b16 %v4490, %v4486
        %v4579 = vpack.c.b16 %v4495, %v4491
        %v4580 = vpack.c.b16 %v4496, %v4492
        %v4581 = vpack.c.b16 %v4497, %v4493
        %v4582 = vpack.c.b16 %v4498, %v4494
        %v4583 = vpack.c.b16 %v4503, %v4499
        %v4584 = vpack.c.b16 %v4504, %v4500
        %v4585 = vpack.c.b16 %v4505, %v4501
        %v4586 = vpack.c.b16 %v4506, %v4502
        %v4587 = vpack.c.b16 %v4511, %v4507
        %v4588 = vpack.c.b16 %v4512, %v4508
        %v4589 = vpack.c.b16 %v4513, %v4509
        %v4590 = vpack.c.b16 %v4514, %v4510
        %v4591 = vpack.c.b16 %v4519, %v4515
        %v4592 = vpack.c.b16 %v4520, %v4516
        %v4593 = vpack.c.b16 %v4521, %v4517
        %v4594 = vpack.c.b16 %v4522, %v4518
        %v4595 = vpack.c.b16 %v4523, %v4523
        %v4596 = vpack.c.b16 %v4524, %v4524
        %v4597 = vpack.c.b16 %v4525, %v4525
        %v4598 = vpack.c.b16 %v4526, %v4526
        %v4668 = vsel %vm3429, %v4241, 0
        %v4671 = vsel %vm3433, %v4595, 0
        %v4674 = vsel %vm3433, %v4596, 0
        %v4677 = vsel %vm3433, %v4597, 0
        %v4680 = vsel %vm3433, %v4598, 0
        %4682 = vmatpush.bf16.msra.mxu0 %v4555
        %4683 = vmatpush.bf16.msra.mxu0 %v4551
        %4684 = vmatpush.bf16.msra.mxu0 %v4547
        %4685 = vmatpush.bf16.msra.mxu0 %v4543
        %4686 = vmatpush.bf16.msra.mxu0 %v4539
        %4687 = vmatpush.bf16.msra.mxu0 %v4535
        %4688 = vmatpush.bf16.msra.mxu0 %v4531
        %4689 = vmatpush.bf16.msra.mxu0 %v4527
        %4690 = vmatmul.bf16.gmra.mxu0 %v4239
        %v4691 = vpop.f32.mrf.mxu0
        %v4692 = vadd.f32 0.0, %v4691
        %v4693 = vpop.f32.mrf.mxu0
        %4694 = vdwg.mxu0
        %4695 = vmatpush.bf16.msra.mxu0 %v4587
        %4696 = vmatpush.bf16.msra.mxu0 %v4583
        %4697 = vmatpush.bf16.msra.mxu0 %v4579
        %4698 = vmatpush.bf16.msra.mxu0 %v4575
        %4699 = vmatpush.bf16.msra.mxu0 %v4571
        %4700 = vmatpush.bf16.msra.mxu0 %v4567
        %4701 = vmatpush.bf16.msra.mxu0 %v4563
        %4702 = vmatpush.bf16.msra.mxu0 %v4559
        %4703 = vmatmul.bf16.gmra.mxu0 %v4240
        %v4704 = vpop.f32.mrf.mxu0
        %v4705 = vadd.f32 %v4692, %v4704
        %v4706 = vpop.f32.mrf.mxu0
        %4707 = vdwg.mxu0
        %4708 = vmatpush.bf16.msra.mxu0 0
        %4709 = vmatpush.bf16.msra.mxu0 0
        %4710 = vmatpush.bf16.msra.mxu0 0
        %4711 = vmatpush.bf16.msra.mxu0 0
        %4712 = vmatpush.bf16.msra.mxu0 0
        %4713 = vmatpush.bf16.msra.mxu0 0
        %4714 = vmatpush.bf16.msra.mxu0 %v4671
        %4715 = vmatpush.bf16.msra.mxu0 %v4591
        %4716 = vmatmul.bf16.gmra.mxu0 %v4668
        %v4717 = vpop.f32.mrf.mxu0
        %v4718 = vadd.f32 %v4705, %v4717
        %v4719 = vpop.f32.mrf.mxu0
        %4720 = vdwg.mxu0
        %4721 = vmatpush.bf16.msra.mxu0 %v4556
        %4722 = vmatpush.bf16.msra.mxu0 %v4552
        %4723 = vmatpush.bf16.msra.mxu0 %v4548
        %4724 = vmatpush.bf16.msra.mxu0 %v4544
        %4725 = vmatpush.bf16.msra.mxu0 %v4540
        %4726 = vmatpush.bf16.msra.mxu0 %v4536
        %4727 = vmatpush.bf16.msra.mxu0 %v4532
        %4728 = vmatpush.bf16.msra.mxu0 %v4528
        %4729 = vmatmul.bf16.gmra.mxu0 %v4239
        %v4730 = vpop.f32.mrf.mxu0
        %v4731 = vadd.f32 0.0, %v4730
        %v4732 = vpop.f32.mrf.mxu0
        %4733 = vdwg.mxu0
        %4734 = vmatpush.bf16.msra.mxu0 %v4588
        %4735 = vmatpush.bf16.msra.mxu0 %v4584
        %4736 = vmatpush.bf16.msra.mxu0 %v4580
        %4737 = vmatpush.bf16.msra.mxu0 %v4576
        %4738 = vmatpush.bf16.msra.mxu0 %v4572
        %4739 = vmatpush.bf16.msra.mxu0 %v4568
        %4740 = vmatpush.bf16.msra.mxu0 %v4564
        %4741 = vmatpush.bf16.msra.mxu0 %v4560
        %4742 = vmatmul.bf16.gmra.mxu0 %v4240
        %v4743 = vpop.f32.mrf.mxu0
        %v4744 = vadd.f32 %v4731, %v4743
        %v4745 = vpop.f32.mrf.mxu0
        %4746 = vdwg.mxu0
        %4747 = vmatpush.bf16.msra.mxu0 0
        %4748 = vmatpush.bf16.msra.mxu0 0
        %4749 = vmatpush.bf16.msra.mxu0 0
        %4750 = vmatpush.bf16.msra.mxu0 0
        %4751 = vmatpush.bf16.msra.mxu0 0
        %4752 = vmatpush.bf16.msra.mxu0 0
        %4753 = vmatpush.bf16.msra.mxu0 %v4674
        %4754 = vmatpush.bf16.msra.mxu0 %v4592
        %4755 = vmatmul.bf16.gmra.mxu0 %v4668
        %v4756 = vpop.f32.mrf.mxu0
        %v4757 = vadd.f32 %v4744, %v4756
        %v4758 = vpop.f32.mrf.mxu0
        %4759 = vdwg.mxu0
        %4760 = vmatpush.bf16.msra.mxu0 %v4557
        %4761 = vmatpush.bf16.msra.mxu0 %v4553
        %4762 = vmatpush.bf16.msra.mxu0 %v4549
        %4763 = vmatpush.bf16.msra.mxu0 %v4545
        %4764 = vmatpush.bf16.msra.mxu0 %v4541
        %4765 = vmatpush.bf16.msra.mxu0 %v4537
        %4766 = vmatpush.bf16.msra.mxu0 %v4533
        %4767 = vmatpush.bf16.msra.mxu0 %v4529
        %4768 = vmatmul.bf16.gmra.mxu0 %v4239
        %v4769 = vpop.f32.mrf.mxu0
        %v4770 = vadd.f32 0.0, %v4769
        %v4771 = vpop.f32.mrf.mxu0
        %4772 = vdwg.mxu0
        %4773 = vmatpush.bf16.msra.mxu0 %v4589
        %4774 = vmatpush.bf16.msra.mxu0 %v4585
        %4775 = vmatpush.bf16.msra.mxu0 %v4581
        %4776 = vmatpush.bf16.msra.mxu0 %v4577
        %4777 = vmatpush.bf16.msra.mxu0 %v4573
        %4778 = vmatpush.bf16.msra.mxu0 %v4569
        %4779 = vmatpush.bf16.msra.mxu0 %v4565
        %4780 = vmatpush.bf16.msra.mxu0 %v4561
        %4781 = vmatmul.bf16.gmra.mxu0 %v4240
        %v4782 = vpop.f32.mrf.mxu0
        %v4783 = vadd.f32 %v4770, %v4782
        %v4784 = vpop.f32.mrf.mxu0
        %4785 = vdwg.mxu0
        %4786 = vmatpush.bf16.msra.mxu0 0
        %4787 = vmatpush.bf16.msra.mxu0 0
        %4788 = vmatpush.bf16.msra.mxu0 0
        %4789 = vmatpush.bf16.msra.mxu0 0
        %4790 = vmatpush.bf16.msra.mxu0 0
        %4791 = vmatpush.bf16.msra.mxu0 0
        %4792 = vmatpush.bf16.msra.mxu0 %v4677
        %4793 = vmatpush.bf16.msra.mxu0 %v4593
        %4794 = vmatmul.bf16.gmra.mxu0 %v4668
        %v4795 = vpop.f32.mrf.mxu0
        %v4796 = vadd.f32 %v4783, %v4795
        %v4797 = vpop.f32.mrf.mxu0
        %4798 = vdwg.mxu0
        %4799 = vmatpush.bf16.msra.mxu0 %v4558
        %4800 = vmatpush.bf16.msra.mxu0 %v4554
        %4801 = vmatpush.bf16.msra.mxu0 %v4550
        %4802 = vmatpush.bf16.msra.mxu0 %v4546
        %4803 = vmatpush.bf16.msra.mxu0 %v4542
        %4804 = vmatpush.bf16.msra.mxu0 %v4538
        %4805 = vmatpush.bf16.msra.mxu0 %v4534
        %4806 = vmatpush.bf16.msra.mxu0 %v4530
        %4807 = vmatmul.bf16.gmra.mxu0 %v4239
        %v4808 = vpop.f32.mrf.mxu0
        %v4809 = vadd.f32 0.0, %v4808
        %v4810 = vpop.f32.mrf.mxu0
        %4811 = vdwg.mxu0
        %4812 = vmatpush.bf16.msra.mxu0 %v4590
        %4813 = vmatpush.bf16.msra.mxu0 %v4586
        %4814 = vmatpush.bf16.msra.mxu0 %v4582
        %4815 = vmatpush.bf16.msra.mxu0 %v4578
        %4816 = vmatpush.bf16.msra.mxu0 %v4574
        %4817 = vmatpush.bf16.msra.mxu0 %v4570
        %4818 = vmatpush.bf16.msra.mxu0 %v4566
        %4819 = vmatpush.bf16.msra.mxu0 %v4562
        %4820 = vmatmul.bf16.gmra.mxu0 %v4240
        %v4821 = vpop.f32.mrf.mxu0
        %v4822 = vadd.f32 %v4809, %v4821
        %v4823 = vpop.f32.mrf.mxu0
        %4824 = vdwg.mxu0
        %4825 = vmatpush.bf16.msra.mxu0 0
        %4826 = vmatpush.bf16.msra.mxu0 0
        %4827 = vmatpush.bf16.msra.mxu0 0
        %4828 = vmatpush.bf16.msra.mxu0 0
        %4829 = vmatpush.bf16.msra.mxu0 0
        %4830 = vmatpush.bf16.msra.mxu0 0
        %4831 = vmatpush.bf16.msra.mxu0 %v4680
        %4832 = vmatpush.bf16.msra.mxu0 %v4594
        %4833 = vmatmul.bf16.gmra.mxu0 %v4668
        %v4834 = vpop.f32.mrf.mxu0
        %v4835 = vadd.f32 %v4822, %v4834
        %v4836 = vpop.f32.mrf.mxu0
        %4837 = vdwg.mxu0
        %v4838 = vadd.f32 %v4242, %v4718
        %v4839 = vadd.f32 %v4243, %v4757
        %v4840 = vadd.f32 %v4244, %v4796
        %v4841 = vadd.f32 %v4245, %v4835
        %4842 = vst [vmem:[#allocation3] sm:$0xff] %v4838
        %4843 = vst [vmem:[#allocation3 + $0x8] sm:$0xff] %v4839
        %4844 = vst [vmem:[#allocation3 + $0x10] sm:$0xff] %v4840
        %4845 = vst.msk [vmem:[#allocation3 + $0x18] sm:$0xff] %vm3609, %v4841
        %s4846 = sadd.s32 %s3611, 3
        %s4847 = smul.u32 %s4846, 8
        %s4848 = sshra.s32 %s4847, 3
        %s4849 = sand.u32 %s4847, 7
        %s4850 = smul.u32 %s4848, 3
        %s4851 = smul.addr %s4850, 8
        %s4852 = scalar_lea.vmem [#allocation2], %s4851
        %v4853 = vld [vmem:[%s4852] sm:$0xff]
        %v4854 = vld [vmem:[%s4852 + $0x8] sm:$0xff]
        %v4855 = vld [vmem:[%s4852 + $0x10] sm:$0xff]
        %v4856 = vpack.c.bf16 %v4853, %v4853
        %v4857 = vpack.c.bf16 %v4854, %v4854
        %v4858 = vpack.c.bf16 %v4855, %v4855
        %v4859 = vld [vmem:[#allocation3] sm:$0xff]
        %v4860 = vld [vmem:[#allocation3 + $0x8] sm:$0xff]
        %v4861 = vld [vmem:[#allocation3 + $0x10] sm:$0xff]
        %v4862 = vld [vmem:[#allocation3 + $0x18] sm:$0xff]
        %s4863 = scalar_lea.vmem %s349, 1680
        %v4864 = vld [vmem:[%s4863] sm:$0xff]
        %v4865 = vld [vmem:[%s4863 + $0x8] sm:$0xff]
        %v4866 = vld [vmem:[%s4863 + $0x10] sm:$0xff]
        %v4867 = vld [vmem:[%s4863 + $0x18] sm:$0xff]
        %v4868 = vld [vmem:[%s4863 + $0x20] sm:$0xff]
        %v4869 = vld [vmem:[%s4863 + $0x28] sm:$0xff]
        %v4870 = vld [vmem:[%s4863 + $0x30] sm:$0xff]
        %v4871 = vld [vmem:[%s4863 + $0x38] sm:$0xff]
        %v4872 = vld [vmem:[%s4863 + $0x40] sm:$0xff]
        %v4873 = vld [vmem:[%s4863 + $0x48] sm:$0xff]
        %v4874 = vld [vmem:[%s4863 + $0x50] sm:$0xff]
        %v4875 = vld [vmem:[%s4863 + $0x58] sm:$0xff]
        %v4876 = vld [vmem:[%s4863 + $0x60] sm:$0xff]
        %v4877 = vld [vmem:[%s4863 + $0x68] sm:$0xff]
        %v4878 = vld [vmem:[%s4863 + $0x70] sm:$0xff]
        %v4879 = vld [vmem:[%s4863 + $0x78] sm:$0xff]
        %v4880 = vld [vmem:[%s4863 + $0x80] sm:$0xff]
        %v4881 = vld [vmem:[%s4863 + $0x88] sm:$0xff]
        %v4882 = vld [vmem:[%s4863 + $0x90] sm:$0xff]
        %v4883 = vld [vmem:[%s4863 + $0x98] sm:$0xff]
        %v4884 = vld [vmem:[%s4863 + $0xa0] sm:$0xff]
        %v4885 = vld [vmem:[%s4863 + $0xa8] sm:$0xff]
        %v4886 = vld [vmem:[%s4863 + $0xb0] sm:$0xff]
        %v4887 = vld [vmem:[%s4863 + $0xb8] sm:$0xff]
        %v4888 = vld [vmem:[%s4863 + $0xc0] sm:$0xff]
        %v4889 = vld [vmem:[%s4863 + $0xc8] sm:$0xff]
        %v4890 = vld [vmem:[%s4863 + $0xd0] sm:$0xff]
        %v4891 = vld [vmem:[%s4863 + $0xd8] sm:$0xff]
        %v4892 = vld [vmem:[%s4863 + $0xe0] sm:$0xff]
        %v4893 = vld [vmem:[%s4863 + $0xe8] sm:$0xff]
        %v4894 = vld [vmem:[%s4863 + $0xf0] sm:$0xff]
        %v4895 = vld [vmem:[%s4863 + $0xf8] sm:$0xff]
        %v4896 = vld [vmem:[%s4863 + $0x100] sm:$0xff]
        %v4897 = vld [vmem:[%s4863 + $0x108] sm:$0xff]
        %v4898 = vld [vmem:[%s4863 + $0x110] sm:$0xff]
        %v4899 = vld [vmem:[%s4863 + $0x118] sm:$0xff]
        %v4900 = vld [vmem:[%s4863 + $0x120] sm:$0xff]
        %v4901 = vld [vmem:[%s4863 + $0x128] sm:$0xff]
        %v4902 = vld [vmem:[%s4863 + $0x130] sm:$0xff]
        %v4903 = vld [vmem:[%s4863 + $0x138] sm:$0xff]
        %v4904 = vld [vmem:[%s4863 + $0x140] sm:$0xff]
        %v4905 = vld [vmem:[%s4863 + $0x148] sm:$0xff]
        %v4906 = vld [vmem:[%s4863 + $0x150] sm:$0xff]
        %v4907 = vld [vmem:[%s4863 + $0x158] sm:$0xff]
        %v4908 = vld [vmem:[%s4863 + $0x160] sm:$0xff]
        %v4909 = vld [vmem:[%s4863 + $0x168] sm:$0xff]
        %v4910 = vld [vmem:[%s4863 + $0x170] sm:$0xff]
        %v4911 = vld [vmem:[%s4863 + $0x178] sm:$0xff]
        %v4912 = vld [vmem:[%s4863 + $0x180] sm:$0xff]
        %v4913 = vld [vmem:[%s4863 + $0x188] sm:$0xff]
        %v4914 = vld [vmem:[%s4863 + $0x190] sm:$0xff]
        %v4915 = vld [vmem:[%s4863 + $0x198] sm:$0xff]
        %v4916 = vld [vmem:[%s4863 + $0x1a0] sm:$0xff]
        %v4917 = vld [vmem:[%s4863 + $0x1a8] sm:$0xff]
        %v4918 = vld [vmem:[%s4863 + $0x1b0] sm:$0xff]
        %v4919 = vld [vmem:[%s4863 + $0x1b8] sm:$0xff]
        %v4920 = vld [vmem:[%s4863 + $0x1c0] sm:$0xff]
        %v4921 = vld [vmem:[%s4863 + $0x1c8] sm:$0xff]
        %v4922 = vld [vmem:[%s4863 + $0x1d0] sm:$0xff]
        %v4923 = vld [vmem:[%s4863 + $0x1d8] sm:$0xff]
        %v4924 = vld [vmem:[%s4863 + $0x1e0] sm:$0xff]
        %v4925 = vld [vmem:[%s4863 + $0x1e8] sm:$0xff]
        %v4926 = vld [vmem:[%s4863 + $0x1f0] sm:$0xff]
        %v4927 = vld [vmem:[%s4863 + $0x1f8] sm:$0xff]
        %v4928 = vld [vmem:[%s4863 + $0x200] sm:$0xff]
        %v4929 = vld [vmem:[%s4863 + $0x208] sm:$0xff]
        %v4930 = vld [vmem:[%s4863 + $0x210] sm:$0xff]
        %v4931 = vld [vmem:[%s4863 + $0x218] sm:$0xff]
        %v4932 = vld [vmem:[%s4863 + $0x220] sm:$0xff]
        %v4933 = vld [vmem:[%s4863 + $0x228] sm:$0xff]
        %v5004 = vunpack.c.l.b16 %v4864
        %v5005 = vunpack.c.h.b16 %v4864
        %v5006 = vunpack.c.l.b16 %v4865
        %v5007 = vunpack.c.h.b16 %v4865
        %v5008 = vunpack.c.l.b16 %v4866
        %v5009 = vunpack.c.h.b16 %v4866
        %v5010 = vunpack.c.l.b16 %v4867
        %v5011 = vunpack.c.h.b16 %v4867
        %v5012 = vunpack.c.l.b16 %v4868
        %v5013 = vunpack.c.h.b16 %v4868
        %v5014 = vunpack.c.l.b16 %v4869
        %v5015 = vunpack.c.h.b16 %v4869
        %v5016 = vunpack.c.l.b16 %v4870
        %v5017 = vunpack.c.h.b16 %v4870
        %v5018 = vunpack.c.l.b16 %v4871
        %v5019 = vunpack.c.h.b16 %v4871
        %v5020 = vunpack.c.l.b16 %v4872
        %v5021 = vunpack.c.h.b16 %v4872
        %v5022 = vunpack.c.l.b16 %v4873
        %v5023 = vunpack.c.h.b16 %v4873
        %v5024 = vunpack.c.l.b16 %v4874
        %v5025 = vunpack.c.h.b16 %v4874
        %v5026 = vunpack.c.l.b16 %v4875
        %v5027 = vunpack.c.h.b16 %v4875
        %v5028 = vunpack.c.l.b16 %v4876
        %v5029 = vunpack.c.h.b16 %v4876
        %v5030 = vunpack.c.l.b16 %v4877
        %v5031 = vunpack.c.h.b16 %v4877
        %v5032 = vunpack.c.l.b16 %v4878
        %v5033 = vunpack.c.h.b16 %v4878
        %v5034 = vunpack.c.l.b16 %v4879
        %v5035 = vunpack.c.h.b16 %v4879
        %v5036 = vunpack.c.l.b16 %v4880
        %v5037 = vunpack.c.h.b16 %v4880
        %v5038 = vunpack.c.l.b16 %v4881
        %v5039 = vunpack.c.h.b16 %v4881
        %v5040 = vunpack.c.l.b16 %v4882
        %v5041 = vunpack.c.h.b16 %v4882
        %v5042 = vunpack.c.l.b16 %v4883
        %v5043 = vunpack.c.h.b16 %v4883
        %v5044 = vunpack.c.l.b16 %v4884
        %v5045 = vunpack.c.h.b16 %v4884
        %v5046 = vunpack.c.l.b16 %v4885
        %v5047 = vunpack.c.h.b16 %v4885
        %v5048 = vunpack.c.l.b16 %v4886
        %v5049 = vunpack.c.h.b16 %v4886
        %v5050 = vunpack.c.l.b16 %v4887
        %v5051 = vunpack.c.h.b16 %v4887
        %v5052 = vunpack.c.l.b16 %v4888
        %v5053 = vunpack.c.h.b16 %v4888
        %v5054 = vunpack.c.l.b16 %v4889
        %v5055 = vunpack.c.h.b16 %v4889
        %v5056 = vunpack.c.l.b16 %v4890
        %v5057 = vunpack.c.h.b16 %v4890
        %v5058 = vunpack.c.l.b16 %v4891
        %v5059 = vunpack.c.h.b16 %v4891
        %v5060 = vunpack.c.l.b16 %v4892
        %v5061 = vunpack.c.h.b16 %v4892
        %v5062 = vunpack.c.l.b16 %v4893
        %v5063 = vunpack.c.h.b16 %v4893
        %v5064 = vunpack.c.l.b16 %v4894
        %v5065 = vunpack.c.h.b16 %v4894
        %v5066 = vunpack.c.l.b16 %v4895
        %v5067 = vunpack.c.h.b16 %v4895
        %v5068 = vunpack.c.l.b16 %v4896
        %v5069 = vunpack.c.h.b16 %v4896
        %v5070 = vunpack.c.l.b16 %v4897
        %v5071 = vunpack.c.h.b16 %v4897
        %v5072 = vunpack.c.l.b16 %v4898
        %v5073 = vunpack.c.h.b16 %v4898
        %v5074 = vunpack.c.l.b16 %v4899
        %v5075 = vunpack.c.h.b16 %v4899
        %v5076 = vunpack.c.l.b16 %v4900
        %v5077 = vunpack.c.h.b16 %v4900
        %v5078 = vunpack.c.l.b16 %v4901
        %v5079 = vunpack.c.h.b16 %v4901
        %v5080 = vunpack.c.l.b16 %v4902
        %v5081 = vunpack.c.h.b16 %v4902
        %v5082 = vunpack.c.l.b16 %v4903
        %v5083 = vunpack.c.h.b16 %v4903
        %v5084 = vunpack.c.l.b16 %v4904
        %v5085 = vunpack.c.h.b16 %v4904
        %v5086 = vunpack.c.l.b16 %v4905
        %v5087 = vunpack.c.h.b16 %v4905
        %v5088 = vunpack.c.l.b16 %v4906
        %v5089 = vunpack.c.h.b16 %v4906
        %v5090 = vunpack.c.l.b16 %v4907
        %v5091 = vunpack.c.h.b16 %v4907
        %v5092 = vunpack.c.l.b16 %v4908
        %v5093 = vunpack.c.h.b16 %v4908
        %v5094 = vunpack.c.l.b16 %v4909
        %v5095 = vunpack.c.h.b16 %v4909
        %v5096 = vunpack.c.l.b16 %v4910
        %v5097 = vunpack.c.h.b16 %v4910
        %v5098 = vunpack.c.l.b16 %v4911
        %v5099 = vunpack.c.h.b16 %v4911
        %v5100 = vunpack.c.l.b16 %v4912
        %v5101 = vunpack.c.h.b16 %v4912
        %v5102 = vunpack.c.l.b16 %v4913
        %v5103 = vunpack.c.h.b16 %v4913
        %v5104 = vunpack.c.l.b16 %v4914
        %v5105 = vunpack.c.h.b16 %v4914
        %v5106 = vunpack.c.l.b16 %v4915
        %v5107 = vunpack.c.h.b16 %v4915
        %v5108 = vunpack.c.l.b16 %v4916
        %v5109 = vunpack.c.h.b16 %v4916
        %v5110 = vunpack.c.l.b16 %v4917
        %v5111 = vunpack.c.h.b16 %v4917
        %v5112 = vunpack.c.l.b16 %v4918
        %v5113 = vunpack.c.h.b16 %v4918
        %v5114 = vunpack.c.l.b16 %v4919
        %v5115 = vunpack.c.h.b16 %v4919
        %v5116 = vunpack.c.l.b16 %v4920
        %v5117 = vunpack.c.h.b16 %v4920
        %v5118 = vunpack.c.l.b16 %v4921
        %v5119 = vunpack.c.h.b16 %v4921
        %v5120 = vunpack.c.l.b16 %v4922
        %v5121 = vunpack.c.h.b16 %v4922
        %v5122 = vunpack.c.l.b16 %v4923
        %v5123 = vunpack.c.h.b16 %v4923
        %v5124 = vunpack.c.l.b16 %v4924
        %v5125 = vunpack.c.h.b16 %v4924
        %v5126 = vunpack.c.l.b16 %v4925
        %v5127 = vunpack.c.h.b16 %v4925
        %v5128 = vunpack.c.l.b16 %v4926
        %v5129 = vunpack.c.h.b16 %v4926
        %v5130 = vunpack.c.l.b16 %v4927
        %v5131 = vunpack.c.h.b16 %v4927
        %v5132 = vunpack.c.l.b16 %v4928
        %v5133 = vunpack.c.h.b16 %v4928
        %v5134 = vunpack.c.l.b16 %v4929
        %v5135 = vunpack.c.h.b16 %v4929
        %v5136 = vunpack.c.l.b16 %v4930
        %v5137 = vunpack.c.h.b16 %v4930
        %v5138 = vunpack.c.l.b16 %v4931
        %v5139 = vunpack.c.h.b16 %v4931
        %v5140 = vunpack.c.l.b16 %v4932
        %v5141 = vunpack.c.h.b16 %v4932
        %v5142 = vunpack.c.l.b16 %v4933
        %v5143 = vunpack.c.h.b16 %v4933
        %v5144 = vpack.c.b16 %v5008, %v5004
        %v5145 = vpack.c.b16 %v5009, %v5005
        %v5146 = vpack.c.b16 %v5010, %v5006
        %v5147 = vpack.c.b16 %v5011, %v5007
        %v5148 = vpack.c.b16 %v5016, %v5012
        %v5149 = vpack.c.b16 %v5017, %v5013
        %v5150 = vpack.c.b16 %v5018, %v5014
        %v5151 = vpack.c.b16 %v5019, %v5015
        %v5152 = vpack.c.b16 %v5024, %v5020
        %v5153 = vpack.c.b16 %v5025, %v5021
        %v5154 = vpack.c.b16 %v5026, %v5022
        %v5155 = vpack.c.b16 %v5027, %v5023
        %v5156 = vpack.c.b16 %v5032, %v5028
        %v5157 = vpack.c.b16 %v5033, %v5029
        %v5158 = vpack.c.b16 %v5034, %v5030
        %v5159 = vpack.c.b16 %v5035, %v5031
        %v5160 = vpack.c.b16 %v5040, %v5036
        %v5161 = vpack.c.b16 %v5041, %v5037
        %v5162 = vpack.c.b16 %v5042, %v5038
        %v5163 = vpack.c.b16 %v5043, %v5039
        %v5164 = vpack.c.b16 %v5048, %v5044
        %v5165 = vpack.c.b16 %v5049, %v5045
        %v5166 = vpack.c.b16 %v5050, %v5046
        %v5167 = vpack.c.b16 %v5051, %v5047
        %v5168 = vpack.c.b16 %v5056, %v5052
        %v5169 = vpack.c.b16 %v5057, %v5053
        %v5170 = vpack.c.b16 %v5058, %v5054
        %v5171 = vpack.c.b16 %v5059, %v5055
        %v5172 = vpack.c.b16 %v5064, %v5060
        %v5173 = vpack.c.b16 %v5065, %v5061
        %v5174 = vpack.c.b16 %v5066, %v5062
        %v5175 = vpack.c.b16 %v5067, %v5063
        %v5176 = vpack.c.b16 %v5072, %v5068
        %v5177 = vpack.c.b16 %v5073, %v5069
        %v5178 = vpack.c.b16 %v5074, %v5070
        %v5179 = vpack.c.b16 %v5075, %v5071
        %v5180 = vpack.c.b16 %v5080, %v5076
        %v5181 = vpack.c.b16 %v5081, %v5077
        %v5182 = vpack.c.b16 %v5082, %v5078
        %v5183 = vpack.c.b16 %v5083, %v5079
        %v5184 = vpack.c.b16 %v5088, %v5084
        %v5185 = vpack.c.b16 %v5089, %v5085
        %v5186 = vpack.c.b16 %v5090, %v5086
        %v5187 = vpack.c.b16 %v5091, %v5087
        %v5188 = vpack.c.b16 %v5096, %v5092
        %v5189 = vpack.c.b16 %v5097, %v5093
        %v5190 = vpack.c.b16 %v5098, %v5094
        %v5191 = vpack.c.b16 %v5099, %v5095
        %v5192 = vpack.c.b16 %v5104, %v5100
        %v5193 = vpack.c.b16 %v5105, %v5101
        %v5194 = vpack.c.b16 %v5106, %v5102
        %v5195 = vpack.c.b16 %v5107, %v5103
        %v5196 = vpack.c.b16 %v5112, %v5108
        %v5197 = vpack.c.b16 %v5113, %v5109
        %v5198 = vpack.c.b16 %v5114, %v5110
        %v5199 = vpack.c.b16 %v5115, %v5111
        %v5200 = vpack.c.b16 %v5120, %v5116
        %v5201 = vpack.c.b16 %v5121, %v5117
        %v5202 = vpack.c.b16 %v5122, %v5118
        %v5203 = vpack.c.b16 %v5123, %v5119
        %v5204 = vpack.c.b16 %v5128, %v5124
        %v5205 = vpack.c.b16 %v5129, %v5125
        %v5206 = vpack.c.b16 %v5130, %v5126
        %v5207 = vpack.c.b16 %v5131, %v5127
        %v5208 = vpack.c.b16 %v5136, %v5132
        %v5209 = vpack.c.b16 %v5137, %v5133
        %v5210 = vpack.c.b16 %v5138, %v5134
        %v5211 = vpack.c.b16 %v5139, %v5135
        %v5212 = vpack.c.b16 %v5140, %v5140
        %v5213 = vpack.c.b16 %v5141, %v5141
        %v5214 = vpack.c.b16 %v5142, %v5142
        %v5215 = vpack.c.b16 %v5143, %v5143
        %v5285 = vsel %vm3429, %v4858, 0
        %v5288 = vsel %vm3433, %v5212, 0
        %v5291 = vsel %vm3433, %v5213, 0
        %v5294 = vsel %vm3433, %v5214, 0
        %v5297 = vsel %vm3433, %v5215, 0
        %5299 = vmatpush.bf16.msra.mxu0 %v5172
        %5300 = vmatpush.bf16.msra.mxu0 %v5168
        %5301 = vmatpush.bf16.msra.mxu0 %v5164
        %5302 = vmatpush.bf16.msra.mxu0 %v5160
        %5303 = vmatpush.bf16.msra.mxu0 %v5156
        %5304 = vmatpush.bf16.msra.mxu0 %v5152
        %5305 = vmatpush.bf16.msra.mxu0 %v5148
        %5306 = vmatpush.bf16.msra.mxu0 %v5144
        %5307 = vmatmul.bf16.gmra.mxu0 %v4856
        %v5308 = vpop.f32.mrf.mxu0
        %v5309 = vadd.f32 0.0, %v5308
        %v5310 = vpop.f32.mrf.mxu0
        %5311 = vdwg.mxu0
        %5312 = vmatpush.bf16.msra.mxu0 %v5204
        %5313 = vmatpush.bf16.msra.mxu0 %v5200
        %5314 = vmatpush.bf16.msra.mxu0 %v5196
        %5315 = vmatpush.bf16.msra.mxu0 %v5192
        %5316 = vmatpush.bf16.msra.mxu0 %v5188
        %5317 = vmatpush.bf16.msra.mxu0 %v5184
        %5318 = vmatpush.bf16.msra.mxu0 %v5180
        %5319 = vmatpush.bf16.msra.mxu0 %v5176
        %5320 = vmatmul.bf16.gmra.mxu0 %v4857
        %v5321 = vpop.f32.mrf.mxu0
        %v5322 = vadd.f32 %v5309, %v5321
        %v5323 = vpop.f32.mrf.mxu0
        %5324 = vdwg.mxu0
        %5325 = vmatpush.bf16.msra.mxu0 0
        %5326 = vmatpush.bf16.msra.mxu0 0
        %5327 = vmatpush.bf16.msra.mxu0 0
        %5328 = vmatpush.bf16.msra.mxu0 0
        %5329 = vmatpush.bf16.msra.mxu0 0
        %5330 = vmatpush.bf16.msra.mxu0 0
        %5331 = vmatpush.bf16.msra.mxu0 %v5288
        %5332 = vmatpush.bf16.msra.mxu0 %v5208
        %5333 = vmatmul.bf16.gmra.mxu0 %v5285
        %v5334 = vpop.f32.mrf.mxu0
        %v5335 = vadd.f32 %v5322, %v5334
        %v5336 = vpop.f32.mrf.mxu0
        %5337 = vdwg.mxu0
        %5338 = vmatpush.bf16.msra.mxu0 %v5173
        %5339 = vmatpush.bf16.msra.mxu0 %v5169
        %5340 = vmatpush.bf16.msra.mxu0 %v5165
        %5341 = vmatpush.bf16.msra.mxu0 %v5161
        %5342 = vmatpush.bf16.msra.mxu0 %v5157
        %5343 = vmatpush.bf16.msra.mxu0 %v5153
        %5344 = vmatpush.bf16.msra.mxu0 %v5149
        %5345 = vmatpush.bf16.msra.mxu0 %v5145
        %5346 = vmatmul.bf16.gmra.mxu0 %v4856
        %v5347 = vpop.f32.mrf.mxu0
        %v5348 = vadd.f32 0.0, %v5347
        %v5349 = vpop.f32.mrf.mxu0
        %5350 = vdwg.mxu0
        %5351 = vmatpush.bf16.msra.mxu0 %v5205
        %5352 = vmatpush.bf16.msra.mxu0 %v5201
        %5353 = vmatpush.bf16.msra.mxu0 %v5197
        %5354 = vmatpush.bf16.msra.mxu0 %v5193
        %5355 = vmatpush.bf16.msra.mxu0 %v5189
        %5356 = vmatpush.bf16.msra.mxu0 %v5185
        %5357 = vmatpush.bf16.msra.mxu0 %v5181
        %5358 = vmatpush.bf16.msra.mxu0 %v5177
        %5359 = vmatmul.bf16.gmra.mxu0 %v4857
        %v5360 = vpop.f32.mrf.mxu0
        %v5361 = vadd.f32 %v5348, %v5360
        %v5362 = vpop.f32.mrf.mxu0
        %5363 = vdwg.mxu0
        %5364 = vmatpush.bf16.msra.mxu0 0
        %5365 = vmatpush.bf16.msra.mxu0 0
        %5366 = vmatpush.bf16.msra.mxu0 0
        %5367 = vmatpush.bf16.msra.mxu0 0
        %5368 = vmatpush.bf16.msra.mxu0 0
        %5369 = vmatpush.bf16.msra.mxu0 0
        %5370 = vmatpush.bf16.msra.mxu0 %v5291
        %5371 = vmatpush.bf16.msra.mxu0 %v5209
        %5372 = vmatmul.bf16.gmra.mxu0 %v5285
        %v5373 = vpop.f32.mrf.mxu0
        %v5374 = vadd.f32 %v5361, %v5373
        %v5375 = vpop.f32.mrf.mxu0
        %5376 = vdwg.mxu0
        %5377 = vmatpush.bf16.msra.mxu0 %v5174
        %5378 = vmatpush.bf16.msra.mxu0 %v5170
        %5379 = vmatpush.bf16.msra.mxu0 %v5166
        %5380 = vmatpush.bf16.msra.mxu0 %v5162
        %5381 = vmatpush.bf16.msra.mxu0 %v5158
        %5382 = vmatpush.bf16.msra.mxu0 %v5154
        %5383 = vmatpush.bf16.msra.mxu0 %v5150
        %5384 = vmatpush.bf16.msra.mxu0 %v5146
        %5385 = vmatmul.bf16.gmra.mxu0 %v4856
        %v5386 = vpop.f32.mrf.mxu0
        %v5387 = vadd.f32 0.0, %v5386
        %v5388 = vpop.f32.mrf.mxu0
        %5389 = vdwg.mxu0
        %5390 = vmatpush.bf16.msra.mxu0 %v5206
        %5391 = vmatpush.bf16.msra.mxu0 %v5202
        %5392 = vmatpush.bf16.msra.mxu0 %v5198
        %5393 = vmatpush.bf16.msra.mxu0 %v5194
        %5394 = vmatpush.bf16.msra.mxu0 %v5190
        %5395 = vmatpush.bf16.msra.mxu0 %v5186
        %5396 = vmatpush.bf16.msra.mxu0 %v5182
        %5397 = vmatpush.bf16.msra.mxu0 %v5178
        %5398 = vmatmul.bf16.gmra.mxu0 %v4857
        %v5399 = vpop.f32.mrf.mxu0
        %v5400 = vadd.f32 %v5387, %v5399
        %v5401 = vpop.f32.mrf.mxu0
        %5402 = vdwg.mxu0
        %5403 = vmatpush.bf16.msra.mxu0 0
        %5404 = vmatpush.bf16.msra.mxu0 0
        %5405 = vmatpush.bf16.msra.mxu0 0
        %5406 = vmatpush.bf16.msra.mxu0 0
        %5407 = vmatpush.bf16.msra.mxu0 0
        %5408 = vmatpush.bf16.msra.mxu0 0
        %5409 = vmatpush.bf16.msra.mxu0 %v5294
        %5410 = vmatpush.bf16.msra.mxu0 %v5210
        %5411 = vmatmul.bf16.gmra.mxu0 %v5285
        %v5412 = vpop.f32.mrf.mxu0
        %v5413 = vadd.f32 %v5400, %v5412
        %v5414 = vpop.f32.mrf.mxu0
        %5415 = vdwg.mxu0
        %5416 = vmatpush.bf16.msra.mxu0 %v5175
        %5417 = vmatpush.bf16.msra.mxu0 %v5171
        %5418 = vmatpush.bf16.msra.mxu0 %v5167
        %5419 = vmatpush.bf16.msra.mxu0 %v5163
        %5420 = vmatpush.bf16.msra.mxu0 %v5159
        %5421 = vmatpush.bf16.msra.mxu0 %v5155
        %5422 = vmatpush.bf16.msra.mxu0 %v5151
        %5423 = vmatpush.bf16.msra.mxu0 %v5147
        %5424 = vmatmul.bf16.gmra.mxu0 %v4856
        %v5425 = vpop.f32.mrf.mxu0
        %v5426 = vadd.f32 0.0, %v5425
        %v5427 = vpop.f32.mrf.mxu0
        %5428 = vdwg.mxu0
        %5429 = vmatpush.bf16.msra.mxu0 %v5207
        %5430 = vmatpush.bf16.msra.mxu0 %v5203
        %5431 = vmatpush.bf16.msra.mxu0 %v5199
        %5432 = vmatpush.bf16.msra.mxu0 %v5195
        %5433 = vmatpush.bf16.msra.mxu0 %v5191
        %5434 = vmatpush.bf16.msra.mxu0 %v5187
        %5435 = vmatpush.bf16.msra.mxu0 %v5183
        %5436 = vmatpush.bf16.msra.mxu0 %v5179
        %5437 = vmatmul.bf16.gmra.mxu0 %v4857
        %v5438 = vpop.f32.mrf.mxu0
        %v5439 = vadd.f32 %v5426, %v5438
        %v5440 = vpop.f32.mrf.mxu0
        %5441 = vdwg.mxu0
        %5442 = vmatpush.bf16.msra.mxu0 0
        %5443 = vmatpush.bf16.msra.mxu0 0
        %5444 = vmatpush.bf16.msra.mxu0 0
        %5445 = vmatpush.bf16.msra.mxu0 0
        %5446 = vmatpush.bf16.msra.mxu0 0
        %5447 = vmatpush.bf16.msra.mxu0 0
        %5448 = vmatpush.bf16.msra.mxu0 %v5297
        %5449 = vmatpush.bf16.msra.mxu0 %v5211
        %5450 = vmatmul.bf16.gmra.mxu0 %v5285
        %v5451 = vpop.f32.mrf.mxu0
        %v5452 = vadd.f32 %v5439, %v5451
        %v5453 = vpop.f32.mrf.mxu0
        %5454 = vdwg.mxu0
        %v5455 = vadd.f32 %v4859, %v5335
        %v5456 = vadd.f32 %v4860, %v5374
        %v5457 = vadd.f32 %v4861, %v5413
        %v5458 = vadd.f32 %v4862, %v5452
        %5459 = vst [vmem:[#allocation3] sm:$0xff] %v5455
        %5460 = vst [vmem:[#allocation3 + $0x8] sm:$0xff] %v5456
        %5461 = vst [vmem:[#allocation3 + $0x10] sm:$0xff] %v5457
        %5462 = vst.msk [vmem:[#allocation3 + $0x18] sm:$0xff] %vm3609, %v5458
        %s5463 = sadd.s32 %s3611, 4
        %s5464 = smul.u32 %s5463, 8
        %s5465 = sshra.s32 %s5464, 3
        %s5466 = sand.u32 %s5464, 7
        %s5467 = smul.u32 %s5465, 3
        %s5468 = smul.addr %s5467, 8
        %s5469 = scalar_lea.vmem [#allocation2], %s5468
        %v5470 = vld [vmem:[%s5469] sm:$0xff]
        %v5471 = vld [vmem:[%s5469 + $0x8] sm:$0xff]
        %v5472 = vld [vmem:[%s5469 + $0x10] sm:$0xff]
        %v5473 = vpack.c.bf16 %v5470, %v5470
        %v5474 = vpack.c.bf16 %v5471, %v5471
        %v5475 = vpack.c.bf16 %v5472, %v5472
        %v5476 = vld [vmem:[#allocation3] sm:$0xff]
        %v5477 = vld [vmem:[#allocation3 + $0x8] sm:$0xff]
        %v5478 = vld [vmem:[#allocation3 + $0x10] sm:$0xff]
        %v5479 = vld [vmem:[#allocation3 + $0x18] sm:$0xff]
        %s5480 = scalar_lea.vmem %s349, 2240
        %v5481 = vld [vmem:[%s5480] sm:$0xff]
        %v5482 = vld [vmem:[%s5480 + $0x8] sm:$0xff]
        %v5483 = vld [vmem:[%s5480 + $0x10] sm:$0xff]
        %v5484 = vld [vmem:[%s5480 + $0x18] sm:$0xff]
        %v5485 = vld [vmem:[%s5480 + $0x20] sm:$0xff]
        %v5486 = vld [vmem:[%s5480 + $0x28] sm:$0xff]
        %v5487 = vld [vmem:[%s5480 + $0x30] sm:$0xff]
        %v5488 = vld [vmem:[%s5480 + $0x38] sm:$0xff]
        %v5489 = vld [vmem:[%s5480 + $0x40] sm:$0xff]
        %v5490 = vld [vmem:[%s5480 + $0x48] sm:$0xff]
        %v5491 = vld [vmem:[%s5480 + $0x50] sm:$0xff]
        %v5492 = vld [vmem:[%s5480 + $0x58] sm:$0xff]
        %v5493 = vld [vmem:[%s5480 + $0x60] sm:$0xff]
        %v5494 = vld [vmem:[%s5480 + $0x68] sm:$0xff]
        %v5495 = vld [vmem:[%s5480 + $0x70] sm:$0xff]
        %v5496 = vld [vmem:[%s5480 + $0x78] sm:$0xff]
        %v5497 = vld [vmem:[%s5480 + $0x80] sm:$0xff]
        %v5498 = vld [vmem:[%s5480 + $0x88] sm:$0xff]
        %v5499 = vld [vmem:[%s5480 + $0x90] sm:$0xff]
        %v5500 = vld [vmem:[%s5480 + $0x98] sm:$0xff]
        %v5501 = vld [vmem:[%s5480 + $0xa0] sm:$0xff]
        %v5502 = vld [vmem:[%s5480 + $0xa8] sm:$0xff]
        %v5503 = vld [vmem:[%s5480 + $0xb0] sm:$0xff]
        %v5504 = vld [vmem:[%s5480 + $0xb8] sm:$0xff]
        %v5505 = vld [vmem:[%s5480 + $0xc0] sm:$0xff]
        %v5506 = vld [vmem:[%s5480 + $0xc8] sm:$0xff]
        %v5507 = vld [vmem:[%s5480 + $0xd0] sm:$0xff]
        %v5508 = vld [vmem:[%s5480 + $0xd8] sm:$0xff]
        %v5509 = vld [vmem:[%s5480 + $0xe0] sm:$0xff]
        %v5510 = vld [vmem:[%s5480 + $0xe8] sm:$0xff]
        %v5511 = vld [vmem:[%s5480 + $0xf0] sm:$0xff]
        %v5512 = vld [vmem:[%s5480 + $0xf8] sm:$0xff]
        %v5513 = vld [vmem:[%s5480 + $0x100] sm:$0xff]
        %v5514 = vld [vmem:[%s5480 + $0x108] sm:$0xff]
        %v5515 = vld [vmem:[%s5480 + $0x110] sm:$0xff]
        %v5516 = vld [vmem:[%s5480 + $0x118] sm:$0xff]
        %v5517 = vld [vmem:[%s5480 + $0x120] sm:$0xff]
        %v5518 = vld [vmem:[%s5480 + $0x128] sm:$0xff]
        %v5519 = vld [vmem:[%s5480 + $0x130] sm:$0xff]
        %v5520 = vld [vmem:[%s5480 + $0x138] sm:$0xff]
        %v5521 = vld [vmem:[%s5480 + $0x140] sm:$0xff]
        %v5522 = vld [vmem:[%s5480 + $0x148] sm:$0xff]
        %v5523 = vld [vmem:[%s5480 + $0x150] sm:$0xff]
        %v5524 = vld [vmem:[%s5480 + $0x158] sm:$0xff]
        %v5525 = vld [vmem:[%s5480 + $0x160] sm:$0xff]
        %v5526 = vld [vmem:[%s5480 + $0x168] sm:$0xff]
        %v5527 = vld [vmem:[%s5480 + $0x170] sm:$0xff]
        %v5528 = vld [vmem:[%s5480 + $0x178] sm:$0xff]
        %v5529 = vld [vmem:[%s5480 + $0x180] sm:$0xff]
        %v5530 = vld [vmem:[%s5480 + $0x188] sm:$0xff]
        %v5531 = vld [vmem:[%s5480 + $0x190] sm:$0xff]
        %v5532 = vld [vmem:[%s5480 + $0x198] sm:$0xff]
        %v5533 = vld [vmem:[%s5480 + $0x1a0] sm:$0xff]
        %v5534 = vld [vmem:[%s5480 + $0x1a8] sm:$0xff]
        %v5535 = vld [vmem:[%s5480 + $0x1b0] sm:$0xff]
        %v5536 = vld [vmem:[%s5480 + $0x1b8] sm:$0xff]
        %v5537 = vld [vmem:[%s5480 + $0x1c0] sm:$0xff]
        %v5538 = vld [vmem:[%s5480 + $0x1c8] sm:$0xff]
        %v5539 = vld [vmem:[%s5480 + $0x1d0] sm:$0xff]
        %v5540 = vld [vmem:[%s5480 + $0x1d8] sm:$0xff]
        %v5541 = vld [vmem:[%s5480 + $0x1e0] sm:$0xff]
        %v5542 = vld [vmem:[%s5480 + $0x1e8] sm:$0xff]
        %v5543 = vld [vmem:[%s5480 + $0x1f0] sm:$0xff]
        %v5544 = vld [vmem:[%s5480 + $0x1f8] sm:$0xff]
        %v5545 = vld [vmem:[%s5480 + $0x200] sm:$0xff]
        %v5546 = vld [vmem:[%s5480 + $0x208] sm:$0xff]
        %v5547 = vld [vmem:[%s5480 + $0x210] sm:$0xff]
        %v5548 = vld [vmem:[%s5480 + $0x218] sm:$0xff]
        %v5549 = vld [vmem:[%s5480 + $0x220] sm:$0xff]
        %v5550 = vld [vmem:[%s5480 + $0x228] sm:$0xff]
        %v5621 = vunpack.c.l.b16 %v5481
        %v5622 = vunpack.c.h.b16 %v5481
        %v5623 = vunpack.c.l.b16 %v5482
        %v5624 = vunpack.c.h.b16 %v5482
        %v5625 = vunpack.c.l.b16 %v5483
        %v5626 = vunpack.c.h.b16 %v5483
        %v5627 = vunpack.c.l.b16 %v5484
        %v5628 = vunpack.c.h.b16 %v5484
        %v5629 = vunpack.c.l.b16 %v5485
        %v5630 = vunpack.c.h.b16 %v5485
        %v5631 = vunpack.c.l.b16 %v5486
        %v5632 = vunpack.c.h.b16 %v5486
        %v5633 = vunpack.c.l.b16 %v5487
        %v5634 = vunpack.c.h.b16 %v5487
        %v5635 = vunpack.c.l.b16 %v5488
        %v5636 = vunpack.c.h.b16 %v5488
        %v5637 = vunpack.c.l.b16 %v5489
        %v5638 = vunpack.c.h.b16 %v5489
        %v5639 = vunpack.c.l.b16 %v5490
        %v5640 = vunpack.c.h.b16 %v5490
        %v5641 = vunpack.c.l.b16 %v5491
        %v5642 = vunpack.c.h.b16 %v5491
        %v5643 = vunpack.c.l.b16 %v5492
        %v5644 = vunpack.c.h.b16 %v5492
        %v5645 = vunpack.c.l.b16 %v5493
        %v5646 = vunpack.c.h.b16 %v5493
        %v5647 = vunpack.c.l.b16 %v5494
        %v5648 = vunpack.c.h.b16 %v5494
        %v5649 = vunpack.c.l.b16 %v5495
        %v5650 = vunpack.c.h.b16 %v5495
        %v5651 = vunpack.c.l.b16 %v5496
        %v5652 = vunpack.c.h.b16 %v5496
        %v5653 = vunpack.c.l.b16 %v5497
        %v5654 = vunpack.c.h.b16 %v5497
        %v5655 = vunpack.c.l.b16 %v5498
        %v5656 = vunpack.c.h.b16 %v5498
        %v5657 = vunpack.c.l.b16 %v5499
        %v5658 = vunpack.c.h.b16 %v5499
        %v5659 = vunpack.c.l.b16 %v5500
        %v5660 = vunpack.c.h.b16 %v5500
        %v5661 = vunpack.c.l.b16 %v5501
        %v5662 = vunpack.c.h.b16 %v5501
        %v5663 = vunpack.c.l.b16 %v5502
        %v5664 = vunpack.c.h.b16 %v5502
        %v5665 = vunpack.c.l.b16 %v5503
        %v5666 = vunpack.c.h.b16 %v5503
        %v5667 = vunpack.c.l.b16 %v5504
        %v5668 = vunpack.c.h.b16 %v5504
        %v5669 = vunpack.c.l.b16 %v5505
        %v5670 = vunpack.c.h.b16 %v5505
        %v5671 = vunpack.c.l.b16 %v5506
        %v5672 = vunpack.c.h.b16 %v5506
        %v5673 = vunpack.c.l.b16 %v5507
        %v5674 = vunpack.c.h.b16 %v5507
        %v5675 = vunpack.c.l.b16 %v5508
        %v5676 = vunpack.c.h.b16 %v5508
        %v5677 = vunpack.c.l.b16 %v5509
        %v5678 = vunpack.c.h.b16 %v5509
        %v5679 = vunpack.c.l.b16 %v5510
        %v5680 = vunpack.c.h.b16 %v5510
        %v5681 = vunpack.c.l.b16 %v5511
        %v5682 = vunpack.c.h.b16 %v5511
        %v5683 = vunpack.c.l.b16 %v5512
        %v5684 = vunpack.c.h.b16 %v5512
        %v5685 = vunpack.c.l.b16 %v5513
        %v5686 = vunpack.c.h.b16 %v5513
        %v5687 = vunpack.c.l.b16 %v5514
        %v5688 = vunpack.c.h.b16 %v5514
        %v5689 = vunpack.c.l.b16 %v5515
        %v5690 = vunpack.c.h.b16 %v5515
        %v5691 = vunpack.c.l.b16 %v5516
        %v5692 = vunpack.c.h.b16 %v5516
        %v5693 = vunpack.c.l.b16 %v5517
        %v5694 = vunpack.c.h.b16 %v5517
        %v5695 = vunpack.c.l.b16 %v5518
        %v5696 = vunpack.c.h.b16 %v5518
        %v5697 = vunpack.c.l.b16 %v5519
        %v5698 = vunpack.c.h.b16 %v5519
        %v5699 = vunpack.c.l.b16 %v5520
        %v5700 = vunpack.c.h.b16 %v5520
        %v5701 = vunpack.c.l.b16 %v5521
        %v5702 = vunpack.c.h.b16 %v5521
        %v5703 = vunpack.c.l.b16 %v5522
        %v5704 = vunpack.c.h.b16 %v5522
        %v5705 = vunpack.c.l.b16 %v5523
        %v5706 = vunpack.c.h.b16 %v5523
        %v5707 = vunpack.c.l.b16 %v5524
        %v5708 = vunpack.c.h.b16 %v5524
        %v5709 = vunpack.c.l.b16 %v5525
        %v5710 = vunpack.c.h.b16 %v5525
        %v5711 = vunpack.c.l.b16 %v5526
        %v5712 = vunpack.c.h.b16 %v5526
        %v5713 = vunpack.c.l.b16 %v5527
        %v5714 = vunpack.c.h.b16 %v5527
        %v5715 = vunpack.c.l.b16 %v5528
        %v5716 = vunpack.c.h.b16 %v5528
        %v5717 = vunpack.c.l.b16 %v5529
        %v5718 = vunpack.c.h.b16 %v5529
        %v5719 = vunpack.c.l.b16 %v5530
        %v5720 = vunpack.c.h.b16 %v5530
        %v5721 = vunpack.c.l.b16 %v5531
        %v5722 = vunpack.c.h.b16 %v5531
        %v5723 = vunpack.c.l.b16 %v5532
        %v5724 = vunpack.c.h.b16 %v5532
        %v5725 = vunpack.c.l.b16 %v5533
        %v5726 = vunpack.c.h.b16 %v5533
        %v5727 = vunpack.c.l.b16 %v5534
        %v5728 = vunpack.c.h.b16 %v5534
        %v5729 = vunpack.c.l.b16 %v5535
        %v5730 = vunpack.c.h.b16 %v5535
        %v5731 = vunpack.c.l.b16 %v5536
        %v5732 = vunpack.c.h.b16 %v5536
        %v5733 = vunpack.c.l.b16 %v5537
        %v5734 = vunpack.c.h.b16 %v5537
        %v5735 = vunpack.c.l.b16 %v5538
        %v5736 = vunpack.c.h.b16 %v5538
        %v5737 = vunpack.c.l.b16 %v5539
        %v5738 = vunpack.c.h.b16 %v5539
        %v5739 = vunpack.c.l.b16 %v5540
        %v5740 = vunpack.c.h.b16 %v5540
        %v5741 = vunpack.c.l.b16 %v5541
        %v5742 = vunpack.c.h.b16 %v5541
        %v5743 = vunpack.c.l.b16 %v5542
        %v5744 = vunpack.c.h.b16 %v5542
        %v5745 = vunpack.c.l.b16 %v5543
        %v5746 = vunpack.c.h.b16 %v5543
        %v5747 = vunpack.c.l.b16 %v5544
        %v5748 = vunpack.c.h.b16 %v5544
        %v5749 = vunpack.c.l.b16 %v5545
        %v5750 = vunpack.c.h.b16 %v5545
        %v5751 = vunpack.c.l.b16 %v5546
        %v5752 = vunpack.c.h.b16 %v5546
        %v5753 = vunpack.c.l.b16 %v5547
        %v5754 = vunpack.c.h.b16 %v5547
        %v5755 = vunpack.c.l.b16 %v5548
        %v5756 = vunpack.c.h.b16 %v5548
        %v5757 = vunpack.c.l.b16 %v5549
        %v5758 = vunpack.c.h.b16 %v5549
        %v5759 = vunpack.c.l.b16 %v5550
        %v5760 = vunpack.c.h.b16 %v5550
        %v5761 = vpack.c.b16 %v5625, %v5621
        %v5762 = vpack.c.b16 %v5626, %v5622
        %v5763 = vpack.c.b16 %v5627, %v5623
        %v5764 = vpack.c.b16 %v5628, %v5624
        %v5765 = vpack.c.b16 %v5633, %v5629
        %v5766 = vpack.c.b16 %v5634, %v5630
        %v5767 = vpack.c.b16 %v5635, %v5631
        %v5768 = vpack.c.b16 %v5636, %v5632
        %v5769 = vpack.c.b16 %v5641, %v5637
        %v5770 = vpack.c.b16 %v5642, %v5638
        %v5771 = vpack.c.b16 %v5643, %v5639
        %v5772 = vpack.c.b16 %v5644, %v5640
        %v5773 = vpack.c.b16 %v5649, %v5645
        %v5774 = vpack.c.b16 %v5650, %v5646
        %v5775 = vpack.c.b16 %v5651, %v5647
        %v5776 = vpack.c.b16 %v5652, %v5648
        %v5777 = vpack.c.b16 %v5657, %v5653
        %v5778 = vpack.c.b16 %v5658, %v5654
        %v5779 = vpack.c.b16 %v5659, %v5655
        %v5780 = vpack.c.b16 %v5660, %v5656
        %v5781 = vpack.c.b16 %v5665, %v5661
        %v5782 = vpack.c.b16 %v5666, %v5662
        %v5783 = vpack.c.b16 %v5667, %v5663
        %v5784 = vpack.c.b16 %v5668, %v5664
        %v5785 = vpack.c.b16 %v5673, %v5669
        %v5786 = vpack.c.b16 %v5674, %v5670
        %v5787 = vpack.c.b16 %v5675, %v5671
        %v5788 = vpack.c.b16 %v5676, %v5672
        %v5789 = vpack.c.b16 %v5681, %v5677
        %v5790 = vpack.c.b16 %v5682, %v5678
        %v5791 = vpack.c.b16 %v5683, %v5679
        %v5792 = vpack.c.b16 %v5684, %v5680
        %v5793 = vpack.c.b16 %v5689, %v5685
        %v5794 = vpack.c.b16 %v5690, %v5686
        %v5795 = vpack.c.b16 %v5691, %v5687
        %v5796 = vpack.c.b16 %v5692, %v5688
        %v5797 = vpack.c.b16 %v5697, %v5693
        %v5798 = vpack.c.b16 %v5698, %v5694
        %v5799 = vpack.c.b16 %v5699, %v5695
        %v5800 = vpack.c.b16 %v5700, %v5696
        %v5801 = vpack.c.b16 %v5705, %v5701
        %v5802 = vpack.c.b16 %v5706, %v5702
        %v5803 = vpack.c.b16 %v5707, %v5703
        %v5804 = vpack.c.b16 %v5708, %v5704
        %v5805 = vpack.c.b16 %v5713, %v5709
        %v5806 = vpack.c.b16 %v5714, %v5710
        %v5807 = vpack.c.b16 %v5715, %v5711
        %v5808 = vpack.c.b16 %v5716, %v5712
        %v5809 = vpack.c.b16 %v5721, %v5717
        %v5810 = vpack.c.b16 %v5722, %v5718
        %v5811 = vpack.c.b16 %v5723, %v5719
        %v5812 = vpack.c.b16 %v5724, %v5720
        %v5813 = vpack.c.b16 %v5729, %v5725
        %v5814 = vpack.c.b16 %v5730, %v5726
        %v5815 = vpack.c.b16 %v5731, %v5727
        %v5816 = vpack.c.b16 %v5732, %v5728
        %v5817 = vpack.c.b16 %v5737, %v5733
        %v5818 = vpack.c.b16 %v5738, %v5734
        %v5819 = vpack.c.b16 %v5739, %v5735
        %v5820 = vpack.c.b16 %v5740, %v5736
        %v5821 = vpack.c.b16 %v5745, %v5741
        %v5822 = vpack.c.b16 %v5746, %v5742
        %v5823 = vpack.c.b16 %v5747, %v5743
        %v5824 = vpack.c.b16 %v5748, %v5744
        %v5825 = vpack.c.b16 %v5753, %v5749
        %v5826 = vpack.c.b16 %v5754, %v5750
        %v5827 = vpack.c.b16 %v5755, %v5751
        %v5828 = vpack.c.b16 %v5756, %v5752
        %v5829 = vpack.c.b16 %v5757, %v5757
        %v5830 = vpack.c.b16 %v5758, %v5758
        %v5831 = vpack.c.b16 %v5759, %v5759
        %v5832 = vpack.c.b16 %v5760, %v5760
        %v5902 = vsel %vm3429, %v5475, 0
        %v5905 = vsel %vm3433, %v5829, 0
        %v5908 = vsel %vm3433, %v5830, 0
        %v5911 = vsel %vm3433, %v5831, 0
        %v5914 = vsel %vm3433, %v5832, 0
        %5916 = vmatpush.bf16.msra.mxu0 %v5789
        %5917 = vmatpush.bf16.msra.mxu0 %v5785
        %5918 = vmatpush.bf16.msra.mxu0 %v5781
        %5919 = vmatpush.bf16.msra.mxu0 %v5777
        %5920 = vmatpush.bf16.msra.mxu0 %v5773
        %5921 = vmatpush.bf16.msra.mxu0 %v5769
        %5922 = vmatpush.bf16.msra.mxu0 %v5765
        %5923 = vmatpush.bf16.msra.mxu0 %v5761
        %5924 = vmatmul.bf16.gmra.mxu0 %v5473
        %v5925 = vpop.f32.mrf.mxu0
        %v5926 = vadd.f32 0.0, %v5925
        %v5927 = vpop.f32.mrf.mxu0
        %5928 = vdwg.mxu0
        %5929 = vmatpush.bf16.msra.mxu0 %v5821
        %5930 = vmatpush.bf16.msra.mxu0 %v5817
        %5931 = vmatpush.bf16.msra.mxu0 %v5813
        %5932 = vmatpush.bf16.msra.mxu0 %v5809
        %5933 = vmatpush.bf16.msra.mxu0 %v5805
        %5934 = vmatpush.bf16.msra.mxu0 %v5801
        %5935 = vmatpush.bf16.msra.mxu0 %v5797
        %5936 = vmatpush.bf16.msra.mxu0 %v5793
        %5937 = vmatmul.bf16.gmra.mxu0 %v5474
        %v5938 = vpop.f32.mrf.mxu0
        %v5939 = vadd.f32 %v5926, %v5938
        %v5940 = vpop.f32.mrf.mxu0
        %5941 = vdwg.mxu0
        %5942 = vmatpush.bf16.msra.mxu0 0
        %5943 = vmatpush.bf16.msra.mxu0 0
        %5944 = vmatpush.bf16.msra.mxu0 0
        %5945 = vmatpush.bf16.msra.mxu0 0
        %5946 = vmatpush.bf16.msra.mxu0 0
        %5947 = vmatpush.bf16.msra.mxu0 0
        %5948 = vmatpush.bf16.msra.mxu0 %v5905
        %5949 = vmatpush.bf16.msra.mxu0 %v5825
        %5950 = vmatmul.bf16.gmra.mxu0 %v5902
        %v5951 = vpop.f32.mrf.mxu0
        %v5952 = vadd.f32 %v5939, %v5951
        %v5953 = vpop.f32.mrf.mxu0
        %5954 = vdwg.mxu0
        %5955 = vmatpush.bf16.msra.mxu0 %v5790
        %5956 = vmatpush.bf16.msra.mxu0 %v5786
        %5957 = vmatpush.bf16.msra.mxu0 %v5782
        %5958 = vmatpush.bf16.msra.mxu0 %v5778
        %5959 = vmatpush.bf16.msra.mxu0 %v5774
        %5960 = vmatpush.bf16.msra.mxu0 %v5770
        %5961 = vmatpush.bf16.msra.mxu0 %v5766
        %5962 = vmatpush.bf16.msra.mxu0 %v5762
        %5963 = vmatmul.bf16.gmra.mxu0 %v5473
        %v5964 = vpop.f32.mrf.mxu0
        %v5965 = vadd.f32 0.0, %v5964
        %v5966 = vpop.f32.mrf.mxu0
        %5967 = vdwg.mxu0
        %5968 = vmatpush.bf16.msra.mxu0 %v5822
        %5969 = vmatpush.bf16.msra.mxu0 %v5818
        %5970 = vmatpush.bf16.msra.mxu0 %v5814
        %5971 = vmatpush.bf16.msra.mxu0 %v5810
        %5972 = vmatpush.bf16.msra.mxu0 %v5806
        %5973 = vmatpush.bf16.msra.mxu0 %v5802
        %5974 = vmatpush.bf16.msra.mxu0 %v5798
        %5975 = vmatpush.bf16.msra.mxu0 %v5794
        %5976 = vmatmul.bf16.gmra.mxu0 %v5474
        %v5977 = vpop.f32.mrf.mxu0
        %v5978 = vadd.f32 %v5965, %v5977
        %v5979 = vpop.f32.mrf.mxu0
        %5980 = vdwg.mxu0
        %5981 = vmatpush.bf16.msra.mxu0 0
        %5982 = vmatpush.bf16.msra.mxu0 0
        %5983 = vmatpush.bf16.msra.mxu0 0
        %5984 = vmatpush.bf16.msra.mxu0 0
        %5985 = vmatpush.bf16.msra.mxu0 0
        %5986 = vmatpush.bf16.msra.mxu0 0
        %5987 = vmatpush.bf16.msra.mxu0 %v5908
        %5988 = vmatpush.bf16.msra.mxu0 %v5826
        %5989 = vmatmul.bf16.gmra.mxu0 %v5902
        %v5990 = vpop.f32.mrf.mxu0
        %v5991 = vadd.f32 %v5978, %v5990
        %v5992 = vpop.f32.mrf.mxu0
        %5993 = vdwg.mxu0
        %5994 = vmatpush.bf16.msra.mxu0 %v5791
        %5995 = vmatpush.bf16.msra.mxu0 %v5787
        %5996 = vmatpush.bf16.msra.mxu0 %v5783
        %5997 = vmatpush.bf16.msra.mxu0 %v5779
        %5998 = vmatpush.bf16.msra.mxu0 %v5775
        %5999 = vmatpush.bf16.msra.mxu0 %v5771
        %6000 = vmatpush.bf16.msra.mxu0 %v5767
        %6001 = vmatpush.bf16.msra.mxu0 %v5763
        %6002 = vmatmul.bf16.gmra.mxu0 %v5473
        %v6003 = vpop.f32.mrf.mxu0
        %v6004 = vadd.f32 0.0, %v6003
        %v6005 = vpop.f32.mrf.mxu0
        %6006 = vdwg.mxu0
        %6007 = vmatpush.bf16.msra.mxu0 %v5823
        %6008 = vmatpush.bf16.msra.mxu0 %v5819
        %6009 = vmatpush.bf16.msra.mxu0 %v5815
        %6010 = vmatpush.bf16.msra.mxu0 %v5811
        %6011 = vmatpush.bf16.msra.mxu0 %v5807
        %6012 = vmatpush.bf16.msra.mxu0 %v5803
        %6013 = vmatpush.bf16.msra.mxu0 %v5799
        %6014 = vmatpush.bf16.msra.mxu0 %v5795
        %6015 = vmatmul.bf16.gmra.mxu0 %v5474
        %v6016 = vpop.f32.mrf.mxu0
        %v6017 = vadd.f32 %v6004, %v6016
        %v6018 = vpop.f32.mrf.mxu0
        %6019 = vdwg.mxu0
        %6020 = vmatpush.bf16.msra.mxu0 0
        %6021 = vmatpush.bf16.msra.mxu0 0
        %6022 = vmatpush.bf16.msra.mxu0 0
        %6023 = vmatpush.bf16.msra.mxu0 0
        %6024 = vmatpush.bf16.msra.mxu0 0
        %6025 = vmatpush.bf16.msra.mxu0 0
        %6026 = vmatpush.bf16.msra.mxu0 %v5911
        %6027 = vmatpush.bf16.msra.mxu0 %v5827
        %6028 = vmatmul.bf16.gmra.mxu0 %v5902
        %v6029 = vpop.f32.mrf.mxu0
        %v6030 = vadd.f32 %v6017, %v6029
        %v6031 = vpop.f32.mrf.mxu0
        %6032 = vdwg.mxu0
        %6033 = vmatpush.bf16.msra.mxu0 %v5792
        %6034 = vmatpush.bf16.msra.mxu0 %v5788
        %6035 = vmatpush.bf16.msra.mxu0 %v5784
        %6036 = vmatpush.bf16.msra.mxu0 %v5780
        %6037 = vmatpush.bf16.msra.mxu0 %v5776
        %6038 = vmatpush.bf16.msra.mxu0 %v5772
        %6039 = vmatpush.bf16.msra.mxu0 %v5768
        %6040 = vmatpush.bf16.msra.mxu0 %v5764
        %6041 = vmatmul.bf16.gmra.mxu0 %v5473
        %v6042 = vpop.f32.mrf.mxu0
        %v6043 = vadd.f32 0.0, %v6042
        %v6044 = vpop.f32.mrf.mxu0
        %6045 = vdwg.mxu0
        %6046 = vmatpush.bf16.msra.mxu0 %v5824
        %6047 = vmatpush.bf16.msra.mxu0 %v5820
        %6048 = vmatpush.bf16.msra.mxu0 %v5816
        %6049 = vmatpush.bf16.msra.mxu0 %v5812
        %6050 = vmatpush.bf16.msra.mxu0 %v5808
        %6051 = vmatpush.bf16.msra.mxu0 %v5804
        %6052 = vmatpush.bf16.msra.mxu0 %v5800
        %6053 = vmatpush.bf16.msra.mxu0 %v5796
        %6054 = vmatmul.bf16.gmra.mxu0 %v5474
        %v6055 = vpop.f32.mrf.mxu0
        %v6056 = vadd.f32 %v6043, %v6055
        %v6057 = vpop.f32.mrf.mxu0
        %6058 = vdwg.mxu0
        %6059 = vmatpush.bf16.msra.mxu0 0
        %6060 = vmatpush.bf16.msra.mxu0 0
        %6061 = vmatpush.bf16.msra.mxu0 0
        %6062 = vmatpush.bf16.msra.mxu0 0
        %6063 = vmatpush.bf16.msra.mxu0 0
        %6064 = vmatpush.bf16.msra.mxu0 0
        %6065 = vmatpush.bf16.msra.mxu0 %v5914
        %6066 = vmatpush.bf16.msra.mxu0 %v5828
        %6067 = vmatmul.bf16.gmra.mxu0 %v5902
        %v6068 = vpop.f32.mrf.mxu0
        %v6069 = vadd.f32 %v6056, %v6068
        %v6070 = vpop.f32.mrf.mxu0
        %6071 = vdwg.mxu0
        %v6072 = vadd.f32 %v5476, %v5952
        %v6073 = vadd.f32 %v5477, %v5991
        %v6074 = vadd.f32 %v5478, %v6030
        %v6075 = vadd.f32 %v5479, %v6069
        %6076 = vst [vmem:[#allocation3] sm:$0xff] %v6072
        %6077 = vst [vmem:[#allocation3 + $0x8] sm:$0xff] %v6073
        %6078 = vst [vmem:[#allocation3 + $0x10] sm:$0xff] %v6074
        %6079 = vst.msk [vmem:[#allocation3 + $0x18] sm:$0xff] %vm3609, %v6075
        %s6080 = sadd.s32 %s3611, 5
        %s6081 = smul.u32 %s6080, 8
        %s6082 = sshra.s32 %s6081, 3
        %s6083 = sand.u32 %s6081, 7
        %s6084 = smul.u32 %s6082, 3
        %s6085 = smul.addr %s6084, 8
        %s6086 = scalar_lea.vmem [#allocation2], %s6085
        %v6087 = vld [vmem:[%s6086] sm:$0xff]
        %v6088 = vld [vmem:[%s6086 + $0x8] sm:$0xff]
        %v6089 = vld [vmem:[%s6086 + $0x10] sm:$0xff]
        %v6090 = vpack.c.bf16 %v6087, %v6087
        %v6091 = vpack.c.bf16 %v6088, %v6088
        %v6092 = vpack.c.bf16 %v6089, %v6089
        %v6093 = vld [vmem:[#allocation3] sm:$0xff]
        %v6094 = vld [vmem:[#allocation3 + $0x8] sm:$0xff]
        %v6095 = vld [vmem:[#allocation3 + $0x10] sm:$0xff]
        %v6096 = vld [vmem:[#allocation3 + $0x18] sm:$0xff]
        %s6097 = scalar_lea.vmem %s349, 2800
        %v6098 = vld [vmem:[%s6097] sm:$0xff]
        %v6099 = vld [vmem:[%s6097 + $0x8] sm:$0xff]
        %v6100 = vld [vmem:[%s6097 + $0x10] sm:$0xff]
        %v6101 = vld [vmem:[%s6097 + $0x18] sm:$0xff]
        %v6102 = vld [vmem:[%s6097 + $0x20] sm:$0xff]
        %v6103 = vld [vmem:[%s6097 + $0x28] sm:$0xff]
        %v6104 = vld [vmem:[%s6097 + $0x30] sm:$0xff]
        %v6105 = vld [vmem:[%s6097 + $0x38] sm:$0xff]
        %v6106 = vld [vmem:[%s6097 + $0x40] sm:$0xff]
        %v6107 = vld [vmem:[%s6097 + $0x48] sm:$0xff]
        %v6108 = vld [vmem:[%s6097 + $0x50] sm:$0xff]
        %v6109 = vld [vmem:[%s6097 + $0x58] sm:$0xff]
        %v6110 = vld [vmem:[%s6097 + $0x60] sm:$0xff]
        %v6111 = vld [vmem:[%s6097 + $0x68] sm:$0xff]
        %v6112 = vld [vmem:[%s6097 + $0x70] sm:$0xff]
        %v6113 = vld [vmem:[%s6097 + $0x78] sm:$0xff]
        %v6114 = vld [vmem:[%s6097 + $0x80] sm:$0xff]
        %v6115 = vld [vmem:[%s6097 + $0x88] sm:$0xff]
        %v6116 = vld [vmem:[%s6097 + $0x90] sm:$0xff]
        %v6117 = vld [vmem:[%s6097 + $0x98] sm:$0xff]
        %v6118 = vld [vmem:[%s6097 + $0xa0] sm:$0xff]
        %v6119 = vld [vmem:[%s6097 + $0xa8] sm:$0xff]
        %v6120 = vld [vmem:[%s6097 + $0xb0] sm:$0xff]
        %v6121 = vld [vmem:[%s6097 + $0xb8] sm:$0xff]
        %v6122 = vld [vmem:[%s6097 + $0xc0] sm:$0xff]
        %v6123 = vld [vmem:[%s6097 + $0xc8] sm:$0xff]
        %v6124 = vld [vmem:[%s6097 + $0xd0] sm:$0xff]
        %v6125 = vld [vmem:[%s6097 + $0xd8] sm:$0xff]
        %v6126 = vld [vmem:[%s6097 + $0xe0] sm:$0xff]
        %v6127 = vld [vmem:[%s6097 + $0xe8] sm:$0xff]
        %v6128 = vld [vmem:[%s6097 + $0xf0] sm:$0xff]
        %v6129 = vld [vmem:[%s6097 + $0xf8] sm:$0xff]
        %v6130 = vld [vmem:[%s6097 + $0x100] sm:$0xff]
        %v6131 = vld [vmem:[%s6097 + $0x108] sm:$0xff]
        %v6132 = vld [vmem:[%s6097 + $0x110] sm:$0xff]
        %v6133 = vld [vmem:[%s6097 + $0x118] sm:$0xff]
        %v6134 = vld [vmem:[%s6097 + $0x120] sm:$0xff]
        %v6135 = vld [vmem:[%s6097 + $0x128] sm:$0xff]
        %v6136 = vld [vmem:[%s6097 + $0x130] sm:$0xff]
        %v6137 = vld [vmem:[%s6097 + $0x138] sm:$0xff]
        %v6138 = vld [vmem:[%s6097 + $0x140] sm:$0xff]
        %v6139 = vld [vmem:[%s6097 + $0x148] sm:$0xff]
        %v6140 = vld [vmem:[%s6097 + $0x150] sm:$0xff]
        %v6141 = vld [vmem:[%s6097 + $0x158] sm:$0xff]
        %v6142 = vld [vmem:[%s6097 + $0x160] sm:$0xff]
        %v6143 = vld [vmem:[%s6097 + $0x168] sm:$0xff]
        %v6144 = vld [vmem:[%s6097 + $0x170] sm:$0xff]
        %v6145 = vld [vmem:[%s6097 + $0x178] sm:$0xff]
        %v6146 = vld [vmem:[%s6097 + $0x180] sm:$0xff]
        %v6147 = vld [vmem:[%s6097 + $0x188] sm:$0xff]
        %v6148 = vld [vmem:[%s6097 + $0x190] sm:$0xff]
        %v6149 = vld [vmem:[%s6097 + $0x198] sm:$0xff]
        %v6150 = vld [vmem:[%s6097 + $0x1a0] sm:$0xff]
        %v6151 = vld [vmem:[%s6097 + $0x1a8] sm:$0xff]
        %v6152 = vld [vmem:[%s6097 + $0x1b0] sm:$0xff]
        %v6153 = vld [vmem:[%s6097 + $0x1b8] sm:$0xff]
        %v6154 = vld [vmem:[%s6097 + $0x1c0] sm:$0xff]
        %v6155 = vld [vmem:[%s6097 + $0x1c8] sm:$0xff]
        %v6156 = vld [vmem:[%s6097 + $0x1d0] sm:$0xff]
        %v6157 = vld [vmem:[%s6097 + $0x1d8] sm:$0xff]
        %v6158 = vld [vmem:[%s6097 + $0x1e0] sm:$0xff]
        %v6159 = vld [vmem:[%s6097 + $0x1e8] sm:$0xff]
        %v6160 = vld [vmem:[%s6097 + $0x1f0] sm:$0xff]
        %v6161 = vld [vmem:[%s6097 + $0x1f8] sm:$0xff]
        %v6162 = vld [vmem:[%s6097 + $0x200] sm:$0xff]
        %v6163 = vld [vmem:[%s6097 + $0x208] sm:$0xff]
        %v6164 = vld [vmem:[%s6097 + $0x210] sm:$0xff]
        %v6165 = vld [vmem:[%s6097 + $0x218] sm:$0xff]
        %v6166 = vld [vmem:[%s6097 + $0x220] sm:$0xff]
        %v6167 = vld [vmem:[%s6097 + $0x228] sm:$0xff]
        %v6238 = vunpack.c.l.b16 %v6098
        %v6239 = vunpack.c.h.b16 %v6098
        %v6240 = vunpack.c.l.b16 %v6099
        %v6241 = vunpack.c.h.b16 %v6099
        %v6242 = vunpack.c.l.b16 %v6100
        %v6243 = vunpack.c.h.b16 %v6100
        %v6244 = vunpack.c.l.b16 %v6101
        %v6245 = vunpack.c.h.b16 %v6101
        %v6246 = vunpack.c.l.b16 %v6102
        %v6247 = vunpack.c.h.b16 %v6102
        %v6248 = vunpack.c.l.b16 %v6103
        %v6249 = vunpack.c.h.b16 %v6103
        %v6250 = vunpack.c.l.b16 %v6104
        %v6251 = vunpack.c.h.b16 %v6104
        %v6252 = vunpack.c.l.b16 %v6105
        %v6253 = vunpack.c.h.b16 %v6105
        %v6254 = vunpack.c.l.b16 %v6106
        %v6255 = vunpack.c.h.b16 %v6106
        %v6256 = vunpack.c.l.b16 %v6107
        %v6257 = vunpack.c.h.b16 %v6107
        %v6258 = vunpack.c.l.b16 %v6108
        %v6259 = vunpack.c.h.b16 %v6108
        %v6260 = vunpack.c.l.b16 %v6109
        %v6261 = vunpack.c.h.b16 %v6109
        %v6262 = vunpack.c.l.b16 %v6110
        %v6263 = vunpack.c.h.b16 %v6110
        %v6264 = vunpack.c.l.b16 %v6111
        %v6265 = vunpack.c.h.b16 %v6111
        %v6266 = vunpack.c.l.b16 %v6112
        %v6267 = vunpack.c.h.b16 %v6112
        %v6268 = vunpack.c.l.b16 %v6113
        %v6269 = vunpack.c.h.b16 %v6113
        %v6270 = vunpack.c.l.b16 %v6114
        %v6271 = vunpack.c.h.b16 %v6114
        %v6272 = vunpack.c.l.b16 %v6115
        %v6273 = vunpack.c.h.b16 %v6115
        %v6274 = vunpack.c.l.b16 %v6116
        %v6275 = vunpack.c.h.b16 %v6116
        %v6276 = vunpack.c.l.b16 %v6117
        %v6277 = vunpack.c.h.b16 %v6117
        %v6278 = vunpack.c.l.b16 %v6118
        %v6279 = vunpack.c.h.b16 %v6118
        %v6280 = vunpack.c.l.b16 %v6119
        %v6281 = vunpack.c.h.b16 %v6119
        %v6282 = vunpack.c.l.b16 %v6120
        %v6283 = vunpack.c.h.b16 %v6120
        %v6284 = vunpack.c.l.b16 %v6121
        %v6285 = vunpack.c.h.b16 %v6121
        %v6286 = vunpack.c.l.b16 %v6122
        %v6287 = vunpack.c.h.b16 %v6122
        %v6288 = vunpack.c.l.b16 %v6123
        %v6289 = vunpack.c.h.b16 %v6123
        %v6290 = vunpack.c.l.b16 %v6124
        %v6291 = vunpack.c.h.b16 %v6124
        %v6292 = vunpack.c.l.b16 %v6125
        %v6293 = vunpack.c.h.b16 %v6125
        %v6294 = vunpack.c.l.b16 %v6126
        %v6295 = vunpack.c.h.b16 %v6126
        %v6296 = vunpack.c.l.b16 %v6127
        %v6297 = vunpack.c.h.b16 %v6127
        %v6298 = vunpack.c.l.b16 %v6128
        %v6299 = vunpack.c.h.b16 %v6128
        %v6300 = vunpack.c.l.b16 %v6129
        %v6301 = vunpack.c.h.b16 %v6129
        %v6302 = vunpack.c.l.b16 %v6130
        %v6303 = vunpack.c.h.b16 %v6130
        %v6304 = vunpack.c.l.b16 %v6131
        %v6305 = vunpack.c.h.b16 %v6131
        %v6306 = vunpack.c.l.b16 %v6132
        %v6307 = vunpack.c.h.b16 %v6132
        %v6308 = vunpack.c.l.b16 %v6133
        %v6309 = vunpack.c.h.b16 %v6133
        %v6310 = vunpack.c.l.b16 %v6134
        %v6311 = vunpack.c.h.b16 %v6134
        %v6312 = vunpack.c.l.b16 %v6135
        %v6313 = vunpack.c.h.b16 %v6135
        %v6314 = vunpack.c.l.b16 %v6136
        %v6315 = vunpack.c.h.b16 %v6136
        %v6316 = vunpack.c.l.b16 %v6137
        %v6317 = vunpack.c.h.b16 %v6137
        %v6318 = vunpack.c.l.b16 %v6138
        %v6319 = vunpack.c.h.b16 %v6138
        %v6320 = vunpack.c.l.b16 %v6139
        %v6321 = vunpack.c.h.b16 %v6139
        %v6322 = vunpack.c.l.b16 %v6140
        %v6323 = vunpack.c.h.b16 %v6140
        %v6324 = vunpack.c.l.b16 %v6141
        %v6325 = vunpack.c.h.b16 %v6141
        %v6326 = vunpack.c.l.b16 %v6142
        %v6327 = vunpack.c.h.b16 %v6142
        %v6328 = vunpack.c.l.b16 %v6143
        %v6329 = vunpack.c.h.b16 %v6143
        %v6330 = vunpack.c.l.b16 %v6144
        %v6331 = vunpack.c.h.b16 %v6144
        %v6332 = vunpack.c.l.b16 %v6145
        %v6333 = vunpack.c.h.b16 %v6145
        %v6334 = vunpack.c.l.b16 %v6146
        %v6335 = vunpack.c.h.b16 %v6146
        %v6336 = vunpack.c.l.b16 %v6147
        %v6337 = vunpack.c.h.b16 %v6147
        %v6338 = vunpack.c.l.b16 %v6148
        %v6339 = vunpack.c.h.b16 %v6148
        %v6340 = vunpack.c.l.b16 %v6149
        %v6341 = vunpack.c.h.b16 %v6149
        %v6342 = vunpack.c.l.b16 %v6150
        %v6343 = vunpack.c.h.b16 %v6150
        %v6344 = vunpack.c.l.b16 %v6151
        %v6345 = vunpack.c.h.b16 %v6151
        %v6346 = vunpack.c.l.b16 %v6152
        %v6347 = vunpack.c.h.b16 %v6152
        %v6348 = vunpack.c.l.b16 %v6153
        %v6349 = vunpack.c.h.b16 %v6153
        %v6350 = vunpack.c.l.b16 %v6154
        %v6351 = vunpack.c.h.b16 %v6154
        %v6352 = vunpack.c.l.b16 %v6155
        %v6353 = vunpack.c.h.b16 %v6155
        %v6354 = vunpack.c.l.b16 %v6156
        %v6355 = vunpack.c.h.b16 %v6156
        %v6356 = vunpack.c.l.b16 %v6157
        %v6357 = vunpack.c.h.b16 %v6157
        %v6358 = vunpack.c.l.b16 %v6158
        %v6359 = vunpack.c.h.b16 %v6158
        %v6360 = vunpack.c.l.b16 %v6159
        %v6361 = vunpack.c.h.b16 %v6159
        %v6362 = vunpack.c.l.b16 %v6160
        %v6363 = vunpack.c.h.b16 %v6160
        %v6364 = vunpack.c.l.b16 %v6161
        %v6365 = vunpack.c.h.b16 %v6161
        %v6366 = vunpack.c.l.b16 %v6162
        %v6367 = vunpack.c.h.b16 %v6162
        %v6368 = vunpack.c.l.b16 %v6163
        %v6369 = vunpack.c.h.b16 %v6163
        %v6370 = vunpack.c.l.b16 %v6164
        %v6371 = vunpack.c.h.b16 %v6164
        %v6372 = vunpack.c.l.b16 %v6165
        %v6373 = vunpack.c.h.b16 %v6165
        %v6374 = vunpack.c.l.b16 %v6166
        %v6375 = vunpack.c.h.b16 %v6166
        %v6376 = vunpack.c.l.b16 %v6167
        %v6377 = vunpack.c.h.b16 %v6167
        %v6378 = vpack.c.b16 %v6242, %v6238
        %v6379 = vpack.c.b16 %v6243, %v6239
        %v6380 = vpack.c.b16 %v6244, %v6240
        %v6381 = vpack.c.b16 %v6245, %v6241
        %v6382 = vpack.c.b16 %v6250, %v6246
        %v6383 = vpack.c.b16 %v6251, %v6247
        %v6384 = vpack.c.b16 %v6252, %v6248
        %v6385 = vpack.c.b16 %v6253, %v6249
        %v6386 = vpack.c.b16 %v6258, %v6254
        %v6387 = vpack.c.b16 %v6259, %v6255
        %v6388 = vpack.c.b16 %v6260, %v6256
        %v6389 = vpack.c.b16 %v6261, %v6257
        %v6390 = vpack.c.b16 %v6266, %v6262
        %v6391 = vpack.c.b16 %v6267, %v6263
        %v6392 = vpack.c.b16 %v6268, %v6264
        %v6393 = vpack.c.b16 %v6269, %v6265
        %v6394 = vpack.c.b16 %v6274, %v6270
        %v6395 = vpack.c.b16 %v6275, %v6271
        %v6396 = vpack.c.b16 %v6276, %v6272
        %v6397 = vpack.c.b16 %v6277, %v6273
        %v6398 = vpack.c.b16 %v6282, %v6278
        %v6399 = vpack.c.b16 %v6283, %v6279
        %v6400 = vpack.c.b16 %v6284, %v6280
        %v6401 = vpack.c.b16 %v6285, %v6281
        %v6402 = vpack.c.b16 %v6290, %v6286
        %v6403 = vpack.c.b16 %v6291, %v6287
        %v6404 = vpack.c.b16 %v6292, %v6288
        %v6405 = vpack.c.b16 %v6293, %v6289
        %v6406 = vpack.c.b16 %v6298, %v6294
        %v6407 = vpack.c.b16 %v6299, %v6295
        %v6408 = vpack.c.b16 %v6300, %v6296
        %v6409 = vpack.c.b16 %v6301, %v6297
        %v6410 = vpack.c.b16 %v6306, %v6302
        %v6411 = vpack.c.b16 %v6307, %v6303
        %v6412 = vpack.c.b16 %v6308, %v6304
        %v6413 = vpack.c.b16 %v6309, %v6305
        %v6414 = vpack.c.b16 %v6314, %v6310
        %v6415 = vpack.c.b16 %v6315, %v6311
        %v6416 = vpack.c.b16 %v6316, %v6312
        %v6417 = vpack.c.b16 %v6317, %v6313
        %v6418 = vpack.c.b16 %v6322, %v6318
        %v6419 = vpack.c.b16 %v6323, %v6319
        %v6420 = vpack.c.b16 %v6324, %v6320
        %v6421 = vpack.c.b16 %v6325, %v6321
        %v6422 = vpack.c.b16 %v6330, %v6326
        %v6423 = vpack.c.b16 %v6331, %v6327
        %v6424 = vpack.c.b16 %v6332, %v6328
        %v6425 = vpack.c.b16 %v6333, %v6329
        %v6426 = vpack.c.b16 %v6338, %v6334
        %v6427 = vpack.c.b16 %v6339, %v6335
        %v6428 = vpack.c.b16 %v6340, %v6336
        %v6429 = vpack.c.b16 %v6341, %v6337
        %v6430 = vpack.c.b16 %v6346, %v6342
        %v6431 = vpack.c.b16 %v6347, %v6343
        %v6432 = vpack.c.b16 %v6348, %v6344
        %v6433 = vpack.c.b16 %v6349, %v6345
        %v6434 = vpack.c.b16 %v6354, %v6350
        %v6435 = vpack.c.b16 %v6355, %v6351
        %v6436 = vpack.c.b16 %v6356, %v6352
        %v6437 = vpack.c.b16 %v6357, %v6353
        %v6438 = vpack.c.b16 %v6362, %v6358
        %v6439 = vpack.c.b16 %v6363, %v6359
        %v6440 = vpack.c.b16 %v6364, %v6360
        %v6441 = vpack.c.b16 %v6365, %v6361
        %v6442 = vpack.c.b16 %v6370, %v6366
        %v6443 = vpack.c.b16 %v6371, %v6367
        %v6444 = vpack.c.b16 %v6372, %v6368
        %v6445 = vpack.c.b16 %v6373, %v6369
        %v6446 = vpack.c.b16 %v6374, %v6374
        %v6447 = vpack.c.b16 %v6375, %v6375
        %v6448 = vpack.c.b16 %v6376, %v6376
        %v6449 = vpack.c.b16 %v6377, %v6377
        %v6519 = vsel %vm3429, %v6092, 0
        %v6522 = vsel %vm3433, %v6446, 0
        %v6525 = vsel %vm3433, %v6447, 0
        %v6528 = vsel %vm3433, %v6448, 0
        %v6531 = vsel %vm3433, %v6449, 0
        %6533 = vmatpush.bf16.msra.mxu0 %v6406
        %6534 = vmatpush.bf16.msra.mxu0 %v6402
        %6535 = vmatpush.bf16.msra.mxu0 %v6398
        %6536 = vmatpush.bf16.msra.mxu0 %v6394
        %6537 = vmatpush.bf16.msra.mxu0 %v6390
        %6538 = vmatpush.bf16.msra.mxu0 %v6386
        %6539 = vmatpush.bf16.msra.mxu0 %v6382
        %6540 = vmatpush.bf16.msra.mxu0 %v6378
        %6541 = vmatmul.bf16.gmra.mxu0 %v6090
        %v6542 = vpop.f32.mrf.mxu0
        %v6543 = vadd.f32 0.0, %v6542
        %v6544 = vpop.f32.mrf.mxu0
        %6545 = vdwg.mxu0
        %6546 = vmatpush.bf16.msra.mxu0 %v6438
        %6547 = vmatpush.bf16.msra.mxu0 %v6434
        %6548 = vmatpush.bf16.msra.mxu0 %v6430
        %6549 = vmatpush.bf16.msra.mxu0 %v6426
        %6550 = vmatpush.bf16.msra.mxu0 %v6422
        %6551 = vmatpush.bf16.msra.mxu0 %v6418
        %6552 = vmatpush.bf16.msra.mxu0 %v6414
        %6553 = vmatpush.bf16.msra.mxu0 %v6410
        %6554 = vmatmul.bf16.gmra.mxu0 %v6091
        %v6555 = vpop.f32.mrf.mxu0
        %v6556 = vadd.f32 %v6543, %v6555
        %v6557 = vpop.f32.mrf.mxu0
        %6558 = vdwg.mxu0
        %6559 = vmatpush.bf16.msra.mxu0 0
        %6560 = vmatpush.bf16.msra.mxu0 0
        %6561 = vmatpush.bf16.msra.mxu0 0
        %6562 = vmatpush.bf16.msra.mxu0 0
        %6563 = vmatpush.bf16.msra.mxu0 0
        %6564 = vmatpush.bf16.msra.mxu0 0
        %6565 = vmatpush.bf16.msra.mxu0 %v6522
        %6566 = vmatpush.bf16.msra.mxu0 %v6442
        %6567 = vmatmul.bf16.gmra.mxu0 %v6519
        %v6568 = vpop.f32.mrf.mxu0
        %v6569 = vadd.f32 %v6556, %v6568
        %v6570 = vpop.f32.mrf.mxu0
        %6571 = vdwg.mxu0
        %6572 = vmatpush.bf16.msra.mxu0 %v6407
        %6573 = vmatpush.bf16.msra.mxu0 %v6403
        %6574 = vmatpush.bf16.msra.mxu0 %v6399
        %6575 = vmatpush.bf16.msra.mxu0 %v6395
        %6576 = vmatpush.bf16.msra.mxu0 %v6391
        %6577 = vmatpush.bf16.msra.mxu0 %v6387
        %6578 = vmatpush.bf16.msra.mxu0 %v6383
        %6579 = vmatpush.bf16.msra.mxu0 %v6379
        %6580 = vmatmul.bf16.gmra.mxu0 %v6090
        %v6581 = vpop.f32.mrf.mxu0
        %v6582 = vadd.f32 0.0, %v6581
        %v6583 = vpop.f32.mrf.mxu0
        %6584 = vdwg.mxu0
        %6585 = vmatpush.bf16.msra.mxu0 %v6439
        %6586 = vmatpush.bf16.msra.mxu0 %v6435
        %6587 = vmatpush.bf16.msra.mxu0 %v6431
        %6588 = vmatpush.bf16.msra.mxu0 %v6427
        %6589 = vmatpush.bf16.msra.mxu0 %v6423
        %6590 = vmatpush.bf16.msra.mxu0 %v6419
        %6591 = vmatpush.bf16.msra.mxu0 %v6415
        %6592 = vmatpush.bf16.msra.mxu0 %v6411
        %6593 = vmatmul.bf16.gmra.mxu0 %v6091
        %v6594 = vpop.f32.mrf.mxu0
        %v6595 = vadd.f32 %v6582, %v6594
        %v6596 = vpop.f32.mrf.mxu0
        %6597 = vdwg.mxu0
        %6598 = vmatpush.bf16.msra.mxu0 0
        %6599 = vmatpush.bf16.msra.mxu0 0
        %6600 = vmatpush.bf16.msra.mxu0 0
        %6601 = vmatpush.bf16.msra.mxu0 0
        %6602 = vmatpush.bf16.msra.mxu0 0
        %6603 = vmatpush.bf16.msra.mxu0 0
        %6604 = vmatpush.bf16.msra.mxu0 %v6525
        %6605 = vmatpush.bf16.msra.mxu0 %v6443
        %6606 = vmatmul.bf16.gmra.mxu0 %v6519
        %v6607 = vpop.f32.mrf.mxu0
        %v6608 = vadd.f32 %v6595, %v6607
        %v6609 = vpop.f32.mrf.mxu0
        %6610 = vdwg.mxu0
        %6611 = vmatpush.bf16.msra.mxu0 %v6408
        %6612 = vmatpush.bf16.msra.mxu0 %v6404
        %6613 = vmatpush.bf16.msra.mxu0 %v6400
        %6614 = vmatpush.bf16.msra.mxu0 %v6396
        %6615 = vmatpush.bf16.msra.mxu0 %v6392
        %6616 = vmatpush.bf16.msra.mxu0 %v6388
        %6617 = vmatpush.bf16.msra.mxu0 %v6384
        %6618 = vmatpush.bf16.msra.mxu0 %v6380
        %6619 = vmatmul.bf16.gmra.mxu0 %v6090
        %v6620 = vpop.f32.mrf.mxu0
        %v6621 = vadd.f32 0.0, %v6620
        %v6622 = vpop.f32.mrf.mxu0
        %6623 = vdwg.mxu0
        %6624 = vmatpush.bf16.msra.mxu0 %v6440
        %6625 = vmatpush.bf16.msra.mxu0 %v6436
        %6626 = vmatpush.bf16.msra.mxu0 %v6432
        %6627 = vmatpush.bf16.msra.mxu0 %v6428
        %6628 = vmatpush.bf16.msra.mxu0 %v6424
        %6629 = vmatpush.bf16.msra.mxu0 %v6420
        %6630 = vmatpush.bf16.msra.mxu0 %v6416
        %6631 = vmatpush.bf16.msra.mxu0 %v6412
        %6632 = vmatmul.bf16.gmra.mxu0 %v6091
        %v6633 = vpop.f32.mrf.mxu0
        %v6634 = vadd.f32 %v6621, %v6633
        %v6635 = vpop.f32.mrf.mxu0
        %6636 = vdwg.mxu0
        %6637 = vmatpush.bf16.msra.mxu0 0
        %6638 = vmatpush.bf16.msra.mxu0 0
        %6639 = vmatpush.bf16.msra.mxu0 0
        %6640 = vmatpush.bf16.msra.mxu0 0
        %6641 = vmatpush.bf16.msra.mxu0 0
        %6642 = vmatpush.bf16.msra.mxu0 0
        %6643 = vmatpush.bf16.msra.mxu0 %v6528
        %6644 = vmatpush.bf16.msra.mxu0 %v6444
        %6645 = vmatmul.bf16.gmra.mxu0 %v6519
        %v6646 = vpop.f32.mrf.mxu0
        %v6647 = vadd.f32 %v6634, %v6646
        %v6648 = vpop.f32.mrf.mxu0
        %6649 = vdwg.mxu0
        %6650 = vmatpush.bf16.msra.mxu0 %v6409
        %6651 = vmatpush.bf16.msra.mxu0 %v6405
        %6652 = vmatpush.bf16.msra.mxu0 %v6401
        %6653 = vmatpush.bf16.msra.mxu0 %v6397
        %6654 = vmatpush.bf16.msra.mxu0 %v6393
        %6655 = vmatpush.bf16.msra.mxu0 %v6389
        %6656 = vmatpush.bf16.msra.mxu0 %v6385
        %6657 = vmatpush.bf16.msra.mxu0 %v6381
        %6658 = vmatmul.bf16.gmra.mxu0 %v6090
        %v6659 = vpop.f32.mrf.mxu0
        %v6660 = vadd.f32 0.0, %v6659
        %v6661 = vpop.f32.mrf.mxu0
        %6662 = vdwg.mxu0
        %6663 = vmatpush.bf16.msra.mxu0 %v6441
        %6664 = vmatpush.bf16.msra.mxu0 %v6437
        %6665 = vmatpush.bf16.msra.mxu0 %v6433
        %6666 = vmatpush.bf16.msra.mxu0 %v6429
        %6667 = vmatpush.bf16.msra.mxu0 %v6425
        %6668 = vmatpush.bf16.msra.mxu0 %v6421
        %6669 = vmatpush.bf16.msra.mxu0 %v6417
        %6670 = vmatpush.bf16.msra.mxu0 %v6413
        %6671 = vmatmul.bf16.gmra.mxu0 %v6091
        %v6672 = vpop.f32.mrf.mxu0
        %v6673 = vadd.f32 %v6660, %v6672
        %v6674 = vpop.f32.mrf.mxu0
        %6675 = vdwg.mxu0
        %6676 = vmatpush.bf16.msra.mxu0 0
        %6677 = vmatpush.bf16.msra.mxu0 0
        %6678 = vmatpush.bf16.msra.mxu0 0
        %6679 = vmatpush.bf16.msra.mxu0 0
        %6680 = vmatpush.bf16.msra.mxu0 0
        %6681 = vmatpush.bf16.msra.mxu0 0
        %6682 = vmatpush.bf16.msra.mxu0 %v6531
        %6683 = vmatpush.bf16.msra.mxu0 %v6445
        %6684 = vmatmul.bf16.gmra.mxu0 %v6519
        %v6685 = vpop.f32.mrf.mxu0
        %v6686 = vadd.f32 %v6673, %v6685
        %v6687 = vpop.f32.mrf.mxu0
        %6688 = vdwg.mxu0
        %v6689 = vadd.f32 %v6093, %v6569
        %v6690 = vadd.f32 %v6094, %v6608
        %v6691 = vadd.f32 %v6095, %v6647
        %v6692 = vadd.f32 %v6096, %v6686
        %6693 = vst [vmem:[#allocation3] sm:$0xff] %v6689
        %6694 = vst [vmem:[#allocation3 + $0x8] sm:$0xff] %v6690
        %6695 = vst [vmem:[#allocation3 + $0x10] sm:$0xff] %v6691
        %6696 = vst.msk [vmem:[#allocation3 + $0x18] sm:$0xff] %vm3609, %v6692
        %s6697 = sadd.s32 %s3611, 6
        %s6698 = smul.u32 %s6697, 8
        %s6699 = sshra.s32 %s6698, 3
        %s6700 = sand.u32 %s6698, 7
        %s6701 = smul.u32 %s6699, 3
        %s6702 = smul.addr %s6701, 8
        %s6703 = scalar_lea.vmem [#allocation2], %s6702
        %v6704 = vld [vmem:[%s6703] sm:$0xff]
        %v6705 = vld [vmem:[%s6703 + $0x8] sm:$0xff]
        %v6706 = vld [vmem:[%s6703 + $0x10] sm:$0xff]
        %v6707 = vpack.c.bf16 %v6704, %v6704
        %v6708 = vpack.c.bf16 %v6705, %v6705
        %v6709 = vpack.c.bf16 %v6706, %v6706
        %v6710 = vld [vmem:[#allocation3] sm:$0xff]
        %v6711 = vld [vmem:[#allocation3 + $0x8] sm:$0xff]
        %v6712 = vld [vmem:[#allocation3 + $0x10] sm:$0xff]
        %v6713 = vld [vmem:[#allocation3 + $0x18] sm:$0xff]
        %s6714 = scalar_lea.vmem %s349, 3360
        %v6715 = vld [vmem:[%s6714] sm:$0xff]
        %v6716 = vld [vmem:[%s6714 + $0x8] sm:$0xff]
        %v6717 = vld [vmem:[%s6714 + $0x10] sm:$0xff]
        %v6718 = vld [vmem:[%s6714 + $0x18] sm:$0xff]
        %v6719 = vld [vmem:[%s6714 + $0x20] sm:$0xff]
        %v6720 = vld [vmem:[%s6714 + $0x28] sm:$0xff]
        %v6721 = vld [vmem:[%s6714 + $0x30] sm:$0xff]
        %v6722 = vld [vmem:[%s6714 + $0x38] sm:$0xff]
        %v6723 = vld [vmem:[%s6714 + $0x40] sm:$0xff]
        %v6724 = vld [vmem:[%s6714 + $0x48] sm:$0xff]
        %v6725 = vld [vmem:[%s6714 + $0x50] sm:$0xff]
        %v6726 = vld [vmem:[%s6714 + $0x58] sm:$0xff]
        %v6727 = vld [vmem:[%s6714 + $0x60] sm:$0xff]
        %v6728 = vld [vmem:[%s6714 + $0x68] sm:$0xff]
        %v6729 = vld [vmem:[%s6714 + $0x70] sm:$0xff]
        %v6730 = vld [vmem:[%s6714 + $0x78] sm:$0xff]
        %v6731 = vld [vmem:[%s6714 + $0x80] sm:$0xff]
        %v6732 = vld [vmem:[%s6714 + $0x88] sm:$0xff]
        %v6733 = vld [vmem:[%s6714 + $0x90] sm:$0xff]
        %v6734 = vld [vmem:[%s6714 + $0x98] sm:$0xff]
        %v6735 = vld [vmem:[%s6714 + $0xa0] sm:$0xff]
        %v6736 = vld [vmem:[%s6714 + $0xa8] sm:$0xff]
        %v6737 = vld [vmem:[%s6714 + $0xb0] sm:$0xff]
        %v6738 = vld [vmem:[%s6714 + $0xb8] sm:$0xff]
        %v6739 = vld [vmem:[%s6714 + $0xc0] sm:$0xff]
        %v6740 = vld [vmem:[%s6714 + $0xc8] sm:$0xff]
        %v6741 = vld [vmem:[%s6714 + $0xd0] sm:$0xff]
        %v6742 = vld [vmem:[%s6714 + $0xd8] sm:$0xff]
        %v6743 = vld [vmem:[%s6714 + $0xe0] sm:$0xff]
        %v6744 = vld [vmem:[%s6714 + $0xe8] sm:$0xff]
        %v6745 = vld [vmem:[%s6714 + $0xf0] sm:$0xff]
        %v6746 = vld [vmem:[%s6714 + $0xf8] sm:$0xff]
        %v6747 = vld [vmem:[%s6714 + $0x100] sm:$0xff]
        %v6748 = vld [vmem:[%s6714 + $0x108] sm:$0xff]
        %v6749 = vld [vmem:[%s6714 + $0x110] sm:$0xff]
        %v6750 = vld [vmem:[%s6714 + $0x118] sm:$0xff]
        %v6751 = vld [vmem:[%s6714 + $0x120] sm:$0xff]
        %v6752 = vld [vmem:[%s6714 + $0x128] sm:$0xff]
        %v6753 = vld [vmem:[%s6714 + $0x130] sm:$0xff]
        %v6754 = vld [vmem:[%s6714 + $0x138] sm:$0xff]
        %v6755 = vld [vmem:[%s6714 + $0x140] sm:$0xff]
        %v6756 = vld [vmem:[%s6714 + $0x148] sm:$0xff]
        %v6757 = vld [vmem:[%s6714 + $0x150] sm:$0xff]
        %v6758 = vld [vmem:[%s6714 + $0x158] sm:$0xff]
        %v6759 = vld [vmem:[%s6714 + $0x160] sm:$0xff]
        %v6760 = vld [vmem:[%s6714 + $0x168] sm:$0xff]
        %v6761 = vld [vmem:[%s6714 + $0x170] sm:$0xff]
        %v6762 = vld [vmem:[%s6714 + $0x178] sm:$0xff]
        %v6763 = vld [vmem:[%s6714 + $0x180] sm:$0xff]
        %v6764 = vld [vmem:[%s6714 + $0x188] sm:$0xff]
        %v6765 = vld [vmem:[%s6714 + $0x190] sm:$0xff]
        %v6766 = vld [vmem:[%s6714 + $0x198] sm:$0xff]
        %v6767 = vld [vmem:[%s6714 + $0x1a0] sm:$0xff]
        %v6768 = vld [vmem:[%s6714 + $0x1a8] sm:$0xff]
        %v6769 = vld [vmem:[%s6714 + $0x1b0] sm:$0xff]
        %v6770 = vld [vmem:[%s6714 + $0x1b8] sm:$0xff]
        %v6771 = vld [vmem:[%s6714 + $0x1c0] sm:$0xff]
        %v6772 = vld [vmem:[%s6714 + $0x1c8] sm:$0xff]
        %v6773 = vld [vmem:[%s6714 + $0x1d0] sm:$0xff]
        %v6774 = vld [vmem:[%s6714 + $0x1d8] sm:$0xff]
        %v6775 = vld [vmem:[%s6714 + $0x1e0] sm:$0xff]
        %v6776 = vld [vmem:[%s6714 + $0x1e8] sm:$0xff]
        %v6777 = vld [vmem:[%s6714 + $0x1f0] sm:$0xff]
        %v6778 = vld [vmem:[%s6714 + $0x1f8] sm:$0xff]
        %v6779 = vld [vmem:[%s6714 + $0x200] sm:$0xff]
        %v6780 = vld [vmem:[%s6714 + $0x208] sm:$0xff]
        %v6781 = vld [vmem:[%s6714 + $0x210] sm:$0xff]
        %v6782 = vld [vmem:[%s6714 + $0x218] sm:$0xff]
        %v6783 = vld [vmem:[%s6714 + $0x220] sm:$0xff]
        %v6784 = vld [vmem:[%s6714 + $0x228] sm:$0xff]
        %v6855 = vunpack.c.l.b16 %v6715
        %v6856 = vunpack.c.h.b16 %v6715
        %v6857 = vunpack.c.l.b16 %v6716
        %v6858 = vunpack.c.h.b16 %v6716
        %v6859 = vunpack.c.l.b16 %v6717
        %v6860 = vunpack.c.h.b16 %v6717
        %v6861 = vunpack.c.l.b16 %v6718
        %v6862 = vunpack.c.h.b16 %v6718
        %v6863 = vunpack.c.l.b16 %v6719
        %v6864 = vunpack.c.h.b16 %v6719
        %v6865 = vunpack.c.l.b16 %v6720
        %v6866 = vunpack.c.h.b16 %v6720
        %v6867 = vunpack.c.l.b16 %v6721
        %v6868 = vunpack.c.h.b16 %v6721
        %v6869 = vunpack.c.l.b16 %v6722
        %v6870 = vunpack.c.h.b16 %v6722
        %v6871 = vunpack.c.l.b16 %v6723
        %v6872 = vunpack.c.h.b16 %v6723
        %v6873 = vunpack.c.l.b16 %v6724
        %v6874 = vunpack.c.h.b16 %v6724
        %v6875 = vunpack.c.l.b16 %v6725
        %v6876 = vunpack.c.h.b16 %v6725
        %v6877 = vunpack.c.l.b16 %v6726
        %v6878 = vunpack.c.h.b16 %v6726
        %v6879 = vunpack.c.l.b16 %v6727
        %v6880 = vunpack.c.h.b16 %v6727
        %v6881 = vunpack.c.l.b16 %v6728
        %v6882 = vunpack.c.h.b16 %v6728
        %v6883 = vunpack.c.l.b16 %v6729
        %v6884 = vunpack.c.h.b16 %v6729
        %v6885 = vunpack.c.l.b16 %v6730
        %v6886 = vunpack.c.h.b16 %v6730
        %v6887 = vunpack.c.l.b16 %v6731
        %v6888 = vunpack.c.h.b16 %v6731
        %v6889 = vunpack.c.l.b16 %v6732
        %v6890 = vunpack.c.h.b16 %v6732
        %v6891 = vunpack.c.l.b16 %v6733
        %v6892 = vunpack.c.h.b16 %v6733
        %v6893 = vunpack.c.l.b16 %v6734
        %v6894 = vunpack.c.h.b16 %v6734
        %v6895 = vunpack.c.l.b16 %v6735
        %v6896 = vunpack.c.h.b16 %v6735
        %v6897 = vunpack.c.l.b16 %v6736
        %v6898 = vunpack.c.h.b16 %v6736
        %v6899 = vunpack.c.l.b16 %v6737
        %v6900 = vunpack.c.h.b16 %v6737
        %v6901 = vunpack.c.l.b16 %v6738
        %v6902 = vunpack.c.h.b16 %v6738
        %v6903 = vunpack.c.l.b16 %v6739
        %v6904 = vunpack.c.h.b16 %v6739
        %v6905 = vunpack.c.l.b16 %v6740
        %v6906 = vunpack.c.h.b16 %v6740
        %v6907 = vunpack.c.l.b16 %v6741
        %v6908 = vunpack.c.h.b16 %v6741
        %v6909 = vunpack.c.l.b16 %v6742
        %v6910 = vunpack.c.h.b16 %v6742
        %v6911 = vunpack.c.l.b16 %v6743
        %v6912 = vunpack.c.h.b16 %v6743
        %v6913 = vunpack.c.l.b16 %v6744
        %v6914 = vunpack.c.h.b16 %v6744
        %v6915 = vunpack.c.l.b16 %v6745
        %v6916 = vunpack.c.h.b16 %v6745
        %v6917 = vunpack.c.l.b16 %v6746
        %v6918 = vunpack.c.h.b16 %v6746
        %v6919 = vunpack.c.l.b16 %v6747
        %v6920 = vunpack.c.h.b16 %v6747
        %v6921 = vunpack.c.l.b16 %v6748
        %v6922 = vunpack.c.h.b16 %v6748
        %v6923 = vunpack.c.l.b16 %v6749
        %v6924 = vunpack.c.h.b16 %v6749
        %v6925 = vunpack.c.l.b16 %v6750
        %v6926 = vunpack.c.h.b16 %v6750
        %v6927 = vunpack.c.l.b16 %v6751
        %v6928 = vunpack.c.h.b16 %v6751
        %v6929 = vunpack.c.l.b16 %v6752
        %v6930 = vunpack.c.h.b16 %v6752
        %v6931 = vunpack.c.l.b16 %v6753
        %v6932 = vunpack.c.h.b16 %v6753
        %v6933 = vunpack.c.l.b16 %v6754
        %v6934 = vunpack.c.h.b16 %v6754
        %v6935 = vunpack.c.l.b16 %v6755
        %v6936 = vunpack.c.h.b16 %v6755
        %v6937 = vunpack.c.l.b16 %v6756
        %v6938 = vunpack.c.h.b16 %v6756
        %v6939 = vunpack.c.l.b16 %v6757
        %v6940 = vunpack.c.h.b16 %v6757
        %v6941 = vunpack.c.l.b16 %v6758
        %v6942 = vunpack.c.h.b16 %v6758
        %v6943 = vunpack.c.l.b16 %v6759
        %v6944 = vunpack.c.h.b16 %v6759
        %v6945 = vunpack.c.l.b16 %v6760
        %v6946 = vunpack.c.h.b16 %v6760
        %v6947 = vunpack.c.l.b16 %v6761
        %v6948 = vunpack.c.h.b16 %v6761
        %v6949 = vunpack.c.l.b16 %v6762
        %v6950 = vunpack.c.h.b16 %v6762
        %v6951 = vunpack.c.l.b16 %v6763
        %v6952 = vunpack.c.h.b16 %v6763
        %v6953 = vunpack.c.l.b16 %v6764
        %v6954 = vunpack.c.h.b16 %v6764
        %v6955 = vunpack.c.l.b16 %v6765
        %v6956 = vunpack.c.h.b16 %v6765
        %v6957 = vunpack.c.l.b16 %v6766
        %v6958 = vunpack.c.h.b16 %v6766
        %v6959 = vunpack.c.l.b16 %v6767
        %v6960 = vunpack.c.h.b16 %v6767
        %v6961 = vunpack.c.l.b16 %v6768
        %v6962 = vunpack.c.h.b16 %v6768
        %v6963 = vunpack.c.l.b16 %v6769
        %v6964 = vunpack.c.h.b16 %v6769
        %v6965 = vunpack.c.l.b16 %v6770
        %v6966 = vunpack.c.h.b16 %v6770
        %v6967 = vunpack.c.l.b16 %v6771
        %v6968 = vunpack.c.h.b16 %v6771
        %v6969 = vunpack.c.l.b16 %v6772
        %v6970 = vunpack.c.h.b16 %v6772
        %v6971 = vunpack.c.l.b16 %v6773
        %v6972 = vunpack.c.h.b16 %v6773
        %v6973 = vunpack.c.l.b16 %v6774
        %v6974 = vunpack.c.h.b16 %v6774
        %v6975 = vunpack.c.l.b16 %v6775
        %v6976 = vunpack.c.h.b16 %v6775
        %v6977 = vunpack.c.l.b16 %v6776
        %v6978 = vunpack.c.h.b16 %v6776
        %v6979 = vunpack.c.l.b16 %v6777
        %v6980 = vunpack.c.h.b16 %v6777
        %v6981 = vunpack.c.l.b16 %v6778
        %v6982 = vunpack.c.h.b16 %v6778
        %v6983 = vunpack.c.l.b16 %v6779
        %v6984 = vunpack.c.h.b16 %v6779
        %v6985 = vunpack.c.l.b16 %v6780
        %v6986 = vunpack.c.h.b16 %v6780
        %v6987 = vunpack.c.l.b16 %v6781
        %v6988 = vunpack.c.h.b16 %v6781
        %v6989 = vunpack.c.l.b16 %v6782
        %v6990 = vunpack.c.h.b16 %v6782
        %v6991 = vunpack.c.l.b16 %v6783
        %v6992 = vunpack.c.h.b16 %v6783
        %v6993 = vunpack.c.l.b16 %v6784
        %v6994 = vunpack.c.h.b16 %v6784
        %v6995 = vpack.c.b16 %v6859, %v6855
        %v6996 = vpack.c.b16 %v6860, %v6856
        %v6997 = vpack.c.b16 %v6861, %v6857
        %v6998 = vpack.c.b16 %v6862, %v6858
        %v6999 = vpack.c.b16 %v6867, %v6863
        %v7000 = vpack.c.b16 %v6868, %v6864
        %v7001 = vpack.c.b16 %v6869, %v6865
        %v7002 = vpack.c.b16 %v6870, %v6866
        %v7003 = vpack.c.b16 %v6875, %v6871
        %v7004 = vpack.c.b16 %v6876, %v6872
        %v7005 = vpack.c.b16 %v6877, %v6873
        %v7006 = vpack.c.b16 %v6878, %v6874
        %v7007 = vpack.c.b16 %v6883, %v6879
        %v7008 = vpack.c.b16 %v6884, %v6880
        %v7009 = vpack.c.b16 %v6885, %v6881
        %v7010 = vpack.c.b16 %v6886, %v6882
        %v7011 = vpack.c.b16 %v6891, %v6887
        %v7012 = vpack.c.b16 %v6892, %v6888
        %v7013 = vpack.c.b16 %v6893, %v6889
        %v7014 = vpack.c.b16 %v6894, %v6890
        %v7015 = vpack.c.b16 %v6899, %v6895
        %v7016 = vpack.c.b16 %v6900, %v6896
        %v7017 = vpack.c.b16 %v6901, %v6897
        %v7018 = vpack.c.b16 %v6902, %v6898
        %v7019 = vpack.c.b16 %v6907, %v6903
        %v7020 = vpack.c.b16 %v6908, %v6904
        %v7021 = vpack.c.b16 %v6909, %v6905
        %v7022 = vpack.c.b16 %v6910, %v6906
        %v7023 = vpack.c.b16 %v6915, %v6911
        %v7024 = vpack.c.b16 %v6916, %v6912
        %v7025 = vpack.c.b16 %v6917, %v6913
        %v7026 = vpack.c.b16 %v6918, %v6914
        %v7027 = vpack.c.b16 %v6923, %v6919
        %v7028 = vpack.c.b16 %v6924, %v6920
        %v7029 = vpack.c.b16 %v6925, %v6921
        %v7030 = vpack.c.b16 %v6926, %v6922
        %v7031 = vpack.c.b16 %v6931, %v6927
        %v7032 = vpack.c.b16 %v6932, %v6928
        %v7033 = vpack.c.b16 %v6933, %v6929
        %v7034 = vpack.c.b16 %v6934, %v6930
        %v7035 = vpack.c.b16 %v6939, %v6935
        %v7036 = vpack.c.b16 %v6940, %v6936
        %v7037 = vpack.c.b16 %v6941, %v6937
        %v7038 = vpack.c.b16 %v6942, %v6938
        %v7039 = vpack.c.b16 %v6947, %v6943
        %v7040 = vpack.c.b16 %v6948, %v6944
        %v7041 = vpack.c.b16 %v6949, %v6945
        %v7042 = vpack.c.b16 %v6950, %v6946
        %v7043 = vpack.c.b16 %v6955, %v6951
        %v7044 = vpack.c.b16 %v6956, %v6952
        %v7045 = vpack.c.b16 %v6957, %v6953
        %v7046 = vpack.c.b16 %v6958, %v6954
        %v7047 = vpack.c.b16 %v6963, %v6959
        %v7048 = vpack.c.b16 %v6964, %v6960
        %v7049 = vpack.c.b16 %v6965, %v6961
        %v7050 = vpack.c.b16 %v6966, %v6962
        %v7051 = vpack.c.b16 %v6971, %v6967
        %v7052 = vpack.c.b16 %v6972, %v6968
        %v7053 = vpack.c.b16 %v6973, %v6969
        %v7054 = vpack.c.b16 %v6974, %v6970
        %v7055 = vpack.c.b16 %v6979, %v6975
        %v7056 = vpack.c.b16 %v6980, %v6976
        %v7057 = vpack.c.b16 %v6981, %v6977
        %v7058 = vpack.c.b16 %v6982, %v6978
        %v7059 = vpack.c.b16 %v6987, %v6983
        %v7060 = vpack.c.b16 %v6988, %v6984
        %v7061 = vpack.c.b16 %v6989, %v6985
        %v7062 = vpack.c.b16 %v6990, %v6986
        %v7063 = vpack.c.b16 %v6991, %v6991
        %v7064 = vpack.c.b16 %v6992, %v6992
        %v7065 = vpack.c.b16 %v6993, %v6993
        %v7066 = vpack.c.b16 %v6994, %v6994
        %v7136 = vsel %vm3429, %v6709, 0
        %v7139 = vsel %vm3433, %v7063, 0
        %v7142 = vsel %vm3433, %v7064, 0
        %v7145 = vsel %vm3433, %v7065, 0
        %v7148 = vsel %vm3433, %v7066, 0
        %7150 = vmatpush.bf16.msra.mxu0 %v7023
        %7151 = vmatpush.bf16.msra.mxu0 %v7019
        %7152 = vmatpush.bf16.msra.mxu0 %v7015
        %7153 = vmatpush.bf16.msra.mxu0 %v7011
        %7154 = vmatpush.bf16.msra.mxu0 %v7007
        %7155 = vmatpush.bf16.msra.mxu0 %v7003
        %7156 = vmatpush.bf16.msra.mxu0 %v6999
        %7157 = vmatpush.bf16.msra.mxu0 %v6995
        %7158 = vmatmul.bf16.gmra.mxu0 %v6707
        %v7159 = vpop.f32.mrf.mxu0
        %v7160 = vadd.f32 0.0, %v7159
        %v7161 = vpop.f32.mrf.mxu0
        %7162 = vdwg.mxu0
        %7163 = vmatpush.bf16.msra.mxu0 %v7055
        %7164 = vmatpush.bf16.msra.mxu0 %v7051
        %7165 = vmatpush.bf16.msra.mxu0 %v7047
        %7166 = vmatpush.bf16.msra.mxu0 %v7043
        %7167 = vmatpush.bf16.msra.mxu0 %v7039
        %7168 = vmatpush.bf16.msra.mxu0 %v7035
        %7169 = vmatpush.bf16.msra.mxu0 %v7031
        %7170 = vmatpush.bf16.msra.mxu0 %v7027
        %7171 = vmatmul.bf16.gmra.mxu0 %v6708
        %v7172 = vpop.f32.mrf.mxu0
        %v7173 = vadd.f32 %v7160, %v7172
        %v7174 = vpop.f32.mrf.mxu0
        %7175 = vdwg.mxu0
        %7176 = vmatpush.bf16.msra.mxu0 0
        %7177 = vmatpush.bf16.msra.mxu0 0
        %7178 = vmatpush.bf16.msra.mxu0 0
        %7179 = vmatpush.bf16.msra.mxu0 0
        %7180 = vmatpush.bf16.msra.mxu0 0
        %7181 = vmatpush.bf16.msra.mxu0 0
        %7182 = vmatpush.bf16.msra.mxu0 %v7139
        %7183 = vmatpush.bf16.msra.mxu0 %v7059
        %7184 = vmatmul.bf16.gmra.mxu0 %v7136
        %v7185 = vpop.f32.mrf.mxu0
        %v7186 = vadd.f32 %v7173, %v7185
        %v7187 = vpop.f32.mrf.mxu0
        %7188 = vdwg.mxu0
        %7189 = vmatpush.bf16.msra.mxu0 %v7024
        %7190 = vmatpush.bf16.msra.mxu0 %v7020
        %7191 = vmatpush.bf16.msra.mxu0 %v7016
        %7192 = vmatpush.bf16.msra.mxu0 %v7012
        %7193 = vmatpush.bf16.msra.mxu0 %v7008
        %7194 = vmatpush.bf16.msra.mxu0 %v7004
        %7195 = vmatpush.bf16.msra.mxu0 %v7000
        %7196 = vmatpush.bf16.msra.mxu0 %v6996
        %7197 = vmatmul.bf16.gmra.mxu0 %v6707
        %v7198 = vpop.f32.mrf.mxu0
        %v7199 = vadd.f32 0.0, %v7198
        %v7200 = vpop.f32.mrf.mxu0
        %7201 = vdwg.mxu0
        %7202 = vmatpush.bf16.msra.mxu0 %v7056
        %7203 = vmatpush.bf16.msra.mxu0 %v7052
        %7204 = vmatpush.bf16.msra.mxu0 %v7048
        %7205 = vmatpush.bf16.msra.mxu0 %v7044
        %7206 = vmatpush.bf16.msra.mxu0 %v7040
        %7207 = vmatpush.bf16.msra.mxu0 %v7036
        %7208 = vmatpush.bf16.msra.mxu0 %v7032
        %7209 = vmatpush.bf16.msra.mxu0 %v7028
        %7210 = vmatmul.bf16.gmra.mxu0 %v6708
        %v7211 = vpop.f32.mrf.mxu0
        %v7212 = vadd.f32 %v7199, %v7211
        %v7213 = vpop.f32.mrf.mxu0
        %7214 = vdwg.mxu0
        %7215 = vmatpush.bf16.msra.mxu0 0
        %7216 = vmatpush.bf16.msra.mxu0 0
        %7217 = vmatpush.bf16.msra.mxu0 0
        %7218 = vmatpush.bf16.msra.mxu0 0
        %7219 = vmatpush.bf16.msra.mxu0 0
        %7220 = vmatpush.bf16.msra.mxu0 0
        %7221 = vmatpush.bf16.msra.mxu0 %v7142
        %7222 = vmatpush.bf16.msra.mxu0 %v7060
        %7223 = vmatmul.bf16.gmra.mxu0 %v7136
        %v7224 = vpop.f32.mrf.mxu0
        %v7225 = vadd.f32 %v7212, %v7224
        %v7226 = vpop.f32.mrf.mxu0
        %7227 = vdwg.mxu0
        %7228 = vmatpush.bf16.msra.mxu0 %v7025
        %7229 = vmatpush.bf16.msra.mxu0 %v7021
        %7230 = vmatpush.bf16.msra.mxu0 %v7017
        %7231 = vmatpush.bf16.msra.mxu0 %v7013
        %7232 = vmatpush.bf16.msra.mxu0 %v7009
        %7233 = vmatpush.bf16.msra.mxu0 %v7005
        %7234 = vmatpush.bf16.msra.mxu0 %v7001
        %7235 = vmatpush.bf16.msra.mxu0 %v6997
        %7236 = vmatmul.bf16.gmra.mxu0 %v6707
        %v7237 = vpop.f32.mrf.mxu0
        %v7238 = vadd.f32 0.0, %v7237
        %v7239 = vpop.f32.mrf.mxu0
        %7240 = vdwg.mxu0
        %7241 = vmatpush.bf16.msra.mxu0 %v7057
        %7242 = vmatpush.bf16.msra.mxu0 %v7053
        %7243 = vmatpush.bf16.msra.mxu0 %v7049
        %7244 = vmatpush.bf16.msra.mxu0 %v7045
        %7245 = vmatpush.bf16.msra.mxu0 %v7041
        %7246 = vmatpush.bf16.msra.mxu0 %v7037
        %7247 = vmatpush.bf16.msra.mxu0 %v7033
        %7248 = vmatpush.bf16.msra.mxu0 %v7029
        %7249 = vmatmul.bf16.gmra.mxu0 %v6708
        %v7250 = vpop.f32.mrf.mxu0
        %v7251 = vadd.f32 %v7238, %v7250
        %v7252 = vpop.f32.mrf.mxu0
        %7253 = vdwg.mxu0
        %7254 = vmatpush.bf16.msra.mxu0 0
        %7255 = vmatpush.bf16.msra.mxu0 0
        %7256 = vmatpush.bf16.msra.mxu0 0
        %7257 = vmatpush.bf16.msra.mxu0 0
        %7258 = vmatpush.bf16.msra.mxu0 0
        %7259 = vmatpush.bf16.msra.mxu0 0
        %7260 = vmatpush.bf16.msra.mxu0 %v7145
        %7261 = vmatpush.bf16.msra.mxu0 %v7061
        %7262 = vmatmul.bf16.gmra.mxu0 %v7136
        %v7263 = vpop.f32.mrf.mxu0
        %v7264 = vadd.f32 %v7251, %v7263
        %v7265 = vpop.f32.mrf.mxu0
        %7266 = vdwg.mxu0
        %7267 = vmatpush.bf16.msra.mxu0 %v7026
        %7268 = vmatpush.bf16.msra.mxu0 %v7022
        %7269 = vmatpush.bf16.msra.mxu0 %v7018
        %7270 = vmatpush.bf16.msra.mxu0 %v7014
        %7271 = vmatpush.bf16.msra.mxu0 %v7010
        %7272 = vmatpush.bf16.msra.mxu0 %v7006
        %7273 = vmatpush.bf16.msra.mxu0 %v7002
        %7274 = vmatpush.bf16.msra.mxu0 %v6998
        %7275 = vmatmul.bf16.gmra.mxu0 %v6707
        %v7276 = vpop.f32.mrf.mxu0
        %v7277 = vadd.f32 0.0, %v7276
        %v7278 = vpop.f32.mrf.mxu0
        %7279 = vdwg.mxu0
        %7280 = vmatpush.bf16.msra.mxu0 %v7058
        %7281 = vmatpush.bf16.msra.mxu0 %v7054
        %7282 = vmatpush.bf16.msra.mxu0 %v7050
        %7283 = vmatpush.bf16.msra.mxu0 %v7046
        %7284 = vmatpush.bf16.msra.mxu0 %v7042
        %7285 = vmatpush.bf16.msra.mxu0 %v7038
        %7286 = vmatpush.bf16.msra.mxu0 %v7034
        %7287 = vmatpush.bf16.msra.mxu0 %v7030
        %7288 = vmatmul.bf16.gmra.mxu0 %v6708
        %v7289 = vpop.f32.mrf.mxu0
        %v7290 = vadd.f32 %v7277, %v7289
        %v7291 = vpop.f32.mrf.mxu0
        %7292 = vdwg.mxu0
        %7293 = vmatpush.bf16.msra.mxu0 0
        %7294 = vmatpush.bf16.msra.mxu0 0
        %7295 = vmatpush.bf16.msra.mxu0 0
        %7296 = vmatpush.bf16.msra.mxu0 0
        %7297 = vmatpush.bf16.msra.mxu0 0
        %7298 = vmatpush.bf16.msra.mxu0 0
        %7299 = vmatpush.bf16.msra.mxu0 %v7148
        %7300 = vmatpush.bf16.msra.mxu0 %v7062
        %7301 = vmatmul.bf16.gmra.mxu0 %v7136
        %v7302 = vpop.f32.mrf.mxu0
        %v7303 = vadd.f32 %v7290, %v7302
        %v7304 = vpop.f32.mrf.mxu0
        %7305 = vdwg.mxu0
        %v7306 = vadd.f32 %v6710, %v7186
        %v7307 = vadd.f32 %v6711, %v7225
        %v7308 = vadd.f32 %v6712, %v7264
        %v7309 = vadd.f32 %v6713, %v7303
        %7310 = vst [vmem:[#allocation3] sm:$0xff] %v7306
        %7311 = vst [vmem:[#allocation3 + $0x8] sm:$0xff] %v7307
        %7312 = vst [vmem:[#allocation3 + $0x10] sm:$0xff] %v7308
        %7313 = vst.msk [vmem:[#allocation3 + $0x18] sm:$0xff] %vm3609, %v7309
        %p7314 = scmp.eq.s32.totalorder %s22, 1
        // Predicated region
        $region65: #{net_forward.1} parent=59 // pred_check
          %p7315 = pneg %p7314
        $region66: #{net_forward.1} parent=59 // pred_check_branch
          %7317 = sbr.rel (%p7315) target = $region68
        $region67: #{net_forward.1} parent=59 // pred_region
          %v7318 = vld [vmem:[#allocation3] sm:$0xff]
          %v7319 = vld [vmem:[#allocation3 + $0x8] sm:$0xff]
          %v7320 = vld [vmem:[#allocation3 + $0x10] sm:$0xff]
          %v7321 = vld [vmem:[#allocation3 + $0x18] sm:$0xff]
          %v7322 = vld [vmem:[%s7] sm:$0xf]
          %v7324 = vperm.slane %v7322, 0
          %v7325 = vperm.slane %v7322, 1
          %v7326 = vperm.slane %v7322, 2
          %v7327 = vperm.slane %v7322, 3
          %v7332 = vadd.f32 %v7318, %v7324
          %v7333 = vadd.f32 %v7319, %v7325
          %v7334 = vadd.f32 %v7320, %v7326
          %v7335 = vadd.f32 %v7321, %v7327
          %v7336 = vmax.f32 %v7332, 0.0
          %v7337 = vmax.f32 %v7333, 0.0
          %v7338 = vmax.f32 %v7334, 0.0
          %v7339 = vmax.f32 %v7335, 0.0
          %v7340 = vld [vmem:[%s8] sm:$0xff]
          %v7341 = vld [vmem:[%s8 + $0x8] sm:$0xff]
          %v7342 = vld [vmem:[%s8 + $0x10] sm:$0xff]
          %v7343 = vld [vmem:[%s8 + $0x18] sm:$0xff]
          %v7344 = vld [vmem:[%s8 + $0x20] sm:$0xff]
          %v7345 = vld [vmem:[%s8 + $0x28] sm:$0xff]
          %v7346 = vld [vmem:[%s8 + $0x30] sm:$0xff]
          %v7347 = vld [vmem:[%s8 + $0x38] sm:$0xff]
          %v7348 = vld [vmem:[%s8 + $0x40] sm:$0xff]
          %v7349 = vld [vmem:[%s8 + $0x48] sm:$0xff]
          %v7350 = vld [vmem:[%s8 + $0x50] sm:$0xff]
          %v7351 = vld [vmem:[%s8 + $0x58] sm:$0xff]
          %v7352 = vld [vmem:[%s8 + $0x60] sm:$0xff]
          %v7353 = vld [vmem:[%s8 + $0x68] sm:$0xff]
          %v7354 = vld [vmem:[%s8 + $0x70] sm:$0xff]
          %v7355 = vld [vmem:[%s8 + $0x78] sm:$0xff]
          %v7356 = vld [vmem:[%s8 + $0x80] sm:$0xff]
          %v7357 = vld [vmem:[%s8 + $0x88] sm:$0xff]
          %v7358 = vld [vmem:[%s8 + $0x90] sm:$0xff]
          %v7359 = vld [vmem:[%s8 + $0x98] sm:$0xff]
          %v7360 = vld [vmem:[%s8 + $0xa0] sm:$0xff]
          %v7361 = vld [vmem:[%s8 + $0xa8] sm:$0xff]
          %v7362 = vld [vmem:[%s8 + $0xb0] sm:$0xff]
          %v7363 = vld [vmem:[%s8 + $0xb8] sm:$0xff]
          %v7364 = vld [vmem:[%s8 + $0xc0] sm:$0xff]
          %v7365 = vld [vmem:[%s8 + $0xc8] sm:$0xff]
          %v7366 = vld [vmem:[%s8 + $0xd0] sm:$0xff]
          %v7367 = vld [vmem:[%s8 + $0xd8] sm:$0xff]
          %v7368 = vld [vmem:[%s8 + $0xe0] sm:$0xff]
          %v7369 = vld [vmem:[%s8 + $0xe8] sm:$0xff]
          %v7370 = vld [vmem:[%s8 + $0xf0] sm:$0xff]
          %v7371 = vld [vmem:[%s8 + $0xf8] sm:$0xff]
          %v7372 = vld [vmem:[%s8 + $0x100] sm:$0xff]
          %v7373 = vld [vmem:[%s8 + $0x108] sm:$0xff]
          %v7374 = vld [vmem:[%s8 + $0x110] sm:$0xff]
          %v7375 = vld [vmem:[%s8 + $0x118] sm:$0xff]
          %v7376 = vld [vmem:[%s8 + $0x120] sm:$0xff]
          %v7377 = vld [vmem:[%s8 + $0x128] sm:$0xff]
          %v7378 = vld [vmem:[%s8 + $0x130] sm:$0xff]
          %v7379 = vld [vmem:[%s8 + $0x138] sm:$0xff]
          %v7380 = vld [vmem:[%s8 + $0x140] sm:$0xff]
          %v7381 = vld [vmem:[%s8 + $0x148] sm:$0xff]
          %v7382 = vld [vmem:[%s8 + $0x150] sm:$0xff]
          %v7383 = vld [vmem:[%s8 + $0x158] sm:$0xff]
          %v7384 = vld [vmem:[%s8 + $0x160] sm:$0xff]
          %v7385 = vld [vmem:[%s8 + $0x168] sm:$0xff]
          %v7386 = vld [vmem:[%s8 + $0x170] sm:$0xff]
          %v7387 = vld [vmem:[%s8 + $0x178] sm:$0xff]
          %v7388 = vld [vmem:[%s8 + $0x180] sm:$0xff]
          %v7389 = vld [vmem:[%s8 + $0x188] sm:$0xff]
          %v7390 = vld [vmem:[%s8 + $0x190] sm:$0xff]
          %v7391 = vld [vmem:[%s8 + $0x198] sm:$0xff]
          %v7392 = vld [vmem:[%s8 + $0x1a0] sm:$0xff]
          %v7393 = vld [vmem:[%s8 + $0x1a8] sm:$0xff]
          %v7394 = vld [vmem:[%s8 + $0x1b0] sm:$0xff]
          %v7395 = vld [vmem:[%s8 + $0x1b8] sm:$0xff]
          %v7396 = vld [vmem:[%s8 + $0x1c0] sm:$0xff]
          %v7397 = vld [vmem:[%s8 + $0x1c8] sm:$0xff]
          %v7398 = vld [vmem:[%s8 + $0x1d0] sm:$0xff]
          %v7399 = vld [vmem:[%s8 + $0x1d8] sm:$0xff]
          %v7400 = vld [vmem:[%s8 + $0x1e0] sm:$0xff]
          %v7401 = vld [vmem:[%s8 + $0x1e8] sm:$0xff]
          %v7402 = vld [vmem:[%s8 + $0x1f0] sm:$0xf]
          %v7403 = vld [vmem:[%s9] sm:$0x1]
          %v7405 = vperm.slane %v7403, 0
          %v7408 = vsel %vm3609, %v7339, 0
          %v7411 = vsel %vm3433, %v7402, 0
          %7413 = vmatpush.msra.mxu0 %v7355
          %7414 = vmatpush.msra.mxu0 %v7354
          %7415 = vmatpush.msra.mxu0 %v7353
          %7416 = vmatpush.msra.mxu0 %v7352
          %7417 = vmatpush.msra.mxu0 %v7351
          %7418 = vmatpush.msra.mxu0 %v7350
          %7419 = vmatpush.msra.mxu0 %v7349
          %7420 = vmatpush.msra.mxu0 %v7348
          %7421 = vmatpush.msra.mxu0 %v7347
          %7422 = vmatpush.msra.mxu0 %v7346
          %7423 = vmatpush.msra.mxu0 %v7345
          %7424 = vmatpush.msra.mxu0 %v7344
          %7425 = vmatpush.msra.mxu0 %v7343
          %7426 = vmatpush.msra.mxu0 %v7342
          %7427 = vmatpush.msra.mxu0 %v7341
          %7428 = vmatpush.msra.mxu0 %v7340
          %7429 = vmatmul.f32.gmra.mxu0 %v7336
          %v7430 = vpop.f32.mrf.mxu0
          %v7431 = vadd.f32 %v7405, %v7430
          %7432 = vdwg.mxu0
          %7433 = vmatpush.msra.mxu0 %v7371
          %7434 = vmatpush.msra.mxu0 %v7370
          %7435 = vmatpush.msra.mxu0 %v7369
          %7436 = vmatpush.msra.mxu0 %v7368
          %7437 = vmatpush.msra.mxu0 %v7367
          %7438 = vmatpush.msra.mxu0 %v7366
          %7439 = vmatpush.msra.mxu0 %v7365
          %7440 = vmatpush.msra.mxu0 %v7364
          %7441 = vmatpush.msra.mxu0 %v7363
          %7442 = vmatpush.msra.mxu0 %v7362
          %7443 = vmatpush.msra.mxu0 %v7361
          %7444 = vmatpush.msra.mxu0 %v7360
          %7445 = vmatpush.msra.mxu0 %v7359
          %7446 = vmatpush.msra.mxu0 %v7358
          %7447 = vmatpush.msra.mxu0 %v7357
          %7448 = vmatpush.msra.mxu0 %v7356
          %7449 = vmatmul.f32.gmra.mxu0 %v7337
          %v7450 = vpop.f32.mrf.mxu0
          %v7451 = vadd.f32 %v7431, %v7450
          %7452 = vdwg.mxu0
          %7453 = vmatpush.msra.mxu0 %v7387
          %7454 = vmatpush.msra.mxu0 %v7386
          %7455 = vmatpush.msra.mxu0 %v7385
          %7456 = vmatpush.msra.mxu0 %v7384
          %7457 = vmatpush.msra.mxu0 %v7383
          %7458 = vmatpush.msra.mxu0 %v7382
          %7459 = vmatpush.msra.mxu0 %v7381
          %7460 = vmatpush.msra.mxu0 %v7380
          %7461 = vmatpush.msra.mxu0 %v7379
          %7462 = vmatpush.msra.mxu0 %v7378
          %7463 = vmatpush.msra.mxu0 %v7377
          %7464 = vmatpush.msra.mxu0 %v7376
          %7465 = vmatpush.msra.mxu0 %v7375
          %7466 = vmatpush.msra.mxu0 %v7374
          %7467 = vmatpush.msra.mxu0 %v7373
          %7468 = vmatpush.msra.mxu0 %v7372
          %7469 = vmatmul.f32.gmra.mxu0 %v7338
          %v7470 = vpop.f32.mrf.mxu0
          %v7471 = vadd.f32 %v7451, %v7470
          %7472 = vdwg.mxu0
          %7473 = vmatpush.msra.mxu0 0.0
          %7474 = vmatpush.msra.mxu0 %v7411
          %7475 = vmatpush.msra.mxu0 %v7401
          %7476 = vmatpush.msra.mxu0 %v7400
          %7477 = vmatpush.msra.mxu0 %v7399
          %7478 = vmatpush.msra.mxu0 %v7398
          %7479 = vmatpush.msra.mxu0 %v7397
          %7480 = vmatpush.msra.mxu0 %v7396
          %7481 = vmatpush.msra.mxu0 %v7395
          %7482 = vmatpush.msra.mxu0 %v7394
          %7483 = vmatpush.msra.mxu0 %v7393
          %7484 = vmatpush.msra.mxu0 %v7392
          %7485 = vmatpush.msra.mxu0 %v7391
          %7486 = vmatpush.msra.mxu0 %v7390
          %7487 = vmatpush.msra.mxu0 %v7389
          %7488 = vmatpush.msra.mxu0 %v7388
          %7489 = vmatmul.f32.gmra.mxu0 %v7408
          %v7490 = vpop.f32.mrf.mxu0
          %v7491 = vadd.f32 %v7471, %v7490
          %7492 = vdwg.mxu0
          %v7493 = vmax.f32 %v7491, 0.0
          %vm7494 = vcmask 211968
          %7495 = vst.msk [vmem:[#allocation4] sm:$0xff] %vm7494, %v7493
        $region68: #{net_forward.1} parent=59 // pred_fallthru
          _
        // Predicated region
        $region69: #{net_forward.1} parent=59 // pred_check
          %p7496 = pneg %p250
        $region70: #{net_forward.1} parent=59 // pred_check_branch
          %7498 = sbr.rel (%p7496) target = $region72
        $region71: #{net_forward.1} parent=59 // pred_region
          %7500 = vsyncadd [#allocation5], 0
          %s7502 = sshll.u32 [#allocation4], 4
          %s7503 = int_to_ptr.vmem [resolvable:$true] %s7502
          %s7504 = sshll.u32 %s10, 4
          %s7505 = int_to_ptr.hbm [resolvable:$true] %s7504
          %7507 = dma.vmem_to_hbm [thread:$0]  %s7503, 128, %s7505, [#allocation5]
        $region72: #{net_forward.1} parent=59 // pred_fallthru
          _
        // Predicated region
        $region73: #{net_forward.1} parent=59 // pred_check
          %p7508 = pneg %p250
        $region74: #{net_forward.1} parent=59 // pred_check_branch
          %7510 = sbr.rel (%p7508) target = $region76
        $region75: #{net_forward.1} parent=59 // pred_region
          %7512 = dma.done [#allocation5], 128
        $region76: #{net_forward.1} parent=59 // pred_fallthru
          _
      $region60: #{net_forward.1} parent=5 // pred_fallthru
        _
      %p7513 = scmp.le.s32.totalorder 2, %s17
      // Predicated region
      $region77: #{net_forward.1} parent=5 // pred_check
        %p7514 = pneg %p7513
      $region78: #{net_forward.1} parent=5 // pred_check_branch
        %7516 = sbr.rel (%p7514) target = $region80
      $region79: #{net_forward.1} parent=5 // pred_region
        %s7517 = ssub.s32 %s17, 2
      $region80: #{net_forward.1} parent=5 // pred_fallthru
        _
    $region6: #{net_forward.1} parent=1 // loop_footer
      %s21 = sadd.s32 1, %s17
    $region7: #{net_forward.1} parent=1 // loop_footer_branch
      %16 = sbr.rel target = $region3
    $region8: #{net_forward.1} parent=1 // loop_exit
      _
    %7518 = vsyncpa [#allocation5], 1
    %s7519 = scalar_lea.sflag [#allocation5], 1
    %7520 = vsyncpa %s7519, 1

</llo_original>
